<compile_context>
chip_gen: v7x
topology: tpu7x:2x2x1
jax: 0.10.0
libtpu: 0.0.40
codegen_flags: <defaults>
</compile_context>

<pallas_src>
import math
import functools

import jax
import jax.numpy as jnp
from jax.experimental import pallas as pl
from jax.experimental.pallas import tpu as pltpu

NUM_HEADS = 8
LN_EPS = 1e-5


# ----------------------------- math helpers (pure jnp, f32) ------------------

def _layernorm(x, g, b):
    # x: (N, E); g/b broadcastable (1, E). All statistics in f32.
    mu = jnp.mean(x, axis=-1, keepdims=True)
    var = jnp.mean((x - mu) ** 2, axis=-1, keepdims=True)
    return (x - mu) * jax.lax.rsqrt(var + LN_EPS) * g + b


def _new_gelu(x):
    c = math.sqrt(2.0 / math.pi)
    # x*x*x instead of jnp.power(x, 3.0): two VALU mults, keeps the lone EUP slot for tanh.
    return 0.5 * x * (1.0 + jnp.tanh(c * (x + 0.044715 * (x * x * x))))


# ----------------------------- in-kernel attention core ----------------------

def _heads_attention(qp, kp, vp, bb, s, att_ref):
    """Multi-head SDPA on projected activations, all heads in one batched einsum pair.

    qp/kp/vp: (bb*s, E); qp already carries the 1/sqrt(d) scale (folded into the
    Q-projection weights at pack time). Heads are gathered into the einsum batch
    dim (NUM_HEADS*bb): the head slices keep the last dim, reshapes only split
    major dims, and the concat runs along the most-major axis (cheap). The
    per-head context is written into its lane slice of the bf16 VMEM scratch
    `att_ref` instead of a jnp.concatenate.
    """
    n, e = qp.shape
    d = e // NUM_HEADS

    def to_heads(x):
        x = x.astype(jnp.bfloat16)
        parts = [x[:, h * d:(h + 1) * d].reshape(1, bb, s, d) for h in range(NUM_HEADS)]
        return jnp.concatenate(parts, axis=0).reshape(NUM_HEADS * bb, s, d)

    qh = to_heads(qp)
    kh = to_heads(kp)
    vh = to_heads(vp)

    # scores / softmax in f32 (elementwise stays f32; only matmul inputs are bf16)
    sc = jnp.einsum('bqd,bkd->bqk', qh, kh, preferred_element_type=jnp.float32)
    m = jnp.max(sc, axis=-1, keepdims=True)
    p = jnp.exp(sc - m)
    denom = jnp.sum(p, axis=-1, keepdims=True)
    r = pl.reciprocal(denom, approx=True)
    r = r * (2.0 - denom * r)        # one Newton-Raphson step: near-exact, still EUP-fed
    p = p * r

    ctx = jnp.einsum('bqk,bkd->bqd', p.astype(jnp.bfloat16), vh,
                     preferred_element_type=jnp.float32)            # (H*bb, s, d)
    ctx = ctx.reshape(NUM_HEADS, bb * s, d)
    for h in range(NUM_HEADS):
        att_ref[:, h * d:(h + 1) * d] = ctx[h].astype(att_ref.dtype)


# ----------------------------- Pallas kernel ---------------------------------

def fusion_block_kernel(q_ref, k_ref, v_ref, wqkv1_ref, bqkv1_ref,
                        w_ref, b_ref, ln_ref, o_ref, att_ref):
    bb, s, e = v_ref.shape
    n = bb * s

    q = q_ref[...].reshape(n, e)
    k = k_ref[...].reshape(n, e)
    v = v_ref[...].reshape(n, e)
    ln = ln_ref[...]   # (10, E): 5 layernorms x (gamma, beta), f32
    b = b_ref[...]     # (7, E): packed biases [bo1, bq2, bk2, bv2, bo2, b1, b2], f32

    def proj(x, w_bf16, bias_f32):
        # bf16 matmul inputs, f32 accumulation, f32 bias add.
        return jnp.dot(x.astype(jnp.bfloat16), w_bf16,
                       preferred_element_type=jnp.float32) + bias_f32

    # ---- fusion1: self-attention over LN1(v); fused (E, 3E) bf16 QKV projection ----
    v_n = _layernorm(v, ln[0:1], ln[1:2])
    qkv = proj(v_n, wqkv1_ref[...], bqkv1_ref[...])
    _heads_attention(qkv[:, 0:e], qkv[:, e:2 * e], qkv[:, 2 * e:3 * e], bb, s, att_ref)
    v = v + proj(att_ref[...], w_ref[0], b[0:1])

    # ---- fusion2: cross-attention (LNq(q), LNk(k), LNv(v)) ----
    v_n = _layernorm(v, ln[2:3], ln[3:4])
    q_n = _layernorm(q, ln[4:5], ln[5:6])
    k_n = _layernorm(k, ln[6:7], ln[7:8])
    qp = proj(q_n, w_ref[1], b[1:2])
    kp = proj(k_n, w_ref[2], b[2:3])
    vp = proj(v_n, w_ref[3], b[3:4])
    _heads_attention(qp, kp, vp, bb, s, att_ref)
    v = v + proj(att_ref[...], w_ref[4], b[4:5])

    # ---- MLP (hidden = E, dropout p=0.0 is a no-op) ----
    v_n = _layernorm(v, ln[8:9], ln[9:10])
    h = proj(v_n, w_ref[5], b[5:6])
    h = _new_gelu(h)                       # f32 elementwise
    v = v + proj(h, w_ref[6], b[6:7])

    o_ref[...] = v.reshape(bb, s, e).astype(o_ref.dtype)


# ----------------------------- wrapper ----------------------------------------

def _vmem_capacity_bytes():
    try:
        return int(pltpu.get_tpu_info().vmem_capacity_bytes)
    except Exception:
        return 64 * 1024 * 1024   # conservative (v7x-sized) fallback


def _pick_block_batch(B, S, E, resident_param_bytes, vmem_cap):
    """VMEM-aware rows-per-step. Activation blocks (q,k,v in + out, double-buffered)
    plus ~12 row-sized f32 intermediates must fit next to the resident parameter
    slabs, with headroom for compiler scratch."""
    budget = int(0.6 * vmem_cap) - resident_param_bytes
    per_row_bytes = (4 * 2 + 12) * E * 4
    rows_cap = max(budget // per_row_bytes, S)
    bb = max(1, min(B, rows_cap // S))
    # Keep >= 2 grid steps when B allows it so v7x's second TensorCore gets work
    # (per-step overhead ~0.35us is negligible next to a fused block of this size).
    if B >= 2:
        bb = min(bb, max(B // 2, 1))
    while B % bb != 0:
        bb -= 1
    return max(bb, 1)


def fusion_block(q, k, v, packed, block_batch=None):
    B, S, E = q.shape
    assert E % NUM_HEADS == 0, "embed_size must be divisible by NUM_HEADS"
    assert k.shape == (B, S, E) and v.shape == (B, S, E)

    wqkv1 = packed["wqkv1"]    # (E, 3E) bf16 (Q columns pre-scaled by 1/sqrt(d))
    bqkv1 = packed["bqkv1"]    # (1, 3E) f32
    w_slab = packed["w_slab"]  # (7, E, E) bf16
    b_slab = packed["b_slab"]  # (7, E)   f32
    ln_slab = packed["ln_slab"]  # (10, E) f32

    vmem_cap = _vmem_capacity_bytes()
    weight_bytes = (wqkv1.size * 2 + w_slab.size * 2
                    + (bqkv1.size + b_slab.size + ln_slab.size) * 4)

    if block_batch is None:
        block_batch = _pick_block_batch(B, S, E, weight_bytes, vmem_cap)
    BB = block_batch
    assert B % BB == 0
    vmem_limit = max(32 * 1024 * 1024, min(int(0.75 * vmem_cap), 100 * 1024 * 1024))

    def call(single_buffer_params):
        def act_spec():
            return pl.BlockSpec((BB, S, E), lambda bidx: (bidx, 0, 0))

        def resident(arr):
            nd = arr.ndim
            index_map = lambda bidx: (0,) * nd   # grid-invariant -> fetched once
            if single_buffer_params:
                return pl.BlockSpec(arr.shape, index_map, pipeline_mode=pl.Buffered(1))
            return pl.BlockSpec(arr.shape, index_map)

        return pl.pallas_call(
            fusion_block_kernel,
            out_shape=jax.ShapeDtypeStruct((B, S, E), q.dtype),
            grid_spec=pltpu.PrefetchScalarGridSpec(
                num_scalar_prefetch=0,
                grid=(B // BB,),
                in_specs=[
                    act_spec(), act_spec(), act_spec(),
                    resident(wqkv1), resident(bqkv1),
                    resident(w_slab), resident(b_slab), resident(ln_slab),
                ],
                out_specs=pl.BlockSpec((BB, S, E), lambda bidx: (bidx, 0, 0)),
                scratch_shapes=[pltpu.VMEM((BB * S, E), jnp.bfloat16)],
            ),
            compiler_params=pltpu.CompilerParams(
                dimension_semantics=("parallel",),
                vmem_limit_bytes=vmem_limit),
        )(q, k, v, wqkv1, bqkv1, w_slab, b_slab, ln_slab)

    try:
        return call(single_buffer_params=True)
    except Exception:
        # pl.Buffered(1) rejected on this build: fall back to default double-buffering
        # for the (grid-invariant) parameter slabs. Same numerics, only more VMEM.
        return call(single_buffer_params=False)


# ----------------------------- parameter packing (once, at init) --------------

def pack_params(params):
    """Pack the 30 FusionBlock parameters into 5 slabs (weights as bf16) and fold
    the 1/sqrt(head_dim) attention scale into the Q-projection weights/biases.
    Call once at init; do NOT call per forward pass."""
    E = params["w1"].shape[0]
    d = E // NUM_HEADS
    scale = 1.0 / math.sqrt(d)

    wq1 = params["wq1"] * scale
    bq1 = params["bq1"] * scale
    wq2 = params["wq2"] * scale
    bq2 = params["bq2"] * scale

    wqkv1 = jnp.concatenate([wq1, params["wk1"], params["wv1"]], axis=1).astype(jnp.bfloat16)
    bqkv1 = jnp.concatenate([bq1, params["bk1"], params["bv1"]], axis=1)        # (1, 3E) f32
    w_slab = jnp.stack([params["wo1"], wq2, params["wk2"], params["wv2"],
                        params["wo2"], params["w1"], params["w2"]],
                       axis=0).astype(jnp.bfloat16)                              # (7, E, E)
    b_slab = jnp.concatenate([params["bo1"], bq2, params["bk2"], params["bv2"],
                              params["bo2"], params["b1"], params["b2"]], axis=0)  # (7, E)
    ln_slab = jnp.concatenate([params["ln1_g"], params["ln1_b"],
                               params["lnv_g"], params["lnv_b"],
                               params["lnq_g"], params["lnq_b"],
                               params["lnk_g"], params["lnk_b"],
                               params["ln3_g"], params["ln3_b"]], axis=0)          # (10, E)
    return {"wqkv1": wqkv1, "bqkv1": bqkv1, "w_slab": w_slab,
            "b_slab": b_slab, "ln_slab": ln_slab}


# ----------------------------- pure-JAX reference (f32, exact) ----------------

def _mha_ref(q, k, v, wq, bq, wk, bk, wv, bv, wo, bo):
    S, E = q.shape
    D = E // NUM_HEADS
    scale = 1.0 / math.sqrt(D)
    qp = q @ wq + bq
    kp = k @ wk + bk
    vp = v @ wv + bv
    qh = qp.reshape(S, NUM_HEADS, D).transpose(1, 0, 2)
    kh = kp.reshape(S, NUM_HEADS, D).transpose(1, 0, 2)
    vh = vp.reshape(S, NUM_HEADS, D).transpose(1, 0, 2)
    s = jnp.einsum('hqd,hkd->hqk', qh, kh) * scale
    p = jax.nn.softmax(s, axis=-1)
    o = jnp.einsum('hqk,hkd->hqd', p, vh).transpose(1, 0, 2).reshape(S, E)
    return o @ wo + bo


def _fusion_block_ref(q, k, v, p):
    v_ = _layernorm(v, p["ln1_g"], p["ln1_b"])
    v = v + _mha_ref(v_, v_, v_, p["wq1"], p["bq1"], p["wk1"], p["bk1"],
                     p["wv1"], p["bv1"], p["wo1"], p["bo1"])
    v_ = _layernorm(v, p["lnv_g"], p["lnv_b"])
    q_ = _layernorm(q, p["lnq_g"], p["lnq_b"])
    k_ = _layernorm(k, p["lnk_g"], p["lnk_b"])
    v = v + _mha_ref(q_, k_, v_, p["wq2"], p["bq2"], p["wk2"], p["bk2"],
                     p["wv2"], p["bv2"], p["wo2"], p["bo2"])
    v_ = _layernorm(v, p["ln3_g"], p["ln3_b"])
    h = _new_gelu(v_ @ p["w1"] + p["b1"]) @ p["w2"] + p["b2"]
    return v + h


# ----------------------------- parameter init --------------------------------

def init_params(key, embed_size):
    E = embed_size
    p = {}
    # LayerNorm defaults: weight=1, bias=0 (stored as (1, E) rows).
    for ln in ("ln1", "lnv", "lnq", "lnk", "ln3"):
        p[f"{ln}_g"] = jnp.ones((1, E), jnp.float32)
        p[f"{ln}_b"] = jnp.zeros((1, E), jnp.float32)
    names = ["wq1", "wk1", "wv1", "wo1", "wq2", "wk2", "wv2", "wo2", "w1", "w2"]
    keys = jax.random.split(key, len(names))
    for n, kk in zip(names, keys):
        p[n] = (0.02 * jax.random.normal(kk, (E, E))).astype(jnp.float32)
    for n in ["bq1", "bk1", "bv1", "bo1", "bq2", "bk2", "bv2", "bo2", "b1", "b2"]:
        p[n] = jnp.zeros((1, E), jnp.float32)
    return p


# ----------------------------- main -------------------------------------------

if __name__ == "__main__":
    B, S, E = 2, 8, 32   # embed_size=32 divisible by 8 heads
    key = jax.random.PRNGKey(0)
    kq, kk, kv, kp = jax.random.split(key, 4)
    q = jax.random.normal(kq, (B, S, E), jnp.float32)
    k = jax.random.normal(kk, (B, S, E), jnp.float32)
    v = jax.random.normal(kv, (B, S, E), jnp.float32)
    params = init_params(kp, E)
    packed = pack_params(params)   # packed + bf16-cast once, outside the per-call path

    out = fusion_block(q, k, v, packed)
    out = jax.block_until_ready(out)

    ref = jax.vmap(functools.partial(_fusion_block_ref, p=params))(q, k, v)
    assert out.shape == (B, S, E)
    max_err = float(jnp.max(jnp.abs(out - ref)))
    # tolerance covers bf16 matmul inputs + (NR-refined) EUP reciprocal in the softmax
    assert jnp.allclose(out, ref, atol=2e-2, rtol=2e-2), \
        f"mismatch vs reference (max abs err {max_err})"

    print("KERNEL_OK")
</pallas_src>

<mosaic_0001>
module attributes {stable_mosaic.version = 11 : i64} {
  func.func @fusion_block_kernel(%arg0: i32, %arg1: memref<1x8x32xf32, #tpu.memory_space<vmem>>, %arg2: memref<1x8x32xf32, #tpu.memory_space<vmem>>, %arg3: memref<1x8x32xf32, #tpu.memory_space<vmem>>, %arg4: memref<32x96xbf16, #tpu.memory_space<vmem>>, %arg5: memref<1x96xf32, #tpu.memory_space<vmem>>, %arg6: memref<7x32x32xbf16, #tpu.memory_space<vmem>>, %arg7: memref<7x32xf32, #tpu.memory_space<vmem>>, %arg8: memref<10x32xf32, #tpu.memory_space<vmem>>, %arg9: memref<1x8x32xf32, #tpu.memory_space<vmem>>, %arg10: memref<8x32xbf16, #tpu.memory_space<vmem>>) attributes {dimension_semantics = [#tpu.dimension_semantics<parallel>], iteration_bounds = array<i64: 2>, scalar_prefetch = 0 : i64, scratch_operands = 1 : i64, tpu.core_type = #tpu.core_type<tc>, window_params = [{transform_indices = @transform_0, window_bounds = array<i64: 1, 8, 32>}, {transform_indices = @transform_1, window_bounds = array<i64: 1, 8, 32>}, {transform_indices = @transform_2, window_bounds = array<i64: 1, 8, 32>}, {pipeline_mode = #tpu.pipeline_mode<synchronous>, transform_indices = @transform_3, window_bounds = array<i64: 32, 96>}, {pipeline_mode = #tpu.pipeline_mode<synchronous>, transform_indices = @transform_4, window_bounds = array<i64: 1, 96>}, {pipeline_mode = #tpu.pipeline_mode<synchronous>, transform_indices = @transform_5, window_bounds = array<i64: 7, 32, 32>}, {pipeline_mode = #tpu.pipeline_mode<synchronous>, transform_indices = @transform_6, window_bounds = array<i64: 7, 32>}, {pipeline_mode = #tpu.pipeline_mode<synchronous>, transform_indices = @transform_7, window_bounds = array<i64: 10, 32>}, {transform_indices = @transform_8, window_bounds = array<i64: 1, 8, 32>}]} {
    %c0 = arith.constant 0 : index
    %c0_0 = arith.constant 0 : index
    %c0_1 = arith.constant 0 : index
    %0 = vector.load %arg1[%c0, %c0_0, %c0_1] : memref<1x8x32xf32, #tpu.memory_space<vmem>>, vector<1x8x32xf32>
    %1 = vector.shape_cast %0 : vector<1x8x32xf32> to vector<8x32xf32>
    %c0_2 = arith.constant 0 : index
    %c0_3 = arith.constant 0 : index
    %c0_4 = arith.constant 0 : index
    %2 = vector.load %arg2[%c0_2, %c0_3, %c0_4] : memref<1x8x32xf32, #tpu.memory_space<vmem>>, vector<1x8x32xf32>
    %3 = vector.shape_cast %2 : vector<1x8x32xf32> to vector<8x32xf32>
    %c0_5 = arith.constant 0 : index
    %c0_6 = arith.constant 0 : index
    %c0_7 = arith.constant 0 : index
    %4 = vector.load %arg3[%c0_5, %c0_6, %c0_7] : memref<1x8x32xf32, #tpu.memory_space<vmem>>, vector<1x8x32xf32>
    %5 = vector.shape_cast %4 : vector<1x8x32xf32> to vector<8x32xf32>
    %c0_8 = arith.constant 0 : index
    %c0_9 = arith.constant 0 : index
    %6 = vector.load %arg8[%c0_8, %c0_9] : memref<10x32xf32, #tpu.memory_space<vmem>>, vector<10x32xf32>
    %c0_10 = arith.constant 0 : index
    %c0_11 = arith.constant 0 : index
    %7 = vector.load %arg7[%c0_10, %c0_11] : memref<7x32xf32, #tpu.memory_space<vmem>>, vector<7x32xf32>
    %8 = vector.extract_strided_slice %6 {offsets = [0, 0], sizes = [1, 32], strides = [1, 1]} : vector<10x32xf32> to vector<1x32xf32>
    %9 = vector.extract_strided_slice %6 {offsets = [1, 0], sizes = [1, 32], strides = [1, 1]} : vector<10x32xf32> to vector<1x32xf32>
    %cst = arith.constant dense<0.000000e+00> : vector<8xf32>
    %10 = vector.multi_reduction <add>, %5, %cst [1] : vector<8x32xf32> to vector<8xf32>
    %11 = vector.shape_cast %10 : vector<8xf32> to vector<8x1xf32>
    %cst_12 = arith.constant 3.200000e+01 : f32
    %12 = vector.broadcast %cst_12 : f32 to vector<8x1xf32>
    %13 = arith.divf %11, %12 : vector<8x1xf32>
    %14 = vector.broadcast %13 : vector<8x1xf32> to vector<8x32xf32>
    %15 = arith.subf %5, %14 : vector<8x32xf32>
    %16 = arith.mulf %15, %15 : vector<8x32xf32>
    %cst_13 = arith.constant dense<0.000000e+00> : vector<8xf32>
    %17 = vector.multi_reduction <add>, %16, %cst_13 [1] : vector<8x32xf32> to vector<8xf32>
    %18 = vector.shape_cast %17 : vector<8xf32> to vector<8x1xf32>
    %cst_14 = arith.constant 3.200000e+01 : f32
    %19 = vector.broadcast %cst_14 : f32 to vector<8x1xf32>
    %20 = arith.divf %18, %19 : vector<8x1xf32>
    %21 = vector.broadcast %13 : vector<8x1xf32> to vector<8x32xf32>
    %22 = arith.subf %5, %21 : vector<8x32xf32>
    %cst_15 = arith.constant 9.99999974E-6 : f32
    %23 = vector.broadcast %cst_15 : f32 to vector<8x1xf32>
    %24 = arith.addf %20, %23 : vector<8x1xf32>
    %25 = math.rsqrt %24 : vector<8x1xf32>
    %26 = vector.broadcast %25 : vector<8x1xf32> to vector<8x32xf32>
    %27 = arith.mulf %22, %26 : vector<8x32xf32>
    %28 = vector.broadcast %8 : vector<1x32xf32> to vector<8x32xf32>
    %29 = arith.mulf %27, %28 : vector<8x32xf32>
    %30 = vector.broadcast %9 : vector<1x32xf32> to vector<8x32xf32>
    %31 = arith.addf %29, %30 : vector<8x32xf32>
    %c0_16 = arith.constant 0 : index
    %c0_17 = arith.constant 0 : index
    %32 = vector.load %arg4[%c0_16, %c0_17] : memref<32x96xbf16, #tpu.memory_space<vmem>>, vector<32x96xbf16>
    %c0_18 = arith.constant 0 : index
    %c0_19 = arith.constant 0 : index
    %33 = vector.load %arg5[%c0_18, %c0_19] : memref<1x96xf32, #tpu.memory_space<vmem>>, vector<1x96xf32>
    %34 = arith.truncf %31 : vector<8x32xf32> to vector<8x32xbf16>
    %cst_20 = arith.constant dense<0.000000e+00> : vector<8x96xf32>
    %35 = tpu.matmul %34, %32, %cst_20 {dimension_numbers = #tpu.dot_dimension_numbers<[1], [0], [0], [1], [0, 0, 1, 1], [], []>} : vector<8x32xbf16>, vector<32x96xbf16>, vector<8x96xf32> -> vector<8x96xf32>
    %36 = vector.broadcast %33 : vector<1x96xf32> to vector<8x96xf32>
    %37 = arith.addf %35, %36 : vector<8x96xf32>
    %38 = vector.extract_strided_slice %37 {offsets = [0, 0], sizes = [8, 32], strides = [1, 1]} : vector<8x96xf32> to vector<8x32xf32>
    %39 = vector.extract_strided_slice %37 {offsets = [0, 32], sizes = [8, 32], strides = [1, 1]} : vector<8x96xf32> to vector<8x32xf32>
    %40 = vector.extract_strided_slice %37 {offsets = [0, 64], sizes = [8, 32], strides = [1, 1]} : vector<8x96xf32> to vector<8x32xf32>
    %41 = arith.truncf %38 : vector<8x32xf32> to vector<8x32xbf16>
    %42 = vector.extract_strided_slice %41 {offsets = [0, 0], sizes = [8, 4], strides = [1, 1]} : vector<8x32xbf16> to vector<8x4xbf16>
    %43 = vector.shape_cast %42 : vector<8x4xbf16> to vector<1x1x8x4xbf16>
    %44 = vector.extract_strided_slice %41 {offsets = [0, 4], sizes = [8, 4], strides = [1, 1]} : vector<8x32xbf16> to vector<8x4xbf16>
    %45 = vector.shape_cast %44 : vector<8x4xbf16> to vector<1x1x8x4xbf16>
    %46 = vector.extract_strided_slice %41 {offsets = [0, 8], sizes = [8, 4], strides = [1, 1]} : vector<8x32xbf16> to vector<8x4xbf16>
    %47 = vector.shape_cast %46 : vector<8x4xbf16> to vector<1x1x8x4xbf16>
    %48 = vector.extract_strided_slice %41 {offsets = [0, 12], sizes = [8, 4], strides = [1, 1]} : vector<8x32xbf16> to vector<8x4xbf16>
    %49 = vector.shape_cast %48 : vector<8x4xbf16> to vector<1x1x8x4xbf16>
    %50 = vector.extract_strided_slice %41 {offsets = [0, 16], sizes = [8, 4], strides = [1, 1]} : vector<8x32xbf16> to vector<8x4xbf16>
    %51 = vector.shape_cast %50 : vector<8x4xbf16> to vector<1x1x8x4xbf16>
    %52 = vector.extract_strided_slice %41 {offsets = [0, 20], sizes = [8, 4], strides = [1, 1]} : vector<8x32xbf16> to vector<8x4xbf16>
    %53 = vector.shape_cast %52 : vector<8x4xbf16> to vector<1x1x8x4xbf16>
    %54 = vector.extract_strided_slice %41 {offsets = [0, 24], sizes = [8, 4], strides = [1, 1]} : vector<8x32xbf16> to vector<8x4xbf16>
    %55 = vector.shape_cast %54 : vector<8x4xbf16> to vector<1x1x8x4xbf16>
    %56 = vector.extract_strided_slice %41 {offsets = [0, 28], sizes = [8, 4], strides = [1, 1]} : vector<8x32xbf16> to vector<8x4xbf16>
    %57 = vector.shape_cast %56 : vector<8x4xbf16> to vector<1x1x8x4xbf16>
    %58 = tpu.concatenate %43, %45, %47, %49, %51, %53, %55, %57 in 0 : vector<1x1x8x4xbf16>, vector<1x1x8x4xbf16>, vector<1x1x8x4xbf16>, vector<1x1x8x4xbf16>, vector<1x1x8x4xbf16>, vector<1x1x8x4xbf16>, vector<1x1x8x4xbf16>, vector<1x1x8x4xbf16> -> vector<8x1x8x4xbf16>
    %59 = vector.shape_cast %58 : vector<8x1x8x4xbf16> to vector<8x8x4xbf16>
    %60 = arith.truncf %39 : vector<8x32xf32> to vector<8x32xbf16>
    %61 = vector.extract_strided_slice %60 {offsets = [0, 0], sizes = [8, 4], strides = [1, 1]} : vector<8x32xbf16> to vector<8x4xbf16>
    %62 = vector.shape_cast %61 : vector<8x4xbf16> to vector<1x1x8x4xbf16>
    %63 = vector.extract_strided_slice %60 {offsets = [0, 4], sizes = [8, 4], strides = [1, 1]} : vector<8x32xbf16> to vector<8x4xbf16>
    %64 = vector.shape_cast %63 : vector<8x4xbf16> to vector<1x1x8x4xbf16>
    %65 = vector.extract_strided_slice %60 {offsets = [0, 8], sizes = [8, 4], strides = [1, 1]} : vector<8x32xbf16> to vector<8x4xbf16>
    %66 = vector.shape_cast %65 : vector<8x4xbf16> to vector<1x1x8x4xbf16>
    %67 = vector.extract_strided_slice %60 {offsets = [0, 12], sizes = [8, 4], strides = [1, 1]} : vector<8x32xbf16> to vector<8x4xbf16>
    %68 = vector.shape_cast %67 : vector<8x4xbf16> to vector<1x1x8x4xbf16>
    %69 = vector.extract_strided_slice %60 {offsets = [0, 16], sizes = [8, 4], strides = [1, 1]} : vector<8x32xbf16> to vector<8x4xbf16>
    %70 = vector.shape_cast %69 : vector<8x4xbf16> to vector<1x1x8x4xbf16>
    %71 = vector.extract_strided_slice %60 {offsets = [0, 20], sizes = [8, 4], strides = [1, 1]} : vector<8x32xbf16> to vector<8x4xbf16>
    %72 = vector.shape_cast %71 : vector<8x4xbf16> to vector<1x1x8x4xbf16>
    %73 = vector.extract_strided_slice %60 {offsets = [0, 24], sizes = [8, 4], strides = [1, 1]} : vector<8x32xbf16> to vector<8x4xbf16>
    %74 = vector.shape_cast %73 : vector<8x4xbf16> to vector<1x1x8x4xbf16>
    %75 = vector.extract_strided_slice %60 {offsets = [0, 28], sizes = [8, 4], strides = [1, 1]} : vector<8x32xbf16> to vector<8x4xbf16>
    %76 = vector.shape_cast %75 : vector<8x4xbf16> to vector<1x1x8x4xbf16>
    %77 = tpu.concatenate %62, %64, %66, %68, %70, %72, %74, %76 in 0 : vector<1x1x8x4xbf16>, vector<1x1x8x4xbf16>, vector<1x1x8x4xbf16>, vector<1x1x8x4xbf16>, vector<1x1x8x4xbf16>, vector<1x1x8x4xbf16>, vector<1x1x8x4xbf16>, vector<1x1x8x4xbf16> -> vector<8x1x8x4xbf16>
    %78 = vector.shape_cast %77 : vector<8x1x8x4xbf16> to vector<8x8x4xbf16>
    %79 = arith.truncf %40 : vector<8x32xf32> to vector<8x32xbf16>
    %80 = vector.extract_strided_slice %79 {offsets = [0, 0], sizes = [8, 4], strides = [1, 1]} : vector<8x32xbf16> to vector<8x4xbf16>
    %81 = vector.shape_cast %80 : vector<8x4xbf16> to vector<1x1x8x4xbf16>
    %82 = vector.extract_strided_slice %79 {offsets = [0, 4], sizes = [8, 4], strides = [1, 1]} : vector<8x32xbf16> to vector<8x4xbf16>
    %83 = vector.shape_cast %82 : vector<8x4xbf16> to vector<1x1x8x4xbf16>
    %84 = vector.extract_strided_slice %79 {offsets = [0, 8], sizes = [8, 4], strides = [1, 1]} : vector<8x32xbf16> to vector<8x4xbf16>
    %85 = vector.shape_cast %84 : vector<8x4xbf16> to vector<1x1x8x4xbf16>
    %86 = vector.extract_strided_slice %79 {offsets = [0, 12], sizes = [8, 4], strides = [1, 1]} : vector<8x32xbf16> to vector<8x4xbf16>
    %87 = vector.shape_cast %86 : vector<8x4xbf16> to vector<1x1x8x4xbf16>
    %88 = vector.extract_strided_slice %79 {offsets = [0, 16], sizes = [8, 4], strides = [1, 1]} : vector<8x32xbf16> to vector<8x4xbf16>
    %89 = vector.shape_cast %88 : vector<8x4xbf16> to vector<1x1x8x4xbf16>
    %90 = vector.extract_strided_slice %79 {offsets = [0, 20], sizes = [8, 4], strides = [1, 1]} : vector<8x32xbf16> to vector<8x4xbf16>
    %91 = vector.shape_cast %90 : vector<8x4xbf16> to vector<1x1x8x4xbf16>
    %92 = vector.extract_strided_slice %79 {offsets = [0, 24], sizes = [8, 4], strides = [1, 1]} : vector<8x32xbf16> to vector<8x4xbf16>
    %93 = vector.shape_cast %92 : vector<8x4xbf16> to vector<1x1x8x4xbf16>
    %94 = vector.extract_strided_slice %79 {offsets = [0, 28], sizes = [8, 4], strides = [1, 1]} : vector<8x32xbf16> to vector<8x4xbf16>
    %95 = vector.shape_cast %94 : vector<8x4xbf16> to vector<1x1x8x4xbf16>
    %96 = tpu.concatenate %81, %83, %85, %87, %89, %91, %93, %95 in 0 : vector<1x1x8x4xbf16>, vector<1x1x8x4xbf16>, vector<1x1x8x4xbf16>, vector<1x1x8x4xbf16>, vector<1x1x8x4xbf16>, vector<1x1x8x4xbf16>, vector<1x1x8x4xbf16>, vector<1x1x8x4xbf16> -> vector<8x1x8x4xbf16>
    %97 = vector.shape_cast %96 : vector<8x1x8x4xbf16> to vector<8x8x4xbf16>
    "tpu.trace_start"() <{level = 10 : i32, message = "bqd,bkd->bqk"}> : () -> ()
    %cst_21 = arith.constant dense<0.000000e+00> : vector<8x8x8xf32>
    %98 = tpu.matmul %59, %78, %cst_21 {dimension_numbers = #tpu.dot_dimension_numbers<[2], [2], [1], [1], [0, 0, 0, 1, 1, 1], [0], [0]>} : vector<8x8x4xbf16>, vector<8x8x4xbf16>, vector<8x8x8xf32> -> vector<8x8x8xf32>
    "tpu.trace_stop"() : () -> ()
    %cst_22 = arith.constant dense<0xFF800000> : vector<8x8xf32>
    %99 = vector.multi_reduction <maximumf>, %98, %cst_22 [2] : vector<8x8x8xf32> to vector<8x8xf32>
    %100 = vector.shape_cast %99 : vector<8x8xf32> to vector<8x8x1xf32>
    %101 = vector.broadcast %100 : vector<8x8x1xf32> to vector<8x8x8xf32>
    %102 = arith.subf %98, %101 : vector<8x8x8xf32>
    %103 = math.exp %102 : vector<8x8x8xf32>
    %cst_23 = arith.constant dense<0.000000e+00> : vector<8x8xf32>
    %104 = vector.multi_reduction <add>, %103, %cst_23 [2] : vector<8x8x8xf32> to vector<8x8xf32>
    %105 = vector.shape_cast %104 : vector<8x8xf32> to vector<8x8x1xf32>
    %106 = tpu.reciprocal %105 {approx = true} : vector<8x8x1xf32> -> vector<8x8x1xf32>
    %107 = arith.mulf %105, %106 : vector<8x8x1xf32>
    %cst_24 = arith.constant 2.000000e+00 : f32
    %108 = vector.broadcast %cst_24 : f32 to vector<8x8x1xf32>
    %109 = arith.subf %108, %107 : vector<8x8x1xf32>
    %110 = arith.mulf %106, %109 : vector<8x8x1xf32>
    %111 = vector.broadcast %110 : vector<8x8x1xf32> to vector<8x8x8xf32>
    %112 = arith.mulf %103, %111 : vector<8x8x8xf32>
    %113 = arith.truncf %112 : vector<8x8x8xf32> to vector<8x8x8xbf16>
    "tpu.trace_start"() <{level = 10 : i32, message = "bqk,bkd->bqd"}> : () -> ()
    %cst_25 = arith.constant dense<0.000000e+00> : vector<8x8x4xf32>
    %114 = tpu.matmul %113, %97, %cst_25 {dimension_numbers = #tpu.dot_dimension_numbers<[2], [1], [1], [2], [0, 0, 0, 1, 1, 2], [0], [0]>} : vector<8x8x8xbf16>, vector<8x8x4xbf16>, vector<8x8x4xf32> -> vector<8x8x4xf32>
    "tpu.trace_stop"() : () -> ()
    %115 = vector.extract_strided_slice %114 {offsets = [0, 0, 0], sizes = [1, 8, 4], strides = [1, 1, 1]} : vector<8x8x4xf32> to vector<1x8x4xf32>
    %116 = vector.shape_cast %115 : vector<1x8x4xf32> to vector<8x4xf32>
    %117 = arith.truncf %116 : vector<8x4xf32> to vector<8x4xbf16>
    %c0_26 = arith.constant 0 : index
    %c0_27 = arith.constant 0 : index
    %118 = vector.load %arg10[%c0_26, %c0_27] : memref<8x32xbf16, #tpu.memory_space<vmem>>, vector<8x4xbf16>
    tpu.vector_store %arg10[%c0_26, %c0_27], %117 {strides = array<i32>} : memref<8x32xbf16, #tpu.memory_space<vmem>>, vector<8x4xbf16>,
    %119 = vector.extract_strided_slice %114 {offsets = [1, 0, 0], sizes = [1, 8, 4], strides = [1, 1, 1]} : vector<8x8x4xf32> to vector<1x8x4xf32>
    %120 = vector.shape_cast %119 : vector<1x8x4xf32> to vector<8x4xf32>
    %121 = arith.truncf %120 : vector<8x4xf32> to vector<8x4xbf16>
    %c0_28 = arith.constant 0 : index
    %c4 = arith.constant 4 : index
    %122 = vector.load %arg10[%c0_28, %c4] : memref<8x32xbf16, #tpu.memory_space<vmem>>, vector<8x4xbf16>
    tpu.vector_store %arg10[%c0_28, %c4], %121 {strides = array<i32>} : memref<8x32xbf16, #tpu.memory_space<vmem>>, vector<8x4xbf16>,
    %123 = vector.extract_strided_slice %114 {offsets = [2, 0, 0], sizes = [1, 8, 4], strides = [1, 1, 1]} : vector<8x8x4xf32> to vector<1x8x4xf32>
    %124 = vector.shape_cast %123 : vector<1x8x4xf32> to vector<8x4xf32>
    %125 = arith.truncf %124 : vector<8x4xf32> to vector<8x4xbf16>
    %c0_29 = arith.constant 0 : index
    %c8 = arith.constant 8 : index
    %126 = vector.load %arg10[%c0_29, %c8] : memref<8x32xbf16, #tpu.memory_space<vmem>>, vector<8x4xbf16>
    tpu.vector_store %arg10[%c0_29, %c8], %125 {strides = array<i32>} : memref<8x32xbf16, #tpu.memory_space<vmem>>, vector<8x4xbf16>,
    %127 = vector.extract_strided_slice %114 {offsets = [3, 0, 0], sizes = [1, 8, 4], strides = [1, 1, 1]} : vector<8x8x4xf32> to vector<1x8x4xf32>
    %128 = vector.shape_cast %127 : vector<1x8x4xf32> to vector<8x4xf32>
    %129 = arith.truncf %128 : vector<8x4xf32> to vector<8x4xbf16>
    %c0_30 = arith.constant 0 : index
    %c12 = arith.constant 12 : index
    %130 = vector.load %arg10[%c0_30, %c12] : memref<8x32xbf16, #tpu.memory_space<vmem>>, vector<8x4xbf16>
    tpu.vector_store %arg10[%c0_30, %c12], %129 {strides = array<i32>} : memref<8x32xbf16, #tpu.memory_space<vmem>>, vector<8x4xbf16>,
    %131 = vector.extract_strided_slice %114 {offsets = [4, 0, 0], sizes = [1, 8, 4], strides = [1, 1, 1]} : vector<8x8x4xf32> to vector<1x8x4xf32>
    %132 = vector.shape_cast %131 : vector<1x8x4xf32> to vector<8x4xf32>
    %133 = arith.truncf %132 : vector<8x4xf32> to vector<8x4xbf16>
    %c0_31 = arith.constant 0 : index
    %c16 = arith.constant 16 : index
    %134 = vector.load %arg10[%c0_31, %c16] : memref<8x32xbf16, #tpu.memory_space<vmem>>, vector<8x4xbf16>
    tpu.vector_store %arg10[%c0_31, %c16], %133 {strides = array<i32>} : memref<8x32xbf16, #tpu.memory_space<vmem>>, vector<8x4xbf16>,
    %135 = vector.extract_strided_slice %114 {offsets = [5, 0, 0], sizes = [1, 8, 4], strides = [1, 1, 1]} : vector<8x8x4xf32> to vector<1x8x4xf32>
    %136 = vector.shape_cast %135 : vector<1x8x4xf32> to vector<8x4xf32>
    %137 = arith.truncf %136 : vector<8x4xf32> to vector<8x4xbf16>
    %c0_32 = arith.constant 0 : index
    %c20 = arith.constant 20 : index
    %138 = vector.load %arg10[%c0_32, %c20] : memref<8x32xbf16, #tpu.memory_space<vmem>>, vector<8x4xbf16>
    tpu.vector_store %arg10[%c0_32, %c20], %137 {strides = array<i32>} : memref<8x32xbf16, #tpu.memory_space<vmem>>, vector<8x4xbf16>,
    %139 = vector.extract_strided_slice %114 {offsets = [6, 0, 0], sizes = [1, 8, 4], strides = [1, 1, 1]} : vector<8x8x4xf32> to vector<1x8x4xf32>
    %140 = vector.shape_cast %139 : vector<1x8x4xf32> to vector<8x4xf32>
    %141 = arith.truncf %140 : vector<8x4xf32> to vector<8x4xbf16>
    %c0_33 = arith.constant 0 : index
    %c24 = arith.constant 24 : index
    %142 = vector.load %arg10[%c0_33, %c24] : memref<8x32xbf16, #tpu.memory_space<vmem>>, vector<8x4xbf16>
    tpu.vector_store %arg10[%c0_33, %c24], %141 {strides = array<i32>} : memref<8x32xbf16, #tpu.memory_space<vmem>>, vector<8x4xbf16>,
    %143 = vector.extract_strided_slice %114 {offsets = [7, 0, 0], sizes = [1, 8, 4], strides = [1, 1, 1]} : vector<8x8x4xf32> to vector<1x8x4xf32>
    %144 = vector.shape_cast %143 : vector<1x8x4xf32> to vector<8x4xf32>
    %145 = arith.truncf %144 : vector<8x4xf32> to vector<8x4xbf16>
    %c0_34 = arith.constant 0 : index
    %c28 = arith.constant 28 : index
    %146 = vector.load %arg10[%c0_34, %c28] : memref<8x32xbf16, #tpu.memory_space<vmem>>, vector<8x4xbf16>
    tpu.vector_store %arg10[%c0_34, %c28], %145 {strides = array<i32>} : memref<8x32xbf16, #tpu.memory_space<vmem>>, vector<8x4xbf16>,
    %c0_35 = arith.constant 0 : index
    %c0_36 = arith.constant 0 : index
    %147 = vector.load %arg10[%c0_35, %c0_36] : memref<8x32xbf16, #tpu.memory_space<vmem>>, vector<8x32xbf16>
    %c0_37 = arith.constant 0 : index
    %c0_38 = arith.constant 0 : index
    %c0_39 = arith.constant 0 : index
    %148 = vector.load %arg6[%c0_37, %c0_38, %c0_39] : memref<7x32x32xbf16, #tpu.memory_space<vmem>>, vector<1x32x32xbf16>
    %149 = vector.shape_cast %148 : vector<1x32x32xbf16> to vector<32x32xbf16>
    %150 = vector.extract_strided_slice %7 {offsets = [0, 0], sizes = [1, 32], strides = [1, 1]} : vector<7x32xf32> to vector<1x32xf32>
    %cst_40 = arith.constant dense<0.000000e+00> : vector<8x32xf32>
    %151 = tpu.matmul %147, %149, %cst_40 {dimension_numbers = #tpu.dot_dimension_numbers<[1], [0], [0], [1], [0, 0, 1, 1], [], []>} : vector<8x32xbf16>, vector<32x32xbf16>, vector<8x32xf32> -> vector<8x32xf32>
    %152 = vector.broadcast %150 : vector<1x32xf32> to vector<8x32xf32>
    %153 = arith.addf %151, %152 : vector<8x32xf32>
    %154 = arith.addf %5, %153 : vector<8x32xf32>
    %155 = vector.extract_strided_slice %6 {offsets = [2, 0], sizes = [1, 32], strides = [1, 1]} : vector<10x32xf32> to vector<1x32xf32>
    %156 = vector.extract_strided_slice %6 {offsets = [3, 0], sizes = [1, 32], strides = [1, 1]} : vector<10x32xf32> to vector<1x32xf32>
    %cst_41 = arith.constant dense<0.000000e+00> : vector<8xf32>
    %157 = vector.multi_reduction <add>, %154, %cst_41 [1] : vector<8x32xf32> to vector<8xf32>
    %158 = vector.shape_cast %157 : vector<8xf32> to vector<8x1xf32>
    %cst_42 = arith.constant 3.200000e+01 : f32
    %159 = vector.broadcast %cst_42 : f32 to vector<8x1xf32>
    %160 = arith.divf %158, %159 : vector<8x1xf32>
    %161 = vector.broadcast %160 : vector<8x1xf32> to vector<8x32xf32>
    %162 = arith.subf %154, %161 : vector<8x32xf32>
    %163 = arith.mulf %162, %162 : vector<8x32xf32>
    %cst_43 = arith.constant dense<0.000000e+00> : vector<8xf32>
    %164 = vector.multi_reduction <add>, %163, %cst_43 [1] : vector<8x32xf32> to vector<8xf32>
    %165 = vector.shape_cast %164 : vector<8xf32> to vector<8x1xf32>
    %cst_44 = arith.constant 3.200000e+01 : f32
    %166 = vector.broadcast %cst_44 : f32 to vector<8x1xf32>
    %167 = arith.divf %165, %166 : vector<8x1xf32>
    %168 = vector.broadcast %160 : vector<8x1xf32> to vector<8x32xf32>
    %169 = arith.subf %154, %168 : vector<8x32xf32>
    %cst_45 = arith.constant 9.99999974E-6 : f32
    %170 = vector.broadcast %cst_45 : f32 to vector<8x1xf32>
    %171 = arith.addf %167, %170 : vector<8x1xf32>
    %172 = math.rsqrt %171 : vector<8x1xf32>
    %173 = vector.broadcast %172 : vector<8x1xf32> to vector<8x32xf32>
    %174 = arith.mulf %169, %173 : vector<8x32xf32>
    %175 = vector.broadcast %155 : vector<1x32xf32> to vector<8x32xf32>
    %176 = arith.mulf %174, %175 : vector<8x32xf32>
    %177 = vector.broadcast %156 : vector<1x32xf32> to vector<8x32xf32>
    %178 = arith.addf %176, %177 : vector<8x32xf32>
    %179 = vector.extract_strided_slice %6 {offsets = [4, 0], sizes = [1, 32], strides = [1, 1]} : vector<10x32xf32> to vector<1x32xf32>
    %180 = vector.extract_strided_slice %6 {offsets = [5, 0], sizes = [1, 32], strides = [1, 1]} : vector<10x32xf32> to vector<1x32xf32>
    %cst_46 = arith.constant dense<0.000000e+00> : vector<8xf32>
    %181 = vector.multi_reduction <add>, %1, %cst_46 [1] : vector<8x32xf32> to vector<8xf32>
    %182 = vector.shape_cast %181 : vector<8xf32> to vector<8x1xf32>
    %cst_47 = arith.constant 3.200000e+01 : f32
    %183 = vector.broadcast %cst_47 : f32 to vector<8x1xf32>
    %184 = arith.divf %182, %183 : vector<8x1xf32>
    %185 = vector.broadcast %184 : vector<8x1xf32> to vector<8x32xf32>
    %186 = arith.subf %1, %185 : vector<8x32xf32>
    %187 = arith.mulf %186, %186 : vector<8x32xf32>
    %cst_48 = arith.constant dense<0.000000e+00> : vector<8xf32>
    %188 = vector.multi_reduction <add>, %187, %cst_48 [1] : vector<8x32xf32> to vector<8xf32>
    %189 = vector.shape_cast %188 : vector<8xf32> to vector<8x1xf32>
    %cst_49 = arith.constant 3.200000e+01 : f32
    %190 = vector.broadcast %cst_49 : f32 to vector<8x1xf32>
    %191 = arith.divf %189, %190 : vector<8x1xf32>
    %192 = vector.broadcast %184 : vector<8x1xf32> to vector<8x32xf32>
    %193 = arith.subf %1, %192 : vector<8x32xf32>
    %cst_50 = arith.constant 9.99999974E-6 : f32
    %194 = vector.broadcast %cst_50 : f32 to vector<8x1xf32>
    %195 = arith.addf %191, %194 : vector<8x1xf32>
    %196 = math.rsqrt %195 : vector<8x1xf32>
    %197 = vector.broadcast %196 : vector<8x1xf32> to vector<8x32xf32>
    %198 = arith.mulf %193, %197 : vector<8x32xf32>
    %199 = vector.broadcast %179 : vector<1x32xf32> to vector<8x32xf32>
    %200 = arith.mulf %198, %199 : vector<8x32xf32>
    %201 = vector.broadcast %180 : vector<1x32xf32> to vector<8x32xf32>
    %202 = arith.addf %200, %201 : vector<8x32xf32>
    %203 = vector.extract_strided_slice %6 {offsets = [6, 0], sizes = [1, 32], strides = [1, 1]} : vector<10x32xf32> to vector<1x32xf32>
    %204 = vector.extract_strided_slice %6 {offsets = [7, 0], sizes = [1, 32], strides = [1, 1]} : vector<10x32xf32> to vector<1x32xf32>
    %cst_51 = arith.constant dense<0.000000e+00> : vector<8xf32>
    %205 = vector.multi_reduction <add>, %3, %cst_51 [1] : vector<8x32xf32> to vector<8xf32>
    %206 = vector.shape_cast %205 : vector<8xf32> to vector<8x1xf32>
    %cst_52 = arith.constant 3.200000e+01 : f32
    %207 = vector.broadcast %cst_52 : f32 to vector<8x1xf32>
    %208 = arith.divf %206, %207 : vector<8x1xf32>
    %209 = vector.broadcast %208 : vector<8x1xf32> to vector<8x32xf32>
    %210 = arith.subf %3, %209 : vector<8x32xf32>
    %211 = arith.mulf %210, %210 : vector<8x32xf32>
    %cst_53 = arith.constant dense<0.000000e+00> : vector<8xf32>
    %212 = vector.multi_reduction <add>, %211, %cst_53 [1] : vector<8x32xf32> to vector<8xf32>
    %213 = vector.shape_cast %212 : vector<8xf32> to vector<8x1xf32>
    %cst_54 = arith.constant 3.200000e+01 : f32
    %214 = vector.broadcast %cst_54 : f32 to vector<8x1xf32>
    %215 = arith.divf %213, %214 : vector<8x1xf32>
    %216 = vector.broadcast %208 : vector<8x1xf32> to vector<8x32xf32>
    %217 = arith.subf %3, %216 : vector<8x32xf32>
    %cst_55 = arith.constant 9.99999974E-6 : f32
    %218 = vector.broadcast %cst_55 : f32 to vector<8x1xf32>
    %219 = arith.addf %215, %218 : vector<8x1xf32>
    %220 = math.rsqrt %219 : vector<8x1xf32>
    %221 = vector.broadcast %220 : vector<8x1xf32> to vector<8x32xf32>
    %222 = arith.mulf %217, %221 : vector<8x32xf32>
    %223 = vector.broadcast %203 : vector<1x32xf32> to vector<8x32xf32>
    %224 = arith.mulf %222, %223 : vector<8x32xf32>
    %225 = vector.broadcast %204 : vector<1x32xf32> to vector<8x32xf32>
    %226 = arith.addf %224, %225 : vector<8x32xf32>
    %c1 = arith.constant 1 : index
    %c0_56 = arith.constant 0 : index
    %c0_57 = arith.constant 0 : index
    %227 = vector.load %arg6[%c1, %c0_56, %c0_57] : memref<7x32x32xbf16, #tpu.memory_space<vmem>>, vector<1x32x32xbf16>
    %228 = vector.shape_cast %227 : vector<1x32x32xbf16> to vector<32x32xbf16>
    %229 = vector.extract_strided_slice %7 {offsets = [1, 0], sizes = [1, 32], strides = [1, 1]} : vector<7x32xf32> to vector<1x32xf32>
    %230 = arith.truncf %202 : vector<8x32xf32> to vector<8x32xbf16>
    %cst_58 = arith.constant dense<0.000000e+00> : vector<8x32xf32>
    %231 = tpu.matmul %230, %228, %cst_58 {dimension_numbers = #tpu.dot_dimension_numbers<[1], [0], [0], [1], [0, 0, 1, 1], [], []>} : vector<8x32xbf16>, vector<32x32xbf16>, vector<8x32xf32> -> vector<8x32xf32>
    %232 = vector.broadcast %229 : vector<1x32xf32> to vector<8x32xf32>
    %233 = arith.addf %231, %232 : vector<8x32xf32>
    %c2 = arith.constant 2 : index
    %c0_59 = arith.constant 0 : index
    %c0_60 = arith.constant 0 : index
    %234 = vector.load %arg6[%c2, %c0_59, %c0_60] : memref<7x32x32xbf16, #tpu.memory_space<vmem>>, vector<1x32x32xbf16>
    %235 = vector.shape_cast %234 : vector<1x32x32xbf16> to vector<32x32xbf16>
    %236 = vector.extract_strided_slice %7 {offsets = [2, 0], sizes = [1, 32], strides = [1, 1]} : vector<7x32xf32> to vector<1x32xf32>
    %237 = arith.truncf %226 : vector<8x32xf32> to vector<8x32xbf16>
    %cst_61 = arith.constant dense<0.000000e+00> : vector<8x32xf32>
    %238 = tpu.matmul %237, %235, %cst_61 {dimension_numbers = #tpu.dot_dimension_numbers<[1], [0], [0], [1], [0, 0, 1, 1], [], []>} : vector<8x32xbf16>, vector<32x32xbf16>, vector<8x32xf32> -> vector<8x32xf32>
    %239 = vector.broadcast %236 : vector<1x32xf32> to vector<8x32xf32>
    %240 = arith.addf %238, %239 : vector<8x32xf32>
    %c3 = arith.constant 3 : index
    %c0_62 = arith.constant 0 : index
    %c0_63 = arith.constant 0 : index
    %241 = vector.load %arg6[%c3, %c0_62, %c0_63] : memref<7x32x32xbf16, #tpu.memory_space<vmem>>, vector<1x32x32xbf16>
    %242 = vector.shape_cast %241 : vector<1x32x32xbf16> to vector<32x32xbf16>
    %243 = vector.extract_strided_slice %7 {offsets = [3, 0], sizes = [1, 32], strides = [1, 1]} : vector<7x32xf32> to vector<1x32xf32>
    %244 = arith.truncf %178 : vector<8x32xf32> to vector<8x32xbf16>
    %cst_64 = arith.constant dense<0.000000e+00> : vector<8x32xf32>
    %245 = tpu.matmul %244, %242, %cst_64 {dimension_numbers = #tpu.dot_dimension_numbers<[1], [0], [0], [1], [0, 0, 1, 1], [], []>} : vector<8x32xbf16>, vector<32x32xbf16>, vector<8x32xf32> -> vector<8x32xf32>
    %246 = vector.broadcast %243 : vector<1x32xf32> to vector<8x32xf32>
    %247 = arith.addf %245, %246 : vector<8x32xf32>
    %248 = arith.truncf %233 : vector<8x32xf32> to vector<8x32xbf16>
    %249 = vector.extract_strided_slice %248 {offsets = [0, 0], sizes = [8, 4], strides = [1, 1]} : vector<8x32xbf16> to vector<8x4xbf16>
    %250 = vector.shape_cast %249 : vector<8x4xbf16> to vector<1x1x8x4xbf16>
    %251 = vector.extract_strided_slice %248 {offsets = [0, 4], sizes = [8, 4], strides = [1, 1]} : vector<8x32xbf16> to vector<8x4xbf16>
    %252 = vector.shape_cast %251 : vector<8x4xbf16> to vector<1x1x8x4xbf16>
    %253 = vector.extract_strided_slice %248 {offsets = [0, 8], sizes = [8, 4], strides = [1, 1]} : vector<8x32xbf16> to vector<8x4xbf16>
    %254 = vector.shape_cast %253 : vector<8x4xbf16> to vector<1x1x8x4xbf16>
    %255 = vector.extract_strided_slice %248 {offsets = [0, 12], sizes = [8, 4], strides = [1, 1]} : vector<8x32xbf16> to vector<8x4xbf16>
    %256 = vector.shape_cast %255 : vector<8x4xbf16> to vector<1x1x8x4xbf16>
    %257 = vector.extract_strided_slice %248 {offsets = [0, 16], sizes = [8, 4], strides = [1, 1]} : vector<8x32xbf16> to vector<8x4xbf16>
    %258 = vector.shape_cast %257 : vector<8x4xbf16> to vector<1x1x8x4xbf16>
    %259 = vector.extract_strided_slice %248 {offsets = [0, 20], sizes = [8, 4], strides = [1, 1]} : vector<8x32xbf16> to vector<8x4xbf16>
    %260 = vector.shape_cast %259 : vector<8x4xbf16> to vector<1x1x8x4xbf16>
    %261 = vector.extract_strided_slice %248 {offsets = [0, 24], sizes = [8, 4], strides = [1, 1]} : vector<8x32xbf16> to vector<8x4xbf16>
    %262 = vector.shape_cast %261 : vector<8x4xbf16> to vector<1x1x8x4xbf16>
    %263 = vector.extract_strided_slice %248 {offsets = [0, 28], sizes = [8, 4], strides = [1, 1]} : vector<8x32xbf16> to vector<8x4xbf16>
    %264 = vector.shape_cast %263 : vector<8x4xbf16> to vector<1x1x8x4xbf16>
    %265 = tpu.concatenate %250, %252, %254, %256, %258, %260, %262, %264 in 0 : vector<1x1x8x4xbf16>, vector<1x1x8x4xbf16>, vector<1x1x8x4xbf16>, vector<1x1x8x4xbf16>, vector<1x1x8x4xbf16>, vector<1x1x8x4xbf16>, vector<1x1x8x4xbf16>, vector<1x1x8x4xbf16> -> vector<8x1x8x4xbf16>
    %266 = vector.shape_cast %265 : vector<8x1x8x4xbf16> to vector<8x8x4xbf16>
    %267 = arith.truncf %240 : vector<8x32xf32> to vector<8x32xbf16>
    %268 = vector.extract_strided_slice %267 {offsets = [0, 0], sizes = [8, 4], strides = [1, 1]} : vector<8x32xbf16> to vector<8x4xbf16>
    %269 = vector.shape_cast %268 : vector<8x4xbf16> to vector<1x1x8x4xbf16>
    %270 = vector.extract_strided_slice %267 {offsets = [0, 4], sizes = [8, 4], strides = [1, 1]} : vector<8x32xbf16> to vector<8x4xbf16>
    %271 = vector.shape_cast %270 : vector<8x4xbf16> to vector<1x1x8x4xbf16>
    %272 = vector.extract_strided_slice %267 {offsets = [0, 8], sizes = [8, 4], strides = [1, 1]} : vector<8x32xbf16> to vector<8x4xbf16>
    %273 = vector.shape_cast %272 : vector<8x4xbf16> to vector<1x1x8x4xbf16>
    %274 = vector.extract_strided_slice %267 {offsets = [0, 12], sizes = [8, 4], strides = [1, 1]} : vector<8x32xbf16> to vector<8x4xbf16>
    %275 = vector.shape_cast %274 : vector<8x4xbf16> to vector<1x1x8x4xbf16>
    %276 = vector.extract_strided_slice %267 {offsets = [0, 16], sizes = [8, 4], strides = [1, 1]} : vector<8x32xbf16> to vector<8x4xbf16>
    %277 = vector.shape_cast %276 : vector<8x4xbf16> to vector<1x1x8x4xbf16>
    %278 = vector.extract_strided_slice %267 {offsets = [0, 20], sizes = [8, 4], strides = [1, 1]} : vector<8x32xbf16> to vector<8x4xbf16>
    %279 = vector.shape_cast %278 : vector<8x4xbf16> to vector<1x1x8x4xbf16>
    %280 = vector.extract_strided_slice %267 {offsets = [0, 24], sizes = [8, 4], strides = [1, 1]} : vector<8x32xbf16> to vector<8x4xbf16>
    %281 = vector.shape_cast %280 : vector<8x4xbf16> to vector<1x1x8x4xbf16>
    %282 = vector.extract_strided_slice %267 {offsets = [0, 28], sizes = [8, 4], strides = [1, 1]} : vector<8x32xbf16> to vector<8x4xbf16>
    %283 = vector.shape_cast %282 : vector<8x4xbf16> to vector<1x1x8x4xbf16>
    %284 = tpu.concatenate %269, %271, %273, %275, %277, %279, %281, %283 in 0 : vector<1x1x8x4xbf16>, vector<1x1x8x4xbf16>, vector<1x1x8x4xbf16>, vector<1x1x8x4xbf16>, vector<1x1x8x4xbf16>, vector<1x1x8x4xbf16>, vector<1x1x8x4xbf16>, vector<1x1x8x4xbf16> -> vector<8x1x8x4xbf16>
    %285 = vector.shape_cast %284 : vector<8x1x8x4xbf16> to vector<8x8x4xbf16>
    %286 = arith.truncf %247 : vector<8x32xf32> to vector<8x32xbf16>
    %287 = vector.extract_strided_slice %286 {offsets = [0, 0], sizes = [8, 4], strides = [1, 1]} : vector<8x32xbf16> to vector<8x4xbf16>
    %288 = vector.shape_cast %287 : vector<8x4xbf16> to vector<1x1x8x4xbf16>
    %289 = vector.extract_strided_slice %286 {offsets = [0, 4], sizes = [8, 4], strides = [1, 1]} : vector<8x32xbf16> to vector<8x4xbf16>
    %290 = vector.shape_cast %289 : vector<8x4xbf16> to vector<1x1x8x4xbf16>
    %291 = vector.extract_strided_slice %286 {offsets = [0, 8], sizes = [8, 4], strides = [1, 1]} : vector<8x32xbf16> to vector<8x4xbf16>
    %292 = vector.shape_cast %291 : vector<8x4xbf16> to vector<1x1x8x4xbf16>
    %293 = vector.extract_strided_slice %286 {offsets = [0, 12], sizes = [8, 4], strides = [1, 1]} : vector<8x32xbf16> to vector<8x4xbf16>
    %294 = vector.shape_cast %293 : vector<8x4xbf16> to vector<1x1x8x4xbf16>
    %295 = vector.extract_strided_slice %286 {offsets = [0, 16], sizes = [8, 4], strides = [1, 1]} : vector<8x32xbf16> to vector<8x4xbf16>
    %296 = vector.shape_cast %295 : vector<8x4xbf16> to vector<1x1x8x4xbf16>
    %297 = vector.extract_strided_slice %286 {offsets = [0, 20], sizes = [8, 4], strides = [1, 1]} : vector<8x32xbf16> to vector<8x4xbf16>
    %298 = vector.shape_cast %297 : vector<8x4xbf16> to vector<1x1x8x4xbf16>
    %299 = vector.extract_strided_slice %286 {offsets = [0, 24], sizes = [8, 4], strides = [1, 1]} : vector<8x32xbf16> to vector<8x4xbf16>
    %300 = vector.shape_cast %299 : vector<8x4xbf16> to vector<1x1x8x4xbf16>
    %301 = vector.extract_strided_slice %286 {offsets = [0, 28], sizes = [8, 4], strides = [1, 1]} : vector<8x32xbf16> to vector<8x4xbf16>
    %302 = vector.shape_cast %301 : vector<8x4xbf16> to vector<1x1x8x4xbf16>
    %303 = tpu.concatenate %288, %290, %292, %294, %296, %298, %300, %302 in 0 : vector<1x1x8x4xbf16>, vector<1x1x8x4xbf16>, vector<1x1x8x4xbf16>, vector<1x1x8x4xbf16>, vector<1x1x8x4xbf16>, vector<1x1x8x4xbf16>, vector<1x1x8x4xbf16>, vector<1x1x8x4xbf16> -> vector<8x1x8x4xbf16>
    %304 = vector.shape_cast %303 : vector<8x1x8x4xbf16> to vector<8x8x4xbf16>
    "tpu.trace_start"() <{level = 10 : i32, message = "bqd,bkd->bqk"}> : () -> ()
    %cst_65 = arith.constant dense<0.000000e+00> : vector<8x8x8xf32>
    %305 = tpu.matmul %266, %285, %cst_65 {dimension_numbers = #tpu.dot_dimension_numbers<[2], [2], [1], [1], [0, 0, 0, 1, 1, 1], [0], [0]>} : vector<8x8x4xbf16>, vector<8x8x4xbf16>, vector<8x8x8xf32> -> vector<8x8x8xf32>
    "tpu.trace_stop"() : () -> ()
    %cst_66 = arith.constant dense<0xFF800000> : vector<8x8xf32>
    %306 = vector.multi_reduction <maximumf>, %305, %cst_66 [2] : vector<8x8x8xf32> to vector<8x8xf32>
    %307 = vector.shape_cast %306 : vector<8x8xf32> to vector<8x8x1xf32>
    %308 = vector.broadcast %307 : vector<8x8x1xf32> to vector<8x8x8xf32>
    %309 = arith.subf %305, %308 : vector<8x8x8xf32>
    %310 = math.exp %309 : vector<8x8x8xf32>
    %cst_67 = arith.constant dense<0.000000e+00> : vector<8x8xf32>
    %311 = vector.multi_reduction <add>, %310, %cst_67 [2] : vector<8x8x8xf32> to vector<8x8xf32>
    %312 = vector.shape_cast %311 : vector<8x8xf32> to vector<8x8x1xf32>
    %313 = tpu.reciprocal %312 {approx = true} : vector<8x8x1xf32> -> vector<8x8x1xf32>
    %314 = arith.mulf %312, %313 : vector<8x8x1xf32>
    %cst_68 = arith.constant 2.000000e+00 : f32
    %315 = vector.broadcast %cst_68 : f32 to vector<8x8x1xf32>
    %316 = arith.subf %315, %314 : vector<8x8x1xf32>
    %317 = arith.mulf %313, %316 : vector<8x8x1xf32>
    %318 = vector.broadcast %317 : vector<8x8x1xf32> to vector<8x8x8xf32>
    %319 = arith.mulf %310, %318 : vector<8x8x8xf32>
    %320 = arith.truncf %319 : vector<8x8x8xf32> to vector<8x8x8xbf16>
    "tpu.trace_start"() <{level = 10 : i32, message = "bqk,bkd->bqd"}> : () -> ()
    %cst_69 = arith.constant dense<0.000000e+00> : vector<8x8x4xf32>
    %321 = tpu.matmul %320, %304, %cst_69 {dimension_numbers = #tpu.dot_dimension_numbers<[2], [1], [1], [2], [0, 0, 0, 1, 1, 2], [0], [0]>} : vector<8x8x8xbf16>, vector<8x8x4xbf16>, vector<8x8x4xf32> -> vector<8x8x4xf32>
    "tpu.trace_stop"() : () -> ()
    %322 = vector.extract_strided_slice %321 {offsets = [0, 0, 0], sizes = [1, 8, 4], strides = [1, 1, 1]} : vector<8x8x4xf32> to vector<1x8x4xf32>
    %323 = vector.shape_cast %322 : vector<1x8x4xf32> to vector<8x4xf32>
    %324 = arith.truncf %323 : vector<8x4xf32> to vector<8x4xbf16>
    %c0_70 = arith.constant 0 : index
    %c0_71 = arith.constant 0 : index
    %325 = vector.load %arg10[%c0_70, %c0_71] : memref<8x32xbf16, #tpu.memory_space<vmem>>, vector<8x4xbf16>
    tpu.vector_store %arg10[%c0_70, %c0_71], %324 {strides = array<i32>} : memref<8x32xbf16, #tpu.memory_space<vmem>>, vector<8x4xbf16>,
    %326 = vector.extract_strided_slice %321 {offsets = [1, 0, 0], sizes = [1, 8, 4], strides = [1, 1, 1]} : vector<8x8x4xf32> to vector<1x8x4xf32>
    %327 = vector.shape_cast %326 : vector<1x8x4xf32> to vector<8x4xf32>
    %328 = arith.truncf %327 : vector<8x4xf32> to vector<8x4xbf16>
    %c0_72 = arith.constant 0 : index
    %c4_73 = arith.constant 4 : index
    %329 = vector.load %arg10[%c0_72, %c4_73] : memref<8x32xbf16, #tpu.memory_space<vmem>>, vector<8x4xbf16>
    tpu.vector_store %arg10[%c0_72, %c4_73], %328 {strides = array<i32>} : memref<8x32xbf16, #tpu.memory_space<vmem>>, vector<8x4xbf16>,
    %330 = vector.extract_strided_slice %321 {offsets = [2, 0, 0], sizes = [1, 8, 4], strides = [1, 1, 1]} : vector<8x8x4xf32> to vector<1x8x4xf32>
    %331 = vector.shape_cast %330 : vector<1x8x4xf32> to vector<8x4xf32>
    %332 = arith.truncf %331 : vector<8x4xf32> to vector<8x4xbf16>
    %c0_74 = arith.constant 0 : index
    %c8_75 = arith.constant 8 : index
    %333 = vector.load %arg10[%c0_74, %c8_75] : memref<8x32xbf16, #tpu.memory_space<vmem>>, vector<8x4xbf16>
    tpu.vector_store %arg10[%c0_74, %c8_75], %332 {strides = array<i32>} : memref<8x32xbf16, #tpu.memory_space<vmem>>, vector<8x4xbf16>,
    %334 = vector.extract_strided_slice %321 {offsets = [3, 0, 0], sizes = [1, 8, 4], strides = [1, 1, 1]} : vector<8x8x4xf32> to vector<1x8x4xf32>
    %335 = vector.shape_cast %334 : vector<1x8x4xf32> to vector<8x4xf32>
    %336 = arith.truncf %335 : vector<8x4xf32> to vector<8x4xbf16>
    %c0_76 = arith.constant 0 : index
    %c12_77 = arith.constant 12 : index
    %337 = vector.load %arg10[%c0_76, %c12_77] : memref<8x32xbf16, #tpu.memory_space<vmem>>, vector<8x4xbf16>
    tpu.vector_store %arg10[%c0_76, %c12_77], %336 {strides = array<i32>} : memref<8x32xbf16, #tpu.memory_space<vmem>>, vector<8x4xbf16>,
    %338 = vector.extract_strided_slice %321 {offsets = [4, 0, 0], sizes = [1, 8, 4], strides = [1, 1, 1]} : vector<8x8x4xf32> to vector<1x8x4xf32>
    %339 = vector.shape_cast %338 : vector<1x8x4xf32> to vector<8x4xf32>
    %340 = arith.truncf %339 : vector<8x4xf32> to vector<8x4xbf16>
    %c0_78 = arith.constant 0 : index
    %c16_79 = arith.constant 16 : index
    %341 = vector.load %arg10[%c0_78, %c16_79] : memref<8x32xbf16, #tpu.memory_space<vmem>>, vector<8x4xbf16>
    tpu.vector_store %arg10[%c0_78, %c16_79], %340 {strides = array<i32>} : memref<8x32xbf16, #tpu.memory_space<vmem>>, vector<8x4xbf16>,
    %342 = vector.extract_strided_slice %321 {offsets = [5, 0, 0], sizes = [1, 8, 4], strides = [1, 1, 1]} : vector<8x8x4xf32> to vector<1x8x4xf32>
    %343 = vector.shape_cast %342 : vector<1x8x4xf32> to vector<8x4xf32>
    %344 = arith.truncf %343 : vector<8x4xf32> to vector<8x4xbf16>
    %c0_80 = arith.constant 0 : index
    %c20_81 = arith.constant 20 : index
    %345 = vector.load %arg10[%c0_80, %c20_81] : memref<8x32xbf16, #tpu.memory_space<vmem>>, vector<8x4xbf16>
    tpu.vector_store %arg10[%c0_80, %c20_81], %344 {strides = array<i32>} : memref<8x32xbf16, #tpu.memory_space<vmem>>, vector<8x4xbf16>,
    %346 = vector.extract_strided_slice %321 {offsets = [6, 0, 0], sizes = [1, 8, 4], strides = [1, 1, 1]} : vector<8x8x4xf32> to vector<1x8x4xf32>
    %347 = vector.shape_cast %346 : vector<1x8x4xf32> to vector<8x4xf32>
    %348 = arith.truncf %347 : vector<8x4xf32> to vector<8x4xbf16>
    %c0_82 = arith.constant 0 : index
    %c24_83 = arith.constant 24 : index
    %349 = vector.load %arg10[%c0_82, %c24_83] : memref<8x32xbf16, #tpu.memory_space<vmem>>, vector<8x4xbf16>
    tpu.vector_store %arg10[%c0_82, %c24_83], %348 {strides = array<i32>} : memref<8x32xbf16, #tpu.memory_space<vmem>>, vector<8x4xbf16>,
    %350 = vector.extract_strided_slice %321 {offsets = [7, 0, 0], sizes = [1, 8, 4], strides = [1, 1, 1]} : vector<8x8x4xf32> to vector<1x8x4xf32>
    %351 = vector.shape_cast %350 : vector<1x8x4xf32> to vector<8x4xf32>
    %352 = arith.truncf %351 : vector<8x4xf32> to vector<8x4xbf16>
    %c0_84 = arith.constant 0 : index
    %c28_85 = arith.constant 28 : index
    %353 = vector.load %arg10[%c0_84, %c28_85] : memref<8x32xbf16, #tpu.memory_space<vmem>>, vector<8x4xbf16>
    tpu.vector_store %arg10[%c0_84, %c28_85], %352 {strides = array<i32>} : memref<8x32xbf16, #tpu.memory_space<vmem>>, vector<8x4xbf16>,
    %c0_86 = arith.constant 0 : index
    %c0_87 = arith.constant 0 : index
    %354 = vector.load %arg10[%c0_86, %c0_87] : memref<8x32xbf16, #tpu.memory_space<vmem>>, vector<8x32xbf16>
    %c4_88 = arith.constant 4 : index
    %c0_89 = arith.constant 0 : index
    %c0_90 = arith.constant 0 : index
    %355 = vector.load %arg6[%c4_88, %c0_89, %c0_90] : memref<7x32x32xbf16, #tpu.memory_space<vmem>>, vector<1x32x32xbf16>
    %356 = vector.shape_cast %355 : vector<1x32x32xbf16> to vector<32x32xbf16>
    %357 = vector.extract_strided_slice %7 {offsets = [4, 0], sizes = [1, 32], strides = [1, 1]} : vector<7x32xf32> to vector<1x32xf32>
    %cst_91 = arith.constant dense<0.000000e+00> : vector<8x32xf32>
    %358 = tpu.matmul %354, %356, %cst_91 {dimension_numbers = #tpu.dot_dimension_numbers<[1], [0], [0], [1], [0, 0, 1, 1], [], []>} : vector<8x32xbf16>, vector<32x32xbf16>, vector<8x32xf32> -> vector<8x32xf32>
    %359 = vector.broadcast %357 : vector<1x32xf32> to vector<8x32xf32>
    %360 = arith.addf %358, %359 : vector<8x32xf32>
    %361 = arith.addf %154, %360 : vector<8x32xf32>
    %362 = vector.extract_strided_slice %6 {offsets = [8, 0], sizes = [1, 32], strides = [1, 1]} : vector<10x32xf32> to vector<1x32xf32>
    %363 = vector.extract_strided_slice %6 {offsets = [9, 0], sizes = [1, 32], strides = [1, 1]} : vector<10x32xf32> to vector<1x32xf32>
    %cst_92 = arith.constant dense<0.000000e+00> : vector<8xf32>
    %364 = vector.multi_reduction <add>, %361, %cst_92 [1] : vector<8x32xf32> to vector<8xf32>
    %365 = vector.shape_cast %364 : vector<8xf32> to vector<8x1xf32>
    %cst_93 = arith.constant 3.200000e+01 : f32
    %366 = vector.broadcast %cst_93 : f32 to vector<8x1xf32>
    %367 = arith.divf %365, %366 : vector<8x1xf32>
    %368 = vector.broadcast %367 : vector<8x1xf32> to vector<8x32xf32>
    %369 = arith.subf %361, %368 : vector<8x32xf32>
    %370 = arith.mulf %369, %369 : vector<8x32xf32>
    %cst_94 = arith.constant dense<0.000000e+00> : vector<8xf32>
    %371 = vector.multi_reduction <add>, %370, %cst_94 [1] : vector<8x32xf32> to vector<8xf32>
    %372 = vector.shape_cast %371 : vector<8xf32> to vector<8x1xf32>
    %cst_95 = arith.constant 3.200000e+01 : f32
    %373 = vector.broadcast %cst_95 : f32 to vector<8x1xf32>
    %374 = arith.divf %372, %373 : vector<8x1xf32>
    %375 = vector.broadcast %367 : vector<8x1xf32> to vector<8x32xf32>
    %376 = arith.subf %361, %375 : vector<8x32xf32>
    %cst_96 = arith.constant 9.99999974E-6 : f32
    %377 = vector.broadcast %cst_96 : f32 to vector<8x1xf32>
    %378 = arith.addf %374, %377 : vector<8x1xf32>
    %379 = math.rsqrt %378 : vector<8x1xf32>
    %380 = vector.broadcast %379 : vector<8x1xf32> to vector<8x32xf32>
    %381 = arith.mulf %376, %380 : vector<8x32xf32>
    %382 = vector.broadcast %362 : vector<1x32xf32> to vector<8x32xf32>
    %383 = arith.mulf %381, %382 : vector<8x32xf32>
    %384 = vector.broadcast %363 : vector<1x32xf32> to vector<8x32xf32>
    %385 = arith.addf %383, %384 : vector<8x32xf32>
    %c5 = arith.constant 5 : index
    %c0_97 = arith.constant 0 : index
    %c0_98 = arith.constant 0 : index
    %386 = vector.load %arg6[%c5, %c0_97, %c0_98] : memref<7x32x32xbf16, #tpu.memory_space<vmem>>, vector<1x32x32xbf16>
    %387 = vector.shape_cast %386 : vector<1x32x32xbf16> to vector<32x32xbf16>
    %388 = vector.extract_strided_slice %7 {offsets = [5, 0], sizes = [1, 32], strides = [1, 1]} : vector<7x32xf32> to vector<1x32xf32>
    %389 = arith.truncf %385 : vector<8x32xf32> to vector<8x32xbf16>
    %cst_99 = arith.constant dense<0.000000e+00> : vector<8x32xf32>
    %390 = tpu.matmul %389, %387, %cst_99 {dimension_numbers = #tpu.dot_dimension_numbers<[1], [0], [0], [1], [0, 0, 1, 1], [], []>} : vector<8x32xbf16>, vector<32x32xbf16>, vector<8x32xf32> -> vector<8x32xf32>
    %391 = vector.broadcast %388 : vector<1x32xf32> to vector<8x32xf32>
    %392 = arith.addf %390, %391 : vector<8x32xf32>
    %cst_100 = arith.constant 5.000000e-01 : f32
    %393 = vector.broadcast %cst_100 : f32 to vector<8x32xf32>
    %394 = arith.mulf %393, %392 : vector<8x32xf32>
    %395 = arith.mulf %392, %392 : vector<8x32xf32>
    %396 = arith.mulf %395, %392 : vector<8x32xf32>
    %cst_101 = arith.constant 4.471500e-02 : f32
    %397 = vector.broadcast %cst_101 : f32 to vector<8x32xf32>
    %398 = arith.mulf %397, %396 : vector<8x32xf32>
    %399 = arith.addf %392, %398 : vector<8x32xf32>
    %cst_102 = arith.constant 0.797884583 : f32
    %400 = vector.broadcast %cst_102 : f32 to vector<8x32xf32>
    %401 = arith.mulf %400, %399 : vector<8x32xf32>
    %402 = math.tanh %401 : vector<8x32xf32>
    %cst_103 = arith.constant 1.000000e+00 : f32
    %403 = vector.broadcast %cst_103 : f32 to vector<8x32xf32>
    %404 = arith.addf %403, %402 : vector<8x32xf32>
    %405 = arith.mulf %394, %404 : vector<8x32xf32>
    %c6 = arith.constant 6 : index
    %c0_104 = arith.constant 0 : index
    %c0_105 = arith.constant 0 : index
    %406 = vector.load %arg6[%c6, %c0_104, %c0_105] : memref<7x32x32xbf16, #tpu.memory_space<vmem>>, vector<1x32x32xbf16>
    %407 = vector.shape_cast %406 : vector<1x32x32xbf16> to vector<32x32xbf16>
    %408 = vector.extract_strided_slice %7 {offsets = [6, 0], sizes = [1, 32], strides = [1, 1]} : vector<7x32xf32> to vector<1x32xf32>
    %409 = arith.truncf %405 : vector<8x32xf32> to vector<8x32xbf16>
    %cst_106 = arith.constant dense<0.000000e+00> : vector<8x32xf32>
    %410 = tpu.matmul %409, %407, %cst_106 {dimension_numbers = #tpu.dot_dimension_numbers<[1], [0], [0], [1], [0, 0, 1, 1], [], []>} : vector<8x32xbf16>, vector<32x32xbf16>, vector<8x32xf32> -> vector<8x32xf32>
    %411 = vector.broadcast %408 : vector<1x32xf32> to vector<8x32xf32>
    %412 = arith.addf %410, %411 : vector<8x32xf32>
    %413 = arith.addf %361, %412 : vector<8x32xf32>
    %414 = vector.shape_cast %413 : vector<8x32xf32> to vector<1x8x32xf32>
    %c0_107 = arith.constant 0 : index
    %c0_108 = arith.constant 0 : index
    %c0_109 = arith.constant 0 : index
    %415 = vector.load %arg9[%c0_107, %c0_108, %c0_109] : memref<1x8x32xf32, #tpu.memory_space<vmem>>, vector<1x8x32xf32>
    tpu.vector_store %arg9[%c0_107, %c0_108, %c0_109], %414 {strides = array<i32>} : memref<1x8x32xf32, #tpu.memory_space<vmem>>, vector<1x8x32xf32>,
    return
  }
  func.func @transform_0(%arg0: i32) -> (i32, i32, i32) {
    %c0_i32 = arith.constant 0 : i32
    %c0_i32_0 = arith.constant 0 : i32
    %c0_i32_1 = arith.constant 0 : i32
    return %arg0, %c0_i32, %c0_i32_0 : i32, i32, i32
  }
  func.func @transform_1(%arg0: i32) -> (i32, i32, i32) {
    %c0_i32 = arith.constant 0 : i32
    %c0_i32_0 = arith.constant 0 : i32
    %c0_i32_1 = arith.constant 0 : i32
    return %arg0, %c0_i32, %c0_i32_0 : i32, i32, i32
  }
  func.func @transform_2(%arg0: i32) -> (i32, i32, i32) {
    %c0_i32 = arith.constant 0 : i32
    %c0_i32_0 = arith.constant 0 : i32
    %c0_i32_1 = arith.constant 0 : i32
    return %arg0, %c0_i32, %c0_i32_0 : i32, i32, i32
  }
  func.func @transform_3(%arg0: i32) -> (i32, i32) {
    %c0_i32 = arith.constant 0 : i32
    %c0_i32_0 = arith.constant 0 : i32
    %c0_i32_1 = arith.constant 0 : i32
    return %c0_i32, %c0_i32_0 : i32, i32
  }
  func.func @transform_4(%arg0: i32) -> (i32, i32) {
    %c0_i32 = arith.constant 0 : i32
    %c0_i32_0 = arith.constant 0 : i32
    %c0_i32_1 = arith.constant 0 : i32
    return %c0_i32, %c0_i32_0 : i32, i32
  }
  func.func @transform_5(%arg0: i32) -> (i32, i32, i32) {
    %c0_i32 = arith.constant 0 : i32
    %c0_i32_0 = arith.constant 0 : i32
    %c0_i32_1 = arith.constant 0 : i32
    %c0_i32_2 = arith.constant 0 : i32
    return %c0_i32, %c0_i32_0, %c0_i32_1 : i32, i32, i32
  }
  func.func @transform_6(%arg0: i32) -> (i32, i32) {
    %c0_i32 = arith.constant 0 : i32
    %c0_i32_0 = arith.constant 0 : i32
    %c0_i32_1 = arith.constant 0 : i32
    return %c0_i32, %c0_i32_0 : i32, i32
  }
  func.func @transform_7(%arg0: i32) -> (i32, i32) {
    %c0_i32 = arith.constant 0 : i32
    %c0_i32_0 = arith.constant 0 : i32
    %c0_i32_1 = arith.constant 0 : i32
    return %c0_i32, %c0_i32_0 : i32, i32
  }
  func.func @transform_8(%arg0: i32) -> (i32, i32, i32) {
    %c0_i32 = arith.constant 0 : i32
    %c0_i32_0 = arith.constant 0 : i32
    %c0_i32_1 = arith.constant 0 : i32
    return %arg0, %c0_i32, %c0_i32_0 : i32, i32, i32
  }
}

module attributes {stable_mosaic.version = 11 : i64} {
  func.func @fusion_block_kernel(%arg0: i32, %arg1: memref<1x8x32xf32, #tpu.memory_space<vmem>>, %arg2: memref<1x8x32xf32, #tpu.memory_space<vmem>>, %arg3: memref<1x8x32xf32, #tpu.memory_space<vmem>>, %arg4: memref<32x96xbf16, #tpu.memory_space<vmem>>, %arg5: memref<1x96xf32, #tpu.memory_space<vmem>>, %arg6: memref<7x32x32xbf16, #tpu.memory_space<vmem>>, %arg7: memref<7x32xf32, #tpu.memory_space<vmem>>, %arg8: memref<10x32xf32, #tpu.memory_space<vmem>>, %arg9: memref<1x8x32xf32, #tpu.memory_space<vmem>>, %arg10: memref<8x32xbf16, #tpu.memory_space<vmem>>) attributes {dimension_semantics = [#tpu.dimension_semantics<parallel>], iteration_bounds = array<i64: 2>, scalar_prefetch = 0 : i64, scratch_operands = 1 : i64, tpu.core_type = #tpu.core_type<tc>, window_params = [{transform_indices = @transform_0, window_bounds = array<i64: 1, 8, 32>}, {transform_indices = @transform_1, window_bounds = array<i64: 1, 8, 32>}, {transform_indices = @transform_2, window_bounds = array<i64: 1, 8, 32>}, {pipeline_mode = #tpu.pipeline_mode<synchronous>, transform_indices = @transform_3, window_bounds = array<i64: 32, 96>}, {pipeline_mode = #tpu.pipeline_mode<synchronous>, transform_indices = @transform_4, window_bounds = array<i64: 1, 96>}, {pipeline_mode = #tpu.pipeline_mode<synchronous>, transform_indices = @transform_5, window_bounds = array<i64: 7, 32, 32>}, {pipeline_mode = #tpu.pipeline_mode<synchronous>, transform_indices = @transform_6, window_bounds = array<i64: 7, 32>}, {pipeline_mode = #tpu.pipeline_mode<synchronous>, transform_indices = @transform_7, window_bounds = array<i64: 10, 32>}, {transform_indices = @transform_8, window_bounds = array<i64: 1, 8, 32>}]} {
    %c0 = arith.constant 0 : index
    %c0_0 = arith.constant 0 : index
    %c0_1 = arith.constant 0 : index
    %0 = vector.load %arg1[%c0, %c0_0, %c0_1] : memref<1x8x32xf32, #tpu.memory_space<vmem>>, vector<1x8x32xf32>
    %1 = vector.shape_cast %0 : vector<1x8x32xf32> to vector<8x32xf32>
    %c0_2 = arith.constant 0 : index
    %c0_3 = arith.constant 0 : index
    %c0_4 = arith.constant 0 : index
    %2 = vector.load %arg2[%c0_2, %c0_3, %c0_4] : memref<1x8x32xf32, #tpu.memory_space<vmem>>, vector<1x8x32xf32>
    %3 = vector.shape_cast %2 : vector<1x8x32xf32> to vector<8x32xf32>
    %c0_5 = arith.constant 0 : index
    %c0_6 = arith.constant 0 : index
    %c0_7 = arith.constant 0 : index
    %4 = vector.load %arg3[%c0_5, %c0_6, %c0_7] : memref<1x8x32xf32, #tpu.memory_space<vmem>>, vector<1x8x32xf32>
    %5 = vector.shape_cast %4 : vector<1x8x32xf32> to vector<8x32xf32>
    %c0_8 = arith.constant 0 : index
    %c0_9 = arith.constant 0 : index
    %6 = vector.load %arg8[%c0_8, %c0_9] : memref<10x32xf32, #tpu.memory_space<vmem>>, vector<10x32xf32>
    %c0_10 = arith.constant 0 : index
    %c0_11 = arith.constant 0 : index
    %7 = vector.load %arg7[%c0_10, %c0_11] : memref<7x32xf32, #tpu.memory_space<vmem>>, vector<7x32xf32>
    %8 = vector.extract_strided_slice %6 {offsets = [0, 0], sizes = [1, 32], strides = [1, 1]} : vector<10x32xf32> to vector<1x32xf32>
    %9 = vector.extract_strided_slice %6 {offsets = [1, 0], sizes = [1, 32], strides = [1, 1]} : vector<10x32xf32> to vector<1x32xf32>
    %cst = arith.constant dense<0.000000e+00> : vector<8xf32>
    %10 = vector.multi_reduction <add>, %5, %cst [1] : vector<8x32xf32> to vector<8xf32>
    %11 = vector.shape_cast %10 : vector<8xf32> to vector<8x1xf32>
    %cst_12 = arith.constant 3.200000e+01 : f32
    %12 = vector.broadcast %cst_12 : f32 to vector<8x1xf32>
    %13 = arith.divf %11, %12 : vector<8x1xf32>
    %14 = vector.broadcast %13 : vector<8x1xf32> to vector<8x32xf32>
    %15 = arith.subf %5, %14 : vector<8x32xf32>
    %16 = arith.mulf %15, %15 : vector<8x32xf32>
    %cst_13 = arith.constant dense<0.000000e+00> : vector<8xf32>
    %17 = vector.multi_reduction <add>, %16, %cst_13 [1] : vector<8x32xf32> to vector<8xf32>
    %18 = vector.shape_cast %17 : vector<8xf32> to vector<8x1xf32>
    %cst_14 = arith.constant 3.200000e+01 : f32
    %19 = vector.broadcast %cst_14 : f32 to vector<8x1xf32>
    %20 = arith.divf %18, %19 : vector<8x1xf32>
    %21 = vector.broadcast %13 : vector<8x1xf32> to vector<8x32xf32>
    %22 = arith.subf %5, %21 : vector<8x32xf32>
    %cst_15 = arith.constant 9.99999974E-6 : f32
    %23 = vector.broadcast %cst_15 : f32 to vector<8x1xf32>
    %24 = arith.addf %20, %23 : vector<8x1xf32>
    %25 = math.rsqrt %24 : vector<8x1xf32>
    %26 = vector.broadcast %25 : vector<8x1xf32> to vector<8x32xf32>
    %27 = arith.mulf %22, %26 : vector<8x32xf32>
    %28 = vector.broadcast %8 : vector<1x32xf32> to vector<8x32xf32>
    %29 = arith.mulf %27, %28 : vector<8x32xf32>
    %30 = vector.broadcast %9 : vector<1x32xf32> to vector<8x32xf32>
    %31 = arith.addf %29, %30 : vector<8x32xf32>
    %c0_16 = arith.constant 0 : index
    %c0_17 = arith.constant 0 : index
    %32 = vector.load %arg4[%c0_16, %c0_17] : memref<32x96xbf16, #tpu.memory_space<vmem>>, vector<32x96xbf16>
    %c0_18 = arith.constant 0 : index
    %c0_19 = arith.constant 0 : index
    %33 = vector.load %arg5[%c0_18, %c0_19] : memref<1x96xf32, #tpu.memory_space<vmem>>, vector<1x96xf32>
    %34 = arith.truncf %31 : vector<8x32xf32> to vector<8x32xbf16>
    %cst_20 = arith.constant dense<0.000000e+00> : vector<8x96xf32>
    %35 = tpu.matmul %34, %32, %cst_20 {dimension_numbers = #tpu.dot_dimension_numbers<[1], [0], [0], [1], [0, 0, 1, 1], [], []>} : vector<8x32xbf16>, vector<32x96xbf16>, vector<8x96xf32> -> vector<8x96xf32>
    %36 = vector.broadcast %33 : vector<1x96xf32> to vector<8x96xf32>
    %37 = arith.addf %35, %36 : vector<8x96xf32>
    %38 = vector.extract_strided_slice %37 {offsets = [0, 0], sizes = [8, 32], strides = [1, 1]} : vector<8x96xf32> to vector<8x32xf32>
    %39 = vector.extract_strided_slice %37 {offsets = [0, 32], sizes = [8, 32], strides = [1, 1]} : vector<8x96xf32> to vector<8x32xf32>
    %40 = vector.extract_strided_slice %37 {offsets = [0, 64], sizes = [8, 32], strides = [1, 1]} : vector<8x96xf32> to vector<8x32xf32>
    %41 = arith.truncf %38 : vector<8x32xf32> to vector<8x32xbf16>
    %42 = vector.extract_strided_slice %41 {offsets = [0, 0], sizes = [8, 4], strides = [1, 1]} : vector<8x32xbf16> to vector<8x4xbf16>
    %43 = vector.shape_cast %42 : vector<8x4xbf16> to vector<1x1x8x4xbf16>
    %44 = vector.extract_strided_slice %41 {offsets = [0, 4], sizes = [8, 4], strides = [1, 1]} : vector<8x32xbf16> to vector<8x4xbf16>
    %45 = vector.shape_cast %44 : vector<8x4xbf16> to vector<1x1x8x4xbf16>
    %46 = vector.extract_strided_slice %41 {offsets = [0, 8], sizes = [8, 4], strides = [1, 1]} : vector<8x32xbf16> to vector<8x4xbf16>
    %47 = vector.shape_cast %46 : vector<8x4xbf16> to vector<1x1x8x4xbf16>
    %48 = vector.extract_strided_slice %41 {offsets = [0, 12], sizes = [8, 4], strides = [1, 1]} : vector<8x32xbf16> to vector<8x4xbf16>
    %49 = vector.shape_cast %48 : vector<8x4xbf16> to vector<1x1x8x4xbf16>
    %50 = vector.extract_strided_slice %41 {offsets = [0, 16], sizes = [8, 4], strides = [1, 1]} : vector<8x32xbf16> to vector<8x4xbf16>
    %51 = vector.shape_cast %50 : vector<8x4xbf16> to vector<1x1x8x4xbf16>
    %52 = vector.extract_strided_slice %41 {offsets = [0, 20], sizes = [8, 4], strides = [1, 1]} : vector<8x32xbf16> to vector<8x4xbf16>
    %53 = vector.shape_cast %52 : vector<8x4xbf16> to vector<1x1x8x4xbf16>
    %54 = vector.extract_strided_slice %41 {offsets = [0, 24], sizes = [8, 4], strides = [1, 1]} : vector<8x32xbf16> to vector<8x4xbf16>
    %55 = vector.shape_cast %54 : vector<8x4xbf16> to vector<1x1x8x4xbf16>
    %56 = vector.extract_strided_slice %41 {offsets = [0, 28], sizes = [8, 4], strides = [1, 1]} : vector<8x32xbf16> to vector<8x4xbf16>
    %57 = vector.shape_cast %56 : vector<8x4xbf16> to vector<1x1x8x4xbf16>
    %58 = tpu.concatenate %43, %45, %47, %49, %51, %53, %55, %57 in 0 : vector<1x1x8x4xbf16>, vector<1x1x8x4xbf16>, vector<1x1x8x4xbf16>, vector<1x1x8x4xbf16>, vector<1x1x8x4xbf16>, vector<1x1x8x4xbf16>, vector<1x1x8x4xbf16>, vector<1x1x8x4xbf16> -> vector<8x1x8x4xbf16>
    %59 = vector.shape_cast %58 : vector<8x1x8x4xbf16> to vector<8x8x4xbf16>
    %60 = arith.truncf %39 : vector<8x32xf32> to vector<8x32xbf16>
    %61 = vector.extract_strided_slice %60 {offsets = [0, 0], sizes = [8, 4], strides = [1, 1]} : vector<8x32xbf16> to vector<8x4xbf16>
    %62 = vector.shape_cast %61 : vector<8x4xbf16> to vector<1x1x8x4xbf16>
    %63 = vector.extract_strided_slice %60 {offsets = [0, 4], sizes = [8, 4], strides = [1, 1]} : vector<8x32xbf16> to vector<8x4xbf16>
    %64 = vector.shape_cast %63 : vector<8x4xbf16> to vector<1x1x8x4xbf16>
    %65 = vector.extract_strided_slice %60 {offsets = [0, 8], sizes = [8, 4], strides = [1, 1]} : vector<8x32xbf16> to vector<8x4xbf16>
    %66 = vector.shape_cast %65 : vector<8x4xbf16> to vector<1x1x8x4xbf16>
    %67 = vector.extract_strided_slice %60 {offsets = [0, 12], sizes = [8, 4], strides = [1, 1]} : vector<8x32xbf16> to vector<8x4xbf16>
    %68 = vector.shape_cast %67 : vector<8x4xbf16> to vector<1x1x8x4xbf16>
    %69 = vector.extract_strided_slice %60 {offsets = [0, 16], sizes = [8, 4], strides = [1, 1]} : vector<8x32xbf16> to vector<8x4xbf16>
    %70 = vector.shape_cast %69 : vector<8x4xbf16> to vector<1x1x8x4xbf16>
    %71 = vector.extract_strided_slice %60 {offsets = [0, 20], sizes = [8, 4], strides = [1, 1]} : vector<8x32xbf16> to vector<8x4xbf16>
    %72 = vector.shape_cast %71 : vector<8x4xbf16> to vector<1x1x8x4xbf16>
    %73 = vector.extract_strided_slice %60 {offsets = [0, 24], sizes = [8, 4], strides = [1, 1]} : vector<8x32xbf16> to vector<8x4xbf16>
    %74 = vector.shape_cast %73 : vector<8x4xbf16> to vector<1x1x8x4xbf16>
    %75 = vector.extract_strided_slice %60 {offsets = [0, 28], sizes = [8, 4], strides = [1, 1]} : vector<8x32xbf16> to vector<8x4xbf16>
    %76 = vector.shape_cast %75 : vector<8x4xbf16> to vector<1x1x8x4xbf16>
    %77 = tpu.concatenate %62, %64, %66, %68, %70, %72, %74, %76 in 0 : vector<1x1x8x4xbf16>, vector<1x1x8x4xbf16>, vector<1x1x8x4xbf16>, vector<1x1x8x4xbf16>, vector<1x1x8x4xbf16>, vector<1x1x8x4xbf16>, vector<1x1x8x4xbf16>, vector<1x1x8x4xbf16> -> vector<8x1x8x4xbf16>
    %78 = vector.shape_cast %77 : vector<8x1x8x4xbf16> to vector<8x8x4xbf16>
    %79 = arith.truncf %40 : vector<8x32xf32> to vector<8x32xbf16>
    %80 = vector.extract_strided_slice %79 {offsets = [0, 0], sizes = [8, 4], strides = [1, 1]} : vector<8x32xbf16> to vector<8x4xbf16>
    %81 = vector.shape_cast %80 : vector<8x4xbf16> to vector<1x1x8x4xbf16>
    %82 = vector.extract_strided_slice %79 {offsets = [0, 4], sizes = [8, 4], strides = [1, 1]} : vector<8x32xbf16> to vector<8x4xbf16>
    %83 = vector.shape_cast %82 : vector<8x4xbf16> to vector<1x1x8x4xbf16>
    %84 = vector.extract_strided_slice %79 {offsets = [0, 8], sizes = [8, 4], strides = [1, 1]} : vector<8x32xbf16> to vector<8x4xbf16>
    %85 = vector.shape_cast %84 : vector<8x4xbf16> to vector<1x1x8x4xbf16>
    %86 = vector.extract_strided_slice %79 {offsets = [0, 12], sizes = [8, 4], strides = [1, 1]} : vector<8x32xbf16> to vector<8x4xbf16>
    %87 = vector.shape_cast %86 : vector<8x4xbf16> to vector<1x1x8x4xbf16>
    %88 = vector.extract_strided_slice %79 {offsets = [0, 16], sizes = [8, 4], strides = [1, 1]} : vector<8x32xbf16> to vector<8x4xbf16>
    %89 = vector.shape_cast %88 : vector<8x4xbf16> to vector<1x1x8x4xbf16>
    %90 = vector.extract_strided_slice %79 {offsets = [0, 20], sizes = [8, 4], strides = [1, 1]} : vector<8x32xbf16> to vector<8x4xbf16>
    %91 = vector.shape_cast %90 : vector<8x4xbf16> to vector<1x1x8x4xbf16>
    %92 = vector.extract_strided_slice %79 {offsets = [0, 24], sizes = [8, 4], strides = [1, 1]} : vector<8x32xbf16> to vector<8x4xbf16>
    %93 = vector.shape_cast %92 : vector<8x4xbf16> to vector<1x1x8x4xbf16>
    %94 = vector.extract_strided_slice %79 {offsets = [0, 28], sizes = [8, 4], strides = [1, 1]} : vector<8x32xbf16> to vector<8x4xbf16>
    %95 = vector.shape_cast %94 : vector<8x4xbf16> to vector<1x1x8x4xbf16>
    %96 = tpu.concatenate %81, %83, %85, %87, %89, %91, %93, %95 in 0 : vector<1x1x8x4xbf16>, vector<1x1x8x4xbf16>, vector<1x1x8x4xbf16>, vector<1x1x8x4xbf16>, vector<1x1x8x4xbf16>, vector<1x1x8x4xbf16>, vector<1x1x8x4xbf16>, vector<1x1x8x4xbf16> -> vector<8x1x8x4xbf16>
    %97 = vector.shape_cast %96 : vector<8x1x8x4xbf16> to vector<8x8x4xbf16>
    "tpu.trace_start"() <{level = 10 : i32, message = "bqd,bkd->bqk"}> : () -> ()
    %cst_21 = arith.constant dense<0.000000e+00> : vector<8x8x8xf32>
    %98 = tpu.matmul %59, %78, %cst_21 {dimension_numbers = #tpu.dot_dimension_numbers<[2], [2], [1], [1], [0, 0, 0, 1, 1, 1], [0], [0]>} : vector<8x8x4xbf16>, vector<8x8x4xbf16>, vector<8x8x8xf32> -> vector<8x8x8xf32>
    "tpu.trace_stop"() : () -> ()
    %cst_22 = arith.constant dense<0xFF800000> : vector<8x8xf32>
    %99 = vector.multi_reduction <maximumf>, %98, %cst_22 [2] : vector<8x8x8xf32> to vector<8x8xf32>
    %100 = vector.shape_cast %99 : vector<8x8xf32> to vector<8x8x1xf32>
    %101 = vector.broadcast %100 : vector<8x8x1xf32> to vector<8x8x8xf32>
    %102 = arith.subf %98, %101 : vector<8x8x8xf32>
    %103 = math.exp %102 : vector<8x8x8xf32>
    %cst_23 = arith.constant dense<0.000000e+00> : vector<8x8xf32>
    %104 = vector.multi_reduction <add>, %103, %cst_23 [2] : vector<8x8x8xf32> to vector<8x8xf32>
    %105 = vector.shape_cast %104 : vector<8x8xf32> to vector<8x8x1xf32>
    %106 = tpu.reciprocal %105 {approx = true} : vector<8x8x1xf32> -> vector<8x8x1xf32>
    %107 = arith.mulf %105, %106 : vector<8x8x1xf32>
    %cst_24 = arith.constant 2.000000e+00 : f32
    %108 = vector.broadcast %cst_24 : f32 to vector<8x8x1xf32>
    %109 = arith.subf %108, %107 : vector<8x8x1xf32>
    %110 = arith.mulf %106, %109 : vector<8x8x1xf32>
    %111 = vector.broadcast %110 : vector<8x8x1xf32> to vector<8x8x8xf32>
    %112 = arith.mulf %103, %111 : vector<8x8x8xf32>
    %113 = arith.truncf %112 : vector<8x8x8xf32> to vector<8x8x8xbf16>
    "tpu.trace_start"() <{level = 10 : i32, message = "bqk,bkd->bqd"}> : () -> ()
    %cst_25 = arith.constant dense<0.000000e+00> : vector<8x8x4xf32>
    %114 = tpu.matmul %113, %97, %cst_25 {dimension_numbers = #tpu.dot_dimension_numbers<[2], [1], [1], [2], [0, 0, 0, 1, 1, 2], [0], [0]>} : vector<8x8x8xbf16>, vector<8x8x4xbf16>, vector<8x8x4xf32> -> vector<8x8x4xf32>
    "tpu.trace_stop"() : () -> ()
    %115 = vector.extract_strided_slice %114 {offsets = [0, 0, 0], sizes = [1, 8, 4], strides = [1, 1, 1]} : vector<8x8x4xf32> to vector<1x8x4xf32>
    %116 = vector.shape_cast %115 : vector<1x8x4xf32> to vector<8x4xf32>
    %117 = arith.truncf %116 : vector<8x4xf32> to vector<8x4xbf16>
    %c0_26 = arith.constant 0 : index
    %c0_27 = arith.constant 0 : index
    %118 = vector.load %arg10[%c0_26, %c0_27] : memref<8x32xbf16, #tpu.memory_space<vmem>>, vector<8x4xbf16>
    tpu.vector_store %arg10[%c0_26, %c0_27], %117 {strides = array<i32>} : memref<8x32xbf16, #tpu.memory_space<vmem>>, vector<8x4xbf16>,
    %119 = vector.extract_strided_slice %114 {offsets = [1, 0, 0], sizes = [1, 8, 4], strides = [1, 1, 1]} : vector<8x8x4xf32> to vector<1x8x4xf32>
    %120 = vector.shape_cast %119 : vector<1x8x4xf32> to vector<8x4xf32>
    %121 = arith.truncf %120 : vector<8x4xf32> to vector<8x4xbf16>
    %c0_28 = arith.constant 0 : index
    %c4 = arith.constant 4 : index
    %122 = vector.load %arg10[%c0_28, %c4] : memref<8x32xbf16, #tpu.memory_space<vmem>>, vector<8x4xbf16>
    tpu.vector_store %arg10[%c0_28, %c4], %121 {strides = array<i32>} : memref<8x32xbf16, #tpu.memory_space<vmem>>, vector<8x4xbf16>,
    %123 = vector.extract_strided_slice %114 {offsets = [2, 0, 0], sizes = [1, 8, 4], strides = [1, 1, 1]} : vector<8x8x4xf32> to vector<1x8x4xf32>
    %124 = vector.shape_cast %123 : vector<1x8x4xf32> to vector<8x4xf32>
    %125 = arith.truncf %124 : vector<8x4xf32> to vector<8x4xbf16>
    %c0_29 = arith.constant 0 : index
    %c8 = arith.constant 8 : index
    %126 = vector.load %arg10[%c0_29, %c8] : memref<8x32xbf16, #tpu.memory_space<vmem>>, vector<8x4xbf16>
    tpu.vector_store %arg10[%c0_29, %c8], %125 {strides = array<i32>} : memref<8x32xbf16, #tpu.memory_space<vmem>>, vector<8x4xbf16>,
    %127 = vector.extract_strided_slice %114 {offsets = [3, 0, 0], sizes = [1, 8, 4], strides = [1, 1, 1]} : vector<8x8x4xf32> to vector<1x8x4xf32>
    %128 = vector.shape_cast %127 : vector<1x8x4xf32> to vector<8x4xf32>
    %129 = arith.truncf %128 : vector<8x4xf32> to vector<8x4xbf16>
    %c0_30 = arith.constant 0 : index
    %c12 = arith.constant 12 : index
    %130 = vector.load %arg10[%c0_30, %c12] : memref<8x32xbf16, #tpu.memory_space<vmem>>, vector<8x4xbf16>
    tpu.vector_store %arg10[%c0_30, %c12], %129 {strides = array<i32>} : memref<8x32xbf16, #tpu.memory_space<vmem>>, vector<8x4xbf16>,
    %131 = vector.extract_strided_slice %114 {offsets = [4, 0, 0], sizes = [1, 8, 4], strides = [1, 1, 1]} : vector<8x8x4xf32> to vector<1x8x4xf32>
    %132 = vector.shape_cast %131 : vector<1x8x4xf32> to vector<8x4xf32>
    %133 = arith.truncf %132 : vector<8x4xf32> to vector<8x4xbf16>
    %c0_31 = arith.constant 0 : index
    %c16 = arith.constant 16 : index
    %134 = vector.load %arg10[%c0_31, %c16] : memref<8x32xbf16, #tpu.memory_space<vmem>>, vector<8x4xbf16>
    tpu.vector_store %arg10[%c0_31, %c16], %133 {strides = array<i32>} : memref<8x32xbf16, #tpu.memory_space<vmem>>, vector<8x4xbf16>,
    %135 = vector.extract_strided_slice %114 {offsets = [5, 0, 0], sizes = [1, 8, 4], strides = [1, 1, 1]} : vector<8x8x4xf32> to vector<1x8x4xf32>
    %136 = vector.shape_cast %135 : vector<1x8x4xf32> to vector<8x4xf32>
    %137 = arith.truncf %136 : vector<8x4xf32> to vector<8x4xbf16>
    %c0_32 = arith.constant 0 : index
    %c20 = arith.constant 20 : index
    %138 = vector.load %arg10[%c0_32, %c20] : memref<8x32xbf16, #tpu.memory_space<vmem>>, vector<8x4xbf16>
    tpu.vector_store %arg10[%c0_32, %c20], %137 {strides = array<i32>} : memref<8x32xbf16, #tpu.memory_space<vmem>>, vector<8x4xbf16>,
    %139 = vector.extract_strided_slice %114 {offsets = [6, 0, 0], sizes = [1, 8, 4], strides = [1, 1, 1]} : vector<8x8x4xf32> to vector<1x8x4xf32>
    %140 = vector.shape_cast %139 : vector<1x8x4xf32> to vector<8x4xf32>
    %141 = arith.truncf %140 : vector<8x4xf32> to vector<8x4xbf16>
    %c0_33 = arith.constant 0 : index
    %c24 = arith.constant 24 : index
    %142 = vector.load %arg10[%c0_33, %c24] : memref<8x32xbf16, #tpu.memory_space<vmem>>, vector<8x4xbf16>
    tpu.vector_store %arg10[%c0_33, %c24], %141 {strides = array<i32>} : memref<8x32xbf16, #tpu.memory_space<vmem>>, vector<8x4xbf16>,
    %143 = vector.extract_strided_slice %114 {offsets = [7, 0, 0], sizes = [1, 8, 4], strides = [1, 1, 1]} : vector<8x8x4xf32> to vector<1x8x4xf32>
    %144 = vector.shape_cast %143 : vector<1x8x4xf32> to vector<8x4xf32>
    %145 = arith.truncf %144 : vector<8x4xf32> to vector<8x4xbf16>
    %c0_34 = arith.constant 0 : index
    %c28 = arith.constant 28 : index
    %146 = vector.load %arg10[%c0_34, %c28] : memref<8x32xbf16, #tpu.memory_space<vmem>>, vector<8x4xbf16>
    tpu.vector_store %arg10[%c0_34, %c28], %145 {strides = array<i32>} : memref<8x32xbf16, #tpu.memory_space<vmem>>, vector<8x4xbf16>,
    %c0_35 = arith.constant 0 : index
    %c0_36 = arith.constant 0 : index
    %147 = vector.load %arg10[%c0_35, %c0_36] : memref<8x32xbf16, #tpu.memory_space<vmem>>, vector<8x32xbf16>
    %c0_37 = arith.constant 0 : index
    %c0_38 = arith.constant 0 : index
    %c0_39 = arith.constant 0 : index
    %148 = vector.load %arg6[%c0_37, %c0_38, %c0_39] : memref<7x32x32xbf16, #tpu.memory_space<vmem>>, vector<1x32x32xbf16>
    %149 = vector.shape_cast %148 : vector<1x32x32xbf16> to vector<32x32xbf16>
    %150 = vector.extract_strided_slice %7 {offsets = [0, 0], sizes = [1, 32], strides = [1, 1]} : vector<7x32xf32> to vector<1x32xf32>
    %cst_40 = arith.constant dense<0.000000e+00> : vector<8x32xf32>
    %151 = tpu.matmul %147, %149, %cst_40 {dimension_numbers = #tpu.dot_dimension_numbers<[1], [0], [0], [1], [0, 0, 1, 1], [], []>} : vector<8x32xbf16>, vector<32x32xbf16>, vector<8x32xf32> -> vector<8x32xf32>
    %152 = vector.broadcast %150 : vector<1x32xf32> to vector<8x32xf32>
    %153 = arith.addf %151, %152 : vector<8x32xf32>
    %154 = arith.addf %5, %153 : vector<8x32xf32>
    %155 = vector.extract_strided_slice %6 {offsets = [2, 0], sizes = [1, 32], strides = [1, 1]} : vector<10x32xf32> to vector<1x32xf32>
    %156 = vector.extract_strided_slice %6 {offsets = [3, 0], sizes = [1, 32], strides = [1, 1]} : vector<10x32xf32> to vector<1x32xf32>
    %cst_41 = arith.constant dense<0.000000e+00> : vector<8xf32>
    %157 = vector.multi_reduction <add>, %154, %cst_41 [1] : vector<8x32xf32> to vector<8xf32>
    %158 = vector.shape_cast %157 : vector<8xf32> to vector<8x1xf32>
    %cst_42 = arith.constant 3.200000e+01 : f32
    %159 = vector.broadcast %cst_42 : f32 to vector<8x1xf32>
    %160 = arith.divf %158, %159 : vector<8x1xf32>
    %161 = vector.broadcast %160 : vector<8x1xf32> to vector<8x32xf32>
    %162 = arith.subf %154, %161 : vector<8x32xf32>
    %163 = arith.mulf %162, %162 : vector<8x32xf32>
    %cst_43 = arith.constant dense<0.000000e+00> : vector<8xf32>
    %164 = vector.multi_reduction <add>, %163, %cst_43 [1] : vector<8x32xf32> to vector<8xf32>
    %165 = vector.shape_cast %164 : vector<8xf32> to vector<8x1xf32>
    %cst_44 = arith.constant 3.200000e+01 : f32
    %166 = vector.broadcast %cst_44 : f32 to vector<8x1xf32>
    %167 = arith.divf %165, %166 : vector<8x1xf32>
    %168 = vector.broadcast %160 : vector<8x1xf32> to vector<8x32xf32>
    %169 = arith.subf %154, %168 : vector<8x32xf32>
    %cst_45 = arith.constant 9.99999974E-6 : f32
    %170 = vector.broadcast %cst_45 : f32 to vector<8x1xf32>
    %171 = arith.addf %167, %170 : vector<8x1xf32>
    %172 = math.rsqrt %171 : vector<8x1xf32>
    %173 = vector.broadcast %172 : vector<8x1xf32> to vector<8x32xf32>
    %174 = arith.mulf %169, %173 : vector<8x32xf32>
    %175 = vector.broadcast %155 : vector<1x32xf32> to vector<8x32xf32>
    %176 = arith.mulf %174, %175 : vector<8x32xf32>
    %177 = vector.broadcast %156 : vector<1x32xf32> to vector<8x32xf32>
    %178 = arith.addf %176, %177 : vector<8x32xf32>
    %179 = vector.extract_strided_slice %6 {offsets = [4, 0], sizes = [1, 32], strides = [1, 1]} : vector<10x32xf32> to vector<1x32xf32>
    %180 = vector.extract_strided_slice %6 {offsets = [5, 0], sizes = [1, 32], strides = [1, 1]} : vector<10x32xf32> to vector<1x32xf32>
    %cst_46 = arith.constant dense<0.000000e+00> : vector<8xf32>
    %181 = vector.multi_reduction <add>, %1, %cst_46 [1] : vector<8x32xf32> to vector<8xf32>
    %182 = vector.shape_cast %181 : vector<8xf32> to vector<8x1xf32>
    %cst_47 = arith.constant 3.200000e+01 : f32
    %183 = vector.broadcast %cst_47 : f32 to vector<8x1xf32>
    %184 = arith.divf %182, %183 : vector<8x1xf32>
    %185 = vector.broadcast %184 : vector<8x1xf32> to vector<8x32xf32>
    %186 = arith.subf %1, %185 : vector<8x32xf32>
    %187 = arith.mulf %186, %186 : vector<8x32xf32>
    %cst_48 = arith.constant dense<0.000000e+00> : vector<8xf32>
    %188 = vector.multi_reduction <add>, %187, %cst_48 [1] : vector<8x32xf32> to vector<8xf32>
    %189 = vector.shape_cast %188 : vector<8xf32> to vector<8x1xf32>
    %cst_49 = arith.constant 3.200000e+01 : f32
    %190 = vector.broadcast %cst_49 : f32 to vector<8x1xf32>
    %191 = arith.divf %189, %190 : vector<8x1xf32>
    %192 = vector.broadcast %184 : vector<8x1xf32> to vector<8x32xf32>
    %193 = arith.subf %1, %192 : vector<8x32xf32>
    %cst_50 = arith.constant 9.99999974E-6 : f32
    %194 = vector.broadcast %cst_50 : f32 to vector<8x1xf32>
    %195 = arith.addf %191, %194 : vector<8x1xf32>
    %196 = math.rsqrt %195 : vector<8x1xf32>
    %197 = vector.broadcast %196 : vector<8x1xf32> to vector<8x32xf32>
    %198 = arith.mulf %193, %197 : vector<8x32xf32>
    %199 = vector.broadcast %179 : vector<1x32xf32> to vector<8x32xf32>
    %200 = arith.mulf %198, %199 : vector<8x32xf32>
    %201 = vector.broadcast %180 : vector<1x32xf32> to vector<8x32xf32>
    %202 = arith.addf %200, %201 : vector<8x32xf32>
    %203 = vector.extract_strided_slice %6 {offsets = [6, 0], sizes = [1, 32], strides = [1, 1]} : vector<10x32xf32> to vector<1x32xf32>
    %204 = vector.extract_strided_slice %6 {offsets = [7, 0], sizes = [1, 32], strides = [1, 1]} : vector<10x32xf32> to vector<1x32xf32>
    %cst_51 = arith.constant dense<0.000000e+00> : vector<8xf32>
    %205 = vector.multi_reduction <add>, %3, %cst_51 [1] : vector<8x32xf32> to vector<8xf32>
    %206 = vector.shape_cast %205 : vector<8xf32> to vector<8x1xf32>
    %cst_52 = arith.constant 3.200000e+01 : f32
    %207 = vector.broadcast %cst_52 : f32 to vector<8x1xf32>
    %208 = arith.divf %206, %207 : vector<8x1xf32>
    %209 = vector.broadcast %208 : vector<8x1xf32> to vector<8x32xf32>
    %210 = arith.subf %3, %209 : vector<8x32xf32>
    %211 = arith.mulf %210, %210 : vector<8x32xf32>
    %cst_53 = arith.constant dense<0.000000e+00> : vector<8xf32>
    %212 = vector.multi_reduction <add>, %211, %cst_53 [1] : vector<8x32xf32> to vector<8xf32>
    %213 = vector.shape_cast %212 : vector<8xf32> to vector<8x1xf32>
    %cst_54 = arith.constant 3.200000e+01 : f32
    %214 = vector.broadcast %cst_54 : f32 to vector<8x1xf32>
    %215 = arith.divf %213, %214 : vector<8x1xf32>
    %216 = vector.broadcast %208 : vector<8x1xf32> to vector<8x32xf32>
    %217 = arith.subf %3, %216 : vector<8x32xf32>
    %cst_55 = arith.constant 9.99999974E-6 : f32
    %218 = vector.broadcast %cst_55 : f32 to vector<8x1xf32>
    %219 = arith.addf %215, %218 : vector<8x1xf32>
    %220 = math.rsqrt %219 : vector<8x1xf32>
    %221 = vector.broadcast %220 : vector<8x1xf32> to vector<8x32xf32>
    %222 = arith.mulf %217, %221 : vector<8x32xf32>
    %223 = vector.broadcast %203 : vector<1x32xf32> to vector<8x32xf32>
    %224 = arith.mulf %222, %223 : vector<8x32xf32>
    %225 = vector.broadcast %204 : vector<1x32xf32> to vector<8x32xf32>
    %226 = arith.addf %224, %225 : vector<8x32xf32>
    %c1 = arith.constant 1 : index
    %c0_56 = arith.constant 0 : index
    %c0_57 = arith.constant 0 : index
    %227 = vector.load %arg6[%c1, %c0_56, %c0_57] : memref<7x32x32xbf16, #tpu.memory_space<vmem>>, vector<1x32x32xbf16>
    %228 = vector.shape_cast %227 : vector<1x32x32xbf16> to vector<32x32xbf16>
    %229 = vector.extract_strided_slice %7 {offsets = [1, 0], sizes = [1, 32], strides = [1, 1]} : vector<7x32xf32> to vector<1x32xf32>
    %230 = arith.truncf %202 : vector<8x32xf32> to vector<8x32xbf16>
    %cst_58 = arith.constant dense<0.000000e+00> : vector<8x32xf32>
    %231 = tpu.matmul %230, %228, %cst_58 {dimension_numbers = #tpu.dot_dimension_numbers<[1], [0], [0], [1], [0, 0, 1, 1], [], []>} : vector<8x32xbf16>, vector<32x32xbf16>, vector<8x32xf32> -> vector<8x32xf32>
    %232 = vector.broadcast %229 : vector<1x32xf32> to vector<8x32xf32>
    %233 = arith.addf %231, %232 : vector<8x32xf32>
    %c2 = arith.constant 2 : index
    %c0_59 = arith.constant 0 : index
    %c0_60 = arith.constant 0 : index
    %234 = vector.load %arg6[%c2, %c0_59, %c0_60] : memref<7x32x32xbf16, #tpu.memory_space<vmem>>, vector<1x32x32xbf16>
    %235 = vector.shape_cast %234 : vector<1x32x32xbf16> to vector<32x32xbf16>
    %236 = vector.extract_strided_slice %7 {offsets = [2, 0], sizes = [1, 32], strides = [1, 1]} : vector<7x32xf32> to vector<1x32xf32>
    %237 = arith.truncf %226 : vector<8x32xf32> to vector<8x32xbf16>
    %cst_61 = arith.constant dense<0.000000e+00> : vector<8x32xf32>
    %238 = tpu.matmul %237, %235, %cst_61 {dimension_numbers = #tpu.dot_dimension_numbers<[1], [0], [0], [1], [0, 0, 1, 1], [], []>} : vector<8x32xbf16>, vector<32x32xbf16>, vector<8x32xf32> -> vector<8x32xf32>
    %239 = vector.broadcast %236 : vector<1x32xf32> to vector<8x32xf32>
    %240 = arith.addf %238, %239 : vector<8x32xf32>
    %c3 = arith.constant 3 : index
    %c0_62 = arith.constant 0 : index
    %c0_63 = arith.constant 0 : index
    %241 = vector.load %arg6[%c3, %c0_62, %c0_63] : memref<7x32x32xbf16, #tpu.memory_space<vmem>>, vector<1x32x32xbf16>
    %242 = vector.shape_cast %241 : vector<1x32x32xbf16> to vector<32x32xbf16>
    %243 = vector.extract_strided_slice %7 {offsets = [3, 0], sizes = [1, 32], strides = [1, 1]} : vector<7x32xf32> to vector<1x32xf32>
    %244 = arith.truncf %178 : vector<8x32xf32> to vector<8x32xbf16>
    %cst_64 = arith.constant dense<0.000000e+00> : vector<8x32xf32>
    %245 = tpu.matmul %244, %242, %cst_64 {dimension_numbers = #tpu.dot_dimension_numbers<[1], [0], [0], [1], [0, 0, 1, 1], [], []>} : vector<8x32xbf16>, vector<32x32xbf16>, vector<8x32xf32> -> vector<8x32xf32>
    %246 = vector.broadcast %243 : vector<1x32xf32> to vector<8x32xf32>
    %247 = arith.addf %245, %246 : vector<8x32xf32>
    %248 = arith.truncf %233 : vector<8x32xf32> to vector<8x32xbf16>
    %249 = vector.extract_strided_slice %248 {offsets = [0, 0], sizes = [8, 4], strides = [1, 1]} : vector<8x32xbf16> to vector<8x4xbf16>
    %250 = vector.shape_cast %249 : vector<8x4xbf16> to vector<1x1x8x4xbf16>
    %251 = vector.extract_strided_slice %248 {offsets = [0, 4], sizes = [8, 4], strides = [1, 1]} : vector<8x32xbf16> to vector<8x4xbf16>
    %252 = vector.shape_cast %251 : vector<8x4xbf16> to vector<1x1x8x4xbf16>
    %253 = vector.extract_strided_slice %248 {offsets = [0, 8], sizes = [8, 4], strides = [1, 1]} : vector<8x32xbf16> to vector<8x4xbf16>
    %254 = vector.shape_cast %253 : vector<8x4xbf16> to vector<1x1x8x4xbf16>
    %255 = vector.extract_strided_slice %248 {offsets = [0, 12], sizes = [8, 4], strides = [1, 1]} : vector<8x32xbf16> to vector<8x4xbf16>
    %256 = vector.shape_cast %255 : vector<8x4xbf16> to vector<1x1x8x4xbf16>
    %257 = vector.extract_strided_slice %248 {offsets = [0, 16], sizes = [8, 4], strides = [1, 1]} : vector<8x32xbf16> to vector<8x4xbf16>
    %258 = vector.shape_cast %257 : vector<8x4xbf16> to vector<1x1x8x4xbf16>
    %259 = vector.extract_strided_slice %248 {offsets = [0, 20], sizes = [8, 4], strides = [1, 1]} : vector<8x32xbf16> to vector<8x4xbf16>
    %260 = vector.shape_cast %259 : vector<8x4xbf16> to vector<1x1x8x4xbf16>
    %261 = vector.extract_strided_slice %248 {offsets = [0, 24], sizes = [8, 4], strides = [1, 1]} : vector<8x32xbf16> to vector<8x4xbf16>
    %262 = vector.shape_cast %261 : vector<8x4xbf16> to vector<1x1x8x4xbf16>
    %263 = vector.extract_strided_slice %248 {offsets = [0, 28], sizes = [8, 4], strides = [1, 1]} : vector<8x32xbf16> to vector<8x4xbf16>
    %264 = vector.shape_cast %263 : vector<8x4xbf16> to vector<1x1x8x4xbf16>
    %265 = tpu.concatenate %250, %252, %254, %256, %258, %260, %262, %264 in 0 : vector<1x1x8x4xbf16>, vector<1x1x8x4xbf16>, vector<1x1x8x4xbf16>, vector<1x1x8x4xbf16>, vector<1x1x8x4xbf16>, vector<1x1x8x4xbf16>, vector<1x1x8x4xbf16>, vector<1x1x8x4xbf16> -> vector<8x1x8x4xbf16>
    %266 = vector.shape_cast %265 : vector<8x1x8x4xbf16> to vector<8x8x4xbf16>
    %267 = arith.truncf %240 : vector<8x32xf32> to vector<8x32xbf16>
    %268 = vector.extract_strided_slice %267 {offsets = [0, 0], sizes = [8, 4], strides = [1, 1]} : vector<8x32xbf16> to vector<8x4xbf16>
    %269 = vector.shape_cast %268 : vector<8x4xbf16> to vector<1x1x8x4xbf16>
    %270 = vector.extract_strided_slice %267 {offsets = [0, 4], sizes = [8, 4], strides = [1, 1]} : vector<8x32xbf16> to vector<8x4xbf16>
    %271 = vector.shape_cast %270 : vector<8x4xbf16> to vector<1x1x8x4xbf16>
    %272 = vector.extract_strided_slice %267 {offsets = [0, 8], sizes = [8, 4], strides = [1, 1]} : vector<8x32xbf16> to vector<8x4xbf16>
    %273 = vector.shape_cast %272 : vector<8x4xbf16> to vector<1x1x8x4xbf16>
    %274 = vector.extract_strided_slice %267 {offsets = [0, 12], sizes = [8, 4], strides = [1, 1]} : vector<8x32xbf16> to vector<8x4xbf16>
    %275 = vector.shape_cast %274 : vector<8x4xbf16> to vector<1x1x8x4xbf16>
    %276 = vector.extract_strided_slice %267 {offsets = [0, 16], sizes = [8, 4], strides = [1, 1]} : vector<8x32xbf16> to vector<8x4xbf16>
    %277 = vector.shape_cast %276 : vector<8x4xbf16> to vector<1x1x8x4xbf16>
    %278 = vector.extract_strided_slice %267 {offsets = [0, 20], sizes = [8, 4], strides = [1, 1]} : vector<8x32xbf16> to vector<8x4xbf16>
    %279 = vector.shape_cast %278 : vector<8x4xbf16> to vector<1x1x8x4xbf16>
    %280 = vector.extract_strided_slice %267 {offsets = [0, 24], sizes = [8, 4], strides = [1, 1]} : vector<8x32xbf16> to vector<8x4xbf16>
    %281 = vector.shape_cast %280 : vector<8x4xbf16> to vector<1x1x8x4xbf16>
    %282 = vector.extract_strided_slice %267 {offsets = [0, 28], sizes = [8, 4], strides = [1, 1]} : vector<8x32xbf16> to vector<8x4xbf16>
    %283 = vector.shape_cast %282 : vector<8x4xbf16> to vector<1x1x8x4xbf16>
    %284 = tpu.concatenate %269, %271, %273, %275, %277, %279, %281, %283 in 0 : vector<1x1x8x4xbf16>, vector<1x1x8x4xbf16>, vector<1x1x8x4xbf16>, vector<1x1x8x4xbf16>, vector<1x1x8x4xbf16>, vector<1x1x8x4xbf16>, vector<1x1x8x4xbf16>, vector<1x1x8x4xbf16> -> vector<8x1x8x4xbf16>
    %285 = vector.shape_cast %284 : vector<8x1x8x4xbf16> to vector<8x8x4xbf16>
    %286 = arith.truncf %247 : vector<8x32xf32> to vector<8x32xbf16>
    %287 = vector.extract_strided_slice %286 {offsets = [0, 0], sizes = [8, 4], strides = [1, 1]} : vector<8x32xbf16> to vector<8x4xbf16>
    %288 = vector.shape_cast %287 : vector<8x4xbf16> to vector<1x1x8x4xbf16>
    %289 = vector.extract_strided_slice %286 {offsets = [0, 4], sizes = [8, 4], strides = [1, 1]} : vector<8x32xbf16> to vector<8x4xbf16>
    %290 = vector.shape_cast %289 : vector<8x4xbf16> to vector<1x1x8x4xbf16>
    %291 = vector.extract_strided_slice %286 {offsets = [0, 8], sizes = [8, 4], strides = [1, 1]} : vector<8x32xbf16> to vector<8x4xbf16>
    %292 = vector.shape_cast %291 : vector<8x4xbf16> to vector<1x1x8x4xbf16>
    %293 = vector.extract_strided_slice %286 {offsets = [0, 12], sizes = [8, 4], strides = [1, 1]} : vector<8x32xbf16> to vector<8x4xbf16>
    %294 = vector.shape_cast %293 : vector<8x4xbf16> to vector<1x1x8x4xbf16>
    %295 = vector.extract_strided_slice %286 {offsets = [0, 16], sizes = [8, 4], strides = [1, 1]} : vector<8x32xbf16> to vector<8x4xbf16>
    %296 = vector.shape_cast %295 : vector<8x4xbf16> to vector<1x1x8x4xbf16>
    %297 = vector.extract_strided_slice %286 {offsets = [0, 20], sizes = [8, 4], strides = [1, 1]} : vector<8x32xbf16> to vector<8x4xbf16>
    %298 = vector.shape_cast %297 : vector<8x4xbf16> to vector<1x1x8x4xbf16>
    %299 = vector.extract_strided_slice %286 {offsets = [0, 24], sizes = [8, 4], strides = [1, 1]} : vector<8x32xbf16> to vector<8x4xbf16>
    %300 = vector.shape_cast %299 : vector<8x4xbf16> to vector<1x1x8x4xbf16>
    %301 = vector.extract_strided_slice %286 {offsets = [0, 28], sizes = [8, 4], strides = [1, 1]} : vector<8x32xbf16> to vector<8x4xbf16>
    %302 = vector.shape_cast %301 : vector<8x4xbf16> to vector<1x1x8x4xbf16>
    %303 = tpu.concatenate %288, %290, %292, %294, %296, %298, %300, %302 in 0 : vector<1x1x8x4xbf16>, vector<1x1x8x4xbf16>, vector<1x1x8x4xbf16>, vector<1x1x8x4xbf16>, vector<1x1x8x4xbf16>, vector<1x1x8x4xbf16>, vector<1x1x8x4xbf16>, vector<1x1x8x4xbf16> -> vector<8x1x8x4xbf16>
    %304 = vector.shape_cast %303 : vector<8x1x8x4xbf16> to vector<8x8x4xbf16>
    "tpu.trace_start"() <{level = 10 : i32, message = "bqd,bkd->bqk"}> : () -> ()
    %cst_65 = arith.constant dense<0.000000e+00> : vector<8x8x8xf32>
    %305 = tpu.matmul %266, %285, %cst_65 {dimension_numbers = #tpu.dot_dimension_numbers<[2], [2], [1], [1], [0, 0, 0, 1, 1, 1], [0], [0]>} : vector<8x8x4xbf16>, vector<8x8x4xbf16>, vector<8x8x8xf32> -> vector<8x8x8xf32>
    "tpu.trace_stop"() : () -> ()
    %cst_66 = arith.constant dense<0xFF800000> : vector<8x8xf32>
    %306 = vector.multi_reduction <maximumf>, %305, %cst_66 [2] : vector<8x8x8xf32> to vector<8x8xf32>
    %307 = vector.shape_cast %306 : vector<8x8xf32> to vector<8x8x1xf32>
    %308 = vector.broadcast %307 : vector<8x8x1xf32> to vector<8x8x8xf32>
    %309 = arith.subf %305, %308 : vector<8x8x8xf32>
    %310 = math.exp %309 : vector<8x8x8xf32>
    %cst_67 = arith.constant dense<0.000000e+00> : vector<8x8xf32>
    %311 = vector.multi_reduction <add>, %310, %cst_67 [2] : vector<8x8x8xf32> to vector<8x8xf32>
    %312 = vector.shape_cast %311 : vector<8x8xf32> to vector<8x8x1xf32>
    %313 = tpu.reciprocal %312 {approx = true} : vector<8x8x1xf32> -> vector<8x8x1xf32>
    %314 = arith.mulf %312, %313 : vector<8x8x1xf32>
    %cst_68 = arith.constant 2.000000e+00 : f32
    %315 = vector.broadcast %cst_68 : f32 to vector<8x8x1xf32>
    %316 = arith.subf %315, %314 : vector<8x8x1xf32>
    %317 = arith.mulf %313, %316 : vector<8x8x1xf32>
    %318 = vector.broadcast %317 : vector<8x8x1xf32> to vector<8x8x8xf32>
    %319 = arith.mulf %310, %318 : vector<8x8x8xf32>
    %320 = arith.truncf %319 : vector<8x8x8xf32> to vector<8x8x8xbf16>
    "tpu.trace_start"() <{level = 10 : i32, message = "bqk,bkd->bqd"}> : () -> ()
    %cst_69 = arith.constant dense<0.000000e+00> : vector<8x8x4xf32>
    %321 = tpu.matmul %320, %304, %cst_69 {dimension_numbers = #tpu.dot_dimension_numbers<[2], [1], [1], [2], [0, 0, 0, 1, 1, 2], [0], [0]>} : vector<8x8x8xbf16>, vector<8x8x4xbf16>, vector<8x8x4xf32> -> vector<8x8x4xf32>
    "tpu.trace_stop"() : () -> ()
    %322 = vector.extract_strided_slice %321 {offsets = [0, 0, 0], sizes = [1, 8, 4], strides = [1, 1, 1]} : vector<8x8x4xf32> to vector<1x8x4xf32>
    %323 = vector.shape_cast %322 : vector<1x8x4xf32> to vector<8x4xf32>
    %324 = arith.truncf %323 : vector<8x4xf32> to vector<8x4xbf16>
    %c0_70 = arith.constant 0 : index
    %c0_71 = arith.constant 0 : index
    %325 = vector.load %arg10[%c0_70, %c0_71] : memref<8x32xbf16, #tpu.memory_space<vmem>>, vector<8x4xbf16>
    tpu.vector_store %arg10[%c0_70, %c0_71], %324 {strides = array<i32>} : memref<8x32xbf16, #tpu.memory_space<vmem>>, vector<8x4xbf16>,
    %326 = vector.extract_strided_slice %321 {offsets = [1, 0, 0], sizes = [1, 8, 4], strides = [1, 1, 1]} : vector<8x8x4xf32> to vector<1x8x4xf32>
    %327 = vector.shape_cast %326 : vector<1x8x4xf32> to vector<8x4xf32>
    %328 = arith.truncf %327 : vector<8x4xf32> to vector<8x4xbf16>
    %c0_72 = arith.constant 0 : index
    %c4_73 = arith.constant 4 : index
    %329 = vector.load %arg10[%c0_72, %c4_73] : memref<8x32xbf16, #tpu.memory_space<vmem>>, vector<8x4xbf16>
    tpu.vector_store %arg10[%c0_72, %c4_73], %328 {strides = array<i32>} : memref<8x32xbf16, #tpu.memory_space<vmem>>, vector<8x4xbf16>,
    %330 = vector.extract_strided_slice %321 {offsets = [2, 0, 0], sizes = [1, 8, 4], strides = [1, 1, 1]} : vector<8x8x4xf32> to vector<1x8x4xf32>
    %331 = vector.shape_cast %330 : vector<1x8x4xf32> to vector<8x4xf32>
    %332 = arith.truncf %331 : vector<8x4xf32> to vector<8x4xbf16>
    %c0_74 = arith.constant 0 : index
    %c8_75 = arith.constant 8 : index
    %333 = vector.load %arg10[%c0_74, %c8_75] : memref<8x32xbf16, #tpu.memory_space<vmem>>, vector<8x4xbf16>
    tpu.vector_store %arg10[%c0_74, %c8_75], %332 {strides = array<i32>} : memref<8x32xbf16, #tpu.memory_space<vmem>>, vector<8x4xbf16>,
    %334 = vector.extract_strided_slice %321 {offsets = [3, 0, 0], sizes = [1, 8, 4], strides = [1, 1, 1]} : vector<8x8x4xf32> to vector<1x8x4xf32>
    %335 = vector.shape_cast %334 : vector<1x8x4xf32> to vector<8x4xf32>
    %336 = arith.truncf %335 : vector<8x4xf32> to vector<8x4xbf16>
    %c0_76 = arith.constant 0 : index
    %c12_77 = arith.constant 12 : index
    %337 = vector.load %arg10[%c0_76, %c12_77] : memref<8x32xbf16, #tpu.memory_space<vmem>>, vector<8x4xbf16>
    tpu.vector_store %arg10[%c0_76, %c12_77], %336 {strides = array<i32>} : memref<8x32xbf16, #tpu.memory_space<vmem>>, vector<8x4xbf16>,
    %338 = vector.extract_strided_slice %321 {offsets = [4, 0, 0], sizes = [1, 8, 4], strides = [1, 1, 1]} : vector<8x8x4xf32> to vector<1x8x4xf32>
    %339 = vector.shape_cast %338 : vector<1x8x4xf32> to vector<8x4xf32>
    %340 = arith.truncf %339 : vector<8x4xf32> to vector<8x4xbf16>
    %c0_78 = arith.constant 0 : index
    %c16_79 = arith.constant 16 : index
    %341 = vector.load %arg10[%c0_78, %c16_79] : memref<8x32xbf16, #tpu.memory_space<vmem>>, vector<8x4xbf16>
    tpu.vector_store %arg10[%c0_78, %c16_79], %340 {strides = array<i32>} : memref<8x32xbf16, #tpu.memory_space<vmem>>, vector<8x4xbf16>,
    %342 = vector.extract_strided_slice %321 {offsets = [5, 0, 0], sizes = [1, 8, 4], strides = [1, 1, 1]} : vector<8x8x4xf32> to vector<1x8x4xf32>
    %343 = vector.shape_cast %342 : vector<1x8x4xf32> to vector<8x4xf32>
    %344 = arith.truncf %343 : vector<8x4xf32> to vector<8x4xbf16>
    %c0_80 = arith.constant 0 : index
    %c20_81 = arith.constant 20 : index
    %345 = vector.load %arg10[%c0_80, %c20_81] : memref<8x32xbf16, #tpu.memory_space<vmem>>, vector<8x4xbf16>
    tpu.vector_store %arg10[%c0_80, %c20_81], %344 {strides = array<i32>} : memref<8x32xbf16, #tpu.memory_space<vmem>>, vector<8x4xbf16>,
    %346 = vector.extract_strided_slice %321 {offsets = [6, 0, 0], sizes = [1, 8, 4], strides = [1, 1, 1]} : vector<8x8x4xf32> to vector<1x8x4xf32>
    %347 = vector.shape_cast %346 : vector<1x8x4xf32> to vector<8x4xf32>
    %348 = arith.truncf %347 : vector<8x4xf32> to vector<8x4xbf16>
    %c0_82 = arith.constant 0 : index
    %c24_83 = arith.constant 24 : index
    %349 = vector.load %arg10[%c0_82, %c24_83] : memref<8x32xbf16, #tpu.memory_space<vmem>>, vector<8x4xbf16>
    tpu.vector_store %arg10[%c0_82, %c24_83], %348 {strides = array<i32>} : memref<8x32xbf16, #tpu.memory_space<vmem>>, vector<8x4xbf16>,
    %350 = vector.extract_strided_slice %321 {offsets = [7, 0, 0], sizes = [1, 8, 4], strides = [1, 1, 1]} : vector<8x8x4xf32> to vector<1x8x4xf32>
    %351 = vector.shape_cast %350 : vector<1x8x4xf32> to vector<8x4xf32>
    %352 = arith.truncf %351 : vector<8x4xf32> to vector<8x4xbf16>
    %c0_84 = arith.constant 0 : index
    %c28_85 = arith.constant 28 : index
    %353 = vector.load %arg10[%c0_84, %c28_85] : memref<8x32xbf16, #tpu.memory_space<vmem>>, vector<8x4xbf16>
    tpu.vector_store %arg10[%c0_84, %c28_85], %352 {strides = array<i32>} : memref<8x32xbf16, #tpu.memory_space<vmem>>, vector<8x4xbf16>,
    %c0_86 = arith.constant 0 : index
    %c0_87 = arith.constant 0 : index
    %354 = vector.load %arg10[%c0_86, %c0_87] : memref<8x32xbf16, #tpu.memory_space<vmem>>, vector<8x32xbf16>
    %c4_88 = arith.constant 4 : index
    %c0_89 = arith.constant 0 : index
    %c0_90 = arith.constant 0 : index
    %355 = vector.load %arg6[%c4_88, %c0_89, %c0_90] : memref<7x32x32xbf16, #tpu.memory_space<vmem>>, vector<1x32x32xbf16>
    %356 = vector.shape_cast %355 : vector<1x32x32xbf16> to vector<32x32xbf16>
    %357 = vector.extract_strided_slice %7 {offsets = [4, 0], sizes = [1, 32], strides = [1, 1]} : vector<7x32xf32> to vector<1x32xf32>
    %cst_91 = arith.constant dense<0.000000e+00> : vector<8x32xf32>
    %358 = tpu.matmul %354, %356, %cst_91 {dimension_numbers = #tpu.dot_dimension_numbers<[1], [0], [0], [1], [0, 0, 1, 1], [], []>} : vector<8x32xbf16>, vector<32x32xbf16>, vector<8x32xf32> -> vector<8x32xf32>
    %359 = vector.broadcast %357 : vector<1x32xf32> to vector<8x32xf32>
    %360 = arith.addf %358, %359 : vector<8x32xf32>
    %361 = arith.addf %154, %360 : vector<8x32xf32>
    %362 = vector.extract_strided_slice %6 {offsets = [8, 0], sizes = [1, 32], strides = [1, 1]} : vector<10x32xf32> to vector<1x32xf32>
    %363 = vector.extract_strided_slice %6 {offsets = [9, 0], sizes = [1, 32], strides = [1, 1]} : vector<10x32xf32> to vector<1x32xf32>
    %cst_92 = arith.constant dense<0.000000e+00> : vector<8xf32>
    %364 = vector.multi_reduction <add>, %361, %cst_92 [1] : vector<8x32xf32> to vector<8xf32>
    %365 = vector.shape_cast %364 : vector<8xf32> to vector<8x1xf32>
    %cst_93 = arith.constant 3.200000e+01 : f32
    %366 = vector.broadcast %cst_93 : f32 to vector<8x1xf32>
    %367 = arith.divf %365, %366 : vector<8x1xf32>
    %368 = vector.broadcast %367 : vector<8x1xf32> to vector<8x32xf32>
    %369 = arith.subf %361, %368 : vector<8x32xf32>
    %370 = arith.mulf %369, %369 : vector<8x32xf32>
    %cst_94 = arith.constant dense<0.000000e+00> : vector<8xf32>
    %371 = vector.multi_reduction <add>, %370, %cst_94 [1] : vector<8x32xf32> to vector<8xf32>
    %372 = vector.shape_cast %371 : vector<8xf32> to vector<8x1xf32>
    %cst_95 = arith.constant 3.200000e+01 : f32
    %373 = vector.broadcast %cst_95 : f32 to vector<8x1xf32>
    %374 = arith.divf %372, %373 : vector<8x1xf32>
    %375 = vector.broadcast %367 : vector<8x1xf32> to vector<8x32xf32>
    %376 = arith.subf %361, %375 : vector<8x32xf32>
    %cst_96 = arith.constant 9.99999974E-6 : f32
    %377 = vector.broadcast %cst_96 : f32 to vector<8x1xf32>
    %378 = arith.addf %374, %377 : vector<8x1xf32>
    %379 = math.rsqrt %378 : vector<8x1xf32>
    %380 = vector.broadcast %379 : vector<8x1xf32> to vector<8x32xf32>
    %381 = arith.mulf %376, %380 : vector<8x32xf32>
    %382 = vector.broadcast %362 : vector<1x32xf32> to vector<8x32xf32>
    %383 = arith.mulf %381, %382 : vector<8x32xf32>
    %384 = vector.broadcast %363 : vector<1x32xf32> to vector<8x32xf32>
    %385 = arith.addf %383, %384 : vector<8x32xf32>
    %c5 = arith.constant 5 : index
    %c0_97 = arith.constant 0 : index
    %c0_98 = arith.constant 0 : index
    %386 = vector.load %arg6[%c5, %c0_97, %c0_98] : memref<7x32x32xbf16, #tpu.memory_space<vmem>>, vector<1x32x32xbf16>
    %387 = vector.shape_cast %386 : vector<1x32x32xbf16> to vector<32x32xbf16>
    %388 = vector.extract_strided_slice %7 {offsets = [5, 0], sizes = [1, 32], strides = [1, 1]} : vector<7x32xf32> to vector<1x32xf32>
    %389 = arith.truncf %385 : vector<8x32xf32> to vector<8x32xbf16>
    %cst_99 = arith.constant dense<0.000000e+00> : vector<8x32xf32>
    %390 = tpu.matmul %389, %387, %cst_99 {dimension_numbers = #tpu.dot_dimension_numbers<[1], [0], [0], [1], [0, 0, 1, 1], [], []>} : vector<8x32xbf16>, vector<32x32xbf16>, vector<8x32xf32> -> vector<8x32xf32>
    %391 = vector.broadcast %388 : vector<1x32xf32> to vector<8x32xf32>
    %392 = arith.addf %390, %391 : vector<8x32xf32>
    %cst_100 = arith.constant 5.000000e-01 : f32
    %393 = vector.broadcast %cst_100 : f32 to vector<8x32xf32>
    %394 = arith.mulf %393, %392 : vector<8x32xf32>
    %395 = arith.mulf %392, %392 : vector<8x32xf32>
    %396 = arith.mulf %395, %392 : vector<8x32xf32>
    %cst_101 = arith.constant 4.471500e-02 : f32
    %397 = vector.broadcast %cst_101 : f32 to vector<8x32xf32>
    %398 = arith.mulf %397, %396 : vector<8x32xf32>
    %399 = arith.addf %392, %398 : vector<8x32xf32>
    %cst_102 = arith.constant 0.797884583 : f32
    %400 = vector.broadcast %cst_102 : f32 to vector<8x32xf32>
    %401 = arith.mulf %400, %399 : vector<8x32xf32>
    %402 = math.tanh %401 : vector<8x32xf32>
    %cst_103 = arith.constant 1.000000e+00 : f32
    %403 = vector.broadcast %cst_103 : f32 to vector<8x32xf32>
    %404 = arith.addf %403, %402 : vector<8x32xf32>
    %405 = arith.mulf %394, %404 : vector<8x32xf32>
    %c6 = arith.constant 6 : index
    %c0_104 = arith.constant 0 : index
    %c0_105 = arith.constant 0 : index
    %406 = vector.load %arg6[%c6, %c0_104, %c0_105] : memref<7x32x32xbf16, #tpu.memory_space<vmem>>, vector<1x32x32xbf16>
    %407 = vector.shape_cast %406 : vector<1x32x32xbf16> to vector<32x32xbf16>
    %408 = vector.extract_strided_slice %7 {offsets = [6, 0], sizes = [1, 32], strides = [1, 1]} : vector<7x32xf32> to vector<1x32xf32>
    %409 = arith.truncf %405 : vector<8x32xf32> to vector<8x32xbf16>
    %cst_106 = arith.constant dense<0.000000e+00> : vector<8x32xf32>
    %410 = tpu.matmul %409, %407, %cst_106 {dimension_numbers = #tpu.dot_dimension_numbers<[1], [0], [0], [1], [0, 0, 1, 1], [], []>} : vector<8x32xbf16>, vector<32x32xbf16>, vector<8x32xf32> -> vector<8x32xf32>
    %411 = vector.broadcast %408 : vector<1x32xf32> to vector<8x32xf32>
    %412 = arith.addf %410, %411 : vector<8x32xf32>
    %413 = arith.addf %361, %412 : vector<8x32xf32>
    %414 = vector.shape_cast %413 : vector<8x32xf32> to vector<1x8x32xf32>
    %c0_107 = arith.constant 0 : index
    %c0_108 = arith.constant 0 : index
    %c0_109 = arith.constant 0 : index
    %415 = vector.load %arg9[%c0_107, %c0_108, %c0_109] : memref<1x8x32xf32, #tpu.memory_space<vmem>>, vector<1x8x32xf32>
    tpu.vector_store %arg9[%c0_107, %c0_108, %c0_109], %414 {strides = array<i32>} : memref<1x8x32xf32, #tpu.memory_space<vmem>>, vector<1x8x32xf32>,
    return
  }
  func.func @transform_0(%arg0: i32) -> (i32, i32, i32) {
    %c0_i32 = arith.constant 0 : i32
    %c0_i32_0 = arith.constant 0 : i32
    %c0_i32_1 = arith.constant 0 : i32
    return %arg0, %c0_i32, %c0_i32_0 : i32, i32, i32
  }
  func.func @transform_1(%arg0: i32) -> (i32, i32, i32) {
    %c0_i32 = arith.constant 0 : i32
    %c0_i32_0 = arith.constant 0 : i32
    %c0_i32_1 = arith.constant 0 : i32
    return %arg0, %c0_i32, %c0_i32_0 : i32, i32, i32
  }
  func.func @transform_2(%arg0: i32) -> (i32, i32, i32) {
    %c0_i32 = arith.constant 0 : i32
    %c0_i32_0 = arith.constant 0 : i32
    %c0_i32_1 = arith.constant 0 : i32
    return %arg0, %c0_i32, %c0_i32_0 : i32, i32, i32
  }
  func.func @transform_3(%arg0: i32) -> (i32, i32) {
    %c0_i32 = arith.constant 0 : i32
    %c0_i32_0 = arith.constant 0 : i32
    %c0_i32_1 = arith.constant 0 : i32
    return %c0_i32, %c0_i32_0 : i32, i32
  }
  func.func @transform_4(%arg0: i32) -> (i32, i32) {
    %c0_i32 = arith.constant 0 : i32
    %c0_i32_0 = arith.constant 0 : i32
    %c0_i32_1 = arith.constant 0 : i32
    return %c0_i32, %c0_i32_0 : i32, i32
  }
  func.func @transform_5(%arg0: i32) -> (i32, i32, i32) {
    %c0_i32 = arith.constant 0 : i32
    %c0_i32_0 = arith.constant 0 : i32
    %c0_i32_1 = arith.constant 0 : i32
    %c0_i32_2 = arith.constant 0 : i32
    return %c0_i32, %c0_i32_0, %c0_i32_1 : i32, i32, i32
  }
  func.func @transform_6(%arg0: i32) -> (i32, i32) {
    %c0_i32 = arith.constant 0 : i32
    %c0_i32_0 = arith.constant 0 : i32
    %c0_i32_1 = arith.constant 0 : i32
    return %c0_i32, %c0_i32_0 : i32, i32
  }
  func.func @transform_7(%arg0: i32) -> (i32, i32) {
    %c0_i32 = arith.constant 0 : i32
    %c0_i32_0 = arith.constant 0 : i32
    %c0_i32_1 = arith.constant 0 : i32
    return %c0_i32, %c0_i32_0 : i32, i32
  }
  func.func @transform_8(%arg0: i32) -> (i32, i32, i32) {
    %c0_i32 = arith.constant 0 : i32
    %c0_i32_0 = arith.constant 0 : i32
    %c0_i32_1 = arith.constant 0 : i32
    return %arg0, %c0_i32, %c0_i32_0 : i32, i32, i32
  }
}

</mosaic_0001>

<llo_original>
// kernel: tpu_custom_call.1
$region0: #{tpu_custom_call.1}
  #allocation0 [shape = 'u32[]', space=smem, size = 0x4, offset = 0x4, fixed_abs, tag = 'smem constant byte address 0x4 - core index']
  #allocation1 [shape = 'u32[144,128]{1,0:T(1,128)}', space=vmem, size = 0x12000, scoped, tag = 'internal scratch']
  #allocation2 [shape = 'bf16[8,32]{1,0:T(8,128)(2,1)}', space=vmem, size = 0x800, scoped, tag = 'scratch operand']
  %s0 = inlined_call_operand.hbm [shape: f32[2,8,32], index: 0, kind: input, shape index: {}]
  %s1 = inlined_call_operand.hbm [shape: f32[2,8,32], index: 1, kind: input, shape index: {}]
  %s2 = inlined_call_operand.hbm [shape: f32[2,8,32], index: 2, kind: input, shape index: {}]
  %s3 = inlined_call_operand.hbm [shape: bf16[32,96], index: 3, kind: input, shape index: {}]
  %s4 = inlined_call_operand.vmem [shape: f32[1,96], index: 4, kind: input, shape index: {}]
  %s5 = inlined_call_operand.hbm [shape: bf16[7,32,32], index: 5, kind: input, shape index: {}]
  %s6 = inlined_call_operand.vmem [shape: f32[7,32], index: 6, kind: input, shape index: {}]
  %s7 = inlined_call_operand.vmem [shape: f32[10,32], index: 7, kind: input, shape index: {}]
  %s8 = inlined_call_operand.hbm [shape: f32[2,8,32], index: 8, kind: output, shape index: {}]
  %s9 = sld [smem:[#allocation0]]
  $region85: #{tpu_custom_call.1} parent=0
    _
  %s11 = ssub.s32 1, %s9
  %s12 = scalar_select 0, %s11, %s9
  $region1: #{tpu_custom_call.1} parent=0
    #allocation3 [shape = 'u8[8192]{0}', space=vmem, size = 0x2000, scoped, tag = 'input window, operand 0']
    #allocation4 [shape = 's32[2]{0}', space=sflag, size = 0x8, scoped, tag = 'scoped memory for tpu_custom_call.1']
    #allocation5 [shape = 's32[2]{0}', space=sflag, size = 0x8, scoped, tag = 'scoped memory for tpu_custom_call.1']
    #allocation6 [shape = 'u8[8192]{0}', space=vmem, size = 0x2000, scoped, tag = 'input window, operand 1']
    #allocation7 [shape = 's32[2]{0}', space=sflag, size = 0x8, scoped, tag = 'scoped memory for tpu_custom_call.1']
    #allocation8 [shape = 'u8[8192]{0}', space=vmem, size = 0x2000, scoped, tag = 'input window, operand 2']
    #allocation9 [shape = 'u8[8192]{0}', space=vmem, size = 0x2000, scoped, tag = 'input window, operand 3, single buffered']
    #allocation10 [shape = 's32[1]{0}', space=sflag, size = 0x4, scoped, tag = 'scoped memory for tpu_custom_call.1']
    #allocation11 [shape = 'u8[57344]{0}', space=vmem, size = 0xe000, scoped, tag = 'input window, operand 5, single buffered']
    #allocation12 [shape = 'u8[8192]{0}', space=vmem, size = 0x2000, scoped, tag = 'output window, operand 0']
    %13 = vsyncpa [#allocation4], 0
    %s14 = scalar_lea.sflag [#allocation4], 1
    %15 = vsyncpa %s14, 0
    %16 = vsyncpa [#allocation7], 0
    %s17 = scalar_lea.sflag [#allocation7], 1
    %18 = vsyncpa %s17, 0
    %19 = vsyncpa [#allocation10], 0
    %20 = vsyncpa [#allocation5], 0
    %s21 = scalar_lea.sflag [#allocation5], 1
    %22 = vsyncpa %s21, 0
    loop: start=0, step=1, limit=4
    $region2: #{tpu_custom_call.1} parent=1 // loop_pre_header
      _
    $region3: #{tpu_custom_call.1} parent=1 // loop_header
      %s24 = sphi 0, %s28
      %p25 = scmp.ge.s32.totalorder %s24, 4
      %s34 = sphi 0, %s36
      %s37 = sphi 0, %s34
      %s38 = sphi 0, %s37
      %s54 = sphi 0, %s38
      %s60 = sphi 0, %s62
      %s63 = sphi 0, %s60
      %s64 = sphi 0, %s63
      %s80 = sphi 0, %s64
      %s86 = sphi 0, %s88
      %s89 = sphi 0, %s86
      %s90 = sphi 0, %s89
      %s106 = sphi 0, %s90
      %s110 = sphi 0, %s110
      %s112 = sphi 0, %s110
      %s113 = sphi 0, %s112
      %s127 = sphi 0, %s113
      %s131 = sphi 0, %s131
      %s133 = sphi 0, %s131
      %s134 = sphi 0, %s133
      %s148 = sphi 0, %s134
      %s152 = sphi 0, %s152
      %s154 = sphi 0, %s152
      %s155 = sphi 0, %s154
      %s169 = sphi 0, %s155
      %s173 = sphi 0, %s173
      %s175 = sphi 0, %s173
      %s176 = sphi 0, %s175
      %s190 = sphi 0, %s176
      %s194 = sphi 0, %s194
      %s196 = sphi 0, %s194
      %s197 = sphi 0, %s196
      %s211 = sphi 0, %s197
      %s217 = sphi 0, %s219
      %s220 = sphi 0, %s217
      %s221 = sphi 0, %s220
      %s237 = sphi 0, %s221
    $region4: #{tpu_custom_call.1} parent=1 // loop_header_branch
      %27 = sbr.rel (%p25) target = $region8
    $region5: #{tpu_custom_call.1} parent=1 // loop_body
      %s29 = ssub.s32 %s24, 1
      %s30 = ssub.s32 %s24, 2
      %s31 = sadd.s32 %s24, 1
      %s32 = ssub.s32 %s24, %s31
      %p33 = scmp.eq.s32.totalorder %s32, 0
      %s35 = sadd.s32 %s34, 1
      %s36 = scalar_select %p33, %s34, %s35
      %p39 = pneg %p33
      %p40 = scmp.eq.s32.totalorder %s24, 1
      %p41 = por %p39, %p40
      %p42 = scmp.ne.s32.totalorder %s34, %s37
      %p43 = scmp.eq.s32.totalorder %s24, 0
      %p44 = por %p42, %p43
      %p45 = scmp.ne.s32.totalorder %s34, %s37
      %p46 = scmp.eq.s32.totalorder %s29, 1
      %p47 = por %p45, %p46
      %p48 = scmp.ne.s32.totalorder %s37, %s38
      %p49 = scmp.eq.s32.totalorder %s29, 0
      %p50 = por %p48, %p49
      %p51 = scmp.ne.s32.totalorder %s37, %s38
      %p52 = scmp.eq.s32.totalorder %s30, 1
      %p53 = por %p51, %p52
      %p55 = scmp.ne.s32.totalorder %s38, %s54
      %p56 = scmp.eq.s32.totalorder %s30, 0
      %p57 = por %p55, %p56
      %s58 = ssub.s32 %s24, %s31
      %p59 = scmp.eq.s32.totalorder %s58, 0
      %s61 = sadd.s32 %s60, 1
      %s62 = scalar_select %p59, %s60, %s61
      %p65 = pneg %p59
      %p66 = scmp.eq.s32.totalorder %s24, 1
      %p67 = por %p65, %p66
      %p68 = scmp.ne.s32.totalorder %s60, %s63
      %p69 = scmp.eq.s32.totalorder %s24, 0
      %p70 = por %p68, %p69
      %p71 = scmp.ne.s32.totalorder %s60, %s63
      %p72 = scmp.eq.s32.totalorder %s29, 1
      %p73 = por %p71, %p72
      %p74 = scmp.ne.s32.totalorder %s63, %s64
      %p75 = scmp.eq.s32.totalorder %s29, 0
      %p76 = por %p74, %p75
      %p77 = scmp.ne.s32.totalorder %s63, %s64
      %p78 = scmp.eq.s32.totalorder %s30, 1
      %p79 = por %p77, %p78
      %p81 = scmp.ne.s32.totalorder %s64, %s80
      %p82 = scmp.eq.s32.totalorder %s30, 0
      %p83 = por %p81, %p82
      %s84 = ssub.s32 %s24, %s31
      %p85 = scmp.eq.s32.totalorder %s84, 0
      %s87 = sadd.s32 %s86, 1
      %s88 = scalar_select %p85, %s86, %s87
      %p91 = pneg %p85
      %p92 = scmp.eq.s32.totalorder %s24, 1
      %p93 = por %p91, %p92
      %p94 = scmp.ne.s32.totalorder %s86, %s89
      %p95 = scmp.eq.s32.totalorder %s24, 0
      %p96 = por %p94, %p95
      %p97 = scmp.ne.s32.totalorder %s86, %s89
      %p98 = scmp.eq.s32.totalorder %s29, 1
      %p99 = por %p97, %p98
      %p100 = scmp.ne.s32.totalorder %s89, %s90
      %p101 = scmp.eq.s32.totalorder %s29, 0
      %p102 = por %p100, %p101
      %p103 = scmp.ne.s32.totalorder %s89, %s90
      %p104 = scmp.eq.s32.totalorder %s30, 1
      %p105 = por %p103, %p104
      %p107 = scmp.ne.s32.totalorder %s90, %s106
      %p108 = scmp.eq.s32.totalorder %s30, 0
      %p109 = por %p107, %p108
      %s111 = sadd.s32 %s110, 1
      %p114 = scmp.eq.s32.totalorder %s24, 1
      %p115 = scmp.ne.s32.totalorder %s110, %s112
      %p116 = scmp.eq.s32.totalorder %s24, 0
      %p117 = por %p115, %p116
      %p118 = scmp.ne.s32.totalorder %s110, %s112
      %p119 = scmp.eq.s32.totalorder %s29, 1
      %p120 = por %p118, %p119
      %p121 = scmp.ne.s32.totalorder %s112, %s113
      %p122 = scmp.eq.s32.totalorder %s29, 0
      %p123 = por %p121, %p122
      %p124 = scmp.ne.s32.totalorder %s112, %s113
      %p125 = scmp.eq.s32.totalorder %s30, 1
      %p126 = por %p124, %p125
      %p128 = scmp.ne.s32.totalorder %s113, %s127
      %p129 = scmp.eq.s32.totalorder %s30, 0
      %p130 = por %p128, %p129
      %s132 = sadd.s32 %s131, 1
      %p135 = scmp.eq.s32.totalorder %s24, 1
      %p136 = scmp.ne.s32.totalorder %s131, %s133
      %p137 = scmp.eq.s32.totalorder %s24, 0
      %p138 = por %p136, %p137
      %p139 = scmp.ne.s32.totalorder %s131, %s133
      %p140 = scmp.eq.s32.totalorder %s29, 1
      %p141 = por %p139, %p140
      %p142 = scmp.ne.s32.totalorder %s133, %s134
      %p143 = scmp.eq.s32.totalorder %s29, 0
      %p144 = por %p142, %p143
      %p145 = scmp.ne.s32.totalorder %s133, %s134
      %p146 = scmp.eq.s32.totalorder %s30, 1
      %p147 = por %p145, %p146
      %p149 = scmp.ne.s32.totalorder %s134, %s148
      %p150 = scmp.eq.s32.totalorder %s30, 0
      %p151 = por %p149, %p150
      %s153 = sadd.s32 %s152, 1
      %p156 = scmp.eq.s32.totalorder %s24, 1
      %p157 = scmp.ne.s32.totalorder %s152, %s154
      %p158 = scmp.eq.s32.totalorder %s24, 0
      %p159 = por %p157, %p158
      %p160 = scmp.ne.s32.totalorder %s152, %s154
      %p161 = scmp.eq.s32.totalorder %s29, 1
      %p162 = por %p160, %p161
      %p163 = scmp.ne.s32.totalorder %s154, %s155
      %p164 = scmp.eq.s32.totalorder %s29, 0
      %p165 = por %p163, %p164
      %p166 = scmp.ne.s32.totalorder %s154, %s155
      %p167 = scmp.eq.s32.totalorder %s30, 1
      %p168 = por %p166, %p167
      %p170 = scmp.ne.s32.totalorder %s155, %s169
      %p171 = scmp.eq.s32.totalorder %s30, 0
      %p172 = por %p170, %p171
      %s174 = sadd.s32 %s173, 1
      %p177 = scmp.eq.s32.totalorder %s24, 1
      %p178 = scmp.ne.s32.totalorder %s173, %s175
      %p179 = scmp.eq.s32.totalorder %s24, 0
      %p180 = por %p178, %p179
      %p181 = scmp.ne.s32.totalorder %s173, %s175
      %p182 = scmp.eq.s32.totalorder %s29, 1
      %p183 = por %p181, %p182
      %p184 = scmp.ne.s32.totalorder %s175, %s176
      %p185 = scmp.eq.s32.totalorder %s29, 0
      %p186 = por %p184, %p185
      %p187 = scmp.ne.s32.totalorder %s175, %s176
      %p188 = scmp.eq.s32.totalorder %s30, 1
      %p189 = por %p187, %p188
      %p191 = scmp.ne.s32.totalorder %s176, %s190
      %p192 = scmp.eq.s32.totalorder %s30, 0
      %p193 = por %p191, %p192
      %s195 = sadd.s32 %s194, 1
      %p198 = scmp.eq.s32.totalorder %s24, 1
      %p199 = scmp.ne.s32.totalorder %s194, %s196
      %p200 = scmp.eq.s32.totalorder %s24, 0
      %p201 = por %p199, %p200
      %p202 = scmp.ne.s32.totalorder %s194, %s196
      %p203 = scmp.eq.s32.totalorder %s29, 1
      %p204 = por %p202, %p203
      %p205 = scmp.ne.s32.totalorder %s196, %s197
      %p206 = scmp.eq.s32.totalorder %s29, 0
      %p207 = por %p205, %p206
      %p208 = scmp.ne.s32.totalorder %s196, %s197
      %p209 = scmp.eq.s32.totalorder %s30, 1
      %p210 = por %p208, %p209
      %p212 = scmp.ne.s32.totalorder %s197, %s211
      %p213 = scmp.eq.s32.totalorder %s30, 0
      %p214 = por %p212, %p213
      %s215 = ssub.s32 %s24, %s31
      %p216 = scmp.eq.s32.totalorder %s215, 0
      %s218 = sadd.s32 %s217, 1
      %s219 = scalar_select %p216, %s217, %s218
      %p222 = pneg %p216
      %p223 = scmp.eq.s32.totalorder %s24, 1
      %p224 = por %p222, %p223
      %p225 = scmp.ne.s32.totalorder %s217, %s220
      %p226 = scmp.eq.s32.totalorder %s24, 0
      %p227 = por %p225, %p226
      %p228 = scmp.ne.s32.totalorder %s217, %s220
      %p229 = scmp.eq.s32.totalorder %s29, 1
      %p230 = por %p228, %p229
      %p231 = scmp.ne.s32.totalorder %s220, %s221
      %p232 = scmp.eq.s32.totalorder %s29, 0
      %p233 = por %p231, %p232
      %p234 = scmp.ne.s32.totalorder %s220, %s221
      %p235 = scmp.eq.s32.totalorder %s30, 1
      %p236 = por %p234, %p235
      %p238 = scmp.ne.s32.totalorder %s221, %s237
      %p239 = scmp.eq.s32.totalorder %s30, 0
      %p240 = por %p238, %p239
      %p241 = scmp.le.s32.totalorder 1, %s24
      %p242 = scmp.lt.s32.totalorder %s24, 3
      %p243 = pnand %p241, %p242
      %p244 = pneg %p243
      // Predicated region
      $region9: #{tpu_custom_call.1} parent=5 // pred_check
        _
      $region10: #{tpu_custom_call.1} parent=5 // pred_check_branch
        %246 = sbr.rel (%p243) target = $region12
      $region11: #{tpu_custom_call.1} parent=5 // pred_region
        %s247 = ssub.s32 %s24, 1
        // Predicated region
        $region13: #{tpu_custom_call.1} parent=11 // pred_check
          %p248 = pneg %p123
        $region14: #{tpu_custom_call.1} parent=11 // pred_check_branch
          %250 = sbr.rel (%p248) target = $region16
        $region15: #{tpu_custom_call.1} parent=11 // pred_region
          %s252 = ssub.s32 256, 256
          %253 = vsyncadd [#allocation10], %s252
          %s254 = sshll.u32 [#allocation9], 4
          %s255 = int_to_ptr.vmem [resolvable:$true] %s254
          %260 = dma.hbm_to_vmem [thread:$0]  %s3, 256, %s255, [#allocation10], 64, 64, 4
        $region16: #{tpu_custom_call.1} parent=11 // pred_fallthru
          _
        // Predicated region
        $region17: #{tpu_custom_call.1} parent=11 // pred_check
          %p261 = pneg %p144
        $region18: #{tpu_custom_call.1} parent=11 // pred_check_branch
          %263 = sbr.rel (%p261) target = $region20
        $region19: #{tpu_custom_call.1} parent=11 // pred_region
          _
        $region20: #{tpu_custom_call.1} parent=11 // pred_fallthru
          _
        // Predicated region
        $region21: #{tpu_custom_call.1} parent=11 // pred_check
          %p264 = pneg %p165
        $region22: #{tpu_custom_call.1} parent=11 // pred_check_branch
          %266 = sbr.rel (%p264) target = $region24
        $region23: #{tpu_custom_call.1} parent=11 // pred_region
          %s268 = ssub.s32 1792, 1792
          %269 = vsyncadd [#allocation10], %s268
          %s270 = sshll.u32 [#allocation11], 4
          %s271 = int_to_ptr.vmem [resolvable:$true] %s270
          %276 = dma.hbm_to_vmem [thread:$0]  %s5, 1792, %s271, [#allocation10], 64, 64, 4
        $region24: #{tpu_custom_call.1} parent=11 // pred_fallthru
          _
        // Predicated region
        $region25: #{tpu_custom_call.1} parent=11 // pred_check
          %p277 = pneg %p186
        $region26: #{tpu_custom_call.1} parent=11 // pred_check_branch
          %279 = sbr.rel (%p277) target = $region28
        $region27: #{tpu_custom_call.1} parent=11 // pred_region
          _
        $region28: #{tpu_custom_call.1} parent=11 // pred_fallthru
          _
        // Predicated region
        $region29: #{tpu_custom_call.1} parent=11 // pred_check
          %p280 = pneg %p207
        $region30: #{tpu_custom_call.1} parent=11 // pred_check_branch
          %282 = sbr.rel (%p280) target = $region32
        $region31: #{tpu_custom_call.1} parent=11 // pred_region
          _
        $region32: #{tpu_custom_call.1} parent=11 // pred_fallthru
          _
      $region12: #{tpu_custom_call.1} parent=5 // pred_fallthru
        _
      %p283 = scmp.lt.s32.totalorder %s24, 2
      // Predicated region
      $region33: #{tpu_custom_call.1} parent=5 // pred_check
        %p284 = pneg %p283
      $region34: #{tpu_custom_call.1} parent=5 // pred_check_branch
        %286 = sbr.rel (%p284) target = $region36
      $region35: #{tpu_custom_call.1} parent=5 // pred_region
        // Predicated region
        $region37: #{tpu_custom_call.1} parent=35 // pred_check
          %p287 = pneg %p44
        $region38: #{tpu_custom_call.1} parent=35 // pred_check_branch
          %289 = sbr.rel (%p287) target = $region40
        $region39: #{tpu_custom_call.1} parent=35 // pred_region
          %s290 = sand.u32 %s34, 1
          %s291 = scalar_lea.sflag [#allocation4], %s290
          %s292 = sand.u32 %s34, 1
          %s293 = smul.addr %s292, 8
          %s294 = scalar_lea.vmem [#allocation3], %s293
          %s296 = ssub.s32 128, 128
          %297 = vsyncadd %s291, %s296
          %s298 = smul.addr %s24, 128
          %s299 = scalar_lea.hbm %s0, %s298
          %s301 = sshll.u32 %s294, 4
          %s302 = int_to_ptr.vmem [resolvable:$true] %s301
          %304 = dma.hbm_to_vmem [thread:$0]  %s299, 128, %s302, %s291
        $region40: #{tpu_custom_call.1} parent=35 // pred_fallthru
          _
        // Predicated region
        $region41: #{tpu_custom_call.1} parent=35 // pred_check
          %p305 = pneg %p70
        $region42: #{tpu_custom_call.1} parent=35 // pred_check_branch
          %307 = sbr.rel (%p305) target = $region44
        $region43: #{tpu_custom_call.1} parent=35 // pred_region
          %s308 = sand.u32 %s24, 1
          %s309 = scalar_lea.sflag [#allocation7], %s308
          %s310 = sand.u32 %s60, 1
          %s311 = smul.addr %s310, 8
          %s312 = scalar_lea.vmem [#allocation6], %s311
          %s314 = ssub.s32 128, 128
          %315 = vsyncadd %s309, %s314
          %s316 = smul.addr %s24, 128
          %s317 = scalar_lea.hbm %s1, %s316
          %s319 = sshll.u32 %s312, 4
          %s320 = int_to_ptr.vmem [resolvable:$true] %s319
          %322 = dma.hbm_to_vmem [thread:$0]  %s317, 128, %s320, %s309
        $region44: #{tpu_custom_call.1} parent=35 // pred_fallthru
          _
        // Predicated region
        $region45: #{tpu_custom_call.1} parent=35 // pred_check
          %p323 = pneg %p96
        $region46: #{tpu_custom_call.1} parent=35 // pred_check_branch
          %325 = sbr.rel (%p323) target = $region48
        $region47: #{tpu_custom_call.1} parent=35 // pred_region
          %s326 = sand.u32 %s24, 1
          %s327 = scalar_lea.sflag [#allocation7], %s326
          %s328 = sand.u32 %s86, 1
          %s329 = smul.addr %s328, 8
          %s330 = scalar_lea.vmem [#allocation8], %s329
          %s332 = ssub.s32 128, 128
          %333 = vsyncadd %s327, %s332
          %s334 = smul.addr %s24, 128
          %s335 = scalar_lea.hbm %s2, %s334
          %s337 = sshll.u32 %s330, 4
          %s338 = int_to_ptr.vmem [resolvable:$true] %s337
          %340 = dma.hbm_to_vmem [thread:$0]  %s335, 128, %s338, %s327
        $region48: #{tpu_custom_call.1} parent=35 // pred_fallthru
          _
      $region36: #{tpu_custom_call.1} parent=5 // pred_fallthru
        _
      %p341 = scmp.le.s32.totalorder 1, %s24
      %p342 = scmp.lt.s32.totalorder %s24, 3
      %p343 = pnand %p341, %p342
      %p344 = pneg %p343
      // Predicated region
      $region49: #{tpu_custom_call.1} parent=5 // pred_check
        _
      $region50: #{tpu_custom_call.1} parent=5 // pred_check_branch
        %346 = sbr.rel (%p343) target = $region52
      $region51: #{tpu_custom_call.1} parent=5 // pred_region
        %s347 = ssub.s32 %s24, 1
        %s348 = sand.u32 %s37, 1
        %s349 = scalar_lea.sflag [#allocation4], %s348
        %s350 = sand.u32 %s37, 1
        %s351 = smul.addr %s350, 8
        %s352 = scalar_lea.vmem [#allocation3], %s351
        // Predicated region
        $region53: #{tpu_custom_call.1} parent=51 // pred_check
          %p353 = pneg %p50
        $region54: #{tpu_custom_call.1} parent=51 // pred_check_branch
          %355 = sbr.rel (%p353) target = $region56
        $region55: #{tpu_custom_call.1} parent=51 // pred_region
          %356 = dma.done %s349, 128
        $region56: #{tpu_custom_call.1} parent=51 // pred_fallthru
          _
        %s357 = sand.u32 %s29, 1
        %s358 = scalar_lea.sflag [#allocation7], %s357
        %s359 = sand.u32 %s63, 1
        %s360 = smul.addr %s359, 8
        %s361 = scalar_lea.vmem [#allocation6], %s360
        // Predicated region
        $region57: #{tpu_custom_call.1} parent=51 // pred_check
          %p362 = pneg %p76
        $region58: #{tpu_custom_call.1} parent=51 // pred_check_branch
          %364 = sbr.rel (%p362) target = $region60
        $region59: #{tpu_custom_call.1} parent=51 // pred_region
          %365 = dma.done %s358, 128
        $region60: #{tpu_custom_call.1} parent=51 // pred_fallthru
          _
        %s366 = sand.u32 %s29, 1
        %s367 = scalar_lea.sflag [#allocation7], %s366
        %s368 = sand.u32 %s89, 1
        %s369 = smul.addr %s368, 8
        %s370 = scalar_lea.vmem [#allocation8], %s369
        // Predicated region
        $region61: #{tpu_custom_call.1} parent=51 // pred_check
          %p371 = pneg %p102
        $region62: #{tpu_custom_call.1} parent=51 // pred_check_branch
          %373 = sbr.rel (%p371) target = $region64
        $region63: #{tpu_custom_call.1} parent=51 // pred_region
          %374 = dma.done %s367, 128
        $region64: #{tpu_custom_call.1} parent=51 // pred_fallthru
          _
        // Predicated region
        $region65: #{tpu_custom_call.1} parent=51 // pred_check
          %p375 = pneg %p123
        $region66: #{tpu_custom_call.1} parent=51 // pred_check_branch
          %377 = sbr.rel (%p375) target = $region68
        $region67: #{tpu_custom_call.1} parent=51 // pred_region
          %378 = dma.done [#allocation10], 256
        $region68: #{tpu_custom_call.1} parent=51 // pred_fallthru
          _
        // Predicated region
        $region69: #{tpu_custom_call.1} parent=51 // pred_check
          %p379 = pneg %p165
        $region70: #{tpu_custom_call.1} parent=51 // pred_check_branch
          %381 = sbr.rel (%p379) target = $region72
        $region71: #{tpu_custom_call.1} parent=51 // pred_region
          %382 = dma.done [#allocation10], 1792
        $region72: #{tpu_custom_call.1} parent=51 // pred_fallthru
          _
        %s383 = sand.u32 %s37, 1
        %s384 = scalar_lea.sflag [#allocation4], %s383
        %s385 = sand.u32 %s37, 1
        %s386 = smul.addr %s385, 8
        %s387 = scalar_lea.vmem [#allocation3], %s386
        %p388 = pneg %p50
        %p389 = pneg %p47
        %s390 = sand.u32 %s29, 1
        %s391 = scalar_lea.sflag [#allocation7], %s390
        %s392 = sand.u32 %s63, 1
        %s393 = smul.addr %s392, 8
        %s394 = scalar_lea.vmem [#allocation6], %s393
        %p395 = pneg %p76
        %p396 = pneg %p73
        %s397 = sand.u32 %s29, 1
        %s398 = scalar_lea.sflag [#allocation7], %s397
        %s399 = sand.u32 %s89, 1
        %s400 = smul.addr %s399, 8
        %s401 = scalar_lea.vmem [#allocation8], %s400
        %p402 = pneg %p102
        %p403 = pneg %p99
        %p404 = pneg %p123
        %p405 = pneg %p120
        %p406 = pneg %p144
        %p407 = pneg %p141
        %p408 = pneg %p165
        %p409 = pneg %p162
        %p410 = pneg %p186
        %p411 = pneg %p183
        %p412 = pneg %p207
        %p413 = pneg %p204
        %p414 = pneg %p233
        %p415 = pneg %p230
        %s416 = sand.u32 %s220, 1
        %s417 = scalar_lea.sflag [#allocation5], %s416
        %s418 = sand.u32 %s220, 1
        %s419 = smul.addr %s418, 8
        %s420 = scalar_lea.vmem [#allocation12], %s419
        %v422 = vld [vmem:[%s352] sm:$0xff]
        %v423 = vld [vmem:[%s361] sm:$0xff]
        %v424 = vld [vmem:[%s370] sm:$0xff]
        %v425 = vld [vmem:[%s7] sm:$0xff]
        %v426 = vld [vmem:[%s7 + $0x8] sm:$0x3]
        %v427 = vld [vmem:[%s6] sm:$0x7f]
        %vm428 = vcmask 261120
        %v429 = vsel %vm428, %v424, 0.0
        %430 = vadd.xlane.f32.xlu0 %v429
        %v431 = vpop.xlane.xlu0 %430
        %v432 = vrcp.pop 32.0
        %v433 = vmul.f32 %v431, %v432
        %v434 = vsub.f32 %v424, %v433
        %v435 = vmul.f32 %v434, %v434
        %v436 = vsel %vm428, %v435, 0.0
        %437 = vadd.xlane.f32.xlu0 %v436
        %v438 = vpop.xlane.xlu0 %437
        %v439 = vmul.f32 %v438, %v432
        %v440 = vadd.f32 %v439, 1e-05
        %v441 = vrsqrt.pop %v440
        %v442 = vmul.f32 %v434, %v441
        %v443 = vlaneseq
        %v444 = vshrl.u32 %v443, 7
        %v445 = vsub.s32 0, %v444
        %v446 = vrot.slane %v425, %v445
        %v447 = vmul.f32 %v442, %v446
        %v448 = vlaneseq
        %v449 = vshrl.u32 %v448, 7
        %v450 = vsub.s32 1, %v449
        %v451 = vrot.slane %v425, %v450
        %v452 = vadd.f32 %v447, %v451
        %v453 = vld [vmem:[#allocation9] sm:$0xf]
        %v454 = vld [vmem:[#allocation9 + $0x4] sm:$0xf]
        %v455 = vld [vmem:[#allocation9 + $0x8] sm:$0xf]
        %v456 = vld [vmem:[#allocation9 + $0xc] sm:$0xf]
        %v457 = vld [vmem:[%s4] sm:$0x1]
        %v458 = vpack.c.bf16 %v452, %v452
        %v460 = vlaneseq
        %v461 = vshrl.u32 %v460, 7
        %v462 = vsub.s32 0, %v461
        %v463 = vrot.slane %v457, %v462
        %v469 = vunpack.c.l.b16 %v453
        %v470 = vunpack.c.l.b16 %v454
        %v471 = vunpack.c.l.b16 %v455
        %v472 = vunpack.c.l.b16 %v456
        %v473 = vpack.c.b16 %v470, %v469
        %v474 = vpack.c.b16 %v472, %v471
        %v478 = vsel %vm428, %v458, 0
        %480 = vmatprep.subr.bf16.mxu0 0
        %481 = vmatpush1.bf16.msra.mxu0 %v473
        %482 = vmatprep.subr.bf16.mxu0 0
        %483 = vmatpush1.bf16.msra.mxu0 %v474
        %484 = vmatprep.subr.bf16.mxu0 0
        %485 = vmatpush1.bf16.msra.mxu0 0
        %486 = vmatprep.subr.bf16.mxu0 0
        %487 = vmatpush1.bf16.msra.mxu0 0
        %488 = vmatprep.subr.bf16.mxu0 0
        %489 = vmatpush1.bf16.msra.mxu0 0
        %490 = vmatprep.subr.bf16.mxu0 0
        %491 = vmatpush1.bf16.msra.mxu0 0
        %492 = vmatprep.subr.bf16.mxu0 0
        %493 = vmatpush1.bf16.msra.mxu0 0
        %494 = vmatprep.subr.bf16.mxu0 0
        %495 = vmatpush1.bf16.msra.mxu0 0
        %496 = vmatprep.subr.bf16.mxu0 0
        %497 = vmatpush1.bf16.msra.mxu0 0
        %498 = vmatprep.subr.bf16.mxu0 0
        %499 = vmatpush1.bf16.msra.mxu0 0
        %500 = vmatprep.subr.bf16.mxu0 0
        %501 = vmatpush1.bf16.msra.mxu0 0
        %502 = vmatprep.subr.bf16.mxu0 0
        %503 = vmatpush1.bf16.msra.mxu0 0
        %504 = vmatprep.subr.bf16.mxu0 0
        %505 = vmatpush1.bf16.msra.mxu0 0
        %506 = vmatprep.subr.bf16.mxu0 0
        %507 = vmatpush1.bf16.msra.mxu0 0
        %508 = vmatprep.subr.bf16.mxu0 0
        %509 = vmatpush1.bf16.msra.mxu0 0
        %510 = vmatprep.subr.bf16.mxu0 0
        %511 = vmatpush1.bf16.msra.mxu0 0
        %512 = vmatprep.mubr.bf16.mxu0 0
        %513 = vmatmul.mubr.bf16.gmra.mrb[0].mxu0 %v478
        %v514 = vpop.f32.mrb[0].mxu0
        %v515 = vadd.f32 %v463, %v514
        %v516 = vpop.f32.mrb[0].mxu0
        %v517 = vpop.f32.mrb[0].mxu0
        %v518 = vpop.f32.mrb[0].mxu0
        %519 = vdwg.mxu0
        %v520 = vpack.c.bf16 %v515, %v515
        %522 = vrot.lane.b32.xlu0 %v520, 124
        %v523 = vpop.permute.xlu0 %522
        %524 = vrot.lane.b32.xlu0 %v520, 120
        %v525 = vpop.permute.xlu0 %524
        %526 = vrot.lane.b32.xlu0 %v520, 116
        %v527 = vpop.permute.xlu0 %526
        %528 = vrot.lane.b32.xlu0 %v520, 112
        %v529 = vpop.permute.xlu0 %528
        %530 = vrot.lane.b32.xlu0 %v520, 108
        %v531 = vpop.permute.xlu0 %530
        %532 = vrot.lane.b32.xlu0 %v520, 104
        %v533 = vpop.permute.xlu0 %532
        %534 = vrot.lane.b32.xlu0 %v520, 100
        %v535 = vpop.permute.xlu0 %534
        %536 = vrot.lane.b32.xlu0 %v520, 96
        %v537 = vpop.permute.xlu0 %536
        %vm538 = vcmask 31744
        %v540 = vsel %vm538, %v520, 0
        %v543 = vsel %vm538, %v537, 0
        %545 = vmatprep.subr.bf16.mxu0 0
        %546 = vmatpush1.bf16.xpose.msra.mxu0 %v543
        %547 = vmatprep.subr.bf16.mxu0 0
        %548 = vmatpush1.bf16.xpose.msra.mxu0 0
        %549 = vmatprep.subr.bf16.mxu0 0
        %550 = vmatpush1.bf16.xpose.msra.mxu0 0
        %551 = vmatprep.subr.bf16.mxu0 0
        %552 = vmatpush1.bf16.xpose.msra.mxu0 0
        %553 = vmatprep.subr.bf16.mxu0 0
        %554 = vmatpush1.bf16.xpose.msra.mxu0 0
        %555 = vmatprep.subr.bf16.mxu0 0
        %556 = vmatpush1.bf16.xpose.msra.mxu0 0
        %557 = vmatprep.subr.bf16.mxu0 0
        %558 = vmatpush1.bf16.xpose.msra.mxu0 0
        %559 = vmatprep.subr.bf16.mxu0 0
        %560 = vmatpush1.bf16.xpose.msra.mxu0 0
        %561 = vmatprep.subr.bf16.mxu0 0
        %562 = vmatpush1.bf16.xpose.msra.mxu0 0
        %563 = vmatprep.subr.bf16.mxu0 0
        %564 = vmatpush1.bf16.xpose.msra.mxu0 0
        %565 = vmatprep.subr.bf16.mxu0 0
        %566 = vmatpush1.bf16.xpose.msra.mxu0 0
        %567 = vmatprep.subr.bf16.mxu0 0
        %568 = vmatpush1.bf16.xpose.msra.mxu0 0
        %569 = vmatprep.subr.bf16.mxu0 0
        %570 = vmatpush1.bf16.xpose.msra.mxu0 0
        %571 = vmatprep.subr.bf16.mxu0 0
        %572 = vmatpush1.bf16.xpose.msra.mxu0 0
        %573 = vmatprep.subr.bf16.mxu0 0
        %574 = vmatpush1.bf16.xpose.msra.mxu0 0
        %575 = vmatprep.subr.bf16.mxu0 0
        %576 = vmatpush1.bf16.xpose.msra.mxu0 0
        %577 = vmatprep.mubr.bf16.mxu0 0
        %578 = vmatmul.mubr.bf16.gmra.mrb[0].mxu0 %v540
        %v579 = vpop.f32.mrb[0].mxu0
        %v580 = vadd.f32 0.0, %v579
        %v581 = vpop.f32.mrb[0].mxu0
        %v582 = vpop.f32.mrb[0].mxu0
        %v583 = vpop.f32.mrb[0].mxu0
        %584 = vdwg.mxu0
        %585 = vrot.lane.b32.xlu0 %v523, 96
        %v586 = vpop.permute.xlu0 %585
        %v588 = vsel %vm538, %v523, 0
        %v591 = vsel %vm538, %v586, 0
        %593 = vmatprep.subr.bf16.mxu0 0
        %594 = vmatpush1.bf16.xpose.msra.mxu0 %v591
        %595 = vmatprep.subr.bf16.mxu0 0
        %596 = vmatpush1.bf16.xpose.msra.mxu0 0
        %597 = vmatprep.subr.bf16.mxu0 0
        %598 = vmatpush1.bf16.xpose.msra.mxu0 0
        %599 = vmatprep.subr.bf16.mxu0 0
        %600 = vmatpush1.bf16.xpose.msra.mxu0 0
        %601 = vmatprep.subr.bf16.mxu0 0
        %602 = vmatpush1.bf16.xpose.msra.mxu0 0
        %603 = vmatprep.subr.bf16.mxu0 0
        %604 = vmatpush1.bf16.xpose.msra.mxu0 0
        %605 = vmatprep.subr.bf16.mxu0 0
        %606 = vmatpush1.bf16.xpose.msra.mxu0 0
        %607 = vmatprep.subr.bf16.mxu0 0
        %608 = vmatpush1.bf16.xpose.msra.mxu0 0
        %609 = vmatprep.subr.bf16.mxu0 0
        %610 = vmatpush1.bf16.xpose.msra.mxu0 0
        %611 = vmatprep.subr.bf16.mxu0 0
        %612 = vmatpush1.bf16.xpose.msra.mxu0 0
        %613 = vmatprep.subr.bf16.mxu0 0
        %614 = vmatpush1.bf16.xpose.msra.mxu0 0
        %615 = vmatprep.subr.bf16.mxu0 0
        %616 = vmatpush1.bf16.xpose.msra.mxu0 0
        %617 = vmatprep.subr.bf16.mxu0 0
        %618 = vmatpush1.bf16.xpose.msra.mxu0 0
        %619 = vmatprep.subr.bf16.mxu0 0
        %620 = vmatpush1.bf16.xpose.msra.mxu0 0
        %621 = vmatprep.subr.bf16.mxu0 0
        %622 = vmatpush1.bf16.xpose.msra.mxu0 0
        %623 = vmatprep.subr.bf16.mxu0 0
        %624 = vmatpush1.bf16.xpose.msra.mxu0 0
        %625 = vmatprep.mubr.bf16.mxu0 0
        %626 = vmatmul.mubr.bf16.gmra.mrb[0].mxu0 %v588
        %v627 = vpop.f32.mrb[0].mxu0
        %v628 = vadd.f32 0.0, %v627
        %v629 = vpop.f32.mrb[0].mxu0
        %v630 = vpop.f32.mrb[0].mxu0
        %v631 = vpop.f32.mrb[0].mxu0
        %632 = vdwg.mxu0
        %633 = vrot.lane.b32.xlu0 %v525, 96
        %v634 = vpop.permute.xlu0 %633
        %v636 = vsel %vm538, %v525, 0
        %v639 = vsel %vm538, %v634, 0
        %641 = vmatprep.subr.bf16.mxu0 0
        %642 = vmatpush1.bf16.xpose.msra.mxu0 %v639
        %643 = vmatprep.subr.bf16.mxu0 0
        %644 = vmatpush1.bf16.xpose.msra.mxu0 0
        %645 = vmatprep.subr.bf16.mxu0 0
        %646 = vmatpush1.bf16.xpose.msra.mxu0 0
        %647 = vmatprep.subr.bf16.mxu0 0
        %648 = vmatpush1.bf16.xpose.msra.mxu0 0
        %649 = vmatprep.subr.bf16.mxu0 0
        %650 = vmatpush1.bf16.xpose.msra.mxu0 0
        %651 = vmatprep.subr.bf16.mxu0 0
        %652 = vmatpush1.bf16.xpose.msra.mxu0 0
        %653 = vmatprep.subr.bf16.mxu0 0
        %654 = vmatpush1.bf16.xpose.msra.mxu0 0
        %655 = vmatprep.subr.bf16.mxu0 0
        %656 = vmatpush1.bf16.xpose.msra.mxu0 0
        %657 = vmatprep.subr.bf16.mxu0 0
        %658 = vmatpush1.bf16.xpose.msra.mxu0 0
        %659 = vmatprep.subr.bf16.mxu0 0
        %660 = vmatpush1.bf16.xpose.msra.mxu0 0
        %661 = vmatprep.subr.bf16.mxu0 0
        %662 = vmatpush1.bf16.xpose.msra.mxu0 0
        %663 = vmatprep.subr.bf16.mxu0 0
        %664 = vmatpush1.bf16.xpose.msra.mxu0 0
        %665 = vmatprep.subr.bf16.mxu0 0
        %666 = vmatpush1.bf16.xpose.msra.mxu0 0
        %667 = vmatprep.subr.bf16.mxu0 0
        %668 = vmatpush1.bf16.xpose.msra.mxu0 0
        %669 = vmatprep.subr.bf16.mxu0 0
        %670 = vmatpush1.bf16.xpose.msra.mxu0 0
        %671 = vmatprep.subr.bf16.mxu0 0
        %672 = vmatpush1.bf16.xpose.msra.mxu0 0
        %673 = vmatprep.mubr.bf16.mxu0 0
        %674 = vmatmul.mubr.bf16.gmra.mrb[0].mxu0 %v636
        %v675 = vpop.f32.mrb[0].mxu0
        %v676 = vadd.f32 0.0, %v675
        %v677 = vpop.f32.mrb[0].mxu0
        %v678 = vpop.f32.mrb[0].mxu0
        %v679 = vpop.f32.mrb[0].mxu0
        %680 = vdwg.mxu0
        %681 = vrot.lane.b32.xlu0 %v527, 96
        %v682 = vpop.permute.xlu0 %681
        %v684 = vsel %vm538, %v527, 0
        %v687 = vsel %vm538, %v682, 0
        %689 = vmatprep.subr.bf16.mxu0 0
        %690 = vmatpush1.bf16.xpose.msra.mxu0 %v687
        %691 = vmatprep.subr.bf16.mxu0 0
        %692 = vmatpush1.bf16.xpose.msra.mxu0 0
        %693 = vmatprep.subr.bf16.mxu0 0
        %694 = vmatpush1.bf16.xpose.msra.mxu0 0
        %695 = vmatprep.subr.bf16.mxu0 0
        %696 = vmatpush1.bf16.xpose.msra.mxu0 0
        %697 = vmatprep.subr.bf16.mxu0 0
        %698 = vmatpush1.bf16.xpose.msra.mxu0 0
        %699 = vmatprep.subr.bf16.mxu0 0
        %700 = vmatpush1.bf16.xpose.msra.mxu0 0
        %701 = vmatprep.subr.bf16.mxu0 0
        %702 = vmatpush1.bf16.xpose.msra.mxu0 0
        %703 = vmatprep.subr.bf16.mxu0 0
        %704 = vmatpush1.bf16.xpose.msra.mxu0 0
        %705 = vmatprep.subr.bf16.mxu0 0
        %706 = vmatpush1.bf16.xpose.msra.mxu0 0
        %707 = vmatprep.subr.bf16.mxu0 0
        %708 = vmatpush1.bf16.xpose.msra.mxu0 0
        %709 = vmatprep.subr.bf16.mxu0 0
        %710 = vmatpush1.bf16.xpose.msra.mxu0 0
        %711 = vmatprep.subr.bf16.mxu0 0
        %712 = vmatpush1.bf16.xpose.msra.mxu0 0
        %713 = vmatprep.subr.bf16.mxu0 0
        %714 = vmatpush1.bf16.xpose.msra.mxu0 0
        %715 = vmatprep.subr.bf16.mxu0 0
        %716 = vmatpush1.bf16.xpose.msra.mxu0 0
        %717 = vmatprep.subr.bf16.mxu0 0
        %718 = vmatpush1.bf16.xpose.msra.mxu0 0
        %719 = vmatprep.subr.bf16.mxu0 0
        %720 = vmatpush1.bf16.xpose.msra.mxu0 0
        %721 = vmatprep.mubr.bf16.mxu0 0
        %722 = vmatmul.mubr.bf16.gmra.mrb[0].mxu0 %v684
        %v723 = vpop.f32.mrb[0].mxu0
        %v724 = vadd.f32 0.0, %v723
        %v725 = vpop.f32.mrb[0].mxu0
        %v726 = vpop.f32.mrb[0].mxu0
        %v727 = vpop.f32.mrb[0].mxu0
        %728 = vdwg.mxu0
        %729 = vrot.lane.b32.xlu0 %v529, 96
        %v730 = vpop.permute.xlu0 %729
        %v732 = vsel %vm538, %v529, 0
        %v735 = vsel %vm538, %v730, 0
        %737 = vmatprep.subr.bf16.mxu0 0
        %738 = vmatpush1.bf16.xpose.msra.mxu0 %v735
        %739 = vmatprep.subr.bf16.mxu0 0
        %740 = vmatpush1.bf16.xpose.msra.mxu0 0
        %741 = vmatprep.subr.bf16.mxu0 0
        %742 = vmatpush1.bf16.xpose.msra.mxu0 0
        %743 = vmatprep.subr.bf16.mxu0 0
        %744 = vmatpush1.bf16.xpose.msra.mxu0 0
        %745 = vmatprep.subr.bf16.mxu0 0
        %746 = vmatpush1.bf16.xpose.msra.mxu0 0
        %747 = vmatprep.subr.bf16.mxu0 0
        %748 = vmatpush1.bf16.xpose.msra.mxu0 0
        %749 = vmatprep.subr.bf16.mxu0 0
        %750 = vmatpush1.bf16.xpose.msra.mxu0 0
        %751 = vmatprep.subr.bf16.mxu0 0
        %752 = vmatpush1.bf16.xpose.msra.mxu0 0
        %753 = vmatprep.subr.bf16.mxu0 0
        %754 = vmatpush1.bf16.xpose.msra.mxu0 0
        %755 = vmatprep.subr.bf16.mxu0 0
        %756 = vmatpush1.bf16.xpose.msra.mxu0 0
        %757 = vmatprep.subr.bf16.mxu0 0
        %758 = vmatpush1.bf16.xpose.msra.mxu0 0
        %759 = vmatprep.subr.bf16.mxu0 0
        %760 = vmatpush1.bf16.xpose.msra.mxu0 0
        %761 = vmatprep.subr.bf16.mxu0 0
        %762 = vmatpush1.bf16.xpose.msra.mxu0 0
        %763 = vmatprep.subr.bf16.mxu0 0
        %764 = vmatpush1.bf16.xpose.msra.mxu0 0
        %765 = vmatprep.subr.bf16.mxu0 0
        %766 = vmatpush1.bf16.xpose.msra.mxu0 0
        %767 = vmatprep.subr.bf16.mxu0 0
        %768 = vmatpush1.bf16.xpose.msra.mxu0 0
        %769 = vmatprep.mubr.bf16.mxu0 0
        %770 = vmatmul.mubr.bf16.gmra.mrb[0].mxu0 %v732
        %v771 = vpop.f32.mrb[0].mxu0
        %v772 = vadd.f32 0.0, %v771
        %v773 = vpop.f32.mrb[0].mxu0
        %v774 = vpop.f32.mrb[0].mxu0
        %v775 = vpop.f32.mrb[0].mxu0
        %776 = vdwg.mxu0
        %777 = vrot.lane.b32.xlu0 %v531, 96
        %v778 = vpop.permute.xlu0 %777
        %v780 = vsel %vm538, %v531, 0
        %v783 = vsel %vm538, %v778, 0
        %785 = vmatprep.subr.bf16.mxu0 0
        %786 = vmatpush1.bf16.xpose.msra.mxu0 %v783
        %787 = vmatprep.subr.bf16.mxu0 0
        %788 = vmatpush1.bf16.xpose.msra.mxu0 0
        %789 = vmatprep.subr.bf16.mxu0 0
        %790 = vmatpush1.bf16.xpose.msra.mxu0 0
        %791 = vmatprep.subr.bf16.mxu0 0
        %792 = vmatpush1.bf16.xpose.msra.mxu0 0
        %793 = vmatprep.subr.bf16.mxu0 0
        %794 = vmatpush1.bf16.xpose.msra.mxu0 0
        %795 = vmatprep.subr.bf16.mxu0 0
        %796 = vmatpush1.bf16.xpose.msra.mxu0 0
        %797 = vmatprep.subr.bf16.mxu0 0
        %798 = vmatpush1.bf16.xpose.msra.mxu0 0
        %799 = vmatprep.subr.bf16.mxu0 0
        %800 = vmatpush1.bf16.xpose.msra.mxu0 0
        %801 = vmatprep.subr.bf16.mxu0 0
        %802 = vmatpush1.bf16.xpose.msra.mxu0 0
        %803 = vmatprep.subr.bf16.mxu0 0
        %804 = vmatpush1.bf16.xpose.msra.mxu0 0
        %805 = vmatprep.subr.bf16.mxu0 0
        %806 = vmatpush1.bf16.xpose.msra.mxu0 0
        %807 = vmatprep.subr.bf16.mxu0 0
        %808 = vmatpush1.bf16.xpose.msra.mxu0 0
        %809 = vmatprep.subr.bf16.mxu0 0
        %810 = vmatpush1.bf16.xpose.msra.mxu0 0
        %811 = vmatprep.subr.bf16.mxu0 0
        %812 = vmatpush1.bf16.xpose.msra.mxu0 0
        %813 = vmatprep.subr.bf16.mxu0 0
        %814 = vmatpush1.bf16.xpose.msra.mxu0 0
        %815 = vmatprep.subr.bf16.mxu0 0
        %816 = vmatpush1.bf16.xpose.msra.mxu0 0
        %817 = vmatprep.mubr.bf16.mxu0 0
        %818 = vmatmul.mubr.bf16.gmra.mrb[0].mxu0 %v780
        %v819 = vpop.f32.mrb[0].mxu0
        %v820 = vadd.f32 0.0, %v819
        %v821 = vpop.f32.mrb[0].mxu0
        %v822 = vpop.f32.mrb[0].mxu0
        %v823 = vpop.f32.mrb[0].mxu0
        %824 = vdwg.mxu0
        %825 = vrot.lane.b32.xlu0 %v533, 96
        %v826 = vpop.permute.xlu0 %825
        %v828 = vsel %vm538, %v533, 0
        %v831 = vsel %vm538, %v826, 0
        %833 = vmatprep.subr.bf16.mxu0 0
        %834 = vmatpush1.bf16.xpose.msra.mxu0 %v831
        %835 = vmatprep.subr.bf16.mxu0 0
        %836 = vmatpush1.bf16.xpose.msra.mxu0 0
        %837 = vmatprep.subr.bf16.mxu0 0
        %838 = vmatpush1.bf16.xpose.msra.mxu0 0
        %839 = vmatprep.subr.bf16.mxu0 0
        %840 = vmatpush1.bf16.xpose.msra.mxu0 0
        %841 = vmatprep.subr.bf16.mxu0 0
        %842 = vmatpush1.bf16.xpose.msra.mxu0 0
        %843 = vmatprep.subr.bf16.mxu0 0
        %844 = vmatpush1.bf16.xpose.msra.mxu0 0
        %845 = vmatprep.subr.bf16.mxu0 0
        %846 = vmatpush1.bf16.xpose.msra.mxu0 0
        %847 = vmatprep.subr.bf16.mxu0 0
        %848 = vmatpush1.bf16.xpose.msra.mxu0 0
        %849 = vmatprep.subr.bf16.mxu0 0
        %850 = vmatpush1.bf16.xpose.msra.mxu0 0
        %851 = vmatprep.subr.bf16.mxu0 0
        %852 = vmatpush1.bf16.xpose.msra.mxu0 0
        %853 = vmatprep.subr.bf16.mxu0 0
        %854 = vmatpush1.bf16.xpose.msra.mxu0 0
        %855 = vmatprep.subr.bf16.mxu0 0
        %856 = vmatpush1.bf16.xpose.msra.mxu0 0
        %857 = vmatprep.subr.bf16.mxu0 0
        %858 = vmatpush1.bf16.xpose.msra.mxu0 0
        %859 = vmatprep.subr.bf16.mxu0 0
        %860 = vmatpush1.bf16.xpose.msra.mxu0 0
        %861 = vmatprep.subr.bf16.mxu0 0
        %862 = vmatpush1.bf16.xpose.msra.mxu0 0
        %863 = vmatprep.subr.bf16.mxu0 0
        %864 = vmatpush1.bf16.xpose.msra.mxu0 0
        %865 = vmatprep.mubr.bf16.mxu0 0
        %866 = vmatmul.mubr.bf16.gmra.mrb[0].mxu0 %v828
        %v867 = vpop.f32.mrb[0].mxu0
        %v868 = vadd.f32 0.0, %v867
        %v869 = vpop.f32.mrb[0].mxu0
        %v870 = vpop.f32.mrb[0].mxu0
        %v871 = vpop.f32.mrb[0].mxu0
        %872 = vdwg.mxu0
        %873 = vrot.lane.b32.xlu0 %v535, 96
        %v874 = vpop.permute.xlu0 %873
        %v876 = vsel %vm538, %v535, 0
        %v879 = vsel %vm538, %v874, 0
        %881 = vmatprep.subr.bf16.mxu0 0
        %882 = vmatpush1.bf16.xpose.msra.mxu0 %v879
        %883 = vmatprep.subr.bf16.mxu0 0
        %884 = vmatpush1.bf16.xpose.msra.mxu0 0
        %885 = vmatprep.subr.bf16.mxu0 0
        %886 = vmatpush1.bf16.xpose.msra.mxu0 0
        %887 = vmatprep.subr.bf16.mxu0 0
        %888 = vmatpush1.bf16.xpose.msra.mxu0 0
        %889 = vmatprep.subr.bf16.mxu0 0
        %890 = vmatpush1.bf16.xpose.msra.mxu0 0
        %891 = vmatprep.subr.bf16.mxu0 0
        %892 = vmatpush1.bf16.xpose.msra.mxu0 0
        %893 = vmatprep.subr.bf16.mxu0 0
        %894 = vmatpush1.bf16.xpose.msra.mxu0 0
        %895 = vmatprep.subr.bf16.mxu0 0
        %896 = vmatpush1.bf16.xpose.msra.mxu0 0
        %897 = vmatprep.subr.bf16.mxu0 0
        %898 = vmatpush1.bf16.xpose.msra.mxu0 0
        %899 = vmatprep.subr.bf16.mxu0 0
        %900 = vmatpush1.bf16.xpose.msra.mxu0 0
        %901 = vmatprep.subr.bf16.mxu0 0
        %902 = vmatpush1.bf16.xpose.msra.mxu0 0
        %903 = vmatprep.subr.bf16.mxu0 0
        %904 = vmatpush1.bf16.xpose.msra.mxu0 0
        %905 = vmatprep.subr.bf16.mxu0 0
        %906 = vmatpush1.bf16.xpose.msra.mxu0 0
        %907 = vmatprep.subr.bf16.mxu0 0
        %908 = vmatpush1.bf16.xpose.msra.mxu0 0
        %909 = vmatprep.subr.bf16.mxu0 0
        %910 = vmatpush1.bf16.xpose.msra.mxu0 0
        %911 = vmatprep.subr.bf16.mxu0 0
        %912 = vmatpush1.bf16.xpose.msra.mxu0 0
        %913 = vmatprep.mubr.bf16.mxu0 0
        %914 = vmatmul.mubr.bf16.gmra.mrb[0].mxu0 %v876
        %v915 = vpop.f32.mrb[0].mxu0
        %v916 = vadd.f32 0.0, %v915
        %v917 = vpop.f32.mrb[0].mxu0
        %v918 = vpop.f32.mrb[0].mxu0
        %v919 = vpop.f32.mrb[0].mxu0
        %920 = vdwg.mxu0
        %vm921 = vcmask 64512
        %v922 = vsel %vm921, %v580, -inf
        %923 = vmax.xlane.f32.xlu0 %v922
        %v924 = vpop.xlane.xlu0 %923
        %v925 = vsel %vm921, %v628, -inf
        %926 = vmax.xlane.f32.xlu0 %v925
        %v927 = vpop.xlane.xlu0 %926
        %v928 = vsel %vm921, %v676, -inf
        %929 = vmax.xlane.f32.xlu0 %v928
        %v930 = vpop.xlane.xlu0 %929
        %v931 = vsel %vm921, %v724, -inf
        %932 = vmax.xlane.f32.xlu0 %v931
        %v933 = vpop.xlane.xlu0 %932
        %v934 = vsel %vm921, %v772, -inf
        %935 = vmax.xlane.f32.xlu0 %v934
        %v936 = vpop.xlane.xlu0 %935
        %v937 = vsel %vm921, %v820, -inf
        %938 = vmax.xlane.f32.xlu0 %v937
        %v939 = vpop.xlane.xlu0 %938
        %v940 = vsel %vm921, %v868, -inf
        %941 = vmax.xlane.f32.xlu0 %v940
        %v942 = vpop.xlane.xlu0 %941
        %v943 = vsel %vm921, %v916, -inf
        %944 = vmax.xlane.f32.xlu0 %v943
        %v945 = vpop.xlane.xlu0 %944
        %v946 = vsub.f32 %v580, %v924
        %v947 = vsub.f32 %v628, %v927
        %v948 = vsub.f32 %v676, %v930
        %v949 = vsub.f32 %v724, %v933
        %v950 = vsub.f32 %v772, %v936
        %v951 = vsub.f32 %v820, %v939
        %v952 = vsub.f32 %v868, %v942
        %v953 = vsub.f32 %v916, %v945
        %v954 = vmul.f32 %v946, 1.442695
        %v955 = vpow.pop %v954
        %v956 = vmul.f32 %v947, 1.442695
        %v957 = vpow.pop %v956
        %v958 = vmul.f32 %v948, 1.442695
        %v959 = vpow.pop %v958
        %v960 = vmul.f32 %v949, 1.442695
        %v961 = vpow.pop %v960
        %v962 = vmul.f32 %v950, 1.442695
        %v963 = vpow.pop %v962
        %v964 = vmul.f32 %v951, 1.442695
        %v965 = vpow.pop %v964
        %v966 = vmul.f32 %v952, 1.442695
        %v967 = vpow.pop %v966
        %v968 = vmul.f32 %v953, 1.442695
        %v969 = vpow.pop %v968
        %v970 = vsel %vm921, %v955, 0.0
        %971 = vadd.xlane.f32.xlu0 %v970
        %v972 = vpop.xlane.xlu0 %971
        %v973 = vsel %vm921, %v957, 0.0
        %974 = vadd.xlane.f32.xlu0 %v973
        %v975 = vpop.xlane.xlu0 %974
        %v976 = vsel %vm921, %v959, 0.0
        %977 = vadd.xlane.f32.xlu0 %v976
        %v978 = vpop.xlane.xlu0 %977
        %v979 = vsel %vm921, %v961, 0.0
        %980 = vadd.xlane.f32.xlu0 %v979
        %v981 = vpop.xlane.xlu0 %980
        %v982 = vsel %vm921, %v963, 0.0
        %983 = vadd.xlane.f32.xlu0 %v982
        %v984 = vpop.xlane.xlu0 %983
        %v985 = vsel %vm921, %v965, 0.0
        %986 = vadd.xlane.f32.xlu0 %v985
        %v987 = vpop.xlane.xlu0 %986
        %v988 = vsel %vm921, %v967, 0.0
        %989 = vadd.xlane.f32.xlu0 %v988
        %v990 = vpop.xlane.xlu0 %989
        %v991 = vsel %vm921, %v969, 0.0
        %992 = vadd.xlane.f32.xlu0 %v991
        %v993 = vpop.xlane.xlu0 %992
        %v994 = vrcp.pop %v972
        %v995 = vrcp.pop %v975
        %v996 = vrcp.pop %v978
        %v997 = vrcp.pop %v981
        %v998 = vrcp.pop %v984
        %v999 = vrcp.pop %v987
        %v1000 = vrcp.pop %v990
        %v1001 = vrcp.pop %v993
        %v1002 = vmul.f32 %v972, %v994
        %v1003 = vmul.f32 %v975, %v995
        %v1004 = vmul.f32 %v978, %v996
        %v1005 = vmul.f32 %v981, %v997
        %v1006 = vmul.f32 %v984, %v998
        %v1007 = vmul.f32 %v987, %v999
        %v1008 = vmul.f32 %v990, %v1000
        %v1009 = vmul.f32 %v993, %v1001
        %v1010 = vsub.f32 2.0, %v1002
        %v1011 = vsub.f32 2.0, %v1003
        %v1012 = vsub.f32 2.0, %v1004
        %v1013 = vsub.f32 2.0, %v1005
        %v1014 = vsub.f32 2.0, %v1006
        %v1015 = vsub.f32 2.0, %v1007
        %v1016 = vsub.f32 2.0, %v1008
        %v1017 = vsub.f32 2.0, %v1009
        %v1018 = vmul.f32 %v994, %v1010
        %v1019 = vmul.f32 %v995, %v1011
        %v1020 = vmul.f32 %v996, %v1012
        %v1021 = vmul.f32 %v997, %v1013
        %v1022 = vmul.f32 %v998, %v1014
        %v1023 = vmul.f32 %v999, %v1015
        %v1024 = vmul.f32 %v1000, %v1016
        %v1025 = vmul.f32 %v1001, %v1017
        %v1026 = vmul.f32 %v955, %v1018
        %v1027 = vmul.f32 %v957, %v1019
        %v1028 = vmul.f32 %v959, %v1020
        %v1029 = vmul.f32 %v961, %v1021
        %v1030 = vmul.f32 %v963, %v1022
        %v1031 = vmul.f32 %v965, %v1023
        %v1032 = vmul.f32 %v967, %v1024
        %v1033 = vmul.f32 %v969, %v1025
        %v1034 = vpack.c.bf16 %v1026, %v1026
        %v1035 = vpack.c.bf16 %v1027, %v1027
        %v1036 = vpack.c.bf16 %v1028, %v1028
        %v1037 = vpack.c.bf16 %v1029, %v1029
        %v1038 = vpack.c.bf16 %v1030, %v1030
        %v1039 = vpack.c.bf16 %v1031, %v1031
        %v1040 = vpack.c.bf16 %v1032, %v1032
        %v1041 = vpack.c.bf16 %v1033, %v1033
        %1042 = vrot.lane.b32.xlu0 %v520, 64
        %v1043 = vpop.permute.xlu0 %1042
        %v1045 = vsel %vm921, %v1034, 0
        %vm1047 = vcmask 1043456
        %v1049 = vsel %vm1047, %v1043, 0
        %1051 = vmatprep.subr.bf16.mxu0 0
        %1052 = vmatpush1.bf16.msra.mxu0 %v1049
        %1053 = vmatprep.subr.bf16.mxu0 0
        %1054 = vmatpush1.bf16.msra.mxu0 0
        %1055 = vmatprep.subr.bf16.mxu0 0
        %1056 = vmatpush1.bf16.msra.mxu0 0
        %1057 = vmatprep.subr.bf16.mxu0 0
        %1058 = vmatpush1.bf16.msra.mxu0 0
        %1059 = vmatprep.subr.bf16.mxu0 0
        %1060 = vmatpush1.bf16.msra.mxu0 0
        %1061 = vmatprep.subr.bf16.mxu0 0
        %1062 = vmatpush1.bf16.msra.mxu0 0
        %1063 = vmatprep.subr.bf16.mxu0 0
        %1064 = vmatpush1.bf16.msra.mxu0 0
        %1065 = vmatprep.subr.bf16.mxu0 0
        %1066 = vmatpush1.bf16.msra.mxu0 0
        %1067 = vmatprep.subr.bf16.mxu0 0
        %1068 = vmatpush1.bf16.msra.mxu0 0
        %1069 = vmatprep.subr.bf16.mxu0 0
        %1070 = vmatpush1.bf16.msra.mxu0 0
        %1071 = vmatprep.subr.bf16.mxu0 0
        %1072 = vmatpush1.bf16.msra.mxu0 0
        %1073 = vmatprep.subr.bf16.mxu0 0
        %1074 = vmatpush1.bf16.msra.mxu0 0
        %1075 = vmatprep.subr.bf16.mxu0 0
        %1076 = vmatpush1.bf16.msra.mxu0 0
        %1077 = vmatprep.subr.bf16.mxu0 0
        %1078 = vmatpush1.bf16.msra.mxu0 0
        %1079 = vmatprep.subr.bf16.mxu0 0
        %1080 = vmatpush1.bf16.msra.mxu0 0
        %1081 = vmatprep.subr.bf16.mxu0 0
        %1082 = vmatpush1.bf16.msra.mxu0 0
        %1083 = vmatprep.mubr.bf16.mxu0 0
        %1084 = vmatmul.mubr.bf16.gmra.mrb[0].mxu0 %v1045
        %v1085 = vpop.f32.mrb[0].mxu0
        %v1086 = vadd.f32 0.0, %v1085
        %v1087 = vpop.f32.mrb[0].mxu0
        %v1088 = vpop.f32.mrb[0].mxu0
        %v1089 = vpop.f32.mrb[0].mxu0
        %1090 = vdwg.mxu0
        %1091 = vrot.lane.b32.xlu0 %v523, 64
        %v1092 = vpop.permute.xlu0 %1091
        %v1094 = vsel %vm921, %v1035, 0
        %v1097 = vsel %vm1047, %v1092, 0
        %1099 = vmatprep.subr.bf16.mxu0 0
        %1100 = vmatpush1.bf16.msra.mxu0 %v1097
        %1101 = vmatprep.subr.bf16.mxu0 0
        %1102 = vmatpush1.bf16.msra.mxu0 0
        %1103 = vmatprep.subr.bf16.mxu0 0
        %1104 = vmatpush1.bf16.msra.mxu0 0
        %1105 = vmatprep.subr.bf16.mxu0 0
        %1106 = vmatpush1.bf16.msra.mxu0 0
        %1107 = vmatprep.subr.bf16.mxu0 0
        %1108 = vmatpush1.bf16.msra.mxu0 0
        %1109 = vmatprep.subr.bf16.mxu0 0
        %1110 = vmatpush1.bf16.msra.mxu0 0
        %1111 = vmatprep.subr.bf16.mxu0 0
        %1112 = vmatpush1.bf16.msra.mxu0 0
        %1113 = vmatprep.subr.bf16.mxu0 0
        %1114 = vmatpush1.bf16.msra.mxu0 0
        %1115 = vmatprep.subr.bf16.mxu0 0
        %1116 = vmatpush1.bf16.msra.mxu0 0
        %1117 = vmatprep.subr.bf16.mxu0 0
        %1118 = vmatpush1.bf16.msra.mxu0 0
        %1119 = vmatprep.subr.bf16.mxu0 0
        %1120 = vmatpush1.bf16.msra.mxu0 0
        %1121 = vmatprep.subr.bf16.mxu0 0
        %1122 = vmatpush1.bf16.msra.mxu0 0
        %1123 = vmatprep.subr.bf16.mxu0 0
        %1124 = vmatpush1.bf16.msra.mxu0 0
        %1125 = vmatprep.subr.bf16.mxu0 0
        %1126 = vmatpush1.bf16.msra.mxu0 0
        %1127 = vmatprep.subr.bf16.mxu0 0
        %1128 = vmatpush1.bf16.msra.mxu0 0
        %1129 = vmatprep.subr.bf16.mxu0 0
        %1130 = vmatpush1.bf16.msra.mxu0 0
        %1131 = vmatprep.mubr.bf16.mxu0 0
        %1132 = vmatmul.mubr.bf16.gmra.mrb[0].mxu0 %v1094
        %v1133 = vpop.f32.mrb[0].mxu0
        %v1134 = vadd.f32 0.0, %v1133
        %v1135 = vpop.f32.mrb[0].mxu0
        %v1136 = vpop.f32.mrb[0].mxu0
        %v1137 = vpop.f32.mrb[0].mxu0
        %1138 = vdwg.mxu0
        %1139 = vrot.lane.b32.xlu0 %v525, 64
        %v1140 = vpop.permute.xlu0 %1139
        %v1142 = vsel %vm921, %v1036, 0
        %v1145 = vsel %vm1047, %v1140, 0
        %1147 = vmatprep.subr.bf16.mxu0 0
        %1148 = vmatpush1.bf16.msra.mxu0 %v1145
        %1149 = vmatprep.subr.bf16.mxu0 0
        %1150 = vmatpush1.bf16.msra.mxu0 0
        %1151 = vmatprep.subr.bf16.mxu0 0
        %1152 = vmatpush1.bf16.msra.mxu0 0
        %1153 = vmatprep.subr.bf16.mxu0 0
        %1154 = vmatpush1.bf16.msra.mxu0 0
        %1155 = vmatprep.subr.bf16.mxu0 0
        %1156 = vmatpush1.bf16.msra.mxu0 0
        %1157 = vmatprep.subr.bf16.mxu0 0
        %1158 = vmatpush1.bf16.msra.mxu0 0
        %1159 = vmatprep.subr.bf16.mxu0 0
        %1160 = vmatpush1.bf16.msra.mxu0 0
        %1161 = vmatprep.subr.bf16.mxu0 0
        %1162 = vmatpush1.bf16.msra.mxu0 0
        %1163 = vmatprep.subr.bf16.mxu0 0
        %1164 = vmatpush1.bf16.msra.mxu0 0
        %1165 = vmatprep.subr.bf16.mxu0 0
        %1166 = vmatpush1.bf16.msra.mxu0 0
        %1167 = vmatprep.subr.bf16.mxu0 0
        %1168 = vmatpush1.bf16.msra.mxu0 0
        %1169 = vmatprep.subr.bf16.mxu0 0
        %1170 = vmatpush1.bf16.msra.mxu0 0
        %1171 = vmatprep.subr.bf16.mxu0 0
        %1172 = vmatpush1.bf16.msra.mxu0 0
        %1173 = vmatprep.subr.bf16.mxu0 0
        %1174 = vmatpush1.bf16.msra.mxu0 0
        %1175 = vmatprep.subr.bf16.mxu0 0
        %1176 = vmatpush1.bf16.msra.mxu0 0
        %1177 = vmatprep.subr.bf16.mxu0 0
        %1178 = vmatpush1.bf16.msra.mxu0 0
        %1179 = vmatprep.mubr.bf16.mxu0 0
        %1180 = vmatmul.mubr.bf16.gmra.mrb[0].mxu0 %v1142
        %v1181 = vpop.f32.mrb[0].mxu0
        %v1182 = vadd.f32 0.0, %v1181
        %v1183 = vpop.f32.mrb[0].mxu0
        %v1184 = vpop.f32.mrb[0].mxu0
        %v1185 = vpop.f32.mrb[0].mxu0
        %1186 = vdwg.mxu0
        %1187 = vrot.lane.b32.xlu0 %v527, 64
        %v1188 = vpop.permute.xlu0 %1187
        %v1190 = vsel %vm921, %v1037, 0
        %v1193 = vsel %vm1047, %v1188, 0
        %1195 = vmatprep.subr.bf16.mxu0 0
        %1196 = vmatpush1.bf16.msra.mxu0 %v1193
        %1197 = vmatprep.subr.bf16.mxu0 0
        %1198 = vmatpush1.bf16.msra.mxu0 0
        %1199 = vmatprep.subr.bf16.mxu0 0
        %1200 = vmatpush1.bf16.msra.mxu0 0
        %1201 = vmatprep.subr.bf16.mxu0 0
        %1202 = vmatpush1.bf16.msra.mxu0 0
        %1203 = vmatprep.subr.bf16.mxu0 0
        %1204 = vmatpush1.bf16.msra.mxu0 0
        %1205 = vmatprep.subr.bf16.mxu0 0
        %1206 = vmatpush1.bf16.msra.mxu0 0
        %1207 = vmatprep.subr.bf16.mxu0 0
        %1208 = vmatpush1.bf16.msra.mxu0 0
        %1209 = vmatprep.subr.bf16.mxu0 0
        %1210 = vmatpush1.bf16.msra.mxu0 0
        %1211 = vmatprep.subr.bf16.mxu0 0
        %1212 = vmatpush1.bf16.msra.mxu0 0
        %1213 = vmatprep.subr.bf16.mxu0 0
        %1214 = vmatpush1.bf16.msra.mxu0 0
        %1215 = vmatprep.subr.bf16.mxu0 0
        %1216 = vmatpush1.bf16.msra.mxu0 0
        %1217 = vmatprep.subr.bf16.mxu0 0
        %1218 = vmatpush1.bf16.msra.mxu0 0
        %1219 = vmatprep.subr.bf16.mxu0 0
        %1220 = vmatpush1.bf16.msra.mxu0 0
        %1221 = vmatprep.subr.bf16.mxu0 0
        %1222 = vmatpush1.bf16.msra.mxu0 0
        %1223 = vmatprep.subr.bf16.mxu0 0
        %1224 = vmatpush1.bf16.msra.mxu0 0
        %1225 = vmatprep.subr.bf16.mxu0 0
        %1226 = vmatpush1.bf16.msra.mxu0 0
        %1227 = vmatprep.mubr.bf16.mxu0 0
        %1228 = vmatmul.mubr.bf16.gmra.mrb[0].mxu0 %v1190
        %v1229 = vpop.f32.mrb[0].mxu0
        %v1230 = vadd.f32 0.0, %v1229
        %v1231 = vpop.f32.mrb[0].mxu0
        %v1232 = vpop.f32.mrb[0].mxu0
        %v1233 = vpop.f32.mrb[0].mxu0
        %1234 = vdwg.mxu0
        %1235 = vrot.lane.b32.xlu0 %v529, 64
        %v1236 = vpop.permute.xlu0 %1235
        %v1238 = vsel %vm921, %v1038, 0
        %v1241 = vsel %vm1047, %v1236, 0
        %1243 = vmatprep.subr.bf16.mxu0 0
        %1244 = vmatpush1.bf16.msra.mxu0 %v1241
        %1245 = vmatprep.subr.bf16.mxu0 0
        %1246 = vmatpush1.bf16.msra.mxu0 0
        %1247 = vmatprep.subr.bf16.mxu0 0
        %1248 = vmatpush1.bf16.msra.mxu0 0
        %1249 = vmatprep.subr.bf16.mxu0 0
        %1250 = vmatpush1.bf16.msra.mxu0 0
        %1251 = vmatprep.subr.bf16.mxu0 0
        %1252 = vmatpush1.bf16.msra.mxu0 0
        %1253 = vmatprep.subr.bf16.mxu0 0
        %1254 = vmatpush1.bf16.msra.mxu0 0
        %1255 = vmatprep.subr.bf16.mxu0 0
        %1256 = vmatpush1.bf16.msra.mxu0 0
        %1257 = vmatprep.subr.bf16.mxu0 0
        %1258 = vmatpush1.bf16.msra.mxu0 0
        %1259 = vmatprep.subr.bf16.mxu0 0
        %1260 = vmatpush1.bf16.msra.mxu0 0
        %1261 = vmatprep.subr.bf16.mxu0 0
        %1262 = vmatpush1.bf16.msra.mxu0 0
        %1263 = vmatprep.subr.bf16.mxu0 0
        %1264 = vmatpush1.bf16.msra.mxu0 0
        %1265 = vmatprep.subr.bf16.mxu0 0
        %1266 = vmatpush1.bf16.msra.mxu0 0
        %1267 = vmatprep.subr.bf16.mxu0 0
        %1268 = vmatpush1.bf16.msra.mxu0 0
        %1269 = vmatprep.subr.bf16.mxu0 0
        %1270 = vmatpush1.bf16.msra.mxu0 0
        %1271 = vmatprep.subr.bf16.mxu0 0
        %1272 = vmatpush1.bf16.msra.mxu0 0
        %1273 = vmatprep.subr.bf16.mxu0 0
        %1274 = vmatpush1.bf16.msra.mxu0 0
        %1275 = vmatprep.mubr.bf16.mxu0 0
        %1276 = vmatmul.mubr.bf16.gmra.mrb[0].mxu0 %v1238
        %v1277 = vpop.f32.mrb[0].mxu0
        %v1278 = vadd.f32 0.0, %v1277
        %v1279 = vpop.f32.mrb[0].mxu0
        %v1280 = vpop.f32.mrb[0].mxu0
        %v1281 = vpop.f32.mrb[0].mxu0
        %1282 = vdwg.mxu0
        %1283 = vrot.lane.b32.xlu0 %v531, 64
        %v1284 = vpop.permute.xlu0 %1283
        %v1286 = vsel %vm921, %v1039, 0
        %v1289 = vsel %vm1047, %v1284, 0
        %1291 = vmatprep.subr.bf16.mxu0 0
        %1292 = vmatpush1.bf16.msra.mxu0 %v1289
        %1293 = vmatprep.subr.bf16.mxu0 0
        %1294 = vmatpush1.bf16.msra.mxu0 0
        %1295 = vmatprep.subr.bf16.mxu0 0
        %1296 = vmatpush1.bf16.msra.mxu0 0
        %1297 = vmatprep.subr.bf16.mxu0 0
        %1298 = vmatpush1.bf16.msra.mxu0 0
        %1299 = vmatprep.subr.bf16.mxu0 0
        %1300 = vmatpush1.bf16.msra.mxu0 0
        %1301 = vmatprep.subr.bf16.mxu0 0
        %1302 = vmatpush1.bf16.msra.mxu0 0
        %1303 = vmatprep.subr.bf16.mxu0 0
        %1304 = vmatpush1.bf16.msra.mxu0 0
        %1305 = vmatprep.subr.bf16.mxu0 0
        %1306 = vmatpush1.bf16.msra.mxu0 0
        %1307 = vmatprep.subr.bf16.mxu0 0
        %1308 = vmatpush1.bf16.msra.mxu0 0
        %1309 = vmatprep.subr.bf16.mxu0 0
        %1310 = vmatpush1.bf16.msra.mxu0 0
        %1311 = vmatprep.subr.bf16.mxu0 0
        %1312 = vmatpush1.bf16.msra.mxu0 0
        %1313 = vmatprep.subr.bf16.mxu0 0
        %1314 = vmatpush1.bf16.msra.mxu0 0
        %1315 = vmatprep.subr.bf16.mxu0 0
        %1316 = vmatpush1.bf16.msra.mxu0 0
        %1317 = vmatprep.subr.bf16.mxu0 0
        %1318 = vmatpush1.bf16.msra.mxu0 0
        %1319 = vmatprep.subr.bf16.mxu0 0
        %1320 = vmatpush1.bf16.msra.mxu0 0
        %1321 = vmatprep.subr.bf16.mxu0 0
        %1322 = vmatpush1.bf16.msra.mxu0 0
        %1323 = vmatprep.mubr.bf16.mxu0 0
        %1324 = vmatmul.mubr.bf16.gmra.mrb[0].mxu0 %v1286
        %v1325 = vpop.f32.mrb[0].mxu0
        %v1326 = vadd.f32 0.0, %v1325
        %v1327 = vpop.f32.mrb[0].mxu0
        %v1328 = vpop.f32.mrb[0].mxu0
        %v1329 = vpop.f32.mrb[0].mxu0
        %1330 = vdwg.mxu0
        %1331 = vrot.lane.b32.xlu0 %v533, 64
        %v1332 = vpop.permute.xlu0 %1331
        %v1334 = vsel %vm921, %v1040, 0
        %v1337 = vsel %vm1047, %v1332, 0
        %1339 = vmatprep.subr.bf16.mxu0 0
        %1340 = vmatpush1.bf16.msra.mxu0 %v1337
        %1341 = vmatprep.subr.bf16.mxu0 0
        %1342 = vmatpush1.bf16.msra.mxu0 0
        %1343 = vmatprep.subr.bf16.mxu0 0
        %1344 = vmatpush1.bf16.msra.mxu0 0
        %1345 = vmatprep.subr.bf16.mxu0 0
        %1346 = vmatpush1.bf16.msra.mxu0 0
        %1347 = vmatprep.subr.bf16.mxu0 0
        %1348 = vmatpush1.bf16.msra.mxu0 0
        %1349 = vmatprep.subr.bf16.mxu0 0
        %1350 = vmatpush1.bf16.msra.mxu0 0
        %1351 = vmatprep.subr.bf16.mxu0 0
        %1352 = vmatpush1.bf16.msra.mxu0 0
        %1353 = vmatprep.subr.bf16.mxu0 0
        %1354 = vmatpush1.bf16.msra.mxu0 0
        %1355 = vmatprep.subr.bf16.mxu0 0
        %1356 = vmatpush1.bf16.msra.mxu0 0
        %1357 = vmatprep.subr.bf16.mxu0 0
        %1358 = vmatpush1.bf16.msra.mxu0 0
        %1359 = vmatprep.subr.bf16.mxu0 0
        %1360 = vmatpush1.bf16.msra.mxu0 0
        %1361 = vmatprep.subr.bf16.mxu0 0
        %1362 = vmatpush1.bf16.msra.mxu0 0
        %1363 = vmatprep.subr.bf16.mxu0 0
        %1364 = vmatpush1.bf16.msra.mxu0 0
        %1365 = vmatprep.subr.bf16.mxu0 0
        %1366 = vmatpush1.bf16.msra.mxu0 0
        %1367 = vmatprep.subr.bf16.mxu0 0
        %1368 = vmatpush1.bf16.msra.mxu0 0
        %1369 = vmatprep.subr.bf16.mxu0 0
        %1370 = vmatpush1.bf16.msra.mxu0 0
        %1371 = vmatprep.mubr.bf16.mxu0 0
        %1372 = vmatmul.mubr.bf16.gmra.mrb[0].mxu0 %v1334
        %v1373 = vpop.f32.mrb[0].mxu0
        %v1374 = vadd.f32 0.0, %v1373
        %v1375 = vpop.f32.mrb[0].mxu0
        %v1376 = vpop.f32.mrb[0].mxu0
        %v1377 = vpop.f32.mrb[0].mxu0
        %1378 = vdwg.mxu0
        %1379 = vrot.lane.b32.xlu0 %v535, 64
        %v1380 = vpop.permute.xlu0 %1379
        %v1382 = vsel %vm921, %v1041, 0
        %v1385 = vsel %vm1047, %v1380, 0
        %1387 = vmatprep.subr.bf16.mxu0 0
        %1388 = vmatpush1.bf16.msra.mxu0 %v1385
        %1389 = vmatprep.subr.bf16.mxu0 0
        %1390 = vmatpush1.bf16.msra.mxu0 0
        %1391 = vmatprep.subr.bf16.mxu0 0
        %1392 = vmatpush1.bf16.msra.mxu0 0
        %1393 = vmatprep.subr.bf16.mxu0 0
        %1394 = vmatpush1.bf16.msra.mxu0 0
        %1395 = vmatprep.subr.bf16.mxu0 0
        %1396 = vmatpush1.bf16.msra.mxu0 0
        %1397 = vmatprep.subr.bf16.mxu0 0
        %1398 = vmatpush1.bf16.msra.mxu0 0
        %1399 = vmatprep.subr.bf16.mxu0 0
        %1400 = vmatpush1.bf16.msra.mxu0 0
        %1401 = vmatprep.subr.bf16.mxu0 0
        %1402 = vmatpush1.bf16.msra.mxu0 0
        %1403 = vmatprep.subr.bf16.mxu0 0
        %1404 = vmatpush1.bf16.msra.mxu0 0
        %1405 = vmatprep.subr.bf16.mxu0 0
        %1406 = vmatpush1.bf16.msra.mxu0 0
        %1407 = vmatprep.subr.bf16.mxu0 0
        %1408 = vmatpush1.bf16.msra.mxu0 0
        %1409 = vmatprep.subr.bf16.mxu0 0
        %1410 = vmatpush1.bf16.msra.mxu0 0
        %1411 = vmatprep.subr.bf16.mxu0 0
        %1412 = vmatpush1.bf16.msra.mxu0 0
        %1413 = vmatprep.subr.bf16.mxu0 0
        %1414 = vmatpush1.bf16.msra.mxu0 0
        %1415 = vmatprep.subr.bf16.mxu0 0
        %1416 = vmatpush1.bf16.msra.mxu0 0
        %1417 = vmatprep.subr.bf16.mxu0 0
        %1418 = vmatpush1.bf16.msra.mxu0 0
        %1419 = vmatprep.mubr.bf16.mxu0 0
        %1420 = vmatmul.mubr.bf16.gmra.mrb[0].mxu0 %v1382
        %v1421 = vpop.f32.mrb[0].mxu0
        %v1422 = vadd.f32 0.0, %v1421
        %v1423 = vpop.f32.mrb[0].mxu0
        %v1424 = vpop.f32.mrb[0].mxu0
        %v1425 = vpop.f32.mrb[0].mxu0
        %1426 = vdwg.mxu0
        %v1427 = vpack.c.bf16 %v1086, %v1086
        %vm1428 = vcmask 27648
        %1429 = vst.msk [vmem:[#allocation2] sm:$0xf] %vm1428, %v1427
        %v1430 = vpack.c.bf16 %v1134, %v1134
        %v1432 = vunpack.c.l.b16 %v1430
        %v1433 = vpack.c.b16 %v1432, %v1432
        %1434 = vrot.lane.b32.xlu0 %v1433, 4
        %v1435 = vpop.permute.xlu0 %1434
        %vm1437 = vcmask 60448
        %1438 = vst.msk [vmem:[#allocation2] sm:$0xf] %vm1437, %v1435
        %v1439 = vpack.c.bf16 %v1182, %v1182
        %v1441 = vunpack.c.l.b16 %v1439
        %v1442 = vpack.c.b16 %v1441, %v1441
        %1443 = vrot.lane.b32.xlu0 %v1442, 8
        %v1444 = vpop.permute.xlu0 %1443
        %vm1446 = vcmask 93248
        %1447 = vst.msk [vmem:[#allocation2] sm:$0xf] %vm1446, %v1444
        %v1448 = vpack.c.bf16 %v1230, %v1230
        %v1450 = vunpack.c.l.b16 %v1448
        %v1451 = vpack.c.b16 %v1450, %v1450
        %1452 = vrot.lane.b32.xlu0 %v1451, 12
        %v1453 = vpop.permute.xlu0 %1452
        %vm1455 = vcmask 126048
        %1456 = vst.msk [vmem:[#allocation2] sm:$0xf] %vm1455, %v1453
        %v1457 = vpack.c.bf16 %v1278, %v1278
        %v1459 = vunpack.c.l.b16 %v1457
        %v1460 = vpack.c.b16 %v1459, %v1459
        %1461 = vrot.lane.b32.xlu0 %v1460, 16
        %v1462 = vpop.permute.xlu0 %1461
        %vm1464 = vcmask 158848
        %1465 = vst.msk [vmem:[#allocation2] sm:$0xf] %vm1464, %v1462
        %v1466 = vpack.c.bf16 %v1326, %v1326
        %v1468 = vunpack.c.l.b16 %v1466
        %v1469 = vpack.c.b16 %v1468, %v1468
        %1470 = vrot.lane.b32.xlu0 %v1469, 20
        %v1471 = vpop.permute.xlu0 %1470
        %vm1473 = vcmask 191648
        %1474 = vst.msk [vmem:[#allocation2] sm:$0xf] %vm1473, %v1471
        %v1475 = vpack.c.bf16 %v1374, %v1374
        %v1477 = vunpack.c.l.b16 %v1475
        %v1478 = vpack.c.b16 %v1477, %v1477
        %1479 = vrot.lane.b32.xlu0 %v1478, 24
        %v1480 = vpop.permute.xlu0 %1479
        %vm1482 = vcmask 224448
        %1483 = vst.msk [vmem:[#allocation2] sm:$0xf] %vm1482, %v1480
        %v1484 = vpack.c.bf16 %v1422, %v1422
        %v1486 = vunpack.c.l.b16 %v1484
        %v1487 = vpack.c.b16 %v1486, %v1486
        %1488 = vrot.lane.b32.xlu0 %v1487, 28
        %v1489 = vpop.permute.xlu0 %1488
        %vm1491 = vcmask 257248
        %1492 = vst.msk [vmem:[#allocation2] sm:$0xf] %vm1491, %v1489
        %v1493 = vld [vmem:[#allocation2] sm:$0xf]
        %v1494 = vld [vmem:[#allocation11] sm:$0xf]
        %v1495 = vld [vmem:[#allocation11 + $0x4] sm:$0xf]
        %v1496 = vld [vmem:[#allocation11 + $0x8] sm:$0xf]
        %v1497 = vld [vmem:[#allocation11 + $0xc] sm:$0xf]
        %v1498 = vlaneseq
        %v1499 = vshrl.u32 %v1498, 7
        %v1500 = vsub.s32 0, %v1499
        %v1501 = vrot.slane %v427, %v1500
        %v1506 = vunpack.c.l.b16 %v1494
        %v1507 = vunpack.c.l.b16 %v1495
        %v1508 = vunpack.c.l.b16 %v1496
        %v1509 = vunpack.c.l.b16 %v1497
        %v1510 = vpack.c.b16 %v1507, %v1506
        %v1511 = vpack.c.b16 %v1509, %v1508
        %v1515 = vsel %vm428, %v1493, 0
        %1517 = vmatprep.subr.bf16.mxu0 0
        %1518 = vmatpush1.bf16.msra.mxu0 %v1510
        %1519 = vmatprep.subr.bf16.mxu0 0
        %1520 = vmatpush1.bf16.msra.mxu0 %v1511
        %1521 = vmatprep.subr.bf16.mxu0 0
        %1522 = vmatpush1.bf16.msra.mxu0 0
        %1523 = vmatprep.subr.bf16.mxu0 0
        %1524 = vmatpush1.bf16.msra.mxu0 0
        %1525 = vmatprep.subr.bf16.mxu0 0
        %1526 = vmatpush1.bf16.msra.mxu0 0
        %1527 = vmatprep.subr.bf16.mxu0 0
        %1528 = vmatpush1.bf16.msra.mxu0 0
        %1529 = vmatprep.subr.bf16.mxu0 0
        %1530 = vmatpush1.bf16.msra.mxu0 0
        %1531 = vmatprep.subr.bf16.mxu0 0
        %1532 = vmatpush1.bf16.msra.mxu0 0
        %1533 = vmatprep.subr.bf16.mxu0 0
        %1534 = vmatpush1.bf16.msra.mxu0 0
        %1535 = vmatprep.subr.bf16.mxu0 0
        %1536 = vmatpush1.bf16.msra.mxu0 0
        %1537 = vmatprep.subr.bf16.mxu0 0
        %1538 = vmatpush1.bf16.msra.mxu0 0
        %1539 = vmatprep.subr.bf16.mxu0 0
        %1540 = vmatpush1.bf16.msra.mxu0 0
        %1541 = vmatprep.subr.bf16.mxu0 0
        %1542 = vmatpush1.bf16.msra.mxu0 0
        %1543 = vmatprep.subr.bf16.mxu0 0
        %1544 = vmatpush1.bf16.msra.mxu0 0
        %1545 = vmatprep.subr.bf16.mxu0 0
        %1546 = vmatpush1.bf16.msra.mxu0 0
        %1547 = vmatprep.subr.bf16.mxu0 0
        %1548 = vmatpush1.bf16.msra.mxu0 0
        %1549 = vmatprep.mubr.bf16.mxu0 0
        %1550 = vmatmul.mubr.bf16.gmra.mrb[0].mxu0 %v1515
        %v1551 = vpop.f32.mrb[0].mxu0
        %v1552 = vadd.f32 %v1501, %v1551
        %v1553 = vpop.f32.mrb[0].mxu0
        %v1554 = vpop.f32.mrb[0].mxu0
        %v1555 = vpop.f32.mrb[0].mxu0
        %1556 = vdwg.mxu0
        %v1557 = vadd.f32 %v424, %v1552
        %v1558 = vsel %vm428, %v1557, 0.0
        %1559 = vadd.xlane.f32.xlu0 %v1558
        %v1560 = vpop.xlane.xlu0 %1559
        %v1561 = vmul.f32 %v1560, %v432
        %v1562 = vsub.f32 %v1557, %v1561
        %v1563 = vmul.f32 %v1562, %v1562
        %v1564 = vsel %vm428, %v1563, 0.0
        %1565 = vadd.xlane.f32.xlu0 %v1564
        %v1566 = vpop.xlane.xlu0 %1565
        %v1567 = vmul.f32 %v1566, %v432
        %v1568 = vadd.f32 %v1567, 1e-05
        %v1569 = vrsqrt.pop %v1568
        %v1570 = vmul.f32 %v1562, %v1569
        %v1571 = vlaneseq
        %v1572 = vshrl.u32 %v1571, 7
        %v1573 = vsub.s32 2, %v1572
        %v1574 = vrot.slane %v425, %v1573
        %v1575 = vmul.f32 %v1570, %v1574
        %v1576 = vlaneseq
        %v1577 = vshrl.u32 %v1576, 7
        %v1578 = vsub.s32 3, %v1577
        %v1579 = vrot.slane %v425, %v1578
        %v1580 = vadd.f32 %v1575, %v1579
        %v1581 = vsel %vm428, %v422, 0.0
        %1582 = vadd.xlane.f32.xlu0 %v1581
        %v1583 = vpop.xlane.xlu0 %1582
        %v1584 = vmul.f32 %v1583, %v432
        %v1585 = vsub.f32 %v422, %v1584
        %v1586 = vmul.f32 %v1585, %v1585
        %v1587 = vsel %vm428, %v1586, 0.0
        %1588 = vadd.xlane.f32.xlu0 %v1587
        %v1589 = vpop.xlane.xlu0 %1588
        %v1590 = vmul.f32 %v1589, %v432
        %v1591 = vadd.f32 %v1590, 1e-05
        %v1592 = vrsqrt.pop %v1591
        %v1593 = vmul.f32 %v1585, %v1592
        %v1594 = vlaneseq
        %v1595 = vshrl.u32 %v1594, 7
        %v1596 = vsub.s32 4, %v1595
        %v1597 = vrot.slane %v425, %v1596
        %v1598 = vmul.f32 %v1593, %v1597
        %v1599 = vlaneseq
        %v1600 = vshrl.u32 %v1599, 7
        %v1601 = vsub.s32 5, %v1600
        %v1602 = vrot.slane %v425, %v1601
        %v1603 = vadd.f32 %v1598, %v1602
        %v1604 = vsel %vm428, %v423, 0.0
        %1605 = vadd.xlane.f32.xlu0 %v1604
        %v1606 = vpop.xlane.xlu0 %1605
        %v1607 = vmul.f32 %v1606, %v432
        %v1608 = vsub.f32 %v423, %v1607
        %v1609 = vmul.f32 %v1608, %v1608
        %v1610 = vsel %vm428, %v1609, 0.0
        %1611 = vadd.xlane.f32.xlu0 %v1610
        %v1612 = vpop.xlane.xlu0 %1611
        %v1613 = vmul.f32 %v1612, %v432
        %v1614 = vadd.f32 %v1613, 1e-05
        %v1615 = vrsqrt.pop %v1614
        %v1616 = vmul.f32 %v1608, %v1615
        %v1617 = vlaneseq
        %v1618 = vshrl.u32 %v1617, 7
        %v1619 = vsub.s32 6, %v1618
        %v1620 = vrot.slane %v425, %v1619
        %v1621 = vmul.f32 %v1616, %v1620
        %v1622 = vlaneseq
        %v1623 = vshrl.u32 %v1622, 7
        %v1624 = vsub.s32 7, %v1623
        %v1625 = vrot.slane %v425, %v1624
        %v1626 = vadd.f32 %v1621, %v1625
        %s1627 = scalar_lea.vmem [#allocation11], 16
        %v1628 = vld [vmem:[%s1627] sm:$0xf]
        %v1629 = vld [vmem:[%s1627 + $0x4] sm:$0xf]
        %v1630 = vld [vmem:[%s1627 + $0x8] sm:$0xf]
        %v1631 = vld [vmem:[%s1627 + $0xc] sm:$0xf]
        %v1632 = vpack.c.bf16 %v1603, %v1603
        %v1633 = vlaneseq
        %v1634 = vshrl.u32 %v1633, 7
        %v1635 = vsub.s32 1, %v1634
        %v1636 = vrot.slane %v427, %v1635
        %v1641 = vunpack.c.l.b16 %v1628
        %v1642 = vunpack.c.l.b16 %v1629
        %v1643 = vunpack.c.l.b16 %v1630
        %v1644 = vunpack.c.l.b16 %v1631
        %v1645 = vpack.c.b16 %v1642, %v1641
        %v1646 = vpack.c.b16 %v1644, %v1643
        %v1650 = vsel %vm428, %v1632, 0
        %1652 = vmatprep.subr.bf16.mxu0 0
        %1653 = vmatpush1.bf16.msra.mxu0 %v1645
        %1654 = vmatprep.subr.bf16.mxu0 0
        %1655 = vmatpush1.bf16.msra.mxu0 %v1646
        %1656 = vmatprep.subr.bf16.mxu0 0
        %1657 = vmatpush1.bf16.msra.mxu0 0
        %1658 = vmatprep.subr.bf16.mxu0 0
        %1659 = vmatpush1.bf16.msra.mxu0 0
        %1660 = vmatprep.subr.bf16.mxu0 0
        %1661 = vmatpush1.bf16.msra.mxu0 0
        %1662 = vmatprep.subr.bf16.mxu0 0
        %1663 = vmatpush1.bf16.msra.mxu0 0
        %1664 = vmatprep.subr.bf16.mxu0 0
        %1665 = vmatpush1.bf16.msra.mxu0 0
        %1666 = vmatprep.subr.bf16.mxu0 0
        %1667 = vmatpush1.bf16.msra.mxu0 0
        %1668 = vmatprep.subr.bf16.mxu0 0
        %1669 = vmatpush1.bf16.msra.mxu0 0
        %1670 = vmatprep.subr.bf16.mxu0 0
        %1671 = vmatpush1.bf16.msra.mxu0 0
        %1672 = vmatprep.subr.bf16.mxu0 0
        %1673 = vmatpush1.bf16.msra.mxu0 0
        %1674 = vmatprep.subr.bf16.mxu0 0
        %1675 = vmatpush1.bf16.msra.mxu0 0
        %1676 = vmatprep.subr.bf16.mxu0 0
        %1677 = vmatpush1.bf16.msra.mxu0 0
        %1678 = vmatprep.subr.bf16.mxu0 0
        %1679 = vmatpush1.bf16.msra.mxu0 0
        %1680 = vmatprep.subr.bf16.mxu0 0
        %1681 = vmatpush1.bf16.msra.mxu0 0
        %1682 = vmatprep.subr.bf16.mxu0 0
        %1683 = vmatpush1.bf16.msra.mxu0 0
        %1684 = vmatprep.mubr.bf16.mxu0 0
        %1685 = vmatmul.mubr.bf16.gmra.mrb[0].mxu0 %v1650
        %v1686 = vpop.f32.mrb[0].mxu0
        %v1687 = vadd.f32 %v1636, %v1686
        %v1688 = vpop.f32.mrb[0].mxu0
        %v1689 = vpop.f32.mrb[0].mxu0
        %v1690 = vpop.f32.mrb[0].mxu0
        %1691 = vdwg.mxu0
        %s1692 = scalar_lea.vmem [#allocation11], 32
        %v1693 = vld [vmem:[%s1692] sm:$0xf]
        %v1694 = vld [vmem:[%s1692 + $0x4] sm:$0xf]
        %v1695 = vld [vmem:[%s1692 + $0x8] sm:$0xf]
        %v1696 = vld [vmem:[%s1692 + $0xc] sm:$0xf]
        %v1697 = vpack.c.bf16 %v1626, %v1626
        %v1698 = vlaneseq
        %v1699 = vshrl.u32 %v1698, 7
        %v1700 = vsub.s32 2, %v1699
        %v1701 = vrot.slane %v427, %v1700
        %v1706 = vunpack.c.l.b16 %v1693
        %v1707 = vunpack.c.l.b16 %v1694
        %v1708 = vunpack.c.l.b16 %v1695
        %v1709 = vunpack.c.l.b16 %v1696
        %v1710 = vpack.c.b16 %v1707, %v1706
        %v1711 = vpack.c.b16 %v1709, %v1708
        %v1715 = vsel %vm428, %v1697, 0
        %1717 = vmatprep.subr.bf16.mxu0 0
        %1718 = vmatpush1.bf16.msra.mxu0 %v1710
        %1719 = vmatprep.subr.bf16.mxu0 0
        %1720 = vmatpush1.bf16.msra.mxu0 %v1711
        %1721 = vmatprep.subr.bf16.mxu0 0
        %1722 = vmatpush1.bf16.msra.mxu0 0
        %1723 = vmatprep.subr.bf16.mxu0 0
        %1724 = vmatpush1.bf16.msra.mxu0 0
        %1725 = vmatprep.subr.bf16.mxu0 0
        %1726 = vmatpush1.bf16.msra.mxu0 0
        %1727 = vmatprep.subr.bf16.mxu0 0
        %1728 = vmatpush1.bf16.msra.mxu0 0
        %1729 = vmatprep.subr.bf16.mxu0 0
        %1730 = vmatpush1.bf16.msra.mxu0 0
        %1731 = vmatprep.subr.bf16.mxu0 0
        %1732 = vmatpush1.bf16.msra.mxu0 0
        %1733 = vmatprep.subr.bf16.mxu0 0
        %1734 = vmatpush1.bf16.msra.mxu0 0
        %1735 = vmatprep.subr.bf16.mxu0 0
        %1736 = vmatpush1.bf16.msra.mxu0 0
        %1737 = vmatprep.subr.bf16.mxu0 0
        %1738 = vmatpush1.bf16.msra.mxu0 0
        %1739 = vmatprep.subr.bf16.mxu0 0
        %1740 = vmatpush1.bf16.msra.mxu0 0
        %1741 = vmatprep.subr.bf16.mxu0 0
        %1742 = vmatpush1.bf16.msra.mxu0 0
        %1743 = vmatprep.subr.bf16.mxu0 0
        %1744 = vmatpush1.bf16.msra.mxu0 0
        %1745 = vmatprep.subr.bf16.mxu0 0
        %1746 = vmatpush1.bf16.msra.mxu0 0
        %1747 = vmatprep.subr.bf16.mxu0 0
        %1748 = vmatpush1.bf16.msra.mxu0 0
        %1749 = vmatprep.mubr.bf16.mxu0 0
        %1750 = vmatmul.mubr.bf16.gmra.mrb[0].mxu0 %v1715
        %v1751 = vpop.f32.mrb[0].mxu0
        %v1752 = vadd.f32 %v1701, %v1751
        %v1753 = vpop.f32.mrb[0].mxu0
        %v1754 = vpop.f32.mrb[0].mxu0
        %v1755 = vpop.f32.mrb[0].mxu0
        %1756 = vdwg.mxu0
        %s1757 = scalar_lea.vmem [#allocation11], 48
        %v1758 = vld [vmem:[%s1757] sm:$0xf]
        %v1759 = vld [vmem:[%s1757 + $0x4] sm:$0xf]
        %v1760 = vld [vmem:[%s1757 + $0x8] sm:$0xf]
        %v1761 = vld [vmem:[%s1757 + $0xc] sm:$0xf]
        %v1762 = vpack.c.bf16 %v1580, %v1580
        %v1763 = vlaneseq
        %v1764 = vshrl.u32 %v1763, 7
        %v1765 = vsub.s32 3, %v1764
        %v1766 = vrot.slane %v427, %v1765
        %v1771 = vunpack.c.l.b16 %v1758
        %v1772 = vunpack.c.l.b16 %v1759
        %v1773 = vunpack.c.l.b16 %v1760
        %v1774 = vunpack.c.l.b16 %v1761
        %v1775 = vpack.c.b16 %v1772, %v1771
        %v1776 = vpack.c.b16 %v1774, %v1773
        %v1780 = vsel %vm428, %v1762, 0
        %1782 = vmatprep.subr.bf16.mxu0 0
        %1783 = vmatpush1.bf16.msra.mxu0 %v1775
        %1784 = vmatprep.subr.bf16.mxu0 0
        %1785 = vmatpush1.bf16.msra.mxu0 %v1776
        %1786 = vmatprep.subr.bf16.mxu0 0
        %1787 = vmatpush1.bf16.msra.mxu0 0
        %1788 = vmatprep.subr.bf16.mxu0 0
        %1789 = vmatpush1.bf16.msra.mxu0 0
        %1790 = vmatprep.subr.bf16.mxu0 0
        %1791 = vmatpush1.bf16.msra.mxu0 0
        %1792 = vmatprep.subr.bf16.mxu0 0
        %1793 = vmatpush1.bf16.msra.mxu0 0
        %1794 = vmatprep.subr.bf16.mxu0 0
        %1795 = vmatpush1.bf16.msra.mxu0 0
        %1796 = vmatprep.subr.bf16.mxu0 0
        %1797 = vmatpush1.bf16.msra.mxu0 0
        %1798 = vmatprep.subr.bf16.mxu0 0
        %1799 = vmatpush1.bf16.msra.mxu0 0
        %1800 = vmatprep.subr.bf16.mxu0 0
        %1801 = vmatpush1.bf16.msra.mxu0 0
        %1802 = vmatprep.subr.bf16.mxu0 0
        %1803 = vmatpush1.bf16.msra.mxu0 0
        %1804 = vmatprep.subr.bf16.mxu0 0
        %1805 = vmatpush1.bf16.msra.mxu0 0
        %1806 = vmatprep.subr.bf16.mxu0 0
        %1807 = vmatpush1.bf16.msra.mxu0 0
        %1808 = vmatprep.subr.bf16.mxu0 0
        %1809 = vmatpush1.bf16.msra.mxu0 0
        %1810 = vmatprep.subr.bf16.mxu0 0
        %1811 = vmatpush1.bf16.msra.mxu0 0
        %1812 = vmatprep.subr.bf16.mxu0 0
        %1813 = vmatpush1.bf16.msra.mxu0 0
        %1814 = vmatprep.mubr.bf16.mxu0 0
        %1815 = vmatmul.mubr.bf16.gmra.mrb[0].mxu0 %v1780
        %v1816 = vpop.f32.mrb[0].mxu0
        %v1817 = vadd.f32 %v1766, %v1816
        %v1818 = vpop.f32.mrb[0].mxu0
        %v1819 = vpop.f32.mrb[0].mxu0
        %v1820 = vpop.f32.mrb[0].mxu0
        %1821 = vdwg.mxu0
        %v1822 = vpack.c.bf16 %v1687, %v1687
        %1824 = vrot.lane.b32.xlu0 %v1822, 124
        %v1825 = vpop.permute.xlu0 %1824
        %1826 = vrot.lane.b32.xlu0 %v1822, 120
        %v1827 = vpop.permute.xlu0 %1826
        %1828 = vrot.lane.b32.xlu0 %v1822, 116
        %v1829 = vpop.permute.xlu0 %1828
        %1830 = vrot.lane.b32.xlu0 %v1822, 112
        %v1831 = vpop.permute.xlu0 %1830
        %1832 = vrot.lane.b32.xlu0 %v1822, 108
        %v1833 = vpop.permute.xlu0 %1832
        %1834 = vrot.lane.b32.xlu0 %v1822, 104
        %v1835 = vpop.permute.xlu0 %1834
        %1836 = vrot.lane.b32.xlu0 %v1822, 100
        %v1837 = vpop.permute.xlu0 %1836
        %v1838 = vpack.c.bf16 %v1752, %v1752
        %1840 = vrot.lane.b32.xlu0 %v1838, 124
        %v1841 = vpop.permute.xlu0 %1840
        %1842 = vrot.lane.b32.xlu0 %v1838, 120
        %v1843 = vpop.permute.xlu0 %1842
        %1844 = vrot.lane.b32.xlu0 %v1838, 116
        %v1845 = vpop.permute.xlu0 %1844
        %1846 = vrot.lane.b32.xlu0 %v1838, 112
        %v1847 = vpop.permute.xlu0 %1846
        %1848 = vrot.lane.b32.xlu0 %v1838, 108
        %v1849 = vpop.permute.xlu0 %1848
        %1850 = vrot.lane.b32.xlu0 %v1838, 104
        %v1851 = vpop.permute.xlu0 %1850
        %1852 = vrot.lane.b32.xlu0 %v1838, 100
        %v1853 = vpop.permute.xlu0 %1852
        %v1854 = vpack.c.bf16 %v1817, %v1817
        %1856 = vrot.lane.b32.xlu0 %v1854, 124
        %v1857 = vpop.permute.xlu0 %1856
        %1858 = vrot.lane.b32.xlu0 %v1854, 120
        %v1859 = vpop.permute.xlu0 %1858
        %1860 = vrot.lane.b32.xlu0 %v1854, 116
        %v1861 = vpop.permute.xlu0 %1860
        %1862 = vrot.lane.b32.xlu0 %v1854, 112
        %v1863 = vpop.permute.xlu0 %1862
        %1864 = vrot.lane.b32.xlu0 %v1854, 108
        %v1865 = vpop.permute.xlu0 %1864
        %1866 = vrot.lane.b32.xlu0 %v1854, 104
        %v1867 = vpop.permute.xlu0 %1866
        %1868 = vrot.lane.b32.xlu0 %v1854, 100
        %v1869 = vpop.permute.xlu0 %1868
        %v1871 = vsel %vm538, %v1822, 0
        %v1874 = vsel %vm538, %v1838, 0
        %1876 = vmatprep.subr.bf16.mxu0 0
        %1877 = vmatpush1.bf16.xpose.msra.mxu0 %v1874
        %1878 = vmatprep.subr.bf16.mxu0 0
        %1879 = vmatpush1.bf16.xpose.msra.mxu0 0
        %1880 = vmatprep.subr.bf16.mxu0 0
        %1881 = vmatpush1.bf16.xpose.msra.mxu0 0
        %1882 = vmatprep.subr.bf16.mxu0 0
        %1883 = vmatpush1.bf16.xpose.msra.mxu0 0
        %1884 = vmatprep.subr.bf16.mxu0 0
        %1885 = vmatpush1.bf16.xpose.msra.mxu0 0
        %1886 = vmatprep.subr.bf16.mxu0 0
        %1887 = vmatpush1.bf16.xpose.msra.mxu0 0
        %1888 = vmatprep.subr.bf16.mxu0 0
        %1889 = vmatpush1.bf16.xpose.msra.mxu0 0
        %1890 = vmatprep.subr.bf16.mxu0 0
        %1891 = vmatpush1.bf16.xpose.msra.mxu0 0
        %1892 = vmatprep.subr.bf16.mxu0 0
        %1893 = vmatpush1.bf16.xpose.msra.mxu0 0
        %1894 = vmatprep.subr.bf16.mxu0 0
        %1895 = vmatpush1.bf16.xpose.msra.mxu0 0
        %1896 = vmatprep.subr.bf16.mxu0 0
        %1897 = vmatpush1.bf16.xpose.msra.mxu0 0
        %1898 = vmatprep.subr.bf16.mxu0 0
        %1899 = vmatpush1.bf16.xpose.msra.mxu0 0
        %1900 = vmatprep.subr.bf16.mxu0 0
        %1901 = vmatpush1.bf16.xpose.msra.mxu0 0
        %1902 = vmatprep.subr.bf16.mxu0 0
        %1903 = vmatpush1.bf16.xpose.msra.mxu0 0
        %1904 = vmatprep.subr.bf16.mxu0 0
        %1905 = vmatpush1.bf16.xpose.msra.mxu0 0
        %1906 = vmatprep.subr.bf16.mxu0 0
        %1907 = vmatpush1.bf16.xpose.msra.mxu0 0
        %1908 = vmatprep.mubr.bf16.mxu0 0
        %1909 = vmatmul.mubr.bf16.gmra.mrb[0].mxu0 %v1871
        %v1910 = vpop.f32.mrb[0].mxu0
        %v1911 = vadd.f32 0.0, %v1910
        %v1912 = vpop.f32.mrb[0].mxu0
        %v1913 = vpop.f32.mrb[0].mxu0
        %v1914 = vpop.f32.mrb[0].mxu0
        %1915 = vdwg.mxu0
        %v1917 = vsel %vm538, %v1825, 0
        %v1920 = vsel %vm538, %v1841, 0
        %1922 = vmatprep.subr.bf16.mxu0 0
        %1923 = vmatpush1.bf16.xpose.msra.mxu0 %v1920
        %1924 = vmatprep.subr.bf16.mxu0 0
        %1925 = vmatpush1.bf16.xpose.msra.mxu0 0
        %1926 = vmatprep.subr.bf16.mxu0 0
        %1927 = vmatpush1.bf16.xpose.msra.mxu0 0
        %1928 = vmatprep.subr.bf16.mxu0 0
        %1929 = vmatpush1.bf16.xpose.msra.mxu0 0
        %1930 = vmatprep.subr.bf16.mxu0 0
        %1931 = vmatpush1.bf16.xpose.msra.mxu0 0
        %1932 = vmatprep.subr.bf16.mxu0 0
        %1933 = vmatpush1.bf16.xpose.msra.mxu0 0
        %1934 = vmatprep.subr.bf16.mxu0 0
        %1935 = vmatpush1.bf16.xpose.msra.mxu0 0
        %1936 = vmatprep.subr.bf16.mxu0 0
        %1937 = vmatpush1.bf16.xpose.msra.mxu0 0
        %1938 = vmatprep.subr.bf16.mxu0 0
        %1939 = vmatpush1.bf16.xpose.msra.mxu0 0
        %1940 = vmatprep.subr.bf16.mxu0 0
        %1941 = vmatpush1.bf16.xpose.msra.mxu0 0
        %1942 = vmatprep.subr.bf16.mxu0 0
        %1943 = vmatpush1.bf16.xpose.msra.mxu0 0
        %1944 = vmatprep.subr.bf16.mxu0 0
        %1945 = vmatpush1.bf16.xpose.msra.mxu0 0
        %1946 = vmatprep.subr.bf16.mxu0 0
        %1947 = vmatpush1.bf16.xpose.msra.mxu0 0
        %1948 = vmatprep.subr.bf16.mxu0 0
        %1949 = vmatpush1.bf16.xpose.msra.mxu0 0
        %1950 = vmatprep.subr.bf16.mxu0 0
        %1951 = vmatpush1.bf16.xpose.msra.mxu0 0
        %1952 = vmatprep.subr.bf16.mxu0 0
        %1953 = vmatpush1.bf16.xpose.msra.mxu0 0
        %1954 = vmatprep.mubr.bf16.mxu0 0
        %1955 = vmatmul.mubr.bf16.gmra.mrb[0].mxu0 %v1917
        %v1956 = vpop.f32.mrb[0].mxu0
        %v1957 = vadd.f32 0.0, %v1956
        %v1958 = vpop.f32.mrb[0].mxu0
        %v1959 = vpop.f32.mrb[0].mxu0
        %v1960 = vpop.f32.mrb[0].mxu0
        %1961 = vdwg.mxu0
        %v1963 = vsel %vm538, %v1827, 0
        %v1966 = vsel %vm538, %v1843, 0
        %1968 = vmatprep.subr.bf16.mxu0 0
        %1969 = vmatpush1.bf16.xpose.msra.mxu0 %v1966
        %1970 = vmatprep.subr.bf16.mxu0 0
        %1971 = vmatpush1.bf16.xpose.msra.mxu0 0
        %1972 = vmatprep.subr.bf16.mxu0 0
        %1973 = vmatpush1.bf16.xpose.msra.mxu0 0
        %1974 = vmatprep.subr.bf16.mxu0 0
        %1975 = vmatpush1.bf16.xpose.msra.mxu0 0
        %1976 = vmatprep.subr.bf16.mxu0 0
        %1977 = vmatpush1.bf16.xpose.msra.mxu0 0
        %1978 = vmatprep.subr.bf16.mxu0 0
        %1979 = vmatpush1.bf16.xpose.msra.mxu0 0
        %1980 = vmatprep.subr.bf16.mxu0 0
        %1981 = vmatpush1.bf16.xpose.msra.mxu0 0
        %1982 = vmatprep.subr.bf16.mxu0 0
        %1983 = vmatpush1.bf16.xpose.msra.mxu0 0
        %1984 = vmatprep.subr.bf16.mxu0 0
        %1985 = vmatpush1.bf16.xpose.msra.mxu0 0
        %1986 = vmatprep.subr.bf16.mxu0 0
        %1987 = vmatpush1.bf16.xpose.msra.mxu0 0
        %1988 = vmatprep.subr.bf16.mxu0 0
        %1989 = vmatpush1.bf16.xpose.msra.mxu0 0
        %1990 = vmatprep.subr.bf16.mxu0 0
        %1991 = vmatpush1.bf16.xpose.msra.mxu0 0
        %1992 = vmatprep.subr.bf16.mxu0 0
        %1993 = vmatpush1.bf16.xpose.msra.mxu0 0
        %1994 = vmatprep.subr.bf16.mxu0 0
        %1995 = vmatpush1.bf16.xpose.msra.mxu0 0
        %1996 = vmatprep.subr.bf16.mxu0 0
        %1997 = vmatpush1.bf16.xpose.msra.mxu0 0
        %1998 = vmatprep.subr.bf16.mxu0 0
        %1999 = vmatpush1.bf16.xpose.msra.mxu0 0
        %2000 = vmatprep.mubr.bf16.mxu0 0
        %2001 = vmatmul.mubr.bf16.gmra.mrb[0].mxu0 %v1963
        %v2002 = vpop.f32.mrb[0].mxu0
        %v2003 = vadd.f32 0.0, %v2002
        %v2004 = vpop.f32.mrb[0].mxu0
        %v2005 = vpop.f32.mrb[0].mxu0
        %v2006 = vpop.f32.mrb[0].mxu0
        %2007 = vdwg.mxu0
        %v2009 = vsel %vm538, %v1829, 0
        %v2012 = vsel %vm538, %v1845, 0
        %2014 = vmatprep.subr.bf16.mxu0 0
        %2015 = vmatpush1.bf16.xpose.msra.mxu0 %v2012
        %2016 = vmatprep.subr.bf16.mxu0 0
        %2017 = vmatpush1.bf16.xpose.msra.mxu0 0
        %2018 = vmatprep.subr.bf16.mxu0 0
        %2019 = vmatpush1.bf16.xpose.msra.mxu0 0
        %2020 = vmatprep.subr.bf16.mxu0 0
        %2021 = vmatpush1.bf16.xpose.msra.mxu0 0
        %2022 = vmatprep.subr.bf16.mxu0 0
        %2023 = vmatpush1.bf16.xpose.msra.mxu0 0
        %2024 = vmatprep.subr.bf16.mxu0 0
        %2025 = vmatpush1.bf16.xpose.msra.mxu0 0
        %2026 = vmatprep.subr.bf16.mxu0 0
        %2027 = vmatpush1.bf16.xpose.msra.mxu0 0
        %2028 = vmatprep.subr.bf16.mxu0 0
        %2029 = vmatpush1.bf16.xpose.msra.mxu0 0
        %2030 = vmatprep.subr.bf16.mxu0 0
        %2031 = vmatpush1.bf16.xpose.msra.mxu0 0
        %2032 = vmatprep.subr.bf16.mxu0 0
        %2033 = vmatpush1.bf16.xpose.msra.mxu0 0
        %2034 = vmatprep.subr.bf16.mxu0 0
        %2035 = vmatpush1.bf16.xpose.msra.mxu0 0
        %2036 = vmatprep.subr.bf16.mxu0 0
        %2037 = vmatpush1.bf16.xpose.msra.mxu0 0
        %2038 = vmatprep.subr.bf16.mxu0 0
        %2039 = vmatpush1.bf16.xpose.msra.mxu0 0
        %2040 = vmatprep.subr.bf16.mxu0 0
        %2041 = vmatpush1.bf16.xpose.msra.mxu0 0
        %2042 = vmatprep.subr.bf16.mxu0 0
        %2043 = vmatpush1.bf16.xpose.msra.mxu0 0
        %2044 = vmatprep.subr.bf16.mxu0 0
        %2045 = vmatpush1.bf16.xpose.msra.mxu0 0
        %2046 = vmatprep.mubr.bf16.mxu0 0
        %2047 = vmatmul.mubr.bf16.gmra.mrb[0].mxu0 %v2009
        %v2048 = vpop.f32.mrb[0].mxu0
        %v2049 = vadd.f32 0.0, %v2048
        %v2050 = vpop.f32.mrb[0].mxu0
        %v2051 = vpop.f32.mrb[0].mxu0
        %v2052 = vpop.f32.mrb[0].mxu0
        %2053 = vdwg.mxu0
        %v2055 = vsel %vm538, %v1831, 0
        %v2058 = vsel %vm538, %v1847, 0
        %2060 = vmatprep.subr.bf16.mxu0 0
        %2061 = vmatpush1.bf16.xpose.msra.mxu0 %v2058
        %2062 = vmatprep.subr.bf16.mxu0 0
        %2063 = vmatpush1.bf16.xpose.msra.mxu0 0
        %2064 = vmatprep.subr.bf16.mxu0 0
        %2065 = vmatpush1.bf16.xpose.msra.mxu0 0
        %2066 = vmatprep.subr.bf16.mxu0 0
        %2067 = vmatpush1.bf16.xpose.msra.mxu0 0
        %2068 = vmatprep.subr.bf16.mxu0 0
        %2069 = vmatpush1.bf16.xpose.msra.mxu0 0
        %2070 = vmatprep.subr.bf16.mxu0 0
        %2071 = vmatpush1.bf16.xpose.msra.mxu0 0
        %2072 = vmatprep.subr.bf16.mxu0 0
        %2073 = vmatpush1.bf16.xpose.msra.mxu0 0
        %2074 = vmatprep.subr.bf16.mxu0 0
        %2075 = vmatpush1.bf16.xpose.msra.mxu0 0
        %2076 = vmatprep.subr.bf16.mxu0 0
        %2077 = vmatpush1.bf16.xpose.msra.mxu0 0
        %2078 = vmatprep.subr.bf16.mxu0 0
        %2079 = vmatpush1.bf16.xpose.msra.mxu0 0
        %2080 = vmatprep.subr.bf16.mxu0 0
        %2081 = vmatpush1.bf16.xpose.msra.mxu0 0
        %2082 = vmatprep.subr.bf16.mxu0 0
        %2083 = vmatpush1.bf16.xpose.msra.mxu0 0
        %2084 = vmatprep.subr.bf16.mxu0 0
        %2085 = vmatpush1.bf16.xpose.msra.mxu0 0
        %2086 = vmatprep.subr.bf16.mxu0 0
        %2087 = vmatpush1.bf16.xpose.msra.mxu0 0
        %2088 = vmatprep.subr.bf16.mxu0 0
        %2089 = vmatpush1.bf16.xpose.msra.mxu0 0
        %2090 = vmatprep.subr.bf16.mxu0 0
        %2091 = vmatpush1.bf16.xpose.msra.mxu0 0
        %2092 = vmatprep.mubr.bf16.mxu0 0
        %2093 = vmatmul.mubr.bf16.gmra.mrb[0].mxu0 %v2055
        %v2094 = vpop.f32.mrb[0].mxu0
        %v2095 = vadd.f32 0.0, %v2094
        %v2096 = vpop.f32.mrb[0].mxu0
        %v2097 = vpop.f32.mrb[0].mxu0
        %v2098 = vpop.f32.mrb[0].mxu0
        %2099 = vdwg.mxu0
        %v2101 = vsel %vm538, %v1833, 0
        %v2104 = vsel %vm538, %v1849, 0
        %2106 = vmatprep.subr.bf16.mxu0 0
        %2107 = vmatpush1.bf16.xpose.msra.mxu0 %v2104
        %2108 = vmatprep.subr.bf16.mxu0 0
        %2109 = vmatpush1.bf16.xpose.msra.mxu0 0
        %2110 = vmatprep.subr.bf16.mxu0 0
        %2111 = vmatpush1.bf16.xpose.msra.mxu0 0
        %2112 = vmatprep.subr.bf16.mxu0 0
        %2113 = vmatpush1.bf16.xpose.msra.mxu0 0
        %2114 = vmatprep.subr.bf16.mxu0 0
        %2115 = vmatpush1.bf16.xpose.msra.mxu0 0
        %2116 = vmatprep.subr.bf16.mxu0 0
        %2117 = vmatpush1.bf16.xpose.msra.mxu0 0
        %2118 = vmatprep.subr.bf16.mxu0 0
        %2119 = vmatpush1.bf16.xpose.msra.mxu0 0
        %2120 = vmatprep.subr.bf16.mxu0 0
        %2121 = vmatpush1.bf16.xpose.msra.mxu0 0
        %2122 = vmatprep.subr.bf16.mxu0 0
        %2123 = vmatpush1.bf16.xpose.msra.mxu0 0
        %2124 = vmatprep.subr.bf16.mxu0 0
        %2125 = vmatpush1.bf16.xpose.msra.mxu0 0
        %2126 = vmatprep.subr.bf16.mxu0 0
        %2127 = vmatpush1.bf16.xpose.msra.mxu0 0
        %2128 = vmatprep.subr.bf16.mxu0 0
        %2129 = vmatpush1.bf16.xpose.msra.mxu0 0
        %2130 = vmatprep.subr.bf16.mxu0 0
        %2131 = vmatpush1.bf16.xpose.msra.mxu0 0
        %2132 = vmatprep.subr.bf16.mxu0 0
        %2133 = vmatpush1.bf16.xpose.msra.mxu0 0
        %2134 = vmatprep.subr.bf16.mxu0 0
        %2135 = vmatpush1.bf16.xpose.msra.mxu0 0
        %2136 = vmatprep.subr.bf16.mxu0 0
        %2137 = vmatpush1.bf16.xpose.msra.mxu0 0
        %2138 = vmatprep.mubr.bf16.mxu0 0
        %2139 = vmatmul.mubr.bf16.gmra.mrb[0].mxu0 %v2101
        %v2140 = vpop.f32.mrb[0].mxu0
        %v2141 = vadd.f32 0.0, %v2140
        %v2142 = vpop.f32.mrb[0].mxu0
        %v2143 = vpop.f32.mrb[0].mxu0
        %v2144 = vpop.f32.mrb[0].mxu0
        %2145 = vdwg.mxu0
        %v2147 = vsel %vm538, %v1835, 0
        %v2150 = vsel %vm538, %v1851, 0
        %2152 = vmatprep.subr.bf16.mxu0 0
        %2153 = vmatpush1.bf16.xpose.msra.mxu0 %v2150
        %2154 = vmatprep.subr.bf16.mxu0 0
        %2155 = vmatpush1.bf16.xpose.msra.mxu0 0
        %2156 = vmatprep.subr.bf16.mxu0 0
        %2157 = vmatpush1.bf16.xpose.msra.mxu0 0
        %2158 = vmatprep.subr.bf16.mxu0 0
        %2159 = vmatpush1.bf16.xpose.msra.mxu0 0
        %2160 = vmatprep.subr.bf16.mxu0 0
        %2161 = vmatpush1.bf16.xpose.msra.mxu0 0
        %2162 = vmatprep.subr.bf16.mxu0 0
        %2163 = vmatpush1.bf16.xpose.msra.mxu0 0
        %2164 = vmatprep.subr.bf16.mxu0 0
        %2165 = vmatpush1.bf16.xpose.msra.mxu0 0
        %2166 = vmatprep.subr.bf16.mxu0 0
        %2167 = vmatpush1.bf16.xpose.msra.mxu0 0
        %2168 = vmatprep.subr.bf16.mxu0 0
        %2169 = vmatpush1.bf16.xpose.msra.mxu0 0
        %2170 = vmatprep.subr.bf16.mxu0 0
        %2171 = vmatpush1.bf16.xpose.msra.mxu0 0
        %2172 = vmatprep.subr.bf16.mxu0 0
        %2173 = vmatpush1.bf16.xpose.msra.mxu0 0
        %2174 = vmatprep.subr.bf16.mxu0 0
        %2175 = vmatpush1.bf16.xpose.msra.mxu0 0
        %2176 = vmatprep.subr.bf16.mxu0 0
        %2177 = vmatpush1.bf16.xpose.msra.mxu0 0
        %2178 = vmatprep.subr.bf16.mxu0 0
        %2179 = vmatpush1.bf16.xpose.msra.mxu0 0
        %2180 = vmatprep.subr.bf16.mxu0 0
        %2181 = vmatpush1.bf16.xpose.msra.mxu0 0
        %2182 = vmatprep.subr.bf16.mxu0 0
        %2183 = vmatpush1.bf16.xpose.msra.mxu0 0
        %2184 = vmatprep.mubr.bf16.mxu0 0
        %2185 = vmatmul.mubr.bf16.gmra.mrb[0].mxu0 %v2147
        %v2186 = vpop.f32.mrb[0].mxu0
        %v2187 = vadd.f32 0.0, %v2186
        %v2188 = vpop.f32.mrb[0].mxu0
        %v2189 = vpop.f32.mrb[0].mxu0
        %v2190 = vpop.f32.mrb[0].mxu0
        %2191 = vdwg.mxu0
        %v2193 = vsel %vm538, %v1837, 0
        %v2196 = vsel %vm538, %v1853, 0
        %2198 = vmatprep.subr.bf16.mxu0 0
        %2199 = vmatpush1.bf16.xpose.msra.mxu0 %v2196
        %2200 = vmatprep.subr.bf16.mxu0 0
        %2201 = vmatpush1.bf16.xpose.msra.mxu0 0
        %2202 = vmatprep.subr.bf16.mxu0 0
        %2203 = vmatpush1.bf16.xpose.msra.mxu0 0
        %2204 = vmatprep.subr.bf16.mxu0 0
        %2205 = vmatpush1.bf16.xpose.msra.mxu0 0
        %2206 = vmatprep.subr.bf16.mxu0 0
        %2207 = vmatpush1.bf16.xpose.msra.mxu0 0
        %2208 = vmatprep.subr.bf16.mxu0 0
        %2209 = vmatpush1.bf16.xpose.msra.mxu0 0
        %2210 = vmatprep.subr.bf16.mxu0 0
        %2211 = vmatpush1.bf16.xpose.msra.mxu0 0
        %2212 = vmatprep.subr.bf16.mxu0 0
        %2213 = vmatpush1.bf16.xpose.msra.mxu0 0
        %2214 = vmatprep.subr.bf16.mxu0 0
        %2215 = vmatpush1.bf16.xpose.msra.mxu0 0
        %2216 = vmatprep.subr.bf16.mxu0 0
        %2217 = vmatpush1.bf16.xpose.msra.mxu0 0
        %2218 = vmatprep.subr.bf16.mxu0 0
        %2219 = vmatpush1.bf16.xpose.msra.mxu0 0
        %2220 = vmatprep.subr.bf16.mxu0 0
        %2221 = vmatpush1.bf16.xpose.msra.mxu0 0
        %2222 = vmatprep.subr.bf16.mxu0 0
        %2223 = vmatpush1.bf16.xpose.msra.mxu0 0
        %2224 = vmatprep.subr.bf16.mxu0 0
        %2225 = vmatpush1.bf16.xpose.msra.mxu0 0
        %2226 = vmatprep.subr.bf16.mxu0 0
        %2227 = vmatpush1.bf16.xpose.msra.mxu0 0
        %2228 = vmatprep.subr.bf16.mxu0 0
        %2229 = vmatpush1.bf16.xpose.msra.mxu0 0
        %2230 = vmatprep.mubr.bf16.mxu0 0
        %2231 = vmatmul.mubr.bf16.gmra.mrb[0].mxu0 %v2193
        %v2232 = vpop.f32.mrb[0].mxu0
        %v2233 = vadd.f32 0.0, %v2232
        %v2234 = vpop.f32.mrb[0].mxu0
        %v2235 = vpop.f32.mrb[0].mxu0
        %v2236 = vpop.f32.mrb[0].mxu0
        %2237 = vdwg.mxu0
        %v2238 = vsel %vm921, %v1911, -inf
        %2239 = vmax.xlane.f32.xlu0 %v2238
        %v2240 = vpop.xlane.xlu0 %2239
        %v2241 = vsel %vm921, %v1957, -inf
        %2242 = vmax.xlane.f32.xlu0 %v2241
        %v2243 = vpop.xlane.xlu0 %2242
        %v2244 = vsel %vm921, %v2003, -inf
        %2245 = vmax.xlane.f32.xlu0 %v2244
        %v2246 = vpop.xlane.xlu0 %2245
        %v2247 = vsel %vm921, %v2049, -inf
        %2248 = vmax.xlane.f32.xlu0 %v2247
        %v2249 = vpop.xlane.xlu0 %2248
        %v2250 = vsel %vm921, %v2095, -inf
        %2251 = vmax.xlane.f32.xlu0 %v2250
        %v2252 = vpop.xlane.xlu0 %2251
        %v2253 = vsel %vm921, %v2141, -inf
        %2254 = vmax.xlane.f32.xlu0 %v2253
        %v2255 = vpop.xlane.xlu0 %2254
        %v2256 = vsel %vm921, %v2187, -inf
        %2257 = vmax.xlane.f32.xlu0 %v2256
        %v2258 = vpop.xlane.xlu0 %2257
        %v2259 = vsel %vm921, %v2233, -inf
        %2260 = vmax.xlane.f32.xlu0 %v2259
        %v2261 = vpop.xlane.xlu0 %2260
        %v2262 = vsub.f32 %v1911, %v2240
        %v2263 = vsub.f32 %v1957, %v2243
        %v2264 = vsub.f32 %v2003, %v2246
        %v2265 = vsub.f32 %v2049, %v2249
        %v2266 = vsub.f32 %v2095, %v2252
        %v2267 = vsub.f32 %v2141, %v2255
        %v2268 = vsub.f32 %v2187, %v2258
        %v2269 = vsub.f32 %v2233, %v2261
        %v2270 = vmul.f32 %v2262, 1.442695
        %v2271 = vpow.pop %v2270
        %v2272 = vmul.f32 %v2263, 1.442695
        %v2273 = vpow.pop %v2272
        %v2274 = vmul.f32 %v2264, 1.442695
        %v2275 = vpow.pop %v2274
        %v2276 = vmul.f32 %v2265, 1.442695
        %v2277 = vpow.pop %v2276
        %v2278 = vmul.f32 %v2266, 1.442695
        %v2279 = vpow.pop %v2278
        %v2280 = vmul.f32 %v2267, 1.442695
        %v2281 = vpow.pop %v2280
        %v2282 = vmul.f32 %v2268, 1.442695
        %v2283 = vpow.pop %v2282
        %v2284 = vmul.f32 %v2269, 1.442695
        %v2285 = vpow.pop %v2284
        %v2286 = vsel %vm921, %v2271, 0.0
        %2287 = vadd.xlane.f32.xlu0 %v2286
        %v2288 = vpop.xlane.xlu0 %2287
        %v2289 = vsel %vm921, %v2273, 0.0
        %2290 = vadd.xlane.f32.xlu0 %v2289
        %v2291 = vpop.xlane.xlu0 %2290
        %v2292 = vsel %vm921, %v2275, 0.0
        %2293 = vadd.xlane.f32.xlu0 %v2292
        %v2294 = vpop.xlane.xlu0 %2293
        %v2295 = vsel %vm921, %v2277, 0.0
        %2296 = vadd.xlane.f32.xlu0 %v2295
        %v2297 = vpop.xlane.xlu0 %2296
        %v2298 = vsel %vm921, %v2279, 0.0
        %2299 = vadd.xlane.f32.xlu0 %v2298
        %v2300 = vpop.xlane.xlu0 %2299
        %v2301 = vsel %vm921, %v2281, 0.0
        %2302 = vadd.xlane.f32.xlu0 %v2301
        %v2303 = vpop.xlane.xlu0 %2302
        %v2304 = vsel %vm921, %v2283, 0.0
        %2305 = vadd.xlane.f32.xlu0 %v2304
        %v2306 = vpop.xlane.xlu0 %2305
        %v2307 = vsel %vm921, %v2285, 0.0
        %2308 = vadd.xlane.f32.xlu0 %v2307
        %v2309 = vpop.xlane.xlu0 %2308
        %v2310 = vrcp.pop %v2288
        %v2311 = vrcp.pop %v2291
        %v2312 = vrcp.pop %v2294
        %v2313 = vrcp.pop %v2297
        %v2314 = vrcp.pop %v2300
        %v2315 = vrcp.pop %v2303
        %v2316 = vrcp.pop %v2306
        %v2317 = vrcp.pop %v2309
        %v2318 = vmul.f32 %v2288, %v2310
        %v2319 = vmul.f32 %v2291, %v2311
        %v2320 = vmul.f32 %v2294, %v2312
        %v2321 = vmul.f32 %v2297, %v2313
        %v2322 = vmul.f32 %v2300, %v2314
        %v2323 = vmul.f32 %v2303, %v2315
        %v2324 = vmul.f32 %v2306, %v2316
        %v2325 = vmul.f32 %v2309, %v2317
        %v2326 = vsub.f32 2.0, %v2318
        %v2327 = vsub.f32 2.0, %v2319
        %v2328 = vsub.f32 2.0, %v2320
        %v2329 = vsub.f32 2.0, %v2321
        %v2330 = vsub.f32 2.0, %v2322
        %v2331 = vsub.f32 2.0, %v2323
        %v2332 = vsub.f32 2.0, %v2324
        %v2333 = vsub.f32 2.0, %v2325
        %v2334 = vmul.f32 %v2310, %v2326
        %v2335 = vmul.f32 %v2311, %v2327
        %v2336 = vmul.f32 %v2312, %v2328
        %v2337 = vmul.f32 %v2313, %v2329
        %v2338 = vmul.f32 %v2314, %v2330
        %v2339 = vmul.f32 %v2315, %v2331
        %v2340 = vmul.f32 %v2316, %v2332
        %v2341 = vmul.f32 %v2317, %v2333
        %v2342 = vmul.f32 %v2271, %v2334
        %v2343 = vmul.f32 %v2273, %v2335
        %v2344 = vmul.f32 %v2275, %v2336
        %v2345 = vmul.f32 %v2277, %v2337
        %v2346 = vmul.f32 %v2279, %v2338
        %v2347 = vmul.f32 %v2281, %v2339
        %v2348 = vmul.f32 %v2283, %v2340
        %v2349 = vmul.f32 %v2285, %v2341
        %v2350 = vpack.c.bf16 %v2342, %v2342
        %v2351 = vpack.c.bf16 %v2343, %v2343
        %v2352 = vpack.c.bf16 %v2344, %v2344
        %v2353 = vpack.c.bf16 %v2345, %v2345
        %v2354 = vpack.c.bf16 %v2346, %v2346
        %v2355 = vpack.c.bf16 %v2347, %v2347
        %v2356 = vpack.c.bf16 %v2348, %v2348
        %v2357 = vpack.c.bf16 %v2349, %v2349
        %v2359 = vsel %vm921, %v2350, 0
        %v2362 = vsel %vm1047, %v1854, 0
        %2364 = vmatprep.subr.bf16.mxu0 0
        %2365 = vmatpush1.bf16.msra.mxu0 %v2362
        %2366 = vmatprep.subr.bf16.mxu0 0
        %2367 = vmatpush1.bf16.msra.mxu0 0
        %2368 = vmatprep.subr.bf16.mxu0 0
        %2369 = vmatpush1.bf16.msra.mxu0 0
        %2370 = vmatprep.subr.bf16.mxu0 0
        %2371 = vmatpush1.bf16.msra.mxu0 0
        %2372 = vmatprep.subr.bf16.mxu0 0
        %2373 = vmatpush1.bf16.msra.mxu0 0
        %2374 = vmatprep.subr.bf16.mxu0 0
        %2375 = vmatpush1.bf16.msra.mxu0 0
        %2376 = vmatprep.subr.bf16.mxu0 0
        %2377 = vmatpush1.bf16.msra.mxu0 0
        %2378 = vmatprep.subr.bf16.mxu0 0
        %2379 = vmatpush1.bf16.msra.mxu0 0
        %2380 = vmatprep.subr.bf16.mxu0 0
        %2381 = vmatpush1.bf16.msra.mxu0 0
        %2382 = vmatprep.subr.bf16.mxu0 0
        %2383 = vmatpush1.bf16.msra.mxu0 0
        %2384 = vmatprep.subr.bf16.mxu0 0
        %2385 = vmatpush1.bf16.msra.mxu0 0
        %2386 = vmatprep.subr.bf16.mxu0 0
        %2387 = vmatpush1.bf16.msra.mxu0 0
        %2388 = vmatprep.subr.bf16.mxu0 0
        %2389 = vmatpush1.bf16.msra.mxu0 0
        %2390 = vmatprep.subr.bf16.mxu0 0
        %2391 = vmatpush1.bf16.msra.mxu0 0
        %2392 = vmatprep.subr.bf16.mxu0 0
        %2393 = vmatpush1.bf16.msra.mxu0 0
        %2394 = vmatprep.subr.bf16.mxu0 0
        %2395 = vmatpush1.bf16.msra.mxu0 0
        %2396 = vmatprep.mubr.bf16.mxu0 0
        %2397 = vmatmul.mubr.bf16.gmra.mrb[0].mxu0 %v2359
        %v2398 = vpop.f32.mrb[0].mxu0
        %v2399 = vadd.f32 0.0, %v2398
        %v2400 = vpop.f32.mrb[0].mxu0
        %v2401 = vpop.f32.mrb[0].mxu0
        %v2402 = vpop.f32.mrb[0].mxu0
        %2403 = vdwg.mxu0
        %v2405 = vsel %vm921, %v2351, 0
        %v2408 = vsel %vm1047, %v1857, 0
        %2410 = vmatprep.subr.bf16.mxu0 0
        %2411 = vmatpush1.bf16.msra.mxu0 %v2408
        %2412 = vmatprep.subr.bf16.mxu0 0
        %2413 = vmatpush1.bf16.msra.mxu0 0
        %2414 = vmatprep.subr.bf16.mxu0 0
        %2415 = vmatpush1.bf16.msra.mxu0 0
        %2416 = vmatprep.subr.bf16.mxu0 0
        %2417 = vmatpush1.bf16.msra.mxu0 0
        %2418 = vmatprep.subr.bf16.mxu0 0
        %2419 = vmatpush1.bf16.msra.mxu0 0
        %2420 = vmatprep.subr.bf16.mxu0 0
        %2421 = vmatpush1.bf16.msra.mxu0 0
        %2422 = vmatprep.subr.bf16.mxu0 0
        %2423 = vmatpush1.bf16.msra.mxu0 0
        %2424 = vmatprep.subr.bf16.mxu0 0
        %2425 = vmatpush1.bf16.msra.mxu0 0
        %2426 = vmatprep.subr.bf16.mxu0 0
        %2427 = vmatpush1.bf16.msra.mxu0 0
        %2428 = vmatprep.subr.bf16.mxu0 0
        %2429 = vmatpush1.bf16.msra.mxu0 0
        %2430 = vmatprep.subr.bf16.mxu0 0
        %2431 = vmatpush1.bf16.msra.mxu0 0
        %2432 = vmatprep.subr.bf16.mxu0 0
        %2433 = vmatpush1.bf16.msra.mxu0 0
        %2434 = vmatprep.subr.bf16.mxu0 0
        %2435 = vmatpush1.bf16.msra.mxu0 0
        %2436 = vmatprep.subr.bf16.mxu0 0
        %2437 = vmatpush1.bf16.msra.mxu0 0
        %2438 = vmatprep.subr.bf16.mxu0 0
        %2439 = vmatpush1.bf16.msra.mxu0 0
        %2440 = vmatprep.subr.bf16.mxu0 0
        %2441 = vmatpush1.bf16.msra.mxu0 0
        %2442 = vmatprep.mubr.bf16.mxu0 0
        %2443 = vmatmul.mubr.bf16.gmra.mrb[0].mxu0 %v2405
        %v2444 = vpop.f32.mrb[0].mxu0
        %v2445 = vadd.f32 0.0, %v2444
        %v2446 = vpop.f32.mrb[0].mxu0
        %v2447 = vpop.f32.mrb[0].mxu0
        %v2448 = vpop.f32.mrb[0].mxu0
        %2449 = vdwg.mxu0
        %v2451 = vsel %vm921, %v2352, 0
        %v2454 = vsel %vm1047, %v1859, 0
        %2456 = vmatprep.subr.bf16.mxu0 0
        %2457 = vmatpush1.bf16.msra.mxu0 %v2454
        %2458 = vmatprep.subr.bf16.mxu0 0
        %2459 = vmatpush1.bf16.msra.mxu0 0
        %2460 = vmatprep.subr.bf16.mxu0 0
        %2461 = vmatpush1.bf16.msra.mxu0 0
        %2462 = vmatprep.subr.bf16.mxu0 0
        %2463 = vmatpush1.bf16.msra.mxu0 0
        %2464 = vmatprep.subr.bf16.mxu0 0
        %2465 = vmatpush1.bf16.msra.mxu0 0
        %2466 = vmatprep.subr.bf16.mxu0 0
        %2467 = vmatpush1.bf16.msra.mxu0 0
        %2468 = vmatprep.subr.bf16.mxu0 0
        %2469 = vmatpush1.bf16.msra.mxu0 0
        %2470 = vmatprep.subr.bf16.mxu0 0
        %2471 = vmatpush1.bf16.msra.mxu0 0
        %2472 = vmatprep.subr.bf16.mxu0 0
        %2473 = vmatpush1.bf16.msra.mxu0 0
        %2474 = vmatprep.subr.bf16.mxu0 0
        %2475 = vmatpush1.bf16.msra.mxu0 0
        %2476 = vmatprep.subr.bf16.mxu0 0
        %2477 = vmatpush1.bf16.msra.mxu0 0
        %2478 = vmatprep.subr.bf16.mxu0 0
        %2479 = vmatpush1.bf16.msra.mxu0 0
        %2480 = vmatprep.subr.bf16.mxu0 0
        %2481 = vmatpush1.bf16.msra.mxu0 0
        %2482 = vmatprep.subr.bf16.mxu0 0
        %2483 = vmatpush1.bf16.msra.mxu0 0
        %2484 = vmatprep.subr.bf16.mxu0 0
        %2485 = vmatpush1.bf16.msra.mxu0 0
        %2486 = vmatprep.subr.bf16.mxu0 0
        %2487 = vmatpush1.bf16.msra.mxu0 0
        %2488 = vmatprep.mubr.bf16.mxu0 0
        %2489 = vmatmul.mubr.bf16.gmra.mrb[0].mxu0 %v2451
        %v2490 = vpop.f32.mrb[0].mxu0
        %v2491 = vadd.f32 0.0, %v2490
        %v2492 = vpop.f32.mrb[0].mxu0
        %v2493 = vpop.f32.mrb[0].mxu0
        %v2494 = vpop.f32.mrb[0].mxu0
        %2495 = vdwg.mxu0
        %v2497 = vsel %vm921, %v2353, 0
        %v2500 = vsel %vm1047, %v1861, 0
        %2502 = vmatprep.subr.bf16.mxu0 0
        %2503 = vmatpush1.bf16.msra.mxu0 %v2500
        %2504 = vmatprep.subr.bf16.mxu0 0
        %2505 = vmatpush1.bf16.msra.mxu0 0
        %2506 = vmatprep.subr.bf16.mxu0 0
        %2507 = vmatpush1.bf16.msra.mxu0 0
        %2508 = vmatprep.subr.bf16.mxu0 0
        %2509 = vmatpush1.bf16.msra.mxu0 0
        %2510 = vmatprep.subr.bf16.mxu0 0
        %2511 = vmatpush1.bf16.msra.mxu0 0
        %2512 = vmatprep.subr.bf16.mxu0 0
        %2513 = vmatpush1.bf16.msra.mxu0 0
        %2514 = vmatprep.subr.bf16.mxu0 0
        %2515 = vmatpush1.bf16.msra.mxu0 0
        %2516 = vmatprep.subr.bf16.mxu0 0
        %2517 = vmatpush1.bf16.msra.mxu0 0
        %2518 = vmatprep.subr.bf16.mxu0 0
        %2519 = vmatpush1.bf16.msra.mxu0 0
        %2520 = vmatprep.subr.bf16.mxu0 0
        %2521 = vmatpush1.bf16.msra.mxu0 0
        %2522 = vmatprep.subr.bf16.mxu0 0
        %2523 = vmatpush1.bf16.msra.mxu0 0
        %2524 = vmatprep.subr.bf16.mxu0 0
        %2525 = vmatpush1.bf16.msra.mxu0 0
        %2526 = vmatprep.subr.bf16.mxu0 0
        %2527 = vmatpush1.bf16.msra.mxu0 0
        %2528 = vmatprep.subr.bf16.mxu0 0
        %2529 = vmatpush1.bf16.msra.mxu0 0
        %2530 = vmatprep.subr.bf16.mxu0 0
        %2531 = vmatpush1.bf16.msra.mxu0 0
        %2532 = vmatprep.subr.bf16.mxu0 0
        %2533 = vmatpush1.bf16.msra.mxu0 0
        %2534 = vmatprep.mubr.bf16.mxu0 0
        %2535 = vmatmul.mubr.bf16.gmra.mrb[0].mxu0 %v2497
        %v2536 = vpop.f32.mrb[0].mxu0
        %v2537 = vadd.f32 0.0, %v2536
        %v2538 = vpop.f32.mrb[0].mxu0
        %v2539 = vpop.f32.mrb[0].mxu0
        %v2540 = vpop.f32.mrb[0].mxu0
        %2541 = vdwg.mxu0
        %v2543 = vsel %vm921, %v2354, 0
        %v2546 = vsel %vm1047, %v1863, 0
        %2548 = vmatprep.subr.bf16.mxu0 0
        %2549 = vmatpush1.bf16.msra.mxu0 %v2546
        %2550 = vmatprep.subr.bf16.mxu0 0
        %2551 = vmatpush1.bf16.msra.mxu0 0
        %2552 = vmatprep.subr.bf16.mxu0 0
        %2553 = vmatpush1.bf16.msra.mxu0 0
        %2554 = vmatprep.subr.bf16.mxu0 0
        %2555 = vmatpush1.bf16.msra.mxu0 0
        %2556 = vmatprep.subr.bf16.mxu0 0
        %2557 = vmatpush1.bf16.msra.mxu0 0
        %2558 = vmatprep.subr.bf16.mxu0 0
        %2559 = vmatpush1.bf16.msra.mxu0 0
        %2560 = vmatprep.subr.bf16.mxu0 0
        %2561 = vmatpush1.bf16.msra.mxu0 0
        %2562 = vmatprep.subr.bf16.mxu0 0
        %2563 = vmatpush1.bf16.msra.mxu0 0
        %2564 = vmatprep.subr.bf16.mxu0 0
        %2565 = vmatpush1.bf16.msra.mxu0 0
        %2566 = vmatprep.subr.bf16.mxu0 0
        %2567 = vmatpush1.bf16.msra.mxu0 0
        %2568 = vmatprep.subr.bf16.mxu0 0
        %2569 = vmatpush1.bf16.msra.mxu0 0
        %2570 = vmatprep.subr.bf16.mxu0 0
        %2571 = vmatpush1.bf16.msra.mxu0 0
        %2572 = vmatprep.subr.bf16.mxu0 0
        %2573 = vmatpush1.bf16.msra.mxu0 0
        %2574 = vmatprep.subr.bf16.mxu0 0
        %2575 = vmatpush1.bf16.msra.mxu0 0
        %2576 = vmatprep.subr.bf16.mxu0 0
        %2577 = vmatpush1.bf16.msra.mxu0 0
        %2578 = vmatprep.subr.bf16.mxu0 0
        %2579 = vmatpush1.bf16.msra.mxu0 0
        %2580 = vmatprep.mubr.bf16.mxu0 0
        %2581 = vmatmul.mubr.bf16.gmra.mrb[0].mxu0 %v2543
        %v2582 = vpop.f32.mrb[0].mxu0
        %v2583 = vadd.f32 0.0, %v2582
        %v2584 = vpop.f32.mrb[0].mxu0
        %v2585 = vpop.f32.mrb[0].mxu0
        %v2586 = vpop.f32.mrb[0].mxu0
        %2587 = vdwg.mxu0
        %v2589 = vsel %vm921, %v2355, 0
        %v2592 = vsel %vm1047, %v1865, 0
        %2594 = vmatprep.subr.bf16.mxu0 0
        %2595 = vmatpush1.bf16.msra.mxu0 %v2592
        %2596 = vmatprep.subr.bf16.mxu0 0
        %2597 = vmatpush1.bf16.msra.mxu0 0
        %2598 = vmatprep.subr.bf16.mxu0 0
        %2599 = vmatpush1.bf16.msra.mxu0 0
        %2600 = vmatprep.subr.bf16.mxu0 0
        %2601 = vmatpush1.bf16.msra.mxu0 0
        %2602 = vmatprep.subr.bf16.mxu0 0
        %2603 = vmatpush1.bf16.msra.mxu0 0
        %2604 = vmatprep.subr.bf16.mxu0 0
        %2605 = vmatpush1.bf16.msra.mxu0 0
        %2606 = vmatprep.subr.bf16.mxu0 0
        %2607 = vmatpush1.bf16.msra.mxu0 0
        %2608 = vmatprep.subr.bf16.mxu0 0
        %2609 = vmatpush1.bf16.msra.mxu0 0
        %2610 = vmatprep.subr.bf16.mxu0 0
        %2611 = vmatpush1.bf16.msra.mxu0 0
        %2612 = vmatprep.subr.bf16.mxu0 0
        %2613 = vmatpush1.bf16.msra.mxu0 0
        %2614 = vmatprep.subr.bf16.mxu0 0
        %2615 = vmatpush1.bf16.msra.mxu0 0
        %2616 = vmatprep.subr.bf16.mxu0 0
        %2617 = vmatpush1.bf16.msra.mxu0 0
        %2618 = vmatprep.subr.bf16.mxu0 0
        %2619 = vmatpush1.bf16.msra.mxu0 0
        %2620 = vmatprep.subr.bf16.mxu0 0
        %2621 = vmatpush1.bf16.msra.mxu0 0
        %2622 = vmatprep.subr.bf16.mxu0 0
        %2623 = vmatpush1.bf16.msra.mxu0 0
        %2624 = vmatprep.subr.bf16.mxu0 0
        %2625 = vmatpush1.bf16.msra.mxu0 0
        %2626 = vmatprep.mubr.bf16.mxu0 0
        %2627 = vmatmul.mubr.bf16.gmra.mrb[0].mxu0 %v2589
        %v2628 = vpop.f32.mrb[0].mxu0
        %v2629 = vadd.f32 0.0, %v2628
        %v2630 = vpop.f32.mrb[0].mxu0
        %v2631 = vpop.f32.mrb[0].mxu0
        %v2632 = vpop.f32.mrb[0].mxu0
        %2633 = vdwg.mxu0
        %v2635 = vsel %vm921, %v2356, 0
        %v2638 = vsel %vm1047, %v1867, 0
        %2640 = vmatprep.subr.bf16.mxu0 0
        %2641 = vmatpush1.bf16.msra.mxu0 %v2638
        %2642 = vmatprep.subr.bf16.mxu0 0
        %2643 = vmatpush1.bf16.msra.mxu0 0
        %2644 = vmatprep.subr.bf16.mxu0 0
        %2645 = vmatpush1.bf16.msra.mxu0 0
        %2646 = vmatprep.subr.bf16.mxu0 0
        %2647 = vmatpush1.bf16.msra.mxu0 0
        %2648 = vmatprep.subr.bf16.mxu0 0
        %2649 = vmatpush1.bf16.msra.mxu0 0
        %2650 = vmatprep.subr.bf16.mxu0 0
        %2651 = vmatpush1.bf16.msra.mxu0 0
        %2652 = vmatprep.subr.bf16.mxu0 0
        %2653 = vmatpush1.bf16.msra.mxu0 0
        %2654 = vmatprep.subr.bf16.mxu0 0
        %2655 = vmatpush1.bf16.msra.mxu0 0
        %2656 = vmatprep.subr.bf16.mxu0 0
        %2657 = vmatpush1.bf16.msra.mxu0 0
        %2658 = vmatprep.subr.bf16.mxu0 0
        %2659 = vmatpush1.bf16.msra.mxu0 0
        %2660 = vmatprep.subr.bf16.mxu0 0
        %2661 = vmatpush1.bf16.msra.mxu0 0
        %2662 = vmatprep.subr.bf16.mxu0 0
        %2663 = vmatpush1.bf16.msra.mxu0 0
        %2664 = vmatprep.subr.bf16.mxu0 0
        %2665 = vmatpush1.bf16.msra.mxu0 0
        %2666 = vmatprep.subr.bf16.mxu0 0
        %2667 = vmatpush1.bf16.msra.mxu0 0
        %2668 = vmatprep.subr.bf16.mxu0 0
        %2669 = vmatpush1.bf16.msra.mxu0 0
        %2670 = vmatprep.subr.bf16.mxu0 0
        %2671 = vmatpush1.bf16.msra.mxu0 0
        %2672 = vmatprep.mubr.bf16.mxu0 0
        %2673 = vmatmul.mubr.bf16.gmra.mrb[0].mxu0 %v2635
        %v2674 = vpop.f32.mrb[0].mxu0
        %v2675 = vadd.f32 0.0, %v2674
        %v2676 = vpop.f32.mrb[0].mxu0
        %v2677 = vpop.f32.mrb[0].mxu0
        %v2678 = vpop.f32.mrb[0].mxu0
        %2679 = vdwg.mxu0
        %v2681 = vsel %vm921, %v2357, 0
        %v2684 = vsel %vm1047, %v1869, 0
        %2686 = vmatprep.subr.bf16.mxu0 0
        %2687 = vmatpush1.bf16.msra.mxu0 %v2684
        %2688 = vmatprep.subr.bf16.mxu0 0
        %2689 = vmatpush1.bf16.msra.mxu0 0
        %2690 = vmatprep.subr.bf16.mxu0 0
        %2691 = vmatpush1.bf16.msra.mxu0 0
        %2692 = vmatprep.subr.bf16.mxu0 0
        %2693 = vmatpush1.bf16.msra.mxu0 0
        %2694 = vmatprep.subr.bf16.mxu0 0
        %2695 = vmatpush1.bf16.msra.mxu0 0
        %2696 = vmatprep.subr.bf16.mxu0 0
        %2697 = vmatpush1.bf16.msra.mxu0 0
        %2698 = vmatprep.subr.bf16.mxu0 0
        %2699 = vmatpush1.bf16.msra.mxu0 0
        %2700 = vmatprep.subr.bf16.mxu0 0
        %2701 = vmatpush1.bf16.msra.mxu0 0
        %2702 = vmatprep.subr.bf16.mxu0 0
        %2703 = vmatpush1.bf16.msra.mxu0 0
        %2704 = vmatprep.subr.bf16.mxu0 0
        %2705 = vmatpush1.bf16.msra.mxu0 0
        %2706 = vmatprep.subr.bf16.mxu0 0
        %2707 = vmatpush1.bf16.msra.mxu0 0
        %2708 = vmatprep.subr.bf16.mxu0 0
        %2709 = vmatpush1.bf16.msra.mxu0 0
        %2710 = vmatprep.subr.bf16.mxu0 0
        %2711 = vmatpush1.bf16.msra.mxu0 0
        %2712 = vmatprep.subr.bf16.mxu0 0
        %2713 = vmatpush1.bf16.msra.mxu0 0
        %2714 = vmatprep.subr.bf16.mxu0 0
        %2715 = vmatpush1.bf16.msra.mxu0 0
        %2716 = vmatprep.subr.bf16.mxu0 0
        %2717 = vmatpush1.bf16.msra.mxu0 0
        %2718 = vmatprep.mubr.bf16.mxu0 0
        %2719 = vmatmul.mubr.bf16.gmra.mrb[0].mxu0 %v2681
        %v2720 = vpop.f32.mrb[0].mxu0
        %v2721 = vadd.f32 0.0, %v2720
        %v2722 = vpop.f32.mrb[0].mxu0
        %v2723 = vpop.f32.mrb[0].mxu0
        %v2724 = vpop.f32.mrb[0].mxu0
        %2725 = vdwg.mxu0
        %v2726 = vpack.c.bf16 %v2399, %v2399
        %2727 = vst.msk [vmem:[#allocation2] sm:$0xf] %vm1428, %v2726
        %v2728 = vpack.c.bf16 %v2445, %v2445
        %v2730 = vunpack.c.l.b16 %v2728
        %v2731 = vpack.c.b16 %v2730, %v2730
        %2732 = vrot.lane.b32.xlu0 %v2731, 4
        %v2733 = vpop.permute.xlu0 %2732
        %2735 = vst.msk [vmem:[#allocation2] sm:$0xf] %vm1437, %v2733
        %v2736 = vpack.c.bf16 %v2491, %v2491
        %v2738 = vunpack.c.l.b16 %v2736
        %v2739 = vpack.c.b16 %v2738, %v2738
        %2740 = vrot.lane.b32.xlu0 %v2739, 8
        %v2741 = vpop.permute.xlu0 %2740
        %2743 = vst.msk [vmem:[#allocation2] sm:$0xf] %vm1446, %v2741
        %v2744 = vpack.c.bf16 %v2537, %v2537
        %v2746 = vunpack.c.l.b16 %v2744
        %v2747 = vpack.c.b16 %v2746, %v2746
        %2748 = vrot.lane.b32.xlu0 %v2747, 12
        %v2749 = vpop.permute.xlu0 %2748
        %2751 = vst.msk [vmem:[#allocation2] sm:$0xf] %vm1455, %v2749
        %v2752 = vpack.c.bf16 %v2583, %v2583
        %v2754 = vunpack.c.l.b16 %v2752
        %v2755 = vpack.c.b16 %v2754, %v2754
        %2756 = vrot.lane.b32.xlu0 %v2755, 16
        %v2757 = vpop.permute.xlu0 %2756
        %2759 = vst.msk [vmem:[#allocation2] sm:$0xf] %vm1464, %v2757
        %v2760 = vpack.c.bf16 %v2629, %v2629
        %v2762 = vunpack.c.l.b16 %v2760
        %v2763 = vpack.c.b16 %v2762, %v2762
        %2764 = vrot.lane.b32.xlu0 %v2763, 20
        %v2765 = vpop.permute.xlu0 %2764
        %2767 = vst.msk [vmem:[#allocation2] sm:$0xf] %vm1473, %v2765
        %v2768 = vpack.c.bf16 %v2675, %v2675
        %v2770 = vunpack.c.l.b16 %v2768
        %v2771 = vpack.c.b16 %v2770, %v2770
        %2772 = vrot.lane.b32.xlu0 %v2771, 24
        %v2773 = vpop.permute.xlu0 %2772
        %2775 = vst.msk [vmem:[#allocation2] sm:$0xf] %vm1482, %v2773
        %v2776 = vpack.c.bf16 %v2721, %v2721
        %v2778 = vunpack.c.l.b16 %v2776
        %v2779 = vpack.c.b16 %v2778, %v2778
        %2780 = vrot.lane.b32.xlu0 %v2779, 28
        %v2781 = vpop.permute.xlu0 %2780
        %2783 = vst.msk [vmem:[#allocation2] sm:$0xf] %vm1491, %v2781
        %v2784 = vld [vmem:[#allocation2] sm:$0xf]
        %s2785 = scalar_lea.vmem [#allocation11], 64
        %v2786 = vld [vmem:[%s2785] sm:$0xf]
        %v2787 = vld [vmem:[%s2785 + $0x4] sm:$0xf]
        %v2788 = vld [vmem:[%s2785 + $0x8] sm:$0xf]
        %v2789 = vld [vmem:[%s2785 + $0xc] sm:$0xf]
        %v2790 = vlaneseq
        %v2791 = vshrl.u32 %v2790, 7
        %v2792 = vsub.s32 4, %v2791
        %v2793 = vrot.slane %v427, %v2792
        %v2798 = vunpack.c.l.b16 %v2786
        %v2799 = vunpack.c.l.b16 %v2787
        %v2800 = vunpack.c.l.b16 %v2788
        %v2801 = vunpack.c.l.b16 %v2789
        %v2802 = vpack.c.b16 %v2799, %v2798
        %v2803 = vpack.c.b16 %v2801, %v2800
        %v2807 = vsel %vm428, %v2784, 0
        %2809 = vmatprep.subr.bf16.mxu0 0
        %2810 = vmatpush1.bf16.msra.mxu0 %v2802
        %2811 = vmatprep.subr.bf16.mxu0 0
        %2812 = vmatpush1.bf16.msra.mxu0 %v2803
        %2813 = vmatprep.subr.bf16.mxu0 0
        %2814 = vmatpush1.bf16.msra.mxu0 0
        %2815 = vmatprep.subr.bf16.mxu0 0
        %2816 = vmatpush1.bf16.msra.mxu0 0
        %2817 = vmatprep.subr.bf16.mxu0 0
        %2818 = vmatpush1.bf16.msra.mxu0 0
        %2819 = vmatprep.subr.bf16.mxu0 0
        %2820 = vmatpush1.bf16.msra.mxu0 0
        %2821 = vmatprep.subr.bf16.mxu0 0
        %2822 = vmatpush1.bf16.msra.mxu0 0
        %2823 = vmatprep.subr.bf16.mxu0 0
        %2824 = vmatpush1.bf16.msra.mxu0 0
        %2825 = vmatprep.subr.bf16.mxu0 0
        %2826 = vmatpush1.bf16.msra.mxu0 0
        %2827 = vmatprep.subr.bf16.mxu0 0
        %2828 = vmatpush1.bf16.msra.mxu0 0
        %2829 = vmatprep.subr.bf16.mxu0 0
        %2830 = vmatpush1.bf16.msra.mxu0 0
        %2831 = vmatprep.subr.bf16.mxu0 0
        %2832 = vmatpush1.bf16.msra.mxu0 0
        %2833 = vmatprep.subr.bf16.mxu0 0
        %2834 = vmatpush1.bf16.msra.mxu0 0
        %2835 = vmatprep.subr.bf16.mxu0 0
        %2836 = vmatpush1.bf16.msra.mxu0 0
        %2837 = vmatprep.subr.bf16.mxu0 0
        %2838 = vmatpush1.bf16.msra.mxu0 0
        %2839 = vmatprep.subr.bf16.mxu0 0
        %2840 = vmatpush1.bf16.msra.mxu0 0
        %2841 = vmatprep.mubr.bf16.mxu0 0
        %2842 = vmatmul.mubr.bf16.gmra.mrb[0].mxu0 %v2807
        %v2843 = vpop.f32.mrb[0].mxu0
        %v2844 = vadd.f32 %v2793, %v2843
        %v2845 = vpop.f32.mrb[0].mxu0
        %v2846 = vpop.f32.mrb[0].mxu0
        %v2847 = vpop.f32.mrb[0].mxu0
        %2848 = vdwg.mxu0
        %v2849 = vadd.f32 %v1557, %v2844
        %v2850 = vsel %vm428, %v2849, 0.0
        %2851 = vadd.xlane.f32.xlu0 %v2850
        %v2852 = vpop.xlane.xlu0 %2851
        %v2853 = vmul.f32 %v2852, %v432
        %v2854 = vsub.f32 %v2849, %v2853
        %v2855 = vmul.f32 %v2854, %v2854
        %v2856 = vsel %vm428, %v2855, 0.0
        %2857 = vadd.xlane.f32.xlu0 %v2856
        %v2858 = vpop.xlane.xlu0 %2857
        %v2859 = vmul.f32 %v2858, %v432
        %v2860 = vadd.f32 %v2859, 1e-05
        %v2861 = vrsqrt.pop %v2860
        %v2862 = vmul.f32 %v2854, %v2861
        %v2863 = vlaneseq
        %v2864 = vshrl.u32 %v2863, 7
        %v2865 = vsub.s32 0, %v2864
        %v2866 = vrot.slane %v426, %v2865
        %v2867 = vmul.f32 %v2862, %v2866
        %v2868 = vlaneseq
        %v2869 = vshrl.u32 %v2868, 7
        %v2870 = vsub.s32 1, %v2869
        %v2871 = vrot.slane %v426, %v2870
        %v2872 = vadd.f32 %v2867, %v2871
        %s2873 = scalar_lea.vmem [#allocation11], 80
        %v2874 = vld [vmem:[%s2873] sm:$0xf]
        %v2875 = vld [vmem:[%s2873 + $0x4] sm:$0xf]
        %v2876 = vld [vmem:[%s2873 + $0x8] sm:$0xf]
        %v2877 = vld [vmem:[%s2873 + $0xc] sm:$0xf]
        %v2878 = vpack.c.bf16 %v2872, %v2872
        %v2879 = vlaneseq
        %v2880 = vshrl.u32 %v2879, 7
        %v2881 = vsub.s32 5, %v2880
        %v2882 = vrot.slane %v427, %v2881
        %v2887 = vunpack.c.l.b16 %v2874
        %v2888 = vunpack.c.l.b16 %v2875
        %v2889 = vunpack.c.l.b16 %v2876
        %v2890 = vunpack.c.l.b16 %v2877
        %v2891 = vpack.c.b16 %v2888, %v2887
        %v2892 = vpack.c.b16 %v2890, %v2889
        %v2896 = vsel %vm428, %v2878, 0
        %2898 = vmatprep.subr.bf16.mxu0 0
        %2899 = vmatpush1.bf16.msra.mxu0 %v2891
        %2900 = vmatprep.subr.bf16.mxu0 0
        %2901 = vmatpush1.bf16.msra.mxu0 %v2892
        %2902 = vmatprep.subr.bf16.mxu0 0
        %2903 = vmatpush1.bf16.msra.mxu0 0
        %2904 = vmatprep.subr.bf16.mxu0 0
        %2905 = vmatpush1.bf16.msra.mxu0 0
        %2906 = vmatprep.subr.bf16.mxu0 0
        %2907 = vmatpush1.bf16.msra.mxu0 0
        %2908 = vmatprep.subr.bf16.mxu0 0
        %2909 = vmatpush1.bf16.msra.mxu0 0
        %2910 = vmatprep.subr.bf16.mxu0 0
        %2911 = vmatpush1.bf16.msra.mxu0 0
        %2912 = vmatprep.subr.bf16.mxu0 0
        %2913 = vmatpush1.bf16.msra.mxu0 0
        %2914 = vmatprep.subr.bf16.mxu0 0
        %2915 = vmatpush1.bf16.msra.mxu0 0
        %2916 = vmatprep.subr.bf16.mxu0 0
        %2917 = vmatpush1.bf16.msra.mxu0 0
        %2918 = vmatprep.subr.bf16.mxu0 0
        %2919 = vmatpush1.bf16.msra.mxu0 0
        %2920 = vmatprep.subr.bf16.mxu0 0
        %2921 = vmatpush1.bf16.msra.mxu0 0
        %2922 = vmatprep.subr.bf16.mxu0 0
        %2923 = vmatpush1.bf16.msra.mxu0 0
        %2924 = vmatprep.subr.bf16.mxu0 0
        %2925 = vmatpush1.bf16.msra.mxu0 0
        %2926 = vmatprep.subr.bf16.mxu0 0
        %2927 = vmatpush1.bf16.msra.mxu0 0
        %2928 = vmatprep.subr.bf16.mxu0 0
        %2929 = vmatpush1.bf16.msra.mxu0 0
        %2930 = vmatprep.mubr.bf16.mxu0 0
        %2931 = vmatmul.mubr.bf16.gmra.mrb[0].mxu0 %v2896
        %v2932 = vpop.f32.mrb[0].mxu0
        %v2933 = vadd.f32 %v2882, %v2932
        %v2934 = vpop.f32.mrb[0].mxu0
        %v2935 = vpop.f32.mrb[0].mxu0
        %v2936 = vpop.f32.mrb[0].mxu0
        %2937 = vdwg.mxu0
        %v2938 = vmul.f32 %v2933, 0.5
        %v2939 = vmul.f32 %v2933, %v2933
        %v2940 = vmul.f32 %v2939, %v2933
        %v2941 = vmul.f32 %v2940, 0.044715
        %v2942 = vadd.f32 %v2933, %v2941
        %v2943 = vmul.f32 %v2942, 0.7978846
        %v2944 = vtanh.pop %v2943
        %v2945 = vadd.f32 %v2944, 1.0
        %v2946 = vmul.f32 %v2938, %v2945
        %s2947 = scalar_lea.vmem [#allocation11], 96
        %v2948 = vld [vmem:[%s2947] sm:$0xf]
        %v2949 = vld [vmem:[%s2947 + $0x4] sm:$0xf]
        %v2950 = vld [vmem:[%s2947 + $0x8] sm:$0xf]
        %v2951 = vld [vmem:[%s2947 + $0xc] sm:$0xf]
        %v2952 = vpack.c.bf16 %v2946, %v2946
        %v2953 = vlaneseq
        %v2954 = vshrl.u32 %v2953, 7
        %v2955 = vsub.s32 6, %v2954
        %v2956 = vrot.slane %v427, %v2955
        %v2961 = vunpack.c.l.b16 %v2948
        %v2962 = vunpack.c.l.b16 %v2949
        %v2963 = vunpack.c.l.b16 %v2950
        %v2964 = vunpack.c.l.b16 %v2951
        %v2965 = vpack.c.b16 %v2962, %v2961
        %v2966 = vpack.c.b16 %v2964, %v2963
        %v2970 = vsel %vm428, %v2952, 0
        %2972 = vmatprep.subr.bf16.mxu0 0
        %2973 = vmatpush1.bf16.msra.mxu0 %v2965
        %2974 = vmatprep.subr.bf16.mxu0 0
        %2975 = vmatpush1.bf16.msra.mxu0 %v2966
        %2976 = vmatprep.subr.bf16.mxu0 0
        %2977 = vmatpush1.bf16.msra.mxu0 0
        %2978 = vmatprep.subr.bf16.mxu0 0
        %2979 = vmatpush1.bf16.msra.mxu0 0
        %2980 = vmatprep.subr.bf16.mxu0 0
        %2981 = vmatpush1.bf16.msra.mxu0 0
        %2982 = vmatprep.subr.bf16.mxu0 0
        %2983 = vmatpush1.bf16.msra.mxu0 0
        %2984 = vmatprep.subr.bf16.mxu0 0
        %2985 = vmatpush1.bf16.msra.mxu0 0
        %2986 = vmatprep.subr.bf16.mxu0 0
        %2987 = vmatpush1.bf16.msra.mxu0 0
        %2988 = vmatprep.subr.bf16.mxu0 0
        %2989 = vmatpush1.bf16.msra.mxu0 0
        %2990 = vmatprep.subr.bf16.mxu0 0
        %2991 = vmatpush1.bf16.msra.mxu0 0
        %2992 = vmatprep.subr.bf16.mxu0 0
        %2993 = vmatpush1.bf16.msra.mxu0 0
        %2994 = vmatprep.subr.bf16.mxu0 0
        %2995 = vmatpush1.bf16.msra.mxu0 0
        %2996 = vmatprep.subr.bf16.mxu0 0
        %2997 = vmatpush1.bf16.msra.mxu0 0
        %2998 = vmatprep.subr.bf16.mxu0 0
        %2999 = vmatpush1.bf16.msra.mxu0 0
        %3000 = vmatprep.subr.bf16.mxu0 0
        %3001 = vmatpush1.bf16.msra.mxu0 0
        %3002 = vmatprep.subr.bf16.mxu0 0
        %3003 = vmatpush1.bf16.msra.mxu0 0
        %3004 = vmatprep.mubr.bf16.mxu0 0
        %3005 = vmatmul.mubr.bf16.gmra.mrb[0].mxu0 %v2970
        %v3006 = vpop.f32.mrb[0].mxu0
        %v3007 = vadd.f32 %v2956, %v3006
        %v3008 = vpop.f32.mrb[0].mxu0
        %v3009 = vpop.f32.mrb[0].mxu0
        %v3010 = vpop.f32.mrb[0].mxu0
        %3011 = vdwg.mxu0
        %v3012 = vadd.f32 %v2849, %v3007
        %3013 = vst.msk [vmem:[%s420] sm:$0xff] %vm428, %v3012
        %s3014 = sand.u32 %s220, 1
        %s3015 = scalar_lea.sflag [#allocation5], %s3014
        %s3016 = sand.u32 %s220, 1
        %s3017 = smul.addr %s3016, 8
        %s3018 = scalar_lea.vmem [#allocation12], %s3017
        // Predicated region
        $region73: #{tpu_custom_call.1} parent=51 // pred_check
          %p3019 = pneg %p230
        $region74: #{tpu_custom_call.1} parent=51 // pred_check_branch
          %3021 = sbr.rel (%p3019) target = $region76
        $region75: #{tpu_custom_call.1} parent=51 // pred_region
          %s3023 = ssub.s32 128, 128
          %3024 = vsyncadd %s3015, %s3023
          %s3025 = smul.addr %s29, 128
          %s3026 = scalar_lea.hbm %s8, %s3025
          %s3028 = sshll.u32 %s3018, 4
          %s3029 = int_to_ptr.vmem [resolvable:$true] %s3028
          %3031 = dma.vmem_to_hbm [thread:$0]  %s3029, 128, %s3026, %s3015
        $region76: #{tpu_custom_call.1} parent=51 // pred_fallthru
          _
      $region52: #{tpu_custom_call.1} parent=5 // pred_fallthru
        _
      %p3032 = scmp.le.s32.totalorder 2, %s24
      // Predicated region
      $region77: #{tpu_custom_call.1} parent=5 // pred_check
        %p3033 = pneg %p3032
      $region78: #{tpu_custom_call.1} parent=5 // pred_check_branch
        %3035 = sbr.rel (%p3033) target = $region80
      $region79: #{tpu_custom_call.1} parent=5 // pred_region
        %s3036 = ssub.s32 %s24, 2
        // Predicated region
        $region81: #{tpu_custom_call.1} parent=79 // pred_check
          %p3037 = pneg %p236
        $region82: #{tpu_custom_call.1} parent=79 // pred_check_branch
          %3039 = sbr.rel (%p3037) target = $region84
        $region83: #{tpu_custom_call.1} parent=79 // pred_region
          %s3040 = sand.u32 %s221, 1
          %s3041 = scalar_lea.sflag [#allocation5], %s3040
          %s3042 = sand.u32 %s221, 1
          %s3043 = smul.addr %s3042, 8
          %s3044 = scalar_lea.vmem [#allocation12], %s3043
          %3045 = dma.done %s3041, 128
        $region84: #{tpu_custom_call.1} parent=79 // pred_fallthru
          _
      $region80: #{tpu_custom_call.1} parent=5 // pred_fallthru
        _
    $region6: #{tpu_custom_call.1} parent=1 // loop_footer
      %s28 = sadd.s32 1, %s24
    $region7: #{tpu_custom_call.1} parent=1 // loop_footer_branch
      %23 = sbr.rel target = $region3
    $region8: #{tpu_custom_call.1} parent=1 // loop_exit
      _
    %3046 = vsyncpa [#allocation4], 1
    %s3047 = scalar_lea.sflag [#allocation4], 1
    %3048 = vsyncpa %s3047, 1
    %3049 = vsyncpa [#allocation7], 1
    %s3050 = scalar_lea.sflag [#allocation7], 1
    %3051 = vsyncpa %s3050, 1
    %3052 = vsyncpa [#allocation10], 1
    %3053 = vsyncpa [#allocation5], 1
    %s3054 = scalar_lea.sflag [#allocation5], 1
    %3055 = vsyncpa %s3054, 1

// kernel: tpu_custom_call.1
$region0: #{tpu_custom_call.1}
  #allocation0 [shape = 'u32[]', space=smem, size = 0x4, offset = 0x4, fixed_abs, tag = 'smem constant byte address 0x4 - core index']
  #allocation1 [shape = 'u32[144,128]{1,0:T(1,128)}', space=vmem, size = 0x12000, scoped, tag = 'internal scratch']
  #allocation2 [shape = 'bf16[8,32]{1,0:T(8,128)(2,1)}', space=vmem, size = 0x800, scoped, tag = 'scratch operand']
  %s0 = inlined_call_operand.hbm [shape: f32[2,8,32], index: 0, kind: input, shape index: {}]
  %s1 = inlined_call_operand.hbm [shape: f32[2,8,32], index: 1, kind: input, shape index: {}]
  %s2 = inlined_call_operand.hbm [shape: f32[2,8,32], index: 2, kind: input, shape index: {}]
  %s3 = inlined_call_operand.hbm [shape: bf16[32,96], index: 3, kind: input, shape index: {}]
  %s4 = inlined_call_operand.vmem [shape: f32[1,96], index: 4, kind: input, shape index: {}]
  %s5 = inlined_call_operand.hbm [shape: bf16[7,32,32], index: 5, kind: input, shape index: {}]
  %s6 = inlined_call_operand.vmem [shape: f32[7,32], index: 6, kind: input, shape index: {}]
  %s7 = inlined_call_operand.vmem [shape: f32[10,32], index: 7, kind: input, shape index: {}]
  %s8 = inlined_call_operand.hbm [shape: f32[2,8,32], index: 8, kind: output, shape index: {}]
  %s9 = sld [smem:[#allocation0]]
  $region85: #{tpu_custom_call.1} parent=0
    _
  %s11 = ssub.s32 1, %s9
  %s12 = scalar_select 0, %s11, %s9
  $region1: #{tpu_custom_call.1} parent=0
    #allocation3 [shape = 'u8[8192]{0}', space=vmem, size = 0x2000, scoped, tag = 'input window, operand 0']
    #allocation4 [shape = 's32[2]{0}', space=sflag, size = 0x8, scoped, tag = 'scoped memory for tpu_custom_call.1']
    #allocation5 [shape = 's32[2]{0}', space=sflag, size = 0x8, scoped, tag = 'scoped memory for tpu_custom_call.1']
    #allocation6 [shape = 'u8[8192]{0}', space=vmem, size = 0x2000, scoped, tag = 'input window, operand 1']
    #allocation7 [shape = 's32[2]{0}', space=sflag, size = 0x8, scoped, tag = 'scoped memory for tpu_custom_call.1']
    #allocation8 [shape = 'u8[8192]{0}', space=vmem, size = 0x2000, scoped, tag = 'input window, operand 2']
    #allocation9 [shape = 'u8[8192]{0}', space=vmem, size = 0x2000, scoped, tag = 'input window, operand 3, single buffered']
    #allocation10 [shape = 's32[1]{0}', space=sflag, size = 0x4, scoped, tag = 'scoped memory for tpu_custom_call.1']
    #allocation11 [shape = 'u8[57344]{0}', space=vmem, size = 0xe000, scoped, tag = 'input window, operand 5, single buffered']
    #allocation12 [shape = 'u8[8192]{0}', space=vmem, size = 0x2000, scoped, tag = 'output window, operand 0']
    %13 = vsyncpa [#allocation4], 0
    %s14 = scalar_lea.sflag [#allocation4], 1
    %15 = vsyncpa %s14, 0
    %16 = vsyncpa [#allocation7], 0
    %s17 = scalar_lea.sflag [#allocation7], 1
    %18 = vsyncpa %s17, 0
    %19 = vsyncpa [#allocation10], 0
    %20 = vsyncpa [#allocation5], 0
    %s21 = scalar_lea.sflag [#allocation5], 1
    %22 = vsyncpa %s21, 0
    loop: start=0, step=1, limit=4
    $region2: #{tpu_custom_call.1} parent=1 // loop_pre_header
      _
    $region3: #{tpu_custom_call.1} parent=1 // loop_header
      %s24 = sphi 0, %s28
      %p25 = scmp.ge.s32.totalorder %s24, 4
      %s34 = sphi 0, %s36
      %s37 = sphi 0, %s34
      %s38 = sphi 0, %s37
      %s54 = sphi 0, %s38
      %s60 = sphi 0, %s62
      %s63 = sphi 0, %s60
      %s64 = sphi 0, %s63
      %s80 = sphi 0, %s64
      %s86 = sphi 0, %s88
      %s89 = sphi 0, %s86
      %s90 = sphi 0, %s89
      %s106 = sphi 0, %s90
      %s110 = sphi 0, %s110
      %s112 = sphi 0, %s110
      %s113 = sphi 0, %s112
      %s127 = sphi 0, %s113
      %s131 = sphi 0, %s131
      %s133 = sphi 0, %s131
      %s134 = sphi 0, %s133
      %s148 = sphi 0, %s134
      %s152 = sphi 0, %s152
      %s154 = sphi 0, %s152
      %s155 = sphi 0, %s154
      %s169 = sphi 0, %s155
      %s173 = sphi 0, %s173
      %s175 = sphi 0, %s173
      %s176 = sphi 0, %s175
      %s190 = sphi 0, %s176
      %s194 = sphi 0, %s194
      %s196 = sphi 0, %s194
      %s197 = sphi 0, %s196
      %s211 = sphi 0, %s197
      %s217 = sphi 0, %s219
      %s220 = sphi 0, %s217
      %s221 = sphi 0, %s220
      %s237 = sphi 0, %s221
    $region4: #{tpu_custom_call.1} parent=1 // loop_header_branch
      %27 = sbr.rel (%p25) target = $region8
    $region5: #{tpu_custom_call.1} parent=1 // loop_body
      %s29 = ssub.s32 %s24, 1
      %s30 = ssub.s32 %s24, 2
      %s31 = sadd.s32 %s24, 1
      %s32 = ssub.s32 %s24, %s31
      %p33 = scmp.eq.s32.totalorder %s32, 0
      %s35 = sadd.s32 %s34, 1
      %s36 = scalar_select %p33, %s34, %s35
      %p39 = pneg %p33
      %p40 = scmp.eq.s32.totalorder %s24, 1
      %p41 = por %p39, %p40
      %p42 = scmp.ne.s32.totalorder %s34, %s37
      %p43 = scmp.eq.s32.totalorder %s24, 0
      %p44 = por %p42, %p43
      %p45 = scmp.ne.s32.totalorder %s34, %s37
      %p46 = scmp.eq.s32.totalorder %s29, 1
      %p47 = por %p45, %p46
      %p48 = scmp.ne.s32.totalorder %s37, %s38
      %p49 = scmp.eq.s32.totalorder %s29, 0
      %p50 = por %p48, %p49
      %p51 = scmp.ne.s32.totalorder %s37, %s38
      %p52 = scmp.eq.s32.totalorder %s30, 1
      %p53 = por %p51, %p52
      %p55 = scmp.ne.s32.totalorder %s38, %s54
      %p56 = scmp.eq.s32.totalorder %s30, 0
      %p57 = por %p55, %p56
      %s58 = ssub.s32 %s24, %s31
      %p59 = scmp.eq.s32.totalorder %s58, 0
      %s61 = sadd.s32 %s60, 1
      %s62 = scalar_select %p59, %s60, %s61
      %p65 = pneg %p59
      %p66 = scmp.eq.s32.totalorder %s24, 1
      %p67 = por %p65, %p66
      %p68 = scmp.ne.s32.totalorder %s60, %s63
      %p69 = scmp.eq.s32.totalorder %s24, 0
      %p70 = por %p68, %p69
      %p71 = scmp.ne.s32.totalorder %s60, %s63
      %p72 = scmp.eq.s32.totalorder %s29, 1
      %p73 = por %p71, %p72
      %p74 = scmp.ne.s32.totalorder %s63, %s64
      %p75 = scmp.eq.s32.totalorder %s29, 0
      %p76 = por %p74, %p75
      %p77 = scmp.ne.s32.totalorder %s63, %s64
      %p78 = scmp.eq.s32.totalorder %s30, 1
      %p79 = por %p77, %p78
      %p81 = scmp.ne.s32.totalorder %s64, %s80
      %p82 = scmp.eq.s32.totalorder %s30, 0
      %p83 = por %p81, %p82
      %s84 = ssub.s32 %s24, %s31
      %p85 = scmp.eq.s32.totalorder %s84, 0
      %s87 = sadd.s32 %s86, 1
      %s88 = scalar_select %p85, %s86, %s87
      %p91 = pneg %p85
      %p92 = scmp.eq.s32.totalorder %s24, 1
      %p93 = por %p91, %p92
      %p94 = scmp.ne.s32.totalorder %s86, %s89
      %p95 = scmp.eq.s32.totalorder %s24, 0
      %p96 = por %p94, %p95
      %p97 = scmp.ne.s32.totalorder %s86, %s89
      %p98 = scmp.eq.s32.totalorder %s29, 1
      %p99 = por %p97, %p98
      %p100 = scmp.ne.s32.totalorder %s89, %s90
      %p101 = scmp.eq.s32.totalorder %s29, 0
      %p102 = por %p100, %p101
      %p103 = scmp.ne.s32.totalorder %s89, %s90
      %p104 = scmp.eq.s32.totalorder %s30, 1
      %p105 = por %p103, %p104
      %p107 = scmp.ne.s32.totalorder %s90, %s106
      %p108 = scmp.eq.s32.totalorder %s30, 0
      %p109 = por %p107, %p108
      %s111 = sadd.s32 %s110, 1
      %p114 = scmp.eq.s32.totalorder %s24, 1
      %p115 = scmp.ne.s32.totalorder %s110, %s112
      %p116 = scmp.eq.s32.totalorder %s24, 0
      %p117 = por %p115, %p116
      %p118 = scmp.ne.s32.totalorder %s110, %s112
      %p119 = scmp.eq.s32.totalorder %s29, 1
      %p120 = por %p118, %p119
      %p121 = scmp.ne.s32.totalorder %s112, %s113
      %p122 = scmp.eq.s32.totalorder %s29, 0
      %p123 = por %p121, %p122
      %p124 = scmp.ne.s32.totalorder %s112, %s113
      %p125 = scmp.eq.s32.totalorder %s30, 1
      %p126 = por %p124, %p125
      %p128 = scmp.ne.s32.totalorder %s113, %s127
      %p129 = scmp.eq.s32.totalorder %s30, 0
      %p130 = por %p128, %p129
      %s132 = sadd.s32 %s131, 1
      %p135 = scmp.eq.s32.totalorder %s24, 1
      %p136 = scmp.ne.s32.totalorder %s131, %s133
      %p137 = scmp.eq.s32.totalorder %s24, 0
      %p138 = por %p136, %p137
      %p139 = scmp.ne.s32.totalorder %s131, %s133
      %p140 = scmp.eq.s32.totalorder %s29, 1
      %p141 = por %p139, %p140
      %p142 = scmp.ne.s32.totalorder %s133, %s134
      %p143 = scmp.eq.s32.totalorder %s29, 0
      %p144 = por %p142, %p143
      %p145 = scmp.ne.s32.totalorder %s133, %s134
      %p146 = scmp.eq.s32.totalorder %s30, 1
      %p147 = por %p145, %p146
      %p149 = scmp.ne.s32.totalorder %s134, %s148
      %p150 = scmp.eq.s32.totalorder %s30, 0
      %p151 = por %p149, %p150
      %s153 = sadd.s32 %s152, 1
      %p156 = scmp.eq.s32.totalorder %s24, 1
      %p157 = scmp.ne.s32.totalorder %s152, %s154
      %p158 = scmp.eq.s32.totalorder %s24, 0
      %p159 = por %p157, %p158
      %p160 = scmp.ne.s32.totalorder %s152, %s154
      %p161 = scmp.eq.s32.totalorder %s29, 1
      %p162 = por %p160, %p161
      %p163 = scmp.ne.s32.totalorder %s154, %s155
      %p164 = scmp.eq.s32.totalorder %s29, 0
      %p165 = por %p163, %p164
      %p166 = scmp.ne.s32.totalorder %s154, %s155
      %p167 = scmp.eq.s32.totalorder %s30, 1
      %p168 = por %p166, %p167
      %p170 = scmp.ne.s32.totalorder %s155, %s169
      %p171 = scmp.eq.s32.totalorder %s30, 0
      %p172 = por %p170, %p171
      %s174 = sadd.s32 %s173, 1
      %p177 = scmp.eq.s32.totalorder %s24, 1
      %p178 = scmp.ne.s32.totalorder %s173, %s175
      %p179 = scmp.eq.s32.totalorder %s24, 0
      %p180 = por %p178, %p179
      %p181 = scmp.ne.s32.totalorder %s173, %s175
      %p182 = scmp.eq.s32.totalorder %s29, 1
      %p183 = por %p181, %p182
      %p184 = scmp.ne.s32.totalorder %s175, %s176
      %p185 = scmp.eq.s32.totalorder %s29, 0
      %p186 = por %p184, %p185
      %p187 = scmp.ne.s32.totalorder %s175, %s176
      %p188 = scmp.eq.s32.totalorder %s30, 1
      %p189 = por %p187, %p188
      %p191 = scmp.ne.s32.totalorder %s176, %s190
      %p192 = scmp.eq.s32.totalorder %s30, 0
      %p193 = por %p191, %p192
      %s195 = sadd.s32 %s194, 1
      %p198 = scmp.eq.s32.totalorder %s24, 1
      %p199 = scmp.ne.s32.totalorder %s194, %s196
      %p200 = scmp.eq.s32.totalorder %s24, 0
      %p201 = por %p199, %p200
      %p202 = scmp.ne.s32.totalorder %s194, %s196
      %p203 = scmp.eq.s32.totalorder %s29, 1
      %p204 = por %p202, %p203
      %p205 = scmp.ne.s32.totalorder %s196, %s197
      %p206 = scmp.eq.s32.totalorder %s29, 0
      %p207 = por %p205, %p206
      %p208 = scmp.ne.s32.totalorder %s196, %s197
      %p209 = scmp.eq.s32.totalorder %s30, 1
      %p210 = por %p208, %p209
      %p212 = scmp.ne.s32.totalorder %s197, %s211
      %p213 = scmp.eq.s32.totalorder %s30, 0
      %p214 = por %p212, %p213
      %s215 = ssub.s32 %s24, %s31
      %p216 = scmp.eq.s32.totalorder %s215, 0
      %s218 = sadd.s32 %s217, 1
      %s219 = scalar_select %p216, %s217, %s218
      %p222 = pneg %p216
      %p223 = scmp.eq.s32.totalorder %s24, 1
      %p224 = por %p222, %p223
      %p225 = scmp.ne.s32.totalorder %s217, %s220
      %p226 = scmp.eq.s32.totalorder %s24, 0
      %p227 = por %p225, %p226
      %p228 = scmp.ne.s32.totalorder %s217, %s220
      %p229 = scmp.eq.s32.totalorder %s29, 1
      %p230 = por %p228, %p229
      %p231 = scmp.ne.s32.totalorder %s220, %s221
      %p232 = scmp.eq.s32.totalorder %s29, 0
      %p233 = por %p231, %p232
      %p234 = scmp.ne.s32.totalorder %s220, %s221
      %p235 = scmp.eq.s32.totalorder %s30, 1
      %p236 = por %p234, %p235
      %p238 = scmp.ne.s32.totalorder %s221, %s237
      %p239 = scmp.eq.s32.totalorder %s30, 0
      %p240 = por %p238, %p239
      %p241 = scmp.le.s32.totalorder 1, %s24
      %p242 = scmp.lt.s32.totalorder %s24, 3
      %p243 = pnand %p241, %p242
      %p244 = pneg %p243
      // Predicated region
      $region9: #{tpu_custom_call.1} parent=5 // pred_check
        _
      $region10: #{tpu_custom_call.1} parent=5 // pred_check_branch
        %246 = sbr.rel (%p243) target = $region12
      $region11: #{tpu_custom_call.1} parent=5 // pred_region
        %s247 = ssub.s32 %s24, 1
        // Predicated region
        $region13: #{tpu_custom_call.1} parent=11 // pred_check
          %p248 = pneg %p123
        $region14: #{tpu_custom_call.1} parent=11 // pred_check_branch
          %250 = sbr.rel (%p248) target = $region16
        $region15: #{tpu_custom_call.1} parent=11 // pred_region
          %s252 = ssub.s32 256, 256
          %253 = vsyncadd [#allocation10], %s252
          %s254 = sshll.u32 [#allocation9], 4
          %s255 = int_to_ptr.vmem [resolvable:$true] %s254
          %260 = dma.hbm_to_vmem [thread:$0]  %s3, 256, %s255, [#allocation10], 64, 64, 4
        $region16: #{tpu_custom_call.1} parent=11 // pred_fallthru
          _
        // Predicated region
        $region17: #{tpu_custom_call.1} parent=11 // pred_check
          %p261 = pneg %p144
        $region18: #{tpu_custom_call.1} parent=11 // pred_check_branch
          %263 = sbr.rel (%p261) target = $region20
        $region19: #{tpu_custom_call.1} parent=11 // pred_region
          _
        $region20: #{tpu_custom_call.1} parent=11 // pred_fallthru
          _
        // Predicated region
        $region21: #{tpu_custom_call.1} parent=11 // pred_check
          %p264 = pneg %p165
        $region22: #{tpu_custom_call.1} parent=11 // pred_check_branch
          %266 = sbr.rel (%p264) target = $region24
        $region23: #{tpu_custom_call.1} parent=11 // pred_region
          %s268 = ssub.s32 1792, 1792
          %269 = vsyncadd [#allocation10], %s268
          %s270 = sshll.u32 [#allocation11], 4
          %s271 = int_to_ptr.vmem [resolvable:$true] %s270
          %276 = dma.hbm_to_vmem [thread:$0]  %s5, 1792, %s271, [#allocation10], 64, 64, 4
        $region24: #{tpu_custom_call.1} parent=11 // pred_fallthru
          _
        // Predicated region
        $region25: #{tpu_custom_call.1} parent=11 // pred_check
          %p277 = pneg %p186
        $region26: #{tpu_custom_call.1} parent=11 // pred_check_branch
          %279 = sbr.rel (%p277) target = $region28
        $region27: #{tpu_custom_call.1} parent=11 // pred_region
          _
        $region28: #{tpu_custom_call.1} parent=11 // pred_fallthru
          _
        // Predicated region
        $region29: #{tpu_custom_call.1} parent=11 // pred_check
          %p280 = pneg %p207
        $region30: #{tpu_custom_call.1} parent=11 // pred_check_branch
          %282 = sbr.rel (%p280) target = $region32
        $region31: #{tpu_custom_call.1} parent=11 // pred_region
          _
        $region32: #{tpu_custom_call.1} parent=11 // pred_fallthru
          _
      $region12: #{tpu_custom_call.1} parent=5 // pred_fallthru
        _
      %p283 = scmp.lt.s32.totalorder %s24, 2
      // Predicated region
      $region33: #{tpu_custom_call.1} parent=5 // pred_check
        %p284 = pneg %p283
      $region34: #{tpu_custom_call.1} parent=5 // pred_check_branch
        %286 = sbr.rel (%p284) target = $region36
      $region35: #{tpu_custom_call.1} parent=5 // pred_region
        // Predicated region
        $region37: #{tpu_custom_call.1} parent=35 // pred_check
          %p287 = pneg %p44
        $region38: #{tpu_custom_call.1} parent=35 // pred_check_branch
          %289 = sbr.rel (%p287) target = $region40
        $region39: #{tpu_custom_call.1} parent=35 // pred_region
          %s290 = sand.u32 %s34, 1
          %s291 = scalar_lea.sflag [#allocation4], %s290
          %s292 = sand.u32 %s34, 1
          %s293 = smul.addr %s292, 8
          %s294 = scalar_lea.vmem [#allocation3], %s293
          %s296 = ssub.s32 128, 128
          %297 = vsyncadd %s291, %s296
          %s298 = smul.addr %s24, 128
          %s299 = scalar_lea.hbm %s0, %s298
          %s301 = sshll.u32 %s294, 4
          %s302 = int_to_ptr.vmem [resolvable:$true] %s301
          %304 = dma.hbm_to_vmem [thread:$0]  %s299, 128, %s302, %s291
        $region40: #{tpu_custom_call.1} parent=35 // pred_fallthru
          _
        // Predicated region
        $region41: #{tpu_custom_call.1} parent=35 // pred_check
          %p305 = pneg %p70
        $region42: #{tpu_custom_call.1} parent=35 // pred_check_branch
          %307 = sbr.rel (%p305) target = $region44
        $region43: #{tpu_custom_call.1} parent=35 // pred_region
          %s308 = sand.u32 %s24, 1
          %s309 = scalar_lea.sflag [#allocation7], %s308
          %s310 = sand.u32 %s60, 1
          %s311 = smul.addr %s310, 8
          %s312 = scalar_lea.vmem [#allocation6], %s311
          %s314 = ssub.s32 128, 128
          %315 = vsyncadd %s309, %s314
          %s316 = smul.addr %s24, 128
          %s317 = scalar_lea.hbm %s1, %s316
          %s319 = sshll.u32 %s312, 4
          %s320 = int_to_ptr.vmem [resolvable:$true] %s319
          %322 = dma.hbm_to_vmem [thread:$0]  %s317, 128, %s320, %s309
        $region44: #{tpu_custom_call.1} parent=35 // pred_fallthru
          _
        // Predicated region
        $region45: #{tpu_custom_call.1} parent=35 // pred_check
          %p323 = pneg %p96
        $region46: #{tpu_custom_call.1} parent=35 // pred_check_branch
          %325 = sbr.rel (%p323) target = $region48
        $region47: #{tpu_custom_call.1} parent=35 // pred_region
          %s326 = sand.u32 %s24, 1
          %s327 = scalar_lea.sflag [#allocation7], %s326
          %s328 = sand.u32 %s86, 1
          %s329 = smul.addr %s328, 8
          %s330 = scalar_lea.vmem [#allocation8], %s329
          %s332 = ssub.s32 128, 128
          %333 = vsyncadd %s327, %s332
          %s334 = smul.addr %s24, 128
          %s335 = scalar_lea.hbm %s2, %s334
          %s337 = sshll.u32 %s330, 4
          %s338 = int_to_ptr.vmem [resolvable:$true] %s337
          %340 = dma.hbm_to_vmem [thread:$0]  %s335, 128, %s338, %s327
        $region48: #{tpu_custom_call.1} parent=35 // pred_fallthru
          _
      $region36: #{tpu_custom_call.1} parent=5 // pred_fallthru
        _
      %p341 = scmp.le.s32.totalorder 1, %s24
      %p342 = scmp.lt.s32.totalorder %s24, 3
      %p343 = pnand %p341, %p342
      %p344 = pneg %p343
      // Predicated region
      $region49: #{tpu_custom_call.1} parent=5 // pred_check
        _
      $region50: #{tpu_custom_call.1} parent=5 // pred_check_branch
        %346 = sbr.rel (%p343) target = $region52
      $region51: #{tpu_custom_call.1} parent=5 // pred_region
        %s347 = ssub.s32 %s24, 1
        %s348 = sand.u32 %s37, 1
        %s349 = scalar_lea.sflag [#allocation4], %s348
        %s350 = sand.u32 %s37, 1
        %s351 = smul.addr %s350, 8
        %s352 = scalar_lea.vmem [#allocation3], %s351
        // Predicated region
        $region53: #{tpu_custom_call.1} parent=51 // pred_check
          %p353 = pneg %p50
        $region54: #{tpu_custom_call.1} parent=51 // pred_check_branch
          %355 = sbr.rel (%p353) target = $region56
        $region55: #{tpu_custom_call.1} parent=51 // pred_region
          %356 = dma.done %s349, 128
        $region56: #{tpu_custom_call.1} parent=51 // pred_fallthru
          _
        %s357 = sand.u32 %s29, 1
        %s358 = scalar_lea.sflag [#allocation7], %s357
        %s359 = sand.u32 %s63, 1
        %s360 = smul.addr %s359, 8
        %s361 = scalar_lea.vmem [#allocation6], %s360
        // Predicated region
        $region57: #{tpu_custom_call.1} parent=51 // pred_check
          %p362 = pneg %p76
        $region58: #{tpu_custom_call.1} parent=51 // pred_check_branch
          %364 = sbr.rel (%p362) target = $region60
        $region59: #{tpu_custom_call.1} parent=51 // pred_region
          %365 = dma.done %s358, 128
        $region60: #{tpu_custom_call.1} parent=51 // pred_fallthru
          _
        %s366 = sand.u32 %s29, 1
        %s367 = scalar_lea.sflag [#allocation7], %s366
        %s368 = sand.u32 %s89, 1
        %s369 = smul.addr %s368, 8
        %s370 = scalar_lea.vmem [#allocation8], %s369
        // Predicated region
        $region61: #{tpu_custom_call.1} parent=51 // pred_check
          %p371 = pneg %p102
        $region62: #{tpu_custom_call.1} parent=51 // pred_check_branch
          %373 = sbr.rel (%p371) target = $region64
        $region63: #{tpu_custom_call.1} parent=51 // pred_region
          %374 = dma.done %s367, 128
        $region64: #{tpu_custom_call.1} parent=51 // pred_fallthru
          _
        // Predicated region
        $region65: #{tpu_custom_call.1} parent=51 // pred_check
          %p375 = pneg %p123
        $region66: #{tpu_custom_call.1} parent=51 // pred_check_branch
          %377 = sbr.rel (%p375) target = $region68
        $region67: #{tpu_custom_call.1} parent=51 // pred_region
          %378 = dma.done [#allocation10], 256
        $region68: #{tpu_custom_call.1} parent=51 // pred_fallthru
          _
        // Predicated region
        $region69: #{tpu_custom_call.1} parent=51 // pred_check
          %p379 = pneg %p165
        $region70: #{tpu_custom_call.1} parent=51 // pred_check_branch
          %381 = sbr.rel (%p379) target = $region72
        $region71: #{tpu_custom_call.1} parent=51 // pred_region
          %382 = dma.done [#allocation10], 1792
        $region72: #{tpu_custom_call.1} parent=51 // pred_fallthru
          _
        %s383 = sand.u32 %s37, 1
        %s384 = scalar_lea.sflag [#allocation4], %s383
        %s385 = sand.u32 %s37, 1
        %s386 = smul.addr %s385, 8
        %s387 = scalar_lea.vmem [#allocation3], %s386
        %p388 = pneg %p50
        %p389 = pneg %p47
        %s390 = sand.u32 %s29, 1
        %s391 = scalar_lea.sflag [#allocation7], %s390
        %s392 = sand.u32 %s63, 1
        %s393 = smul.addr %s392, 8
        %s394 = scalar_lea.vmem [#allocation6], %s393
        %p395 = pneg %p76
        %p396 = pneg %p73
        %s397 = sand.u32 %s29, 1
        %s398 = scalar_lea.sflag [#allocation7], %s397
        %s399 = sand.u32 %s89, 1
        %s400 = smul.addr %s399, 8
        %s401 = scalar_lea.vmem [#allocation8], %s400
        %p402 = pneg %p102
        %p403 = pneg %p99
        %p404 = pneg %p123
        %p405 = pneg %p120
        %p406 = pneg %p144
        %p407 = pneg %p141
        %p408 = pneg %p165
        %p409 = pneg %p162
        %p410 = pneg %p186
        %p411 = pneg %p183
        %p412 = pneg %p207
        %p413 = pneg %p204
        %p414 = pneg %p233
        %p415 = pneg %p230
        %s416 = sand.u32 %s220, 1
        %s417 = scalar_lea.sflag [#allocation5], %s416
        %s418 = sand.u32 %s220, 1
        %s419 = smul.addr %s418, 8
        %s420 = scalar_lea.vmem [#allocation12], %s419
        %v422 = vld [vmem:[%s352] sm:$0xff]
        %v423 = vld [vmem:[%s361] sm:$0xff]
        %v424 = vld [vmem:[%s370] sm:$0xff]
        %v425 = vld [vmem:[%s7] sm:$0xff]
        %v426 = vld [vmem:[%s7 + $0x8] sm:$0x3]
        %v427 = vld [vmem:[%s6] sm:$0x7f]
        %vm428 = vcmask 261120
        %v429 = vsel %vm428, %v424, 0.0
        %430 = vadd.xlane.f32.xlu0 %v429
        %v431 = vpop.xlane.xlu0 %430
        %v432 = vrcp.pop 32.0
        %v433 = vmul.f32 %v431, %v432
        %v434 = vsub.f32 %v424, %v433
        %v435 = vmul.f32 %v434, %v434
        %v436 = vsel %vm428, %v435, 0.0
        %437 = vadd.xlane.f32.xlu0 %v436
        %v438 = vpop.xlane.xlu0 %437
        %v439 = vmul.f32 %v438, %v432
        %v440 = vadd.f32 %v439, 1e-05
        %v441 = vrsqrt.pop %v440
        %v442 = vmul.f32 %v434, %v441
        %v443 = vlaneseq
        %v444 = vshrl.u32 %v443, 7
        %v445 = vsub.s32 0, %v444
        %v446 = vrot.slane %v425, %v445
        %v447 = vmul.f32 %v442, %v446
        %v448 = vlaneseq
        %v449 = vshrl.u32 %v448, 7
        %v450 = vsub.s32 1, %v449
        %v451 = vrot.slane %v425, %v450
        %v452 = vadd.f32 %v447, %v451
        %v453 = vld [vmem:[#allocation9] sm:$0xf]
        %v454 = vld [vmem:[#allocation9 + $0x4] sm:$0xf]
        %v455 = vld [vmem:[#allocation9 + $0x8] sm:$0xf]
        %v456 = vld [vmem:[#allocation9 + $0xc] sm:$0xf]
        %v457 = vld [vmem:[%s4] sm:$0x1]
        %v458 = vpack.c.bf16 %v452, %v452
        %v460 = vlaneseq
        %v461 = vshrl.u32 %v460, 7
        %v462 = vsub.s32 0, %v461
        %v463 = vrot.slane %v457, %v462
        %v469 = vunpack.c.l.b16 %v453
        %v470 = vunpack.c.l.b16 %v454
        %v471 = vunpack.c.l.b16 %v455
        %v472 = vunpack.c.l.b16 %v456
        %v473 = vpack.c.b16 %v470, %v469
        %v474 = vpack.c.b16 %v472, %v471
        %v478 = vsel %vm428, %v458, 0
        %480 = vmatprep.subr.bf16.mxu0 0
        %481 = vmatpush1.bf16.msra.mxu0 %v473
        %482 = vmatprep.subr.bf16.mxu0 0
        %483 = vmatpush1.bf16.msra.mxu0 %v474
        %484 = vmatprep.subr.bf16.mxu0 0
        %485 = vmatpush1.bf16.msra.mxu0 0
        %486 = vmatprep.subr.bf16.mxu0 0
        %487 = vmatpush1.bf16.msra.mxu0 0
        %488 = vmatprep.subr.bf16.mxu0 0
        %489 = vmatpush1.bf16.msra.mxu0 0
        %490 = vmatprep.subr.bf16.mxu0 0
        %491 = vmatpush1.bf16.msra.mxu0 0
        %492 = vmatprep.subr.bf16.mxu0 0
        %493 = vmatpush1.bf16.msra.mxu0 0
        %494 = vmatprep.subr.bf16.mxu0 0
        %495 = vmatpush1.bf16.msra.mxu0 0
        %496 = vmatprep.subr.bf16.mxu0 0
        %497 = vmatpush1.bf16.msra.mxu0 0
        %498 = vmatprep.subr.bf16.mxu0 0
        %499 = vmatpush1.bf16.msra.mxu0 0
        %500 = vmatprep.subr.bf16.mxu0 0
        %501 = vmatpush1.bf16.msra.mxu0 0
        %502 = vmatprep.subr.bf16.mxu0 0
        %503 = vmatpush1.bf16.msra.mxu0 0
        %504 = vmatprep.subr.bf16.mxu0 0
        %505 = vmatpush1.bf16.msra.mxu0 0
        %506 = vmatprep.subr.bf16.mxu0 0
        %507 = vmatpush1.bf16.msra.mxu0 0
        %508 = vmatprep.subr.bf16.mxu0 0
        %509 = vmatpush1.bf16.msra.mxu0 0
        %510 = vmatprep.subr.bf16.mxu0 0
        %511 = vmatpush1.bf16.msra.mxu0 0
        %512 = vmatprep.mubr.bf16.mxu0 0
        %513 = vmatmul.mubr.bf16.gmra.mrb[0].mxu0 %v478
        %v514 = vpop.f32.mrb[0].mxu0
        %v515 = vadd.f32 %v463, %v514
        %v516 = vpop.f32.mrb[0].mxu0
        %v517 = vpop.f32.mrb[0].mxu0
        %v518 = vpop.f32.mrb[0].mxu0
        %519 = vdwg.mxu0
        %v520 = vpack.c.bf16 %v515, %v515
        %522 = vrot.lane.b32.xlu0 %v520, 124
        %v523 = vpop.permute.xlu0 %522
        %524 = vrot.lane.b32.xlu0 %v520, 120
        %v525 = vpop.permute.xlu0 %524
        %526 = vrot.lane.b32.xlu0 %v520, 116
        %v527 = vpop.permute.xlu0 %526
        %528 = vrot.lane.b32.xlu0 %v520, 112
        %v529 = vpop.permute.xlu0 %528
        %530 = vrot.lane.b32.xlu0 %v520, 108
        %v531 = vpop.permute.xlu0 %530
        %532 = vrot.lane.b32.xlu0 %v520, 104
        %v533 = vpop.permute.xlu0 %532
        %534 = vrot.lane.b32.xlu0 %v520, 100
        %v535 = vpop.permute.xlu0 %534
        %536 = vrot.lane.b32.xlu0 %v520, 96
        %v537 = vpop.permute.xlu0 %536
        %vm538 = vcmask 31744
        %v540 = vsel %vm538, %v520, 0
        %v543 = vsel %vm538, %v537, 0
        %545 = vmatprep.subr.bf16.mxu0 0
        %546 = vmatpush1.bf16.xpose.msra.mxu0 %v543
        %547 = vmatprep.subr.bf16.mxu0 0
        %548 = vmatpush1.bf16.xpose.msra.mxu0 0
        %549 = vmatprep.subr.bf16.mxu0 0
        %550 = vmatpush1.bf16.xpose.msra.mxu0 0
        %551 = vmatprep.subr.bf16.mxu0 0
        %552 = vmatpush1.bf16.xpose.msra.mxu0 0
        %553 = vmatprep.subr.bf16.mxu0 0
        %554 = vmatpush1.bf16.xpose.msra.mxu0 0
        %555 = vmatprep.subr.bf16.mxu0 0
        %556 = vmatpush1.bf16.xpose.msra.mxu0 0
        %557 = vmatprep.subr.bf16.mxu0 0
        %558 = vmatpush1.bf16.xpose.msra.mxu0 0
        %559 = vmatprep.subr.bf16.mxu0 0
        %560 = vmatpush1.bf16.xpose.msra.mxu0 0
        %561 = vmatprep.subr.bf16.mxu0 0
        %562 = vmatpush1.bf16.xpose.msra.mxu0 0
        %563 = vmatprep.subr.bf16.mxu0 0
        %564 = vmatpush1.bf16.xpose.msra.mxu0 0
        %565 = vmatprep.subr.bf16.mxu0 0
        %566 = vmatpush1.bf16.xpose.msra.mxu0 0
        %567 = vmatprep.subr.bf16.mxu0 0
        %568 = vmatpush1.bf16.xpose.msra.mxu0 0
        %569 = vmatprep.subr.bf16.mxu0 0
        %570 = vmatpush1.bf16.xpose.msra.mxu0 0
        %571 = vmatprep.subr.bf16.mxu0 0
        %572 = vmatpush1.bf16.xpose.msra.mxu0 0
        %573 = vmatprep.subr.bf16.mxu0 0
        %574 = vmatpush1.bf16.xpose.msra.mxu0 0
        %575 = vmatprep.subr.bf16.mxu0 0
        %576 = vmatpush1.bf16.xpose.msra.mxu0 0
        %577 = vmatprep.mubr.bf16.mxu0 0
        %578 = vmatmul.mubr.bf16.gmra.mrb[0].mxu0 %v540
        %v579 = vpop.f32.mrb[0].mxu0
        %v580 = vadd.f32 0.0, %v579
        %v581 = vpop.f32.mrb[0].mxu0
        %v582 = vpop.f32.mrb[0].mxu0
        %v583 = vpop.f32.mrb[0].mxu0
        %584 = vdwg.mxu0
        %585 = vrot.lane.b32.xlu0 %v523, 96
        %v586 = vpop.permute.xlu0 %585
        %v588 = vsel %vm538, %v523, 0
        %v591 = vsel %vm538, %v586, 0
        %593 = vmatprep.subr.bf16.mxu0 0
        %594 = vmatpush1.bf16.xpose.msra.mxu0 %v591
        %595 = vmatprep.subr.bf16.mxu0 0
        %596 = vmatpush1.bf16.xpose.msra.mxu0 0
        %597 = vmatprep.subr.bf16.mxu0 0
        %598 = vmatpush1.bf16.xpose.msra.mxu0 0
        %599 = vmatprep.subr.bf16.mxu0 0
        %600 = vmatpush1.bf16.xpose.msra.mxu0 0
        %601 = vmatprep.subr.bf16.mxu0 0
        %602 = vmatpush1.bf16.xpose.msra.mxu0 0
        %603 = vmatprep.subr.bf16.mxu0 0
        %604 = vmatpush1.bf16.xpose.msra.mxu0 0
        %605 = vmatprep.subr.bf16.mxu0 0
        %606 = vmatpush1.bf16.xpose.msra.mxu0 0
        %607 = vmatprep.subr.bf16.mxu0 0
        %608 = vmatpush1.bf16.xpose.msra.mxu0 0
        %609 = vmatprep.subr.bf16.mxu0 0
        %610 = vmatpush1.bf16.xpose.msra.mxu0 0
        %611 = vmatprep.subr.bf16.mxu0 0
        %612 = vmatpush1.bf16.xpose.msra.mxu0 0
        %613 = vmatprep.subr.bf16.mxu0 0
        %614 = vmatpush1.bf16.xpose.msra.mxu0 0
        %615 = vmatprep.subr.bf16.mxu0 0
        %616 = vmatpush1.bf16.xpose.msra.mxu0 0
        %617 = vmatprep.subr.bf16.mxu0 0
        %618 = vmatpush1.bf16.xpose.msra.mxu0 0
        %619 = vmatprep.subr.bf16.mxu0 0
        %620 = vmatpush1.bf16.xpose.msra.mxu0 0
        %621 = vmatprep.subr.bf16.mxu0 0
        %622 = vmatpush1.bf16.xpose.msra.mxu0 0
        %623 = vmatprep.subr.bf16.mxu0 0
        %624 = vmatpush1.bf16.xpose.msra.mxu0 0
        %625 = vmatprep.mubr.bf16.mxu0 0
        %626 = vmatmul.mubr.bf16.gmra.mrb[0].mxu0 %v588
        %v627 = vpop.f32.mrb[0].mxu0
        %v628 = vadd.f32 0.0, %v627
        %v629 = vpop.f32.mrb[0].mxu0
        %v630 = vpop.f32.mrb[0].mxu0
        %v631 = vpop.f32.mrb[0].mxu0
        %632 = vdwg.mxu0
        %633 = vrot.lane.b32.xlu0 %v525, 96
        %v634 = vpop.permute.xlu0 %633
        %v636 = vsel %vm538, %v525, 0
        %v639 = vsel %vm538, %v634, 0
        %641 = vmatprep.subr.bf16.mxu0 0
        %642 = vmatpush1.bf16.xpose.msra.mxu0 %v639
        %643 = vmatprep.subr.bf16.mxu0 0
        %644 = vmatpush1.bf16.xpose.msra.mxu0 0
        %645 = vmatprep.subr.bf16.mxu0 0
        %646 = vmatpush1.bf16.xpose.msra.mxu0 0
        %647 = vmatprep.subr.bf16.mxu0 0
        %648 = vmatpush1.bf16.xpose.msra.mxu0 0
        %649 = vmatprep.subr.bf16.mxu0 0
        %650 = vmatpush1.bf16.xpose.msra.mxu0 0
        %651 = vmatprep.subr.bf16.mxu0 0
        %652 = vmatpush1.bf16.xpose.msra.mxu0 0
        %653 = vmatprep.subr.bf16.mxu0 0
        %654 = vmatpush1.bf16.xpose.msra.mxu0 0
        %655 = vmatprep.subr.bf16.mxu0 0
        %656 = vmatpush1.bf16.xpose.msra.mxu0 0
        %657 = vmatprep.subr.bf16.mxu0 0
        %658 = vmatpush1.bf16.xpose.msra.mxu0 0
        %659 = vmatprep.subr.bf16.mxu0 0
        %660 = vmatpush1.bf16.xpose.msra.mxu0 0
        %661 = vmatprep.subr.bf16.mxu0 0
        %662 = vmatpush1.bf16.xpose.msra.mxu0 0
        %663 = vmatprep.subr.bf16.mxu0 0
        %664 = vmatpush1.bf16.xpose.msra.mxu0 0
        %665 = vmatprep.subr.bf16.mxu0 0
        %666 = vmatpush1.bf16.xpose.msra.mxu0 0
        %667 = vmatprep.subr.bf16.mxu0 0
        %668 = vmatpush1.bf16.xpose.msra.mxu0 0
        %669 = vmatprep.subr.bf16.mxu0 0
        %670 = vmatpush1.bf16.xpose.msra.mxu0 0
        %671 = vmatprep.subr.bf16.mxu0 0
        %672 = vmatpush1.bf16.xpose.msra.mxu0 0
        %673 = vmatprep.mubr.bf16.mxu0 0
        %674 = vmatmul.mubr.bf16.gmra.mrb[0].mxu0 %v636
        %v675 = vpop.f32.mrb[0].mxu0
        %v676 = vadd.f32 0.0, %v675
        %v677 = vpop.f32.mrb[0].mxu0
        %v678 = vpop.f32.mrb[0].mxu0
        %v679 = vpop.f32.mrb[0].mxu0
        %680 = vdwg.mxu0
        %681 = vrot.lane.b32.xlu0 %v527, 96
        %v682 = vpop.permute.xlu0 %681
        %v684 = vsel %vm538, %v527, 0
        %v687 = vsel %vm538, %v682, 0
        %689 = vmatprep.subr.bf16.mxu0 0
        %690 = vmatpush1.bf16.xpose.msra.mxu0 %v687
        %691 = vmatprep.subr.bf16.mxu0 0
        %692 = vmatpush1.bf16.xpose.msra.mxu0 0
        %693 = vmatprep.subr.bf16.mxu0 0
        %694 = vmatpush1.bf16.xpose.msra.mxu0 0
        %695 = vmatprep.subr.bf16.mxu0 0
        %696 = vmatpush1.bf16.xpose.msra.mxu0 0
        %697 = vmatprep.subr.bf16.mxu0 0
        %698 = vmatpush1.bf16.xpose.msra.mxu0 0
        %699 = vmatprep.subr.bf16.mxu0 0
        %700 = vmatpush1.bf16.xpose.msra.mxu0 0
        %701 = vmatprep.subr.bf16.mxu0 0
        %702 = vmatpush1.bf16.xpose.msra.mxu0 0
        %703 = vmatprep.subr.bf16.mxu0 0
        %704 = vmatpush1.bf16.xpose.msra.mxu0 0
        %705 = vmatprep.subr.bf16.mxu0 0
        %706 = vmatpush1.bf16.xpose.msra.mxu0 0
        %707 = vmatprep.subr.bf16.mxu0 0
        %708 = vmatpush1.bf16.xpose.msra.mxu0 0
        %709 = vmatprep.subr.bf16.mxu0 0
        %710 = vmatpush1.bf16.xpose.msra.mxu0 0
        %711 = vmatprep.subr.bf16.mxu0 0
        %712 = vmatpush1.bf16.xpose.msra.mxu0 0
        %713 = vmatprep.subr.bf16.mxu0 0
        %714 = vmatpush1.bf16.xpose.msra.mxu0 0
        %715 = vmatprep.subr.bf16.mxu0 0
        %716 = vmatpush1.bf16.xpose.msra.mxu0 0
        %717 = vmatprep.subr.bf16.mxu0 0
        %718 = vmatpush1.bf16.xpose.msra.mxu0 0
        %719 = vmatprep.subr.bf16.mxu0 0
        %720 = vmatpush1.bf16.xpose.msra.mxu0 0
        %721 = vmatprep.mubr.bf16.mxu0 0
        %722 = vmatmul.mubr.bf16.gmra.mrb[0].mxu0 %v684
        %v723 = vpop.f32.mrb[0].mxu0
        %v724 = vadd.f32 0.0, %v723
        %v725 = vpop.f32.mrb[0].mxu0
        %v726 = vpop.f32.mrb[0].mxu0
        %v727 = vpop.f32.mrb[0].mxu0
        %728 = vdwg.mxu0
        %729 = vrot.lane.b32.xlu0 %v529, 96
        %v730 = vpop.permute.xlu0 %729
        %v732 = vsel %vm538, %v529, 0
        %v735 = vsel %vm538, %v730, 0
        %737 = vmatprep.subr.bf16.mxu0 0
        %738 = vmatpush1.bf16.xpose.msra.mxu0 %v735
        %739 = vmatprep.subr.bf16.mxu0 0
        %740 = vmatpush1.bf16.xpose.msra.mxu0 0
        %741 = vmatprep.subr.bf16.mxu0 0
        %742 = vmatpush1.bf16.xpose.msra.mxu0 0
        %743 = vmatprep.subr.bf16.mxu0 0
        %744 = vmatpush1.bf16.xpose.msra.mxu0 0
        %745 = vmatprep.subr.bf16.mxu0 0
        %746 = vmatpush1.bf16.xpose.msra.mxu0 0
        %747 = vmatprep.subr.bf16.mxu0 0
        %748 = vmatpush1.bf16.xpose.msra.mxu0 0
        %749 = vmatprep.subr.bf16.mxu0 0
        %750 = vmatpush1.bf16.xpose.msra.mxu0 0
        %751 = vmatprep.subr.bf16.mxu0 0
        %752 = vmatpush1.bf16.xpose.msra.mxu0 0
        %753 = vmatprep.subr.bf16.mxu0 0
        %754 = vmatpush1.bf16.xpose.msra.mxu0 0
        %755 = vmatprep.subr.bf16.mxu0 0
        %756 = vmatpush1.bf16.xpose.msra.mxu0 0
        %757 = vmatprep.subr.bf16.mxu0 0
        %758 = vmatpush1.bf16.xpose.msra.mxu0 0
        %759 = vmatprep.subr.bf16.mxu0 0
        %760 = vmatpush1.bf16.xpose.msra.mxu0 0
        %761 = vmatprep.subr.bf16.mxu0 0
        %762 = vmatpush1.bf16.xpose.msra.mxu0 0
        %763 = vmatprep.subr.bf16.mxu0 0
        %764 = vmatpush1.bf16.xpose.msra.mxu0 0
        %765 = vmatprep.subr.bf16.mxu0 0
        %766 = vmatpush1.bf16.xpose.msra.mxu0 0
        %767 = vmatprep.subr.bf16.mxu0 0
        %768 = vmatpush1.bf16.xpose.msra.mxu0 0
        %769 = vmatprep.mubr.bf16.mxu0 0
        %770 = vmatmul.mubr.bf16.gmra.mrb[0].mxu0 %v732
        %v771 = vpop.f32.mrb[0].mxu0
        %v772 = vadd.f32 0.0, %v771
        %v773 = vpop.f32.mrb[0].mxu0
        %v774 = vpop.f32.mrb[0].mxu0
        %v775 = vpop.f32.mrb[0].mxu0
        %776 = vdwg.mxu0
        %777 = vrot.lane.b32.xlu0 %v531, 96
        %v778 = vpop.permute.xlu0 %777
        %v780 = vsel %vm538, %v531, 0
        %v783 = vsel %vm538, %v778, 0
        %785 = vmatprep.subr.bf16.mxu0 0
        %786 = vmatpush1.bf16.xpose.msra.mxu0 %v783
        %787 = vmatprep.subr.bf16.mxu0 0
        %788 = vmatpush1.bf16.xpose.msra.mxu0 0
        %789 = vmatprep.subr.bf16.mxu0 0
        %790 = vmatpush1.bf16.xpose.msra.mxu0 0
        %791 = vmatprep.subr.bf16.mxu0 0
        %792 = vmatpush1.bf16.xpose.msra.mxu0 0
        %793 = vmatprep.subr.bf16.mxu0 0
        %794 = vmatpush1.bf16.xpose.msra.mxu0 0
        %795 = vmatprep.subr.bf16.mxu0 0
        %796 = vmatpush1.bf16.xpose.msra.mxu0 0
        %797 = vmatprep.subr.bf16.mxu0 0
        %798 = vmatpush1.bf16.xpose.msra.mxu0 0
        %799 = vmatprep.subr.bf16.mxu0 0
        %800 = vmatpush1.bf16.xpose.msra.mxu0 0
        %801 = vmatprep.subr.bf16.mxu0 0
        %802 = vmatpush1.bf16.xpose.msra.mxu0 0
        %803 = vmatprep.subr.bf16.mxu0 0
        %804 = vmatpush1.bf16.xpose.msra.mxu0 0
        %805 = vmatprep.subr.bf16.mxu0 0
        %806 = vmatpush1.bf16.xpose.msra.mxu0 0
        %807 = vmatprep.subr.bf16.mxu0 0
        %808 = vmatpush1.bf16.xpose.msra.mxu0 0
        %809 = vmatprep.subr.bf16.mxu0 0
        %810 = vmatpush1.bf16.xpose.msra.mxu0 0
        %811 = vmatprep.subr.bf16.mxu0 0
        %812 = vmatpush1.bf16.xpose.msra.mxu0 0
        %813 = vmatprep.subr.bf16.mxu0 0
        %814 = vmatpush1.bf16.xpose.msra.mxu0 0
        %815 = vmatprep.subr.bf16.mxu0 0
        %816 = vmatpush1.bf16.xpose.msra.mxu0 0
        %817 = vmatprep.mubr.bf16.mxu0 0
        %818 = vmatmul.mubr.bf16.gmra.mrb[0].mxu0 %v780
        %v819 = vpop.f32.mrb[0].mxu0
        %v820 = vadd.f32 0.0, %v819
        %v821 = vpop.f32.mrb[0].mxu0
        %v822 = vpop.f32.mrb[0].mxu0
        %v823 = vpop.f32.mrb[0].mxu0
        %824 = vdwg.mxu0
        %825 = vrot.lane.b32.xlu0 %v533, 96
        %v826 = vpop.permute.xlu0 %825
        %v828 = vsel %vm538, %v533, 0
        %v831 = vsel %vm538, %v826, 0
        %833 = vmatprep.subr.bf16.mxu0 0
        %834 = vmatpush1.bf16.xpose.msra.mxu0 %v831
        %835 = vmatprep.subr.bf16.mxu0 0
        %836 = vmatpush1.bf16.xpose.msra.mxu0 0
        %837 = vmatprep.subr.bf16.mxu0 0
        %838 = vmatpush1.bf16.xpose.msra.mxu0 0
        %839 = vmatprep.subr.bf16.mxu0 0
        %840 = vmatpush1.bf16.xpose.msra.mxu0 0
        %841 = vmatprep.subr.bf16.mxu0 0
        %842 = vmatpush1.bf16.xpose.msra.mxu0 0
        %843 = vmatprep.subr.bf16.mxu0 0
        %844 = vmatpush1.bf16.xpose.msra.mxu0 0
        %845 = vmatprep.subr.bf16.mxu0 0
        %846 = vmatpush1.bf16.xpose.msra.mxu0 0
        %847 = vmatprep.subr.bf16.mxu0 0
        %848 = vmatpush1.bf16.xpose.msra.mxu0 0
        %849 = vmatprep.subr.bf16.mxu0 0
        %850 = vmatpush1.bf16.xpose.msra.mxu0 0
        %851 = vmatprep.subr.bf16.mxu0 0
        %852 = vmatpush1.bf16.xpose.msra.mxu0 0
        %853 = vmatprep.subr.bf16.mxu0 0
        %854 = vmatpush1.bf16.xpose.msra.mxu0 0
        %855 = vmatprep.subr.bf16.mxu0 0
        %856 = vmatpush1.bf16.xpose.msra.mxu0 0
        %857 = vmatprep.subr.bf16.mxu0 0
        %858 = vmatpush1.bf16.xpose.msra.mxu0 0
        %859 = vmatprep.subr.bf16.mxu0 0
        %860 = vmatpush1.bf16.xpose.msra.mxu0 0
        %861 = vmatprep.subr.bf16.mxu0 0
        %862 = vmatpush1.bf16.xpose.msra.mxu0 0
        %863 = vmatprep.subr.bf16.mxu0 0
        %864 = vmatpush1.bf16.xpose.msra.mxu0 0
        %865 = vmatprep.mubr.bf16.mxu0 0
        %866 = vmatmul.mubr.bf16.gmra.mrb[0].mxu0 %v828
        %v867 = vpop.f32.mrb[0].mxu0
        %v868 = vadd.f32 0.0, %v867
        %v869 = vpop.f32.mrb[0].mxu0
        %v870 = vpop.f32.mrb[0].mxu0
        %v871 = vpop.f32.mrb[0].mxu0
        %872 = vdwg.mxu0
        %873 = vrot.lane.b32.xlu0 %v535, 96
        %v874 = vpop.permute.xlu0 %873
        %v876 = vsel %vm538, %v535, 0
        %v879 = vsel %vm538, %v874, 0
        %881 = vmatprep.subr.bf16.mxu0 0
        %882 = vmatpush1.bf16.xpose.msra.mxu0 %v879
        %883 = vmatprep.subr.bf16.mxu0 0
        %884 = vmatpush1.bf16.xpose.msra.mxu0 0
        %885 = vmatprep.subr.bf16.mxu0 0
        %886 = vmatpush1.bf16.xpose.msra.mxu0 0
        %887 = vmatprep.subr.bf16.mxu0 0
        %888 = vmatpush1.bf16.xpose.msra.mxu0 0
        %889 = vmatprep.subr.bf16.mxu0 0
        %890 = vmatpush1.bf16.xpose.msra.mxu0 0
        %891 = vmatprep.subr.bf16.mxu0 0
        %892 = vmatpush1.bf16.xpose.msra.mxu0 0
        %893 = vmatprep.subr.bf16.mxu0 0
        %894 = vmatpush1.bf16.xpose.msra.mxu0 0
        %895 = vmatprep.subr.bf16.mxu0 0
        %896 = vmatpush1.bf16.xpose.msra.mxu0 0
        %897 = vmatprep.subr.bf16.mxu0 0
        %898 = vmatpush1.bf16.xpose.msra.mxu0 0
        %899 = vmatprep.subr.bf16.mxu0 0
        %900 = vmatpush1.bf16.xpose.msra.mxu0 0
        %901 = vmatprep.subr.bf16.mxu0 0
        %902 = vmatpush1.bf16.xpose.msra.mxu0 0
        %903 = vmatprep.subr.bf16.mxu0 0
        %904 = vmatpush1.bf16.xpose.msra.mxu0 0
        %905 = vmatprep.subr.bf16.mxu0 0
        %906 = vmatpush1.bf16.xpose.msra.mxu0 0
        %907 = vmatprep.subr.bf16.mxu0 0
        %908 = vmatpush1.bf16.xpose.msra.mxu0 0
        %909 = vmatprep.subr.bf16.mxu0 0
        %910 = vmatpush1.bf16.xpose.msra.mxu0 0
        %911 = vmatprep.subr.bf16.mxu0 0
        %912 = vmatpush1.bf16.xpose.msra.mxu0 0
        %913 = vmatprep.mubr.bf16.mxu0 0
        %914 = vmatmul.mubr.bf16.gmra.mrb[0].mxu0 %v876
        %v915 = vpop.f32.mrb[0].mxu0
        %v916 = vadd.f32 0.0, %v915
        %v917 = vpop.f32.mrb[0].mxu0
        %v918 = vpop.f32.mrb[0].mxu0
        %v919 = vpop.f32.mrb[0].mxu0
        %920 = vdwg.mxu0
        %vm921 = vcmask 64512
        %v922 = vsel %vm921, %v580, -inf
        %923 = vmax.xlane.f32.xlu0 %v922
        %v924 = vpop.xlane.xlu0 %923
        %v925 = vsel %vm921, %v628, -inf
        %926 = vmax.xlane.f32.xlu0 %v925
        %v927 = vpop.xlane.xlu0 %926
        %v928 = vsel %vm921, %v676, -inf
        %929 = vmax.xlane.f32.xlu0 %v928
        %v930 = vpop.xlane.xlu0 %929
        %v931 = vsel %vm921, %v724, -inf
        %932 = vmax.xlane.f32.xlu0 %v931
        %v933 = vpop.xlane.xlu0 %932
        %v934 = vsel %vm921, %v772, -inf
        %935 = vmax.xlane.f32.xlu0 %v934
        %v936 = vpop.xlane.xlu0 %935
        %v937 = vsel %vm921, %v820, -inf
        %938 = vmax.xlane.f32.xlu0 %v937
        %v939 = vpop.xlane.xlu0 %938
        %v940 = vsel %vm921, %v868, -inf
        %941 = vmax.xlane.f32.xlu0 %v940
        %v942 = vpop.xlane.xlu0 %941
        %v943 = vsel %vm921, %v916, -inf
        %944 = vmax.xlane.f32.xlu0 %v943
        %v945 = vpop.xlane.xlu0 %944
        %v946 = vsub.f32 %v580, %v924
        %v947 = vsub.f32 %v628, %v927
        %v948 = vsub.f32 %v676, %v930
        %v949 = vsub.f32 %v724, %v933
        %v950 = vsub.f32 %v772, %v936
        %v951 = vsub.f32 %v820, %v939
        %v952 = vsub.f32 %v868, %v942
        %v953 = vsub.f32 %v916, %v945
        %v954 = vmul.f32 %v946, 1.442695
        %v955 = vpow.pop %v954
        %v956 = vmul.f32 %v947, 1.442695
        %v957 = vpow.pop %v956
        %v958 = vmul.f32 %v948, 1.442695
        %v959 = vpow.pop %v958
        %v960 = vmul.f32 %v949, 1.442695
        %v961 = vpow.pop %v960
        %v962 = vmul.f32 %v950, 1.442695
        %v963 = vpow.pop %v962
        %v964 = vmul.f32 %v951, 1.442695
        %v965 = vpow.pop %v964
        %v966 = vmul.f32 %v952, 1.442695
        %v967 = vpow.pop %v966
        %v968 = vmul.f32 %v953, 1.442695
        %v969 = vpow.pop %v968
        %v970 = vsel %vm921, %v955, 0.0
        %971 = vadd.xlane.f32.xlu0 %v970
        %v972 = vpop.xlane.xlu0 %971
        %v973 = vsel %vm921, %v957, 0.0
        %974 = vadd.xlane.f32.xlu0 %v973
        %v975 = vpop.xlane.xlu0 %974
        %v976 = vsel %vm921, %v959, 0.0
        %977 = vadd.xlane.f32.xlu0 %v976
        %v978 = vpop.xlane.xlu0 %977
        %v979 = vsel %vm921, %v961, 0.0
        %980 = vadd.xlane.f32.xlu0 %v979
        %v981 = vpop.xlane.xlu0 %980
        %v982 = vsel %vm921, %v963, 0.0
        %983 = vadd.xlane.f32.xlu0 %v982
        %v984 = vpop.xlane.xlu0 %983
        %v985 = vsel %vm921, %v965, 0.0
        %986 = vadd.xlane.f32.xlu0 %v985
        %v987 = vpop.xlane.xlu0 %986
        %v988 = vsel %vm921, %v967, 0.0
        %989 = vadd.xlane.f32.xlu0 %v988
        %v990 = vpop.xlane.xlu0 %989
        %v991 = vsel %vm921, %v969, 0.0
        %992 = vadd.xlane.f32.xlu0 %v991
        %v993 = vpop.xlane.xlu0 %992
        %v994 = vrcp.pop %v972
        %v995 = vrcp.pop %v975
        %v996 = vrcp.pop %v978
        %v997 = vrcp.pop %v981
        %v998 = vrcp.pop %v984
        %v999 = vrcp.pop %v987
        %v1000 = vrcp.pop %v990
        %v1001 = vrcp.pop %v993
        %v1002 = vmul.f32 %v972, %v994
        %v1003 = vmul.f32 %v975, %v995
        %v1004 = vmul.f32 %v978, %v996
        %v1005 = vmul.f32 %v981, %v997
        %v1006 = vmul.f32 %v984, %v998
        %v1007 = vmul.f32 %v987, %v999
        %v1008 = vmul.f32 %v990, %v1000
        %v1009 = vmul.f32 %v993, %v1001
        %v1010 = vsub.f32 2.0, %v1002
        %v1011 = vsub.f32 2.0, %v1003
        %v1012 = vsub.f32 2.0, %v1004
        %v1013 = vsub.f32 2.0, %v1005
        %v1014 = vsub.f32 2.0, %v1006
        %v1015 = vsub.f32 2.0, %v1007
        %v1016 = vsub.f32 2.0, %v1008
        %v1017 = vsub.f32 2.0, %v1009
        %v1018 = vmul.f32 %v994, %v1010
        %v1019 = vmul.f32 %v995, %v1011
        %v1020 = vmul.f32 %v996, %v1012
        %v1021 = vmul.f32 %v997, %v1013
        %v1022 = vmul.f32 %v998, %v1014
        %v1023 = vmul.f32 %v999, %v1015
        %v1024 = vmul.f32 %v1000, %v1016
        %v1025 = vmul.f32 %v1001, %v1017
        %v1026 = vmul.f32 %v955, %v1018
        %v1027 = vmul.f32 %v957, %v1019
        %v1028 = vmul.f32 %v959, %v1020
        %v1029 = vmul.f32 %v961, %v1021
        %v1030 = vmul.f32 %v963, %v1022
        %v1031 = vmul.f32 %v965, %v1023
        %v1032 = vmul.f32 %v967, %v1024
        %v1033 = vmul.f32 %v969, %v1025
        %v1034 = vpack.c.bf16 %v1026, %v1026
        %v1035 = vpack.c.bf16 %v1027, %v1027
        %v1036 = vpack.c.bf16 %v1028, %v1028
        %v1037 = vpack.c.bf16 %v1029, %v1029
        %v1038 = vpack.c.bf16 %v1030, %v1030
        %v1039 = vpack.c.bf16 %v1031, %v1031
        %v1040 = vpack.c.bf16 %v1032, %v1032
        %v1041 = vpack.c.bf16 %v1033, %v1033
        %1042 = vrot.lane.b32.xlu0 %v520, 64
        %v1043 = vpop.permute.xlu0 %1042
        %v1045 = vsel %vm921, %v1034, 0
        %vm1047 = vcmask 1043456
        %v1049 = vsel %vm1047, %v1043, 0
        %1051 = vmatprep.subr.bf16.mxu0 0
        %1052 = vmatpush1.bf16.msra.mxu0 %v1049
        %1053 = vmatprep.subr.bf16.mxu0 0
        %1054 = vmatpush1.bf16.msra.mxu0 0
        %1055 = vmatprep.subr.bf16.mxu0 0
        %1056 = vmatpush1.bf16.msra.mxu0 0
        %1057 = vmatprep.subr.bf16.mxu0 0
        %1058 = vmatpush1.bf16.msra.mxu0 0
        %1059 = vmatprep.subr.bf16.mxu0 0
        %1060 = vmatpush1.bf16.msra.mxu0 0
        %1061 = vmatprep.subr.bf16.mxu0 0
        %1062 = vmatpush1.bf16.msra.mxu0 0
        %1063 = vmatprep.subr.bf16.mxu0 0
        %1064 = vmatpush1.bf16.msra.mxu0 0
        %1065 = vmatprep.subr.bf16.mxu0 0
        %1066 = vmatpush1.bf16.msra.mxu0 0
        %1067 = vmatprep.subr.bf16.mxu0 0
        %1068 = vmatpush1.bf16.msra.mxu0 0
        %1069 = vmatprep.subr.bf16.mxu0 0
        %1070 = vmatpush1.bf16.msra.mxu0 0
        %1071 = vmatprep.subr.bf16.mxu0 0
        %1072 = vmatpush1.bf16.msra.mxu0 0
        %1073 = vmatprep.subr.bf16.mxu0 0
        %1074 = vmatpush1.bf16.msra.mxu0 0
        %1075 = vmatprep.subr.bf16.mxu0 0
        %1076 = vmatpush1.bf16.msra.mxu0 0
        %1077 = vmatprep.subr.bf16.mxu0 0
        %1078 = vmatpush1.bf16.msra.mxu0 0
        %1079 = vmatprep.subr.bf16.mxu0 0
        %1080 = vmatpush1.bf16.msra.mxu0 0
        %1081 = vmatprep.subr.bf16.mxu0 0
        %1082 = vmatpush1.bf16.msra.mxu0 0
        %1083 = vmatprep.mubr.bf16.mxu0 0
        %1084 = vmatmul.mubr.bf16.gmra.mrb[0].mxu0 %v1045
        %v1085 = vpop.f32.mrb[0].mxu0
        %v1086 = vadd.f32 0.0, %v1085
        %v1087 = vpop.f32.mrb[0].mxu0
        %v1088 = vpop.f32.mrb[0].mxu0
        %v1089 = vpop.f32.mrb[0].mxu0
        %1090 = vdwg.mxu0
        %1091 = vrot.lane.b32.xlu0 %v523, 64
        %v1092 = vpop.permute.xlu0 %1091
        %v1094 = vsel %vm921, %v1035, 0
        %v1097 = vsel %vm1047, %v1092, 0
        %1099 = vmatprep.subr.bf16.mxu0 0
        %1100 = vmatpush1.bf16.msra.mxu0 %v1097
        %1101 = vmatprep.subr.bf16.mxu0 0
        %1102 = vmatpush1.bf16.msra.mxu0 0
        %1103 = vmatprep.subr.bf16.mxu0 0
        %1104 = vmatpush1.bf16.msra.mxu0 0
        %1105 = vmatprep.subr.bf16.mxu0 0
        %1106 = vmatpush1.bf16.msra.mxu0 0
        %1107 = vmatprep.subr.bf16.mxu0 0
        %1108 = vmatpush1.bf16.msra.mxu0 0
        %1109 = vmatprep.subr.bf16.mxu0 0
        %1110 = vmatpush1.bf16.msra.mxu0 0
        %1111 = vmatprep.subr.bf16.mxu0 0
        %1112 = vmatpush1.bf16.msra.mxu0 0
        %1113 = vmatprep.subr.bf16.mxu0 0
        %1114 = vmatpush1.bf16.msra.mxu0 0
        %1115 = vmatprep.subr.bf16.mxu0 0
        %1116 = vmatpush1.bf16.msra.mxu0 0
        %1117 = vmatprep.subr.bf16.mxu0 0
        %1118 = vmatpush1.bf16.msra.mxu0 0
        %1119 = vmatprep.subr.bf16.mxu0 0
        %1120 = vmatpush1.bf16.msra.mxu0 0
        %1121 = vmatprep.subr.bf16.mxu0 0
        %1122 = vmatpush1.bf16.msra.mxu0 0
        %1123 = vmatprep.subr.bf16.mxu0 0
        %1124 = vmatpush1.bf16.msra.mxu0 0
        %1125 = vmatprep.subr.bf16.mxu0 0
        %1126 = vmatpush1.bf16.msra.mxu0 0
        %1127 = vmatprep.subr.bf16.mxu0 0
        %1128 = vmatpush1.bf16.msra.mxu0 0
        %1129 = vmatprep.subr.bf16.mxu0 0
        %1130 = vmatpush1.bf16.msra.mxu0 0
        %1131 = vmatprep.mubr.bf16.mxu0 0
        %1132 = vmatmul.mubr.bf16.gmra.mrb[0].mxu0 %v1094
        %v1133 = vpop.f32.mrb[0].mxu0
        %v1134 = vadd.f32 0.0, %v1133
        %v1135 = vpop.f32.mrb[0].mxu0
        %v1136 = vpop.f32.mrb[0].mxu0
        %v1137 = vpop.f32.mrb[0].mxu0
        %1138 = vdwg.mxu0
        %1139 = vrot.lane.b32.xlu0 %v525, 64
        %v1140 = vpop.permute.xlu0 %1139
        %v1142 = vsel %vm921, %v1036, 0
        %v1145 = vsel %vm1047, %v1140, 0
        %1147 = vmatprep.subr.bf16.mxu0 0
        %1148 = vmatpush1.bf16.msra.mxu0 %v1145
        %1149 = vmatprep.subr.bf16.mxu0 0
        %1150 = vmatpush1.bf16.msra.mxu0 0
        %1151 = vmatprep.subr.bf16.mxu0 0
        %1152 = vmatpush1.bf16.msra.mxu0 0
        %1153 = vmatprep.subr.bf16.mxu0 0
        %1154 = vmatpush1.bf16.msra.mxu0 0
        %1155 = vmatprep.subr.bf16.mxu0 0
        %1156 = vmatpush1.bf16.msra.mxu0 0
        %1157 = vmatprep.subr.bf16.mxu0 0
        %1158 = vmatpush1.bf16.msra.mxu0 0
        %1159 = vmatprep.subr.bf16.mxu0 0
        %1160 = vmatpush1.bf16.msra.mxu0 0
        %1161 = vmatprep.subr.bf16.mxu0 0
        %1162 = vmatpush1.bf16.msra.mxu0 0
        %1163 = vmatprep.subr.bf16.mxu0 0
        %1164 = vmatpush1.bf16.msra.mxu0 0
        %1165 = vmatprep.subr.bf16.mxu0 0
        %1166 = vmatpush1.bf16.msra.mxu0 0
        %1167 = vmatprep.subr.bf16.mxu0 0
        %1168 = vmatpush1.bf16.msra.mxu0 0
        %1169 = vmatprep.subr.bf16.mxu0 0
        %1170 = vmatpush1.bf16.msra.mxu0 0
        %1171 = vmatprep.subr.bf16.mxu0 0
        %1172 = vmatpush1.bf16.msra.mxu0 0
        %1173 = vmatprep.subr.bf16.mxu0 0
        %1174 = vmatpush1.bf16.msra.mxu0 0
        %1175 = vmatprep.subr.bf16.mxu0 0
        %1176 = vmatpush1.bf16.msra.mxu0 0
        %1177 = vmatprep.subr.bf16.mxu0 0
        %1178 = vmatpush1.bf16.msra.mxu0 0
        %1179 = vmatprep.mubr.bf16.mxu0 0
        %1180 = vmatmul.mubr.bf16.gmra.mrb[0].mxu0 %v1142
        %v1181 = vpop.f32.mrb[0].mxu0
        %v1182 = vadd.f32 0.0, %v1181
        %v1183 = vpop.f32.mrb[0].mxu0
        %v1184 = vpop.f32.mrb[0].mxu0
        %v1185 = vpop.f32.mrb[0].mxu0
        %1186 = vdwg.mxu0
        %1187 = vrot.lane.b32.xlu0 %v527, 64
        %v1188 = vpop.permute.xlu0 %1187
        %v1190 = vsel %vm921, %v1037, 0
        %v1193 = vsel %vm1047, %v1188, 0
        %1195 = vmatprep.subr.bf16.mxu0 0
        %1196 = vmatpush1.bf16.msra.mxu0 %v1193
        %1197 = vmatprep.subr.bf16.mxu0 0
        %1198 = vmatpush1.bf16.msra.mxu0 0
        %1199 = vmatprep.subr.bf16.mxu0 0
        %1200 = vmatpush1.bf16.msra.mxu0 0
        %1201 = vmatprep.subr.bf16.mxu0 0
        %1202 = vmatpush1.bf16.msra.mxu0 0
        %1203 = vmatprep.subr.bf16.mxu0 0
        %1204 = vmatpush1.bf16.msra.mxu0 0
        %1205 = vmatprep.subr.bf16.mxu0 0
        %1206 = vmatpush1.bf16.msra.mxu0 0
        %1207 = vmatprep.subr.bf16.mxu0 0
        %1208 = vmatpush1.bf16.msra.mxu0 0
        %1209 = vmatprep.subr.bf16.mxu0 0
        %1210 = vmatpush1.bf16.msra.mxu0 0
        %1211 = vmatprep.subr.bf16.mxu0 0
        %1212 = vmatpush1.bf16.msra.mxu0 0
        %1213 = vmatprep.subr.bf16.mxu0 0
        %1214 = vmatpush1.bf16.msra.mxu0 0
        %1215 = vmatprep.subr.bf16.mxu0 0
        %1216 = vmatpush1.bf16.msra.mxu0 0
        %1217 = vmatprep.subr.bf16.mxu0 0
        %1218 = vmatpush1.bf16.msra.mxu0 0
        %1219 = vmatprep.subr.bf16.mxu0 0
        %1220 = vmatpush1.bf16.msra.mxu0 0
        %1221 = vmatprep.subr.bf16.mxu0 0
        %1222 = vmatpush1.bf16.msra.mxu0 0
        %1223 = vmatprep.subr.bf16.mxu0 0
        %1224 = vmatpush1.bf16.msra.mxu0 0
        %1225 = vmatprep.subr.bf16.mxu0 0
        %1226 = vmatpush1.bf16.msra.mxu0 0
        %1227 = vmatprep.mubr.bf16.mxu0 0
        %1228 = vmatmul.mubr.bf16.gmra.mrb[0].mxu0 %v1190
        %v1229 = vpop.f32.mrb[0].mxu0
        %v1230 = vadd.f32 0.0, %v1229
        %v1231 = vpop.f32.mrb[0].mxu0
        %v1232 = vpop.f32.mrb[0].mxu0
        %v1233 = vpop.f32.mrb[0].mxu0
        %1234 = vdwg.mxu0
        %1235 = vrot.lane.b32.xlu0 %v529, 64
        %v1236 = vpop.permute.xlu0 %1235
        %v1238 = vsel %vm921, %v1038, 0
        %v1241 = vsel %vm1047, %v1236, 0
        %1243 = vmatprep.subr.bf16.mxu0 0
        %1244 = vmatpush1.bf16.msra.mxu0 %v1241
        %1245 = vmatprep.subr.bf16.mxu0 0
        %1246 = vmatpush1.bf16.msra.mxu0 0
        %1247 = vmatprep.subr.bf16.mxu0 0
        %1248 = vmatpush1.bf16.msra.mxu0 0
        %1249 = vmatprep.subr.bf16.mxu0 0
        %1250 = vmatpush1.bf16.msra.mxu0 0
        %1251 = vmatprep.subr.bf16.mxu0 0
        %1252 = vmatpush1.bf16.msra.mxu0 0
        %1253 = vmatprep.subr.bf16.mxu0 0
        %1254 = vmatpush1.bf16.msra.mxu0 0
        %1255 = vmatprep.subr.bf16.mxu0 0
        %1256 = vmatpush1.bf16.msra.mxu0 0
        %1257 = vmatprep.subr.bf16.mxu0 0
        %1258 = vmatpush1.bf16.msra.mxu0 0
        %1259 = vmatprep.subr.bf16.mxu0 0
        %1260 = vmatpush1.bf16.msra.mxu0 0
        %1261 = vmatprep.subr.bf16.mxu0 0
        %1262 = vmatpush1.bf16.msra.mxu0 0
        %1263 = vmatprep.subr.bf16.mxu0 0
        %1264 = vmatpush1.bf16.msra.mxu0 0
        %1265 = vmatprep.subr.bf16.mxu0 0
        %1266 = vmatpush1.bf16.msra.mxu0 0
        %1267 = vmatprep.subr.bf16.mxu0 0
        %1268 = vmatpush1.bf16.msra.mxu0 0
        %1269 = vmatprep.subr.bf16.mxu0 0
        %1270 = vmatpush1.bf16.msra.mxu0 0
        %1271 = vmatprep.subr.bf16.mxu0 0
        %1272 = vmatpush1.bf16.msra.mxu0 0
        %1273 = vmatprep.subr.bf16.mxu0 0
        %1274 = vmatpush1.bf16.msra.mxu0 0
        %1275 = vmatprep.mubr.bf16.mxu0 0
        %1276 = vmatmul.mubr.bf16.gmra.mrb[0].mxu0 %v1238
        %v1277 = vpop.f32.mrb[0].mxu0
        %v1278 = vadd.f32 0.0, %v1277
        %v1279 = vpop.f32.mrb[0].mxu0
        %v1280 = vpop.f32.mrb[0].mxu0
        %v1281 = vpop.f32.mrb[0].mxu0
        %1282 = vdwg.mxu0
        %1283 = vrot.lane.b32.xlu0 %v531, 64
        %v1284 = vpop.permute.xlu0 %1283
        %v1286 = vsel %vm921, %v1039, 0
        %v1289 = vsel %vm1047, %v1284, 0
        %1291 = vmatprep.subr.bf16.mxu0 0
        %1292 = vmatpush1.bf16.msra.mxu0 %v1289
        %1293 = vmatprep.subr.bf16.mxu0 0
        %1294 = vmatpush1.bf16.msra.mxu0 0
        %1295 = vmatprep.subr.bf16.mxu0 0
        %1296 = vmatpush1.bf16.msra.mxu0 0
        %1297 = vmatprep.subr.bf16.mxu0 0
        %1298 = vmatpush1.bf16.msra.mxu0 0
        %1299 = vmatprep.subr.bf16.mxu0 0
        %1300 = vmatpush1.bf16.msra.mxu0 0
        %1301 = vmatprep.subr.bf16.mxu0 0
        %1302 = vmatpush1.bf16.msra.mxu0 0
        %1303 = vmatprep.subr.bf16.mxu0 0
        %1304 = vmatpush1.bf16.msra.mxu0 0
        %1305 = vmatprep.subr.bf16.mxu0 0
        %1306 = vmatpush1.bf16.msra.mxu0 0
        %1307 = vmatprep.subr.bf16.mxu0 0
        %1308 = vmatpush1.bf16.msra.mxu0 0
        %1309 = vmatprep.subr.bf16.mxu0 0
        %1310 = vmatpush1.bf16.msra.mxu0 0
        %1311 = vmatprep.subr.bf16.mxu0 0
        %1312 = vmatpush1.bf16.msra.mxu0 0
        %1313 = vmatprep.subr.bf16.mxu0 0
        %1314 = vmatpush1.bf16.msra.mxu0 0
        %1315 = vmatprep.subr.bf16.mxu0 0
        %1316 = vmatpush1.bf16.msra.mxu0 0
        %1317 = vmatprep.subr.bf16.mxu0 0
        %1318 = vmatpush1.bf16.msra.mxu0 0
        %1319 = vmatprep.subr.bf16.mxu0 0
        %1320 = vmatpush1.bf16.msra.mxu0 0
        %1321 = vmatprep.subr.bf16.mxu0 0
        %1322 = vmatpush1.bf16.msra.mxu0 0
        %1323 = vmatprep.mubr.bf16.mxu0 0
        %1324 = vmatmul.mubr.bf16.gmra.mrb[0].mxu0 %v1286
        %v1325 = vpop.f32.mrb[0].mxu0
        %v1326 = vadd.f32 0.0, %v1325
        %v1327 = vpop.f32.mrb[0].mxu0
        %v1328 = vpop.f32.mrb[0].mxu0
        %v1329 = vpop.f32.mrb[0].mxu0
        %1330 = vdwg.mxu0
        %1331 = vrot.lane.b32.xlu0 %v533, 64
        %v1332 = vpop.permute.xlu0 %1331
        %v1334 = vsel %vm921, %v1040, 0
        %v1337 = vsel %vm1047, %v1332, 0
        %1339 = vmatprep.subr.bf16.mxu0 0
        %1340 = vmatpush1.bf16.msra.mxu0 %v1337
        %1341 = vmatprep.subr.bf16.mxu0 0
        %1342 = vmatpush1.bf16.msra.mxu0 0
        %1343 = vmatprep.subr.bf16.mxu0 0
        %1344 = vmatpush1.bf16.msra.mxu0 0
        %1345 = vmatprep.subr.bf16.mxu0 0
        %1346 = vmatpush1.bf16.msra.mxu0 0
        %1347 = vmatprep.subr.bf16.mxu0 0
        %1348 = vmatpush1.bf16.msra.mxu0 0
        %1349 = vmatprep.subr.bf16.mxu0 0
        %1350 = vmatpush1.bf16.msra.mxu0 0
        %1351 = vmatprep.subr.bf16.mxu0 0
        %1352 = vmatpush1.bf16.msra.mxu0 0
        %1353 = vmatprep.subr.bf16.mxu0 0
        %1354 = vmatpush1.bf16.msra.mxu0 0
        %1355 = vmatprep.subr.bf16.mxu0 0
        %1356 = vmatpush1.bf16.msra.mxu0 0
        %1357 = vmatprep.subr.bf16.mxu0 0
        %1358 = vmatpush1.bf16.msra.mxu0 0
        %1359 = vmatprep.subr.bf16.mxu0 0
        %1360 = vmatpush1.bf16.msra.mxu0 0
        %1361 = vmatprep.subr.bf16.mxu0 0
        %1362 = vmatpush1.bf16.msra.mxu0 0
        %1363 = vmatprep.subr.bf16.mxu0 0
        %1364 = vmatpush1.bf16.msra.mxu0 0
        %1365 = vmatprep.subr.bf16.mxu0 0
        %1366 = vmatpush1.bf16.msra.mxu0 0
        %1367 = vmatprep.subr.bf16.mxu0 0
        %1368 = vmatpush1.bf16.msra.mxu0 0
        %1369 = vmatprep.subr.bf16.mxu0 0
        %1370 = vmatpush1.bf16.msra.mxu0 0
        %1371 = vmatprep.mubr.bf16.mxu0 0
        %1372 = vmatmul.mubr.bf16.gmra.mrb[0].mxu0 %v1334
        %v1373 = vpop.f32.mrb[0].mxu0
        %v1374 = vadd.f32 0.0, %v1373
        %v1375 = vpop.f32.mrb[0].mxu0
        %v1376 = vpop.f32.mrb[0].mxu0
        %v1377 = vpop.f32.mrb[0].mxu0
        %1378 = vdwg.mxu0
        %1379 = vrot.lane.b32.xlu0 %v535, 64
        %v1380 = vpop.permute.xlu0 %1379
        %v1382 = vsel %vm921, %v1041, 0
        %v1385 = vsel %vm1047, %v1380, 0
        %1387 = vmatprep.subr.bf16.mxu0 0
        %1388 = vmatpush1.bf16.msra.mxu0 %v1385
        %1389 = vmatprep.subr.bf16.mxu0 0
        %1390 = vmatpush1.bf16.msra.mxu0 0
        %1391 = vmatprep.subr.bf16.mxu0 0
        %1392 = vmatpush1.bf16.msra.mxu0 0
        %1393 = vmatprep.subr.bf16.mxu0 0
        %1394 = vmatpush1.bf16.msra.mxu0 0
        %1395 = vmatprep.subr.bf16.mxu0 0
        %1396 = vmatpush1.bf16.msra.mxu0 0
        %1397 = vmatprep.subr.bf16.mxu0 0
        %1398 = vmatpush1.bf16.msra.mxu0 0
        %1399 = vmatprep.subr.bf16.mxu0 0
        %1400 = vmatpush1.bf16.msra.mxu0 0
        %1401 = vmatprep.subr.bf16.mxu0 0
        %1402 = vmatpush1.bf16.msra.mxu0 0
        %1403 = vmatprep.subr.bf16.mxu0 0
        %1404 = vmatpush1.bf16.msra.mxu0 0
        %1405 = vmatprep.subr.bf16.mxu0 0
        %1406 = vmatpush1.bf16.msra.mxu0 0
        %1407 = vmatprep.subr.bf16.mxu0 0
        %1408 = vmatpush1.bf16.msra.mxu0 0
        %1409 = vmatprep.subr.bf16.mxu0 0
        %1410 = vmatpush1.bf16.msra.mxu0 0
        %1411 = vmatprep.subr.bf16.mxu0 0
        %1412 = vmatpush1.bf16.msra.mxu0 0
        %1413 = vmatprep.subr.bf16.mxu0 0
        %1414 = vmatpush1.bf16.msra.mxu0 0
        %1415 = vmatprep.subr.bf16.mxu0 0
        %1416 = vmatpush1.bf16.msra.mxu0 0
        %1417 = vmatprep.subr.bf16.mxu0 0
        %1418 = vmatpush1.bf16.msra.mxu0 0
        %1419 = vmatprep.mubr.bf16.mxu0 0
        %1420 = vmatmul.mubr.bf16.gmra.mrb[0].mxu0 %v1382
        %v1421 = vpop.f32.mrb[0].mxu0
        %v1422 = vadd.f32 0.0, %v1421
        %v1423 = vpop.f32.mrb[0].mxu0
        %v1424 = vpop.f32.mrb[0].mxu0
        %v1425 = vpop.f32.mrb[0].mxu0
        %1426 = vdwg.mxu0
        %v1427 = vpack.c.bf16 %v1086, %v1086
        %vm1428 = vcmask 27648
        %1429 = vst.msk [vmem:[#allocation2] sm:$0xf] %vm1428, %v1427
        %v1430 = vpack.c.bf16 %v1134, %v1134
        %v1432 = vunpack.c.l.b16 %v1430
        %v1433 = vpack.c.b16 %v1432, %v1432
        %1434 = vrot.lane.b32.xlu0 %v1433, 4
        %v1435 = vpop.permute.xlu0 %1434
        %vm1437 = vcmask 60448
        %1438 = vst.msk [vmem:[#allocation2] sm:$0xf] %vm1437, %v1435
        %v1439 = vpack.c.bf16 %v1182, %v1182
        %v1441 = vunpack.c.l.b16 %v1439
        %v1442 = vpack.c.b16 %v1441, %v1441
        %1443 = vrot.lane.b32.xlu0 %v1442, 8
        %v1444 = vpop.permute.xlu0 %1443
        %vm1446 = vcmask 93248
        %1447 = vst.msk [vmem:[#allocation2] sm:$0xf] %vm1446, %v1444
        %v1448 = vpack.c.bf16 %v1230, %v1230
        %v1450 = vunpack.c.l.b16 %v1448
        %v1451 = vpack.c.b16 %v1450, %v1450
        %1452 = vrot.lane.b32.xlu0 %v1451, 12
        %v1453 = vpop.permute.xlu0 %1452
        %vm1455 = vcmask 126048
        %1456 = vst.msk [vmem:[#allocation2] sm:$0xf] %vm1455, %v1453
        %v1457 = vpack.c.bf16 %v1278, %v1278
        %v1459 = vunpack.c.l.b16 %v1457
        %v1460 = vpack.c.b16 %v1459, %v1459
        %1461 = vrot.lane.b32.xlu0 %v1460, 16
        %v1462 = vpop.permute.xlu0 %1461
        %vm1464 = vcmask 158848
        %1465 = vst.msk [vmem:[#allocation2] sm:$0xf] %vm1464, %v1462
        %v1466 = vpack.c.bf16 %v1326, %v1326
        %v1468 = vunpack.c.l.b16 %v1466
        %v1469 = vpack.c.b16 %v1468, %v1468
        %1470 = vrot.lane.b32.xlu0 %v1469, 20
        %v1471 = vpop.permute.xlu0 %1470
        %vm1473 = vcmask 191648
        %1474 = vst.msk [vmem:[#allocation2] sm:$0xf] %vm1473, %v1471
        %v1475 = vpack.c.bf16 %v1374, %v1374
        %v1477 = vunpack.c.l.b16 %v1475
        %v1478 = vpack.c.b16 %v1477, %v1477
        %1479 = vrot.lane.b32.xlu0 %v1478, 24
        %v1480 = vpop.permute.xlu0 %1479
        %vm1482 = vcmask 224448
        %1483 = vst.msk [vmem:[#allocation2] sm:$0xf] %vm1482, %v1480
        %v1484 = vpack.c.bf16 %v1422, %v1422
        %v1486 = vunpack.c.l.b16 %v1484
        %v1487 = vpack.c.b16 %v1486, %v1486
        %1488 = vrot.lane.b32.xlu0 %v1487, 28
        %v1489 = vpop.permute.xlu0 %1488
        %vm1491 = vcmask 257248
        %1492 = vst.msk [vmem:[#allocation2] sm:$0xf] %vm1491, %v1489
        %v1493 = vld [vmem:[#allocation2] sm:$0xf]
        %v1494 = vld [vmem:[#allocation11] sm:$0xf]
        %v1495 = vld [vmem:[#allocation11 + $0x4] sm:$0xf]
        %v1496 = vld [vmem:[#allocation11 + $0x8] sm:$0xf]
        %v1497 = vld [vmem:[#allocation11 + $0xc] sm:$0xf]
        %v1498 = vlaneseq
        %v1499 = vshrl.u32 %v1498, 7
        %v1500 = vsub.s32 0, %v1499
        %v1501 = vrot.slane %v427, %v1500
        %v1506 = vunpack.c.l.b16 %v1494
        %v1507 = vunpack.c.l.b16 %v1495
        %v1508 = vunpack.c.l.b16 %v1496
        %v1509 = vunpack.c.l.b16 %v1497
        %v1510 = vpack.c.b16 %v1507, %v1506
        %v1511 = vpack.c.b16 %v1509, %v1508
        %v1515 = vsel %vm428, %v1493, 0
        %1517 = vmatprep.subr.bf16.mxu0 0
        %1518 = vmatpush1.bf16.msra.mxu0 %v1510
        %1519 = vmatprep.subr.bf16.mxu0 0
        %1520 = vmatpush1.bf16.msra.mxu0 %v1511
        %1521 = vmatprep.subr.bf16.mxu0 0
        %1522 = vmatpush1.bf16.msra.mxu0 0
        %1523 = vmatprep.subr.bf16.mxu0 0
        %1524 = vmatpush1.bf16.msra.mxu0 0
        %1525 = vmatprep.subr.bf16.mxu0 0
        %1526 = vmatpush1.bf16.msra.mxu0 0
        %1527 = vmatprep.subr.bf16.mxu0 0
        %1528 = vmatpush1.bf16.msra.mxu0 0
        %1529 = vmatprep.subr.bf16.mxu0 0
        %1530 = vmatpush1.bf16.msra.mxu0 0
        %1531 = vmatprep.subr.bf16.mxu0 0
        %1532 = vmatpush1.bf16.msra.mxu0 0
        %1533 = vmatprep.subr.bf16.mxu0 0
        %1534 = vmatpush1.bf16.msra.mxu0 0
        %1535 = vmatprep.subr.bf16.mxu0 0
        %1536 = vmatpush1.bf16.msra.mxu0 0
        %1537 = vmatprep.subr.bf16.mxu0 0
        %1538 = vmatpush1.bf16.msra.mxu0 0
        %1539 = vmatprep.subr.bf16.mxu0 0
        %1540 = vmatpush1.bf16.msra.mxu0 0
        %1541 = vmatprep.subr.bf16.mxu0 0
        %1542 = vmatpush1.bf16.msra.mxu0 0
        %1543 = vmatprep.subr.bf16.mxu0 0
        %1544 = vmatpush1.bf16.msra.mxu0 0
        %1545 = vmatprep.subr.bf16.mxu0 0
        %1546 = vmatpush1.bf16.msra.mxu0 0
        %1547 = vmatprep.subr.bf16.mxu0 0
        %1548 = vmatpush1.bf16.msra.mxu0 0
        %1549 = vmatprep.mubr.bf16.mxu0 0
        %1550 = vmatmul.mubr.bf16.gmra.mrb[0].mxu0 %v1515
        %v1551 = vpop.f32.mrb[0].mxu0
        %v1552 = vadd.f32 %v1501, %v1551
        %v1553 = vpop.f32.mrb[0].mxu0
        %v1554 = vpop.f32.mrb[0].mxu0
        %v1555 = vpop.f32.mrb[0].mxu0
        %1556 = vdwg.mxu0
        %v1557 = vadd.f32 %v424, %v1552
        %v1558 = vsel %vm428, %v1557, 0.0
        %1559 = vadd.xlane.f32.xlu0 %v1558
        %v1560 = vpop.xlane.xlu0 %1559
        %v1561 = vmul.f32 %v1560, %v432
        %v1562 = vsub.f32 %v1557, %v1561
        %v1563 = vmul.f32 %v1562, %v1562
        %v1564 = vsel %vm428, %v1563, 0.0
        %1565 = vadd.xlane.f32.xlu0 %v1564
        %v1566 = vpop.xlane.xlu0 %1565
        %v1567 = vmul.f32 %v1566, %v432
        %v1568 = vadd.f32 %v1567, 1e-05
        %v1569 = vrsqrt.pop %v1568
        %v1570 = vmul.f32 %v1562, %v1569
        %v1571 = vlaneseq
        %v1572 = vshrl.u32 %v1571, 7
        %v1573 = vsub.s32 2, %v1572
        %v1574 = vrot.slane %v425, %v1573
        %v1575 = vmul.f32 %v1570, %v1574
        %v1576 = vlaneseq
        %v1577 = vshrl.u32 %v1576, 7
        %v1578 = vsub.s32 3, %v1577
        %v1579 = vrot.slane %v425, %v1578
        %v1580 = vadd.f32 %v1575, %v1579
        %v1581 = vsel %vm428, %v422, 0.0
        %1582 = vadd.xlane.f32.xlu0 %v1581
        %v1583 = vpop.xlane.xlu0 %1582
        %v1584 = vmul.f32 %v1583, %v432
        %v1585 = vsub.f32 %v422, %v1584
        %v1586 = vmul.f32 %v1585, %v1585
        %v1587 = vsel %vm428, %v1586, 0.0
        %1588 = vadd.xlane.f32.xlu0 %v1587
        %v1589 = vpop.xlane.xlu0 %1588
        %v1590 = vmul.f32 %v1589, %v432
        %v1591 = vadd.f32 %v1590, 1e-05
        %v1592 = vrsqrt.pop %v1591
        %v1593 = vmul.f32 %v1585, %v1592
        %v1594 = vlaneseq
        %v1595 = vshrl.u32 %v1594, 7
        %v1596 = vsub.s32 4, %v1595
        %v1597 = vrot.slane %v425, %v1596
        %v1598 = vmul.f32 %v1593, %v1597
        %v1599 = vlaneseq
        %v1600 = vshrl.u32 %v1599, 7
        %v1601 = vsub.s32 5, %v1600
        %v1602 = vrot.slane %v425, %v1601
        %v1603 = vadd.f32 %v1598, %v1602
        %v1604 = vsel %vm428, %v423, 0.0
        %1605 = vadd.xlane.f32.xlu0 %v1604
        %v1606 = vpop.xlane.xlu0 %1605
        %v1607 = vmul.f32 %v1606, %v432
        %v1608 = vsub.f32 %v423, %v1607
        %v1609 = vmul.f32 %v1608, %v1608
        %v1610 = vsel %vm428, %v1609, 0.0
        %1611 = vadd.xlane.f32.xlu0 %v1610
        %v1612 = vpop.xlane.xlu0 %1611
        %v1613 = vmul.f32 %v1612, %v432
        %v1614 = vadd.f32 %v1613, 1e-05
        %v1615 = vrsqrt.pop %v1614
        %v1616 = vmul.f32 %v1608, %v1615
        %v1617 = vlaneseq
        %v1618 = vshrl.u32 %v1617, 7
        %v1619 = vsub.s32 6, %v1618
        %v1620 = vrot.slane %v425, %v1619
        %v1621 = vmul.f32 %v1616, %v1620
        %v1622 = vlaneseq
        %v1623 = vshrl.u32 %v1622, 7
        %v1624 = vsub.s32 7, %v1623
        %v1625 = vrot.slane %v425, %v1624
        %v1626 = vadd.f32 %v1621, %v1625
        %s1627 = scalar_lea.vmem [#allocation11], 16
        %v1628 = vld [vmem:[%s1627] sm:$0xf]
        %v1629 = vld [vmem:[%s1627 + $0x4] sm:$0xf]
        %v1630 = vld [vmem:[%s1627 + $0x8] sm:$0xf]
        %v1631 = vld [vmem:[%s1627 + $0xc] sm:$0xf]
        %v1632 = vpack.c.bf16 %v1603, %v1603
        %v1633 = vlaneseq
        %v1634 = vshrl.u32 %v1633, 7
        %v1635 = vsub.s32 1, %v1634
        %v1636 = vrot.slane %v427, %v1635
        %v1641 = vunpack.c.l.b16 %v1628
        %v1642 = vunpack.c.l.b16 %v1629
        %v1643 = vunpack.c.l.b16 %v1630
        %v1644 = vunpack.c.l.b16 %v1631
        %v1645 = vpack.c.b16 %v1642, %v1641
        %v1646 = vpack.c.b16 %v1644, %v1643
        %v1650 = vsel %vm428, %v1632, 0
        %1652 = vmatprep.subr.bf16.mxu0 0
        %1653 = vmatpush1.bf16.msra.mxu0 %v1645
        %1654 = vmatprep.subr.bf16.mxu0 0
        %1655 = vmatpush1.bf16.msra.mxu0 %v1646
        %1656 = vmatprep.subr.bf16.mxu0 0
        %1657 = vmatpush1.bf16.msra.mxu0 0
        %1658 = vmatprep.subr.bf16.mxu0 0
        %1659 = vmatpush1.bf16.msra.mxu0 0
        %1660 = vmatprep.subr.bf16.mxu0 0
        %1661 = vmatpush1.bf16.msra.mxu0 0
        %1662 = vmatprep.subr.bf16.mxu0 0
        %1663 = vmatpush1.bf16.msra.mxu0 0
        %1664 = vmatprep.subr.bf16.mxu0 0
        %1665 = vmatpush1.bf16.msra.mxu0 0
        %1666 = vmatprep.subr.bf16.mxu0 0
        %1667 = vmatpush1.bf16.msra.mxu0 0
        %1668 = vmatprep.subr.bf16.mxu0 0
        %1669 = vmatpush1.bf16.msra.mxu0 0
        %1670 = vmatprep.subr.bf16.mxu0 0
        %1671 = vmatpush1.bf16.msra.mxu0 0
        %1672 = vmatprep.subr.bf16.mxu0 0
        %1673 = vmatpush1.bf16.msra.mxu0 0
        %1674 = vmatprep.subr.bf16.mxu0 0
        %1675 = vmatpush1.bf16.msra.mxu0 0
        %1676 = vmatprep.subr.bf16.mxu0 0
        %1677 = vmatpush1.bf16.msra.mxu0 0
        %1678 = vmatprep.subr.bf16.mxu0 0
        %1679 = vmatpush1.bf16.msra.mxu0 0
        %1680 = vmatprep.subr.bf16.mxu0 0
        %1681 = vmatpush1.bf16.msra.mxu0 0
        %1682 = vmatprep.subr.bf16.mxu0 0
        %1683 = vmatpush1.bf16.msra.mxu0 0
        %1684 = vmatprep.mubr.bf16.mxu0 0
        %1685 = vmatmul.mubr.bf16.gmra.mrb[0].mxu0 %v1650
        %v1686 = vpop.f32.mrb[0].mxu0
        %v1687 = vadd.f32 %v1636, %v1686
        %v1688 = vpop.f32.mrb[0].mxu0
        %v1689 = vpop.f32.mrb[0].mxu0
        %v1690 = vpop.f32.mrb[0].mxu0
        %1691 = vdwg.mxu0
        %s1692 = scalar_lea.vmem [#allocation11], 32
        %v1693 = vld [vmem:[%s1692] sm:$0xf]
        %v1694 = vld [vmem:[%s1692 + $0x4] sm:$0xf]
        %v1695 = vld [vmem:[%s1692 + $0x8] sm:$0xf]
        %v1696 = vld [vmem:[%s1692 + $0xc] sm:$0xf]
        %v1697 = vpack.c.bf16 %v1626, %v1626
        %v1698 = vlaneseq
        %v1699 = vshrl.u32 %v1698, 7
        %v1700 = vsub.s32 2, %v1699
        %v1701 = vrot.slane %v427, %v1700
        %v1706 = vunpack.c.l.b16 %v1693
        %v1707 = vunpack.c.l.b16 %v1694
        %v1708 = vunpack.c.l.b16 %v1695
        %v1709 = vunpack.c.l.b16 %v1696
        %v1710 = vpack.c.b16 %v1707, %v1706
        %v1711 = vpack.c.b16 %v1709, %v1708
        %v1715 = vsel %vm428, %v1697, 0
        %1717 = vmatprep.subr.bf16.mxu0 0
        %1718 = vmatpush1.bf16.msra.mxu0 %v1710
        %1719 = vmatprep.subr.bf16.mxu0 0
        %1720 = vmatpush1.bf16.msra.mxu0 %v1711
        %1721 = vmatprep.subr.bf16.mxu0 0
        %1722 = vmatpush1.bf16.msra.mxu0 0
        %1723 = vmatprep.subr.bf16.mxu0 0
        %1724 = vmatpush1.bf16.msra.mxu0 0
        %1725 = vmatprep.subr.bf16.mxu0 0
        %1726 = vmatpush1.bf16.msra.mxu0 0
        %1727 = vmatprep.subr.bf16.mxu0 0
        %1728 = vmatpush1.bf16.msra.mxu0 0
        %1729 = vmatprep.subr.bf16.mxu0 0
        %1730 = vmatpush1.bf16.msra.mxu0 0
        %1731 = vmatprep.subr.bf16.mxu0 0
        %1732 = vmatpush1.bf16.msra.mxu0 0
        %1733 = vmatprep.subr.bf16.mxu0 0
        %1734 = vmatpush1.bf16.msra.mxu0 0
        %1735 = vmatprep.subr.bf16.mxu0 0
        %1736 = vmatpush1.bf16.msra.mxu0 0
        %1737 = vmatprep.subr.bf16.mxu0 0
        %1738 = vmatpush1.bf16.msra.mxu0 0
        %1739 = vmatprep.subr.bf16.mxu0 0
        %1740 = vmatpush1.bf16.msra.mxu0 0
        %1741 = vmatprep.subr.bf16.mxu0 0
        %1742 = vmatpush1.bf16.msra.mxu0 0
        %1743 = vmatprep.subr.bf16.mxu0 0
        %1744 = vmatpush1.bf16.msra.mxu0 0
        %1745 = vmatprep.subr.bf16.mxu0 0
        %1746 = vmatpush1.bf16.msra.mxu0 0
        %1747 = vmatprep.subr.bf16.mxu0 0
        %1748 = vmatpush1.bf16.msra.mxu0 0
        %1749 = vmatprep.mubr.bf16.mxu0 0
        %1750 = vmatmul.mubr.bf16.gmra.mrb[0].mxu0 %v1715
        %v1751 = vpop.f32.mrb[0].mxu0
        %v1752 = vadd.f32 %v1701, %v1751
        %v1753 = vpop.f32.mrb[0].mxu0
        %v1754 = vpop.f32.mrb[0].mxu0
        %v1755 = vpop.f32.mrb[0].mxu0
        %1756 = vdwg.mxu0
        %s1757 = scalar_lea.vmem [#allocation11], 48
        %v1758 = vld [vmem:[%s1757] sm:$0xf]
        %v1759 = vld [vmem:[%s1757 + $0x4] sm:$0xf]
        %v1760 = vld [vmem:[%s1757 + $0x8] sm:$0xf]
        %v1761 = vld [vmem:[%s1757 + $0xc] sm:$0xf]
        %v1762 = vpack.c.bf16 %v1580, %v1580
        %v1763 = vlaneseq
        %v1764 = vshrl.u32 %v1763, 7
        %v1765 = vsub.s32 3, %v1764
        %v1766 = vrot.slane %v427, %v1765
        %v1771 = vunpack.c.l.b16 %v1758
        %v1772 = vunpack.c.l.b16 %v1759
        %v1773 = vunpack.c.l.b16 %v1760
        %v1774 = vunpack.c.l.b16 %v1761
        %v1775 = vpack.c.b16 %v1772, %v1771
        %v1776 = vpack.c.b16 %v1774, %v1773
        %v1780 = vsel %vm428, %v1762, 0
        %1782 = vmatprep.subr.bf16.mxu0 0
        %1783 = vmatpush1.bf16.msra.mxu0 %v1775
        %1784 = vmatprep.subr.bf16.mxu0 0
        %1785 = vmatpush1.bf16.msra.mxu0 %v1776
        %1786 = vmatprep.subr.bf16.mxu0 0
        %1787 = vmatpush1.bf16.msra.mxu0 0
        %1788 = vmatprep.subr.bf16.mxu0 0
        %1789 = vmatpush1.bf16.msra.mxu0 0
        %1790 = vmatprep.subr.bf16.mxu0 0
        %1791 = vmatpush1.bf16.msra.mxu0 0
        %1792 = vmatprep.subr.bf16.mxu0 0
        %1793 = vmatpush1.bf16.msra.mxu0 0
        %1794 = vmatprep.subr.bf16.mxu0 0
        %1795 = vmatpush1.bf16.msra.mxu0 0
        %1796 = vmatprep.subr.bf16.mxu0 0
        %1797 = vmatpush1.bf16.msra.mxu0 0
        %1798 = vmatprep.subr.bf16.mxu0 0
        %1799 = vmatpush1.bf16.msra.mxu0 0
        %1800 = vmatprep.subr.bf16.mxu0 0
        %1801 = vmatpush1.bf16.msra.mxu0 0
        %1802 = vmatprep.subr.bf16.mxu0 0
        %1803 = vmatpush1.bf16.msra.mxu0 0
        %1804 = vmatprep.subr.bf16.mxu0 0
        %1805 = vmatpush1.bf16.msra.mxu0 0
        %1806 = vmatprep.subr.bf16.mxu0 0
        %1807 = vmatpush1.bf16.msra.mxu0 0
        %1808 = vmatprep.subr.bf16.mxu0 0
        %1809 = vmatpush1.bf16.msra.mxu0 0
        %1810 = vmatprep.subr.bf16.mxu0 0
        %1811 = vmatpush1.bf16.msra.mxu0 0
        %1812 = vmatprep.subr.bf16.mxu0 0
        %1813 = vmatpush1.bf16.msra.mxu0 0
        %1814 = vmatprep.mubr.bf16.mxu0 0
        %1815 = vmatmul.mubr.bf16.gmra.mrb[0].mxu0 %v1780
        %v1816 = vpop.f32.mrb[0].mxu0
        %v1817 = vadd.f32 %v1766, %v1816
        %v1818 = vpop.f32.mrb[0].mxu0
        %v1819 = vpop.f32.mrb[0].mxu0
        %v1820 = vpop.f32.mrb[0].mxu0
        %1821 = vdwg.mxu0
        %v1822 = vpack.c.bf16 %v1687, %v1687
        %1824 = vrot.lane.b32.xlu0 %v1822, 124
        %v1825 = vpop.permute.xlu0 %1824
        %1826 = vrot.lane.b32.xlu0 %v1822, 120
        %v1827 = vpop.permute.xlu0 %1826
        %1828 = vrot.lane.b32.xlu0 %v1822, 116
        %v1829 = vpop.permute.xlu0 %1828
        %1830 = vrot.lane.b32.xlu0 %v1822, 112
        %v1831 = vpop.permute.xlu0 %1830
        %1832 = vrot.lane.b32.xlu0 %v1822, 108
        %v1833 = vpop.permute.xlu0 %1832
        %1834 = vrot.lane.b32.xlu0 %v1822, 104
        %v1835 = vpop.permute.xlu0 %1834
        %1836 = vrot.lane.b32.xlu0 %v1822, 100
        %v1837 = vpop.permute.xlu0 %1836
        %v1838 = vpack.c.bf16 %v1752, %v1752
        %1840 = vrot.lane.b32.xlu0 %v1838, 124
        %v1841 = vpop.permute.xlu0 %1840
        %1842 = vrot.lane.b32.xlu0 %v1838, 120
        %v1843 = vpop.permute.xlu0 %1842
        %1844 = vrot.lane.b32.xlu0 %v1838, 116
        %v1845 = vpop.permute.xlu0 %1844
        %1846 = vrot.lane.b32.xlu0 %v1838, 112
        %v1847 = vpop.permute.xlu0 %1846
        %1848 = vrot.lane.b32.xlu0 %v1838, 108
        %v1849 = vpop.permute.xlu0 %1848
        %1850 = vrot.lane.b32.xlu0 %v1838, 104
        %v1851 = vpop.permute.xlu0 %1850
        %1852 = vrot.lane.b32.xlu0 %v1838, 100
        %v1853 = vpop.permute.xlu0 %1852
        %v1854 = vpack.c.bf16 %v1817, %v1817
        %1856 = vrot.lane.b32.xlu0 %v1854, 124
        %v1857 = vpop.permute.xlu0 %1856
        %1858 = vrot.lane.b32.xlu0 %v1854, 120
        %v1859 = vpop.permute.xlu0 %1858
        %1860 = vrot.lane.b32.xlu0 %v1854, 116
        %v1861 = vpop.permute.xlu0 %1860
        %1862 = vrot.lane.b32.xlu0 %v1854, 112
        %v1863 = vpop.permute.xlu0 %1862
        %1864 = vrot.lane.b32.xlu0 %v1854, 108
        %v1865 = vpop.permute.xlu0 %1864
        %1866 = vrot.lane.b32.xlu0 %v1854, 104
        %v1867 = vpop.permute.xlu0 %1866
        %1868 = vrot.lane.b32.xlu0 %v1854, 100
        %v1869 = vpop.permute.xlu0 %1868
        %v1871 = vsel %vm538, %v1822, 0
        %v1874 = vsel %vm538, %v1838, 0
        %1876 = vmatprep.subr.bf16.mxu0 0
        %1877 = vmatpush1.bf16.xpose.msra.mxu0 %v1874
        %1878 = vmatprep.subr.bf16.mxu0 0
        %1879 = vmatpush1.bf16.xpose.msra.mxu0 0
        %1880 = vmatprep.subr.bf16.mxu0 0
        %1881 = vmatpush1.bf16.xpose.msra.mxu0 0
        %1882 = vmatprep.subr.bf16.mxu0 0
        %1883 = vmatpush1.bf16.xpose.msra.mxu0 0
        %1884 = vmatprep.subr.bf16.mxu0 0
        %1885 = vmatpush1.bf16.xpose.msra.mxu0 0
        %1886 = vmatprep.subr.bf16.mxu0 0
        %1887 = vmatpush1.bf16.xpose.msra.mxu0 0
        %1888 = vmatprep.subr.bf16.mxu0 0
        %1889 = vmatpush1.bf16.xpose.msra.mxu0 0
        %1890 = vmatprep.subr.bf16.mxu0 0
        %1891 = vmatpush1.bf16.xpose.msra.mxu0 0
        %1892 = vmatprep.subr.bf16.mxu0 0
        %1893 = vmatpush1.bf16.xpose.msra.mxu0 0
        %1894 = vmatprep.subr.bf16.mxu0 0
        %1895 = vmatpush1.bf16.xpose.msra.mxu0 0
        %1896 = vmatprep.subr.bf16.mxu0 0
        %1897 = vmatpush1.bf16.xpose.msra.mxu0 0
        %1898 = vmatprep.subr.bf16.mxu0 0
        %1899 = vmatpush1.bf16.xpose.msra.mxu0 0
        %1900 = vmatprep.subr.bf16.mxu0 0
        %1901 = vmatpush1.bf16.xpose.msra.mxu0 0
        %1902 = vmatprep.subr.bf16.mxu0 0
        %1903 = vmatpush1.bf16.xpose.msra.mxu0 0
        %1904 = vmatprep.subr.bf16.mxu0 0
        %1905 = vmatpush1.bf16.xpose.msra.mxu0 0
        %1906 = vmatprep.subr.bf16.mxu0 0
        %1907 = vmatpush1.bf16.xpose.msra.mxu0 0
        %1908 = vmatprep.mubr.bf16.mxu0 0
        %1909 = vmatmul.mubr.bf16.gmra.mrb[0].mxu0 %v1871
        %v1910 = vpop.f32.mrb[0].mxu0
        %v1911 = vadd.f32 0.0, %v1910
        %v1912 = vpop.f32.mrb[0].mxu0
        %v1913 = vpop.f32.mrb[0].mxu0
        %v1914 = vpop.f32.mrb[0].mxu0
        %1915 = vdwg.mxu0
        %v1917 = vsel %vm538, %v1825, 0
        %v1920 = vsel %vm538, %v1841, 0
        %1922 = vmatprep.subr.bf16.mxu0 0
        %1923 = vmatpush1.bf16.xpose.msra.mxu0 %v1920
        %1924 = vmatprep.subr.bf16.mxu0 0
        %1925 = vmatpush1.bf16.xpose.msra.mxu0 0
        %1926 = vmatprep.subr.bf16.mxu0 0
        %1927 = vmatpush1.bf16.xpose.msra.mxu0 0
        %1928 = vmatprep.subr.bf16.mxu0 0
        %1929 = vmatpush1.bf16.xpose.msra.mxu0 0
        %1930 = vmatprep.subr.bf16.mxu0 0
        %1931 = vmatpush1.bf16.xpose.msra.mxu0 0
        %1932 = vmatprep.subr.bf16.mxu0 0
        %1933 = vmatpush1.bf16.xpose.msra.mxu0 0
        %1934 = vmatprep.subr.bf16.mxu0 0
        %1935 = vmatpush1.bf16.xpose.msra.mxu0 0
        %1936 = vmatprep.subr.bf16.mxu0 0
        %1937 = vmatpush1.bf16.xpose.msra.mxu0 0
        %1938 = vmatprep.subr.bf16.mxu0 0
        %1939 = vmatpush1.bf16.xpose.msra.mxu0 0
        %1940 = vmatprep.subr.bf16.mxu0 0
        %1941 = vmatpush1.bf16.xpose.msra.mxu0 0
        %1942 = vmatprep.subr.bf16.mxu0 0
        %1943 = vmatpush1.bf16.xpose.msra.mxu0 0
        %1944 = vmatprep.subr.bf16.mxu0 0
        %1945 = vmatpush1.bf16.xpose.msra.mxu0 0
        %1946 = vmatprep.subr.bf16.mxu0 0
        %1947 = vmatpush1.bf16.xpose.msra.mxu0 0
        %1948 = vmatprep.subr.bf16.mxu0 0
        %1949 = vmatpush1.bf16.xpose.msra.mxu0 0
        %1950 = vmatprep.subr.bf16.mxu0 0
        %1951 = vmatpush1.bf16.xpose.msra.mxu0 0
        %1952 = vmatprep.subr.bf16.mxu0 0
        %1953 = vmatpush1.bf16.xpose.msra.mxu0 0
        %1954 = vmatprep.mubr.bf16.mxu0 0
        %1955 = vmatmul.mubr.bf16.gmra.mrb[0].mxu0 %v1917
        %v1956 = vpop.f32.mrb[0].mxu0
        %v1957 = vadd.f32 0.0, %v1956
        %v1958 = vpop.f32.mrb[0].mxu0
        %v1959 = vpop.f32.mrb[0].mxu0
        %v1960 = vpop.f32.mrb[0].mxu0
        %1961 = vdwg.mxu0
        %v1963 = vsel %vm538, %v1827, 0
        %v1966 = vsel %vm538, %v1843, 0
        %1968 = vmatprep.subr.bf16.mxu0 0
        %1969 = vmatpush1.bf16.xpose.msra.mxu0 %v1966
        %1970 = vmatprep.subr.bf16.mxu0 0
        %1971 = vmatpush1.bf16.xpose.msra.mxu0 0
        %1972 = vmatprep.subr.bf16.mxu0 0
        %1973 = vmatpush1.bf16.xpose.msra.mxu0 0
        %1974 = vmatprep.subr.bf16.mxu0 0
        %1975 = vmatpush1.bf16.xpose.msra.mxu0 0
        %1976 = vmatprep.subr.bf16.mxu0 0
        %1977 = vmatpush1.bf16.xpose.msra.mxu0 0
        %1978 = vmatprep.subr.bf16.mxu0 0
        %1979 = vmatpush1.bf16.xpose.msra.mxu0 0
        %1980 = vmatprep.subr.bf16.mxu0 0
        %1981 = vmatpush1.bf16.xpose.msra.mxu0 0
        %1982 = vmatprep.subr.bf16.mxu0 0
        %1983 = vmatpush1.bf16.xpose.msra.mxu0 0
        %1984 = vmatprep.subr.bf16.mxu0 0
        %1985 = vmatpush1.bf16.xpose.msra.mxu0 0
        %1986 = vmatprep.subr.bf16.mxu0 0
        %1987 = vmatpush1.bf16.xpose.msra.mxu0 0
        %1988 = vmatprep.subr.bf16.mxu0 0
        %1989 = vmatpush1.bf16.xpose.msra.mxu0 0
        %1990 = vmatprep.subr.bf16.mxu0 0
        %1991 = vmatpush1.bf16.xpose.msra.mxu0 0
        %1992 = vmatprep.subr.bf16.mxu0 0
        %1993 = vmatpush1.bf16.xpose.msra.mxu0 0
        %1994 = vmatprep.subr.bf16.mxu0 0
        %1995 = vmatpush1.bf16.xpose.msra.mxu0 0
        %1996 = vmatprep.subr.bf16.mxu0 0
        %1997 = vmatpush1.bf16.xpose.msra.mxu0 0
        %1998 = vmatprep.subr.bf16.mxu0 0
        %1999 = vmatpush1.bf16.xpose.msra.mxu0 0
        %2000 = vmatprep.mubr.bf16.mxu0 0
        %2001 = vmatmul.mubr.bf16.gmra.mrb[0].mxu0 %v1963
        %v2002 = vpop.f32.mrb[0].mxu0
        %v2003 = vadd.f32 0.0, %v2002
        %v2004 = vpop.f32.mrb[0].mxu0
        %v2005 = vpop.f32.mrb[0].mxu0
        %v2006 = vpop.f32.mrb[0].mxu0
        %2007 = vdwg.mxu0
        %v2009 = vsel %vm538, %v1829, 0
        %v2012 = vsel %vm538, %v1845, 0
        %2014 = vmatprep.subr.bf16.mxu0 0
        %2015 = vmatpush1.bf16.xpose.msra.mxu0 %v2012
        %2016 = vmatprep.subr.bf16.mxu0 0
        %2017 = vmatpush1.bf16.xpose.msra.mxu0 0
        %2018 = vmatprep.subr.bf16.mxu0 0
        %2019 = vmatpush1.bf16.xpose.msra.mxu0 0
        %2020 = vmatprep.subr.bf16.mxu0 0
        %2021 = vmatpush1.bf16.xpose.msra.mxu0 0
        %2022 = vmatprep.subr.bf16.mxu0 0
        %2023 = vmatpush1.bf16.xpose.msra.mxu0 0
        %2024 = vmatprep.subr.bf16.mxu0 0
        %2025 = vmatpush1.bf16.xpose.msra.mxu0 0
        %2026 = vmatprep.subr.bf16.mxu0 0
        %2027 = vmatpush1.bf16.xpose.msra.mxu0 0
        %2028 = vmatprep.subr.bf16.mxu0 0
        %2029 = vmatpush1.bf16.xpose.msra.mxu0 0
        %2030 = vmatprep.subr.bf16.mxu0 0
        %2031 = vmatpush1.bf16.xpose.msra.mxu0 0
        %2032 = vmatprep.subr.bf16.mxu0 0
        %2033 = vmatpush1.bf16.xpose.msra.mxu0 0
        %2034 = vmatprep.subr.bf16.mxu0 0
        %2035 = vmatpush1.bf16.xpose.msra.mxu0 0
        %2036 = vmatprep.subr.bf16.mxu0 0
        %2037 = vmatpush1.bf16.xpose.msra.mxu0 0
        %2038 = vmatprep.subr.bf16.mxu0 0
        %2039 = vmatpush1.bf16.xpose.msra.mxu0 0
        %2040 = vmatprep.subr.bf16.mxu0 0
        %2041 = vmatpush1.bf16.xpose.msra.mxu0 0
        %2042 = vmatprep.subr.bf16.mxu0 0
        %2043 = vmatpush1.bf16.xpose.msra.mxu0 0
        %2044 = vmatprep.subr.bf16.mxu0 0
        %2045 = vmatpush1.bf16.xpose.msra.mxu0 0
        %2046 = vmatprep.mubr.bf16.mxu0 0
        %2047 = vmatmul.mubr.bf16.gmra.mrb[0].mxu0 %v2009
        %v2048 = vpop.f32.mrb[0].mxu0
        %v2049 = vadd.f32 0.0, %v2048
        %v2050 = vpop.f32.mrb[0].mxu0
        %v2051 = vpop.f32.mrb[0].mxu0
        %v2052 = vpop.f32.mrb[0].mxu0
        %2053 = vdwg.mxu0
        %v2055 = vsel %vm538, %v1831, 0
        %v2058 = vsel %vm538, %v1847, 0
        %2060 = vmatprep.subr.bf16.mxu0 0
        %2061 = vmatpush1.bf16.xpose.msra.mxu0 %v2058
        %2062 = vmatprep.subr.bf16.mxu0 0
        %2063 = vmatpush1.bf16.xpose.msra.mxu0 0
        %2064 = vmatprep.subr.bf16.mxu0 0
        %2065 = vmatpush1.bf16.xpose.msra.mxu0 0
        %2066 = vmatprep.subr.bf16.mxu0 0
        %2067 = vmatpush1.bf16.xpose.msra.mxu0 0
        %2068 = vmatprep.subr.bf16.mxu0 0
        %2069 = vmatpush1.bf16.xpose.msra.mxu0 0
        %2070 = vmatprep.subr.bf16.mxu0 0
        %2071 = vmatpush1.bf16.xpose.msra.mxu0 0
        %2072 = vmatprep.subr.bf16.mxu0 0
        %2073 = vmatpush1.bf16.xpose.msra.mxu0 0
        %2074 = vmatprep.subr.bf16.mxu0 0
        %2075 = vmatpush1.bf16.xpose.msra.mxu0 0
        %2076 = vmatprep.subr.bf16.mxu0 0
        %2077 = vmatpush1.bf16.xpose.msra.mxu0 0
        %2078 = vmatprep.subr.bf16.mxu0 0
        %2079 = vmatpush1.bf16.xpose.msra.mxu0 0
        %2080 = vmatprep.subr.bf16.mxu0 0
        %2081 = vmatpush1.bf16.xpose.msra.mxu0 0
        %2082 = vmatprep.subr.bf16.mxu0 0
        %2083 = vmatpush1.bf16.xpose.msra.mxu0 0
        %2084 = vmatprep.subr.bf16.mxu0 0
        %2085 = vmatpush1.bf16.xpose.msra.mxu0 0
        %2086 = vmatprep.subr.bf16.mxu0 0
        %2087 = vmatpush1.bf16.xpose.msra.mxu0 0
        %2088 = vmatprep.subr.bf16.mxu0 0
        %2089 = vmatpush1.bf16.xpose.msra.mxu0 0
        %2090 = vmatprep.subr.bf16.mxu0 0
        %2091 = vmatpush1.bf16.xpose.msra.mxu0 0
        %2092 = vmatprep.mubr.bf16.mxu0 0
        %2093 = vmatmul.mubr.bf16.gmra.mrb[0].mxu0 %v2055
        %v2094 = vpop.f32.mrb[0].mxu0
        %v2095 = vadd.f32 0.0, %v2094
        %v2096 = vpop.f32.mrb[0].mxu0
        %v2097 = vpop.f32.mrb[0].mxu0
        %v2098 = vpop.f32.mrb[0].mxu0
        %2099 = vdwg.mxu0
        %v2101 = vsel %vm538, %v1833, 0
        %v2104 = vsel %vm538, %v1849, 0
        %2106 = vmatprep.subr.bf16.mxu0 0
        %2107 = vmatpush1.bf16.xpose.msra.mxu0 %v2104
        %2108 = vmatprep.subr.bf16.mxu0 0
        %2109 = vmatpush1.bf16.xpose.msra.mxu0 0
        %2110 = vmatprep.subr.bf16.mxu0 0
        %2111 = vmatpush1.bf16.xpose.msra.mxu0 0
        %2112 = vmatprep.subr.bf16.mxu0 0
        %2113 = vmatpush1.bf16.xpose.msra.mxu0 0
        %2114 = vmatprep.subr.bf16.mxu0 0
        %2115 = vmatpush1.bf16.xpose.msra.mxu0 0
        %2116 = vmatprep.subr.bf16.mxu0 0
        %2117 = vmatpush1.bf16.xpose.msra.mxu0 0
        %2118 = vmatprep.subr.bf16.mxu0 0
        %2119 = vmatpush1.bf16.xpose.msra.mxu0 0
        %2120 = vmatprep.subr.bf16.mxu0 0
        %2121 = vmatpush1.bf16.xpose.msra.mxu0 0
        %2122 = vmatprep.subr.bf16.mxu0 0
        %2123 = vmatpush1.bf16.xpose.msra.mxu0 0
        %2124 = vmatprep.subr.bf16.mxu0 0
        %2125 = vmatpush1.bf16.xpose.msra.mxu0 0
        %2126 = vmatprep.subr.bf16.mxu0 0
        %2127 = vmatpush1.bf16.xpose.msra.mxu0 0
        %2128 = vmatprep.subr.bf16.mxu0 0
        %2129 = vmatpush1.bf16.xpose.msra.mxu0 0
        %2130 = vmatprep.subr.bf16.mxu0 0
        %2131 = vmatpush1.bf16.xpose.msra.mxu0 0
        %2132 = vmatprep.subr.bf16.mxu0 0
        %2133 = vmatpush1.bf16.xpose.msra.mxu0 0
        %2134 = vmatprep.subr.bf16.mxu0 0
        %2135 = vmatpush1.bf16.xpose.msra.mxu0 0
        %2136 = vmatprep.subr.bf16.mxu0 0
        %2137 = vmatpush1.bf16.xpose.msra.mxu0 0
        %2138 = vmatprep.mubr.bf16.mxu0 0
        %2139 = vmatmul.mubr.bf16.gmra.mrb[0].mxu0 %v2101
        %v2140 = vpop.f32.mrb[0].mxu0
        %v2141 = vadd.f32 0.0, %v2140
        %v2142 = vpop.f32.mrb[0].mxu0
        %v2143 = vpop.f32.mrb[0].mxu0
        %v2144 = vpop.f32.mrb[0].mxu0
        %2145 = vdwg.mxu0
        %v2147 = vsel %vm538, %v1835, 0
        %v2150 = vsel %vm538, %v1851, 0
        %2152 = vmatprep.subr.bf16.mxu0 0
        %2153 = vmatpush1.bf16.xpose.msra.mxu0 %v2150
        %2154 = vmatprep.subr.bf16.mxu0 0
        %2155 = vmatpush1.bf16.xpose.msra.mxu0 0
        %2156 = vmatprep.subr.bf16.mxu0 0
        %2157 = vmatpush1.bf16.xpose.msra.mxu0 0
        %2158 = vmatprep.subr.bf16.mxu0 0
        %2159 = vmatpush1.bf16.xpose.msra.mxu0 0
        %2160 = vmatprep.subr.bf16.mxu0 0
        %2161 = vmatpush1.bf16.xpose.msra.mxu0 0
        %2162 = vmatprep.subr.bf16.mxu0 0
        %2163 = vmatpush1.bf16.xpose.msra.mxu0 0
        %2164 = vmatprep.subr.bf16.mxu0 0
        %2165 = vmatpush1.bf16.xpose.msra.mxu0 0
        %2166 = vmatprep.subr.bf16.mxu0 0
        %2167 = vmatpush1.bf16.xpose.msra.mxu0 0
        %2168 = vmatprep.subr.bf16.mxu0 0
        %2169 = vmatpush1.bf16.xpose.msra.mxu0 0
        %2170 = vmatprep.subr.bf16.mxu0 0
        %2171 = vmatpush1.bf16.xpose.msra.mxu0 0
        %2172 = vmatprep.subr.bf16.mxu0 0
        %2173 = vmatpush1.bf16.xpose.msra.mxu0 0
        %2174 = vmatprep.subr.bf16.mxu0 0
        %2175 = vmatpush1.bf16.xpose.msra.mxu0 0
        %2176 = vmatprep.subr.bf16.mxu0 0
        %2177 = vmatpush1.bf16.xpose.msra.mxu0 0
        %2178 = vmatprep.subr.bf16.mxu0 0
        %2179 = vmatpush1.bf16.xpose.msra.mxu0 0
        %2180 = vmatprep.subr.bf16.mxu0 0
        %2181 = vmatpush1.bf16.xpose.msra.mxu0 0
        %2182 = vmatprep.subr.bf16.mxu0 0
        %2183 = vmatpush1.bf16.xpose.msra.mxu0 0
        %2184 = vmatprep.mubr.bf16.mxu0 0
        %2185 = vmatmul.mubr.bf16.gmra.mrb[0].mxu0 %v2147
        %v2186 = vpop.f32.mrb[0].mxu0
        %v2187 = vadd.f32 0.0, %v2186
        %v2188 = vpop.f32.mrb[0].mxu0
        %v2189 = vpop.f32.mrb[0].mxu0
        %v2190 = vpop.f32.mrb[0].mxu0
        %2191 = vdwg.mxu0
        %v2193 = vsel %vm538, %v1837, 0
        %v2196 = vsel %vm538, %v1853, 0
        %2198 = vmatprep.subr.bf16.mxu0 0
        %2199 = vmatpush1.bf16.xpose.msra.mxu0 %v2196
        %2200 = vmatprep.subr.bf16.mxu0 0
        %2201 = vmatpush1.bf16.xpose.msra.mxu0 0
        %2202 = vmatprep.subr.bf16.mxu0 0
        %2203 = vmatpush1.bf16.xpose.msra.mxu0 0
        %2204 = vmatprep.subr.bf16.mxu0 0
        %2205 = vmatpush1.bf16.xpose.msra.mxu0 0
        %2206 = vmatprep.subr.bf16.mxu0 0
        %2207 = vmatpush1.bf16.xpose.msra.mxu0 0
        %2208 = vmatprep.subr.bf16.mxu0 0
        %2209 = vmatpush1.bf16.xpose.msra.mxu0 0
        %2210 = vmatprep.subr.bf16.mxu0 0
        %2211 = vmatpush1.bf16.xpose.msra.mxu0 0
        %2212 = vmatprep.subr.bf16.mxu0 0
        %2213 = vmatpush1.bf16.xpose.msra.mxu0 0
        %2214 = vmatprep.subr.bf16.mxu0 0
        %2215 = vmatpush1.bf16.xpose.msra.mxu0 0
        %2216 = vmatprep.subr.bf16.mxu0 0
        %2217 = vmatpush1.bf16.xpose.msra.mxu0 0
        %2218 = vmatprep.subr.bf16.mxu0 0
        %2219 = vmatpush1.bf16.xpose.msra.mxu0 0
        %2220 = vmatprep.subr.bf16.mxu0 0
        %2221 = vmatpush1.bf16.xpose.msra.mxu0 0
        %2222 = vmatprep.subr.bf16.mxu0 0
        %2223 = vmatpush1.bf16.xpose.msra.mxu0 0
        %2224 = vmatprep.subr.bf16.mxu0 0
        %2225 = vmatpush1.bf16.xpose.msra.mxu0 0
        %2226 = vmatprep.subr.bf16.mxu0 0
        %2227 = vmatpush1.bf16.xpose.msra.mxu0 0
        %2228 = vmatprep.subr.bf16.mxu0 0
        %2229 = vmatpush1.bf16.xpose.msra.mxu0 0
        %2230 = vmatprep.mubr.bf16.mxu0 0
        %2231 = vmatmul.mubr.bf16.gmra.mrb[0].mxu0 %v2193
        %v2232 = vpop.f32.mrb[0].mxu0
        %v2233 = vadd.f32 0.0, %v2232
        %v2234 = vpop.f32.mrb[0].mxu0
        %v2235 = vpop.f32.mrb[0].mxu0
        %v2236 = vpop.f32.mrb[0].mxu0
        %2237 = vdwg.mxu0
        %v2238 = vsel %vm921, %v1911, -inf
        %2239 = vmax.xlane.f32.xlu0 %v2238
        %v2240 = vpop.xlane.xlu0 %2239
        %v2241 = vsel %vm921, %v1957, -inf
        %2242 = vmax.xlane.f32.xlu0 %v2241
        %v2243 = vpop.xlane.xlu0 %2242
        %v2244 = vsel %vm921, %v2003, -inf
        %2245 = vmax.xlane.f32.xlu0 %v2244
        %v2246 = vpop.xlane.xlu0 %2245
        %v2247 = vsel %vm921, %v2049, -inf
        %2248 = vmax.xlane.f32.xlu0 %v2247
        %v2249 = vpop.xlane.xlu0 %2248
        %v2250 = vsel %vm921, %v2095, -inf
        %2251 = vmax.xlane.f32.xlu0 %v2250
        %v2252 = vpop.xlane.xlu0 %2251
        %v2253 = vsel %vm921, %v2141, -inf
        %2254 = vmax.xlane.f32.xlu0 %v2253
        %v2255 = vpop.xlane.xlu0 %2254
        %v2256 = vsel %vm921, %v2187, -inf
        %2257 = vmax.xlane.f32.xlu0 %v2256
        %v2258 = vpop.xlane.xlu0 %2257
        %v2259 = vsel %vm921, %v2233, -inf
        %2260 = vmax.xlane.f32.xlu0 %v2259
        %v2261 = vpop.xlane.xlu0 %2260
        %v2262 = vsub.f32 %v1911, %v2240
        %v2263 = vsub.f32 %v1957, %v2243
        %v2264 = vsub.f32 %v2003, %v2246
        %v2265 = vsub.f32 %v2049, %v2249
        %v2266 = vsub.f32 %v2095, %v2252
        %v2267 = vsub.f32 %v2141, %v2255
        %v2268 = vsub.f32 %v2187, %v2258
        %v2269 = vsub.f32 %v2233, %v2261
        %v2270 = vmul.f32 %v2262, 1.442695
        %v2271 = vpow.pop %v2270
        %v2272 = vmul.f32 %v2263, 1.442695
        %v2273 = vpow.pop %v2272
        %v2274 = vmul.f32 %v2264, 1.442695
        %v2275 = vpow.pop %v2274
        %v2276 = vmul.f32 %v2265, 1.442695
        %v2277 = vpow.pop %v2276
        %v2278 = vmul.f32 %v2266, 1.442695
        %v2279 = vpow.pop %v2278
        %v2280 = vmul.f32 %v2267, 1.442695
        %v2281 = vpow.pop %v2280
        %v2282 = vmul.f32 %v2268, 1.442695
        %v2283 = vpow.pop %v2282
        %v2284 = vmul.f32 %v2269, 1.442695
        %v2285 = vpow.pop %v2284
        %v2286 = vsel %vm921, %v2271, 0.0
        %2287 = vadd.xlane.f32.xlu0 %v2286
        %v2288 = vpop.xlane.xlu0 %2287
        %v2289 = vsel %vm921, %v2273, 0.0
        %2290 = vadd.xlane.f32.xlu0 %v2289
        %v2291 = vpop.xlane.xlu0 %2290
        %v2292 = vsel %vm921, %v2275, 0.0
        %2293 = vadd.xlane.f32.xlu0 %v2292
        %v2294 = vpop.xlane.xlu0 %2293
        %v2295 = vsel %vm921, %v2277, 0.0
        %2296 = vadd.xlane.f32.xlu0 %v2295
        %v2297 = vpop.xlane.xlu0 %2296
        %v2298 = vsel %vm921, %v2279, 0.0
        %2299 = vadd.xlane.f32.xlu0 %v2298
        %v2300 = vpop.xlane.xlu0 %2299
        %v2301 = vsel %vm921, %v2281, 0.0
        %2302 = vadd.xlane.f32.xlu0 %v2301
        %v2303 = vpop.xlane.xlu0 %2302
        %v2304 = vsel %vm921, %v2283, 0.0
        %2305 = vadd.xlane.f32.xlu0 %v2304
        %v2306 = vpop.xlane.xlu0 %2305
        %v2307 = vsel %vm921, %v2285, 0.0
        %2308 = vadd.xlane.f32.xlu0 %v2307
        %v2309 = vpop.xlane.xlu0 %2308
        %v2310 = vrcp.pop %v2288
        %v2311 = vrcp.pop %v2291
        %v2312 = vrcp.pop %v2294
        %v2313 = vrcp.pop %v2297
        %v2314 = vrcp.pop %v2300
        %v2315 = vrcp.pop %v2303
        %v2316 = vrcp.pop %v2306
        %v2317 = vrcp.pop %v2309
        %v2318 = vmul.f32 %v2288, %v2310
        %v2319 = vmul.f32 %v2291, %v2311
        %v2320 = vmul.f32 %v2294, %v2312
        %v2321 = vmul.f32 %v2297, %v2313
        %v2322 = vmul.f32 %v2300, %v2314
        %v2323 = vmul.f32 %v2303, %v2315
        %v2324 = vmul.f32 %v2306, %v2316
        %v2325 = vmul.f32 %v2309, %v2317
        %v2326 = vsub.f32 2.0, %v2318
        %v2327 = vsub.f32 2.0, %v2319
        %v2328 = vsub.f32 2.0, %v2320
        %v2329 = vsub.f32 2.0, %v2321
        %v2330 = vsub.f32 2.0, %v2322
        %v2331 = vsub.f32 2.0, %v2323
        %v2332 = vsub.f32 2.0, %v2324
        %v2333 = vsub.f32 2.0, %v2325
        %v2334 = vmul.f32 %v2310, %v2326
        %v2335 = vmul.f32 %v2311, %v2327
        %v2336 = vmul.f32 %v2312, %v2328
        %v2337 = vmul.f32 %v2313, %v2329
        %v2338 = vmul.f32 %v2314, %v2330
        %v2339 = vmul.f32 %v2315, %v2331
        %v2340 = vmul.f32 %v2316, %v2332
        %v2341 = vmul.f32 %v2317, %v2333
        %v2342 = vmul.f32 %v2271, %v2334
        %v2343 = vmul.f32 %v2273, %v2335
        %v2344 = vmul.f32 %v2275, %v2336
        %v2345 = vmul.f32 %v2277, %v2337
        %v2346 = vmul.f32 %v2279, %v2338
        %v2347 = vmul.f32 %v2281, %v2339
        %v2348 = vmul.f32 %v2283, %v2340
        %v2349 = vmul.f32 %v2285, %v2341
        %v2350 = vpack.c.bf16 %v2342, %v2342
        %v2351 = vpack.c.bf16 %v2343, %v2343
        %v2352 = vpack.c.bf16 %v2344, %v2344
        %v2353 = vpack.c.bf16 %v2345, %v2345
        %v2354 = vpack.c.bf16 %v2346, %v2346
        %v2355 = vpack.c.bf16 %v2347, %v2347
        %v2356 = vpack.c.bf16 %v2348, %v2348
        %v2357 = vpack.c.bf16 %v2349, %v2349
        %v2359 = vsel %vm921, %v2350, 0
        %v2362 = vsel %vm1047, %v1854, 0
        %2364 = vmatprep.subr.bf16.mxu0 0
        %2365 = vmatpush1.bf16.msra.mxu0 %v2362
        %2366 = vmatprep.subr.bf16.mxu0 0
        %2367 = vmatpush1.bf16.msra.mxu0 0
        %2368 = vmatprep.subr.bf16.mxu0 0
        %2369 = vmatpush1.bf16.msra.mxu0 0
        %2370 = vmatprep.subr.bf16.mxu0 0
        %2371 = vmatpush1.bf16.msra.mxu0 0
        %2372 = vmatprep.subr.bf16.mxu0 0
        %2373 = vmatpush1.bf16.msra.mxu0 0
        %2374 = vmatprep.subr.bf16.mxu0 0
        %2375 = vmatpush1.bf16.msra.mxu0 0
        %2376 = vmatprep.subr.bf16.mxu0 0
        %2377 = vmatpush1.bf16.msra.mxu0 0
        %2378 = vmatprep.subr.bf16.mxu0 0
        %2379 = vmatpush1.bf16.msra.mxu0 0
        %2380 = vmatprep.subr.bf16.mxu0 0
        %2381 = vmatpush1.bf16.msra.mxu0 0
        %2382 = vmatprep.subr.bf16.mxu0 0
        %2383 = vmatpush1.bf16.msra.mxu0 0
        %2384 = vmatprep.subr.bf16.mxu0 0
        %2385 = vmatpush1.bf16.msra.mxu0 0
        %2386 = vmatprep.subr.bf16.mxu0 0
        %2387 = vmatpush1.bf16.msra.mxu0 0
        %2388 = vmatprep.subr.bf16.mxu0 0
        %2389 = vmatpush1.bf16.msra.mxu0 0
        %2390 = vmatprep.subr.bf16.mxu0 0
        %2391 = vmatpush1.bf16.msra.mxu0 0
        %2392 = vmatprep.subr.bf16.mxu0 0
        %2393 = vmatpush1.bf16.msra.mxu0 0
        %2394 = vmatprep.subr.bf16.mxu0 0
        %2395 = vmatpush1.bf16.msra.mxu0 0
        %2396 = vmatprep.mubr.bf16.mxu0 0
        %2397 = vmatmul.mubr.bf16.gmra.mrb[0].mxu0 %v2359
        %v2398 = vpop.f32.mrb[0].mxu0
        %v2399 = vadd.f32 0.0, %v2398
        %v2400 = vpop.f32.mrb[0].mxu0
        %v2401 = vpop.f32.mrb[0].mxu0
        %v2402 = vpop.f32.mrb[0].mxu0
        %2403 = vdwg.mxu0
        %v2405 = vsel %vm921, %v2351, 0
        %v2408 = vsel %vm1047, %v1857, 0
        %2410 = vmatprep.subr.bf16.mxu0 0
        %2411 = vmatpush1.bf16.msra.mxu0 %v2408
        %2412 = vmatprep.subr.bf16.mxu0 0
        %2413 = vmatpush1.bf16.msra.mxu0 0
        %2414 = vmatprep.subr.bf16.mxu0 0
        %2415 = vmatpush1.bf16.msra.mxu0 0
        %2416 = vmatprep.subr.bf16.mxu0 0
        %2417 = vmatpush1.bf16.msra.mxu0 0
        %2418 = vmatprep.subr.bf16.mxu0 0
        %2419 = vmatpush1.bf16.msra.mxu0 0
        %2420 = vmatprep.subr.bf16.mxu0 0
        %2421 = vmatpush1.bf16.msra.mxu0 0
        %2422 = vmatprep.subr.bf16.mxu0 0
        %2423 = vmatpush1.bf16.msra.mxu0 0
        %2424 = vmatprep.subr.bf16.mxu0 0
        %2425 = vmatpush1.bf16.msra.mxu0 0
        %2426 = vmatprep.subr.bf16.mxu0 0
        %2427 = vmatpush1.bf16.msra.mxu0 0
        %2428 = vmatprep.subr.bf16.mxu0 0
        %2429 = vmatpush1.bf16.msra.mxu0 0
        %2430 = vmatprep.subr.bf16.mxu0 0
        %2431 = vmatpush1.bf16.msra.mxu0 0
        %2432 = vmatprep.subr.bf16.mxu0 0
        %2433 = vmatpush1.bf16.msra.mxu0 0
        %2434 = vmatprep.subr.bf16.mxu0 0
        %2435 = vmatpush1.bf16.msra.mxu0 0
        %2436 = vmatprep.subr.bf16.mxu0 0
        %2437 = vmatpush1.bf16.msra.mxu0 0
        %2438 = vmatprep.subr.bf16.mxu0 0
        %2439 = vmatpush1.bf16.msra.mxu0 0
        %2440 = vmatprep.subr.bf16.mxu0 0
        %2441 = vmatpush1.bf16.msra.mxu0 0
        %2442 = vmatprep.mubr.bf16.mxu0 0
        %2443 = vmatmul.mubr.bf16.gmra.mrb[0].mxu0 %v2405
        %v2444 = vpop.f32.mrb[0].mxu0
        %v2445 = vadd.f32 0.0, %v2444
        %v2446 = vpop.f32.mrb[0].mxu0
        %v2447 = vpop.f32.mrb[0].mxu0
        %v2448 = vpop.f32.mrb[0].mxu0
        %2449 = vdwg.mxu0
        %v2451 = vsel %vm921, %v2352, 0
        %v2454 = vsel %vm1047, %v1859, 0
        %2456 = vmatprep.subr.bf16.mxu0 0
        %2457 = vmatpush1.bf16.msra.mxu0 %v2454
        %2458 = vmatprep.subr.bf16.mxu0 0
        %2459 = vmatpush1.bf16.msra.mxu0 0
        %2460 = vmatprep.subr.bf16.mxu0 0
        %2461 = vmatpush1.bf16.msra.mxu0 0
        %2462 = vmatprep.subr.bf16.mxu0 0
        %2463 = vmatpush1.bf16.msra.mxu0 0
        %2464 = vmatprep.subr.bf16.mxu0 0
        %2465 = vmatpush1.bf16.msra.mxu0 0
        %2466 = vmatprep.subr.bf16.mxu0 0
        %2467 = vmatpush1.bf16.msra.mxu0 0
        %2468 = vmatprep.subr.bf16.mxu0 0
        %2469 = vmatpush1.bf16.msra.mxu0 0
        %2470 = vmatprep.subr.bf16.mxu0 0
        %2471 = vmatpush1.bf16.msra.mxu0 0
        %2472 = vmatprep.subr.bf16.mxu0 0
        %2473 = vmatpush1.bf16.msra.mxu0 0
        %2474 = vmatprep.subr.bf16.mxu0 0
        %2475 = vmatpush1.bf16.msra.mxu0 0
        %2476 = vmatprep.subr.bf16.mxu0 0
        %2477 = vmatpush1.bf16.msra.mxu0 0
        %2478 = vmatprep.subr.bf16.mxu0 0
        %2479 = vmatpush1.bf16.msra.mxu0 0
        %2480 = vmatprep.subr.bf16.mxu0 0
        %2481 = vmatpush1.bf16.msra.mxu0 0
        %2482 = vmatprep.subr.bf16.mxu0 0
        %2483 = vmatpush1.bf16.msra.mxu0 0
        %2484 = vmatprep.subr.bf16.mxu0 0
        %2485 = vmatpush1.bf16.msra.mxu0 0
        %2486 = vmatprep.subr.bf16.mxu0 0
        %2487 = vmatpush1.bf16.msra.mxu0 0
        %2488 = vmatprep.mubr.bf16.mxu0 0
        %2489 = vmatmul.mubr.bf16.gmra.mrb[0].mxu0 %v2451
        %v2490 = vpop.f32.mrb[0].mxu0
        %v2491 = vadd.f32 0.0, %v2490
        %v2492 = vpop.f32.mrb[0].mxu0
        %v2493 = vpop.f32.mrb[0].mxu0
        %v2494 = vpop.f32.mrb[0].mxu0
        %2495 = vdwg.mxu0
        %v2497 = vsel %vm921, %v2353, 0
        %v2500 = vsel %vm1047, %v1861, 0
        %2502 = vmatprep.subr.bf16.mxu0 0
        %2503 = vmatpush1.bf16.msra.mxu0 %v2500
        %2504 = vmatprep.subr.bf16.mxu0 0
        %2505 = vmatpush1.bf16.msra.mxu0 0
        %2506 = vmatprep.subr.bf16.mxu0 0
        %2507 = vmatpush1.bf16.msra.mxu0 0
        %2508 = vmatprep.subr.bf16.mxu0 0
        %2509 = vmatpush1.bf16.msra.mxu0 0
        %2510 = vmatprep.subr.bf16.mxu0 0
        %2511 = vmatpush1.bf16.msra.mxu0 0
        %2512 = vmatprep.subr.bf16.mxu0 0
        %2513 = vmatpush1.bf16.msra.mxu0 0
        %2514 = vmatprep.subr.bf16.mxu0 0
        %2515 = vmatpush1.bf16.msra.mxu0 0
        %2516 = vmatprep.subr.bf16.mxu0 0
        %2517 = vmatpush1.bf16.msra.mxu0 0
        %2518 = vmatprep.subr.bf16.mxu0 0
        %2519 = vmatpush1.bf16.msra.mxu0 0
        %2520 = vmatprep.subr.bf16.mxu0 0
        %2521 = vmatpush1.bf16.msra.mxu0 0
        %2522 = vmatprep.subr.bf16.mxu0 0
        %2523 = vmatpush1.bf16.msra.mxu0 0
        %2524 = vmatprep.subr.bf16.mxu0 0
        %2525 = vmatpush1.bf16.msra.mxu0 0
        %2526 = vmatprep.subr.bf16.mxu0 0
        %2527 = vmatpush1.bf16.msra.mxu0 0
        %2528 = vmatprep.subr.bf16.mxu0 0
        %2529 = vmatpush1.bf16.msra.mxu0 0
        %2530 = vmatprep.subr.bf16.mxu0 0
        %2531 = vmatpush1.bf16.msra.mxu0 0
        %2532 = vmatprep.subr.bf16.mxu0 0
        %2533 = vmatpush1.bf16.msra.mxu0 0
        %2534 = vmatprep.mubr.bf16.mxu0 0
        %2535 = vmatmul.mubr.bf16.gmra.mrb[0].mxu0 %v2497
        %v2536 = vpop.f32.mrb[0].mxu0
        %v2537 = vadd.f32 0.0, %v2536
        %v2538 = vpop.f32.mrb[0].mxu0
        %v2539 = vpop.f32.mrb[0].mxu0
        %v2540 = vpop.f32.mrb[0].mxu0
        %2541 = vdwg.mxu0
        %v2543 = vsel %vm921, %v2354, 0
        %v2546 = vsel %vm1047, %v1863, 0
        %2548 = vmatprep.subr.bf16.mxu0 0
        %2549 = vmatpush1.bf16.msra.mxu0 %v2546
        %2550 = vmatprep.subr.bf16.mxu0 0
        %2551 = vmatpush1.bf16.msra.mxu0 0
        %2552 = vmatprep.subr.bf16.mxu0 0
        %2553 = vmatpush1.bf16.msra.mxu0 0
        %2554 = vmatprep.subr.bf16.mxu0 0
        %2555 = vmatpush1.bf16.msra.mxu0 0
        %2556 = vmatprep.subr.bf16.mxu0 0
        %2557 = vmatpush1.bf16.msra.mxu0 0
        %2558 = vmatprep.subr.bf16.mxu0 0
        %2559 = vmatpush1.bf16.msra.mxu0 0
        %2560 = vmatprep.subr.bf16.mxu0 0
        %2561 = vmatpush1.bf16.msra.mxu0 0
        %2562 = vmatprep.subr.bf16.mxu0 0
        %2563 = vmatpush1.bf16.msra.mxu0 0
        %2564 = vmatprep.subr.bf16.mxu0 0
        %2565 = vmatpush1.bf16.msra.mxu0 0
        %2566 = vmatprep.subr.bf16.mxu0 0
        %2567 = vmatpush1.bf16.msra.mxu0 0
        %2568 = vmatprep.subr.bf16.mxu0 0
        %2569 = vmatpush1.bf16.msra.mxu0 0
        %2570 = vmatprep.subr.bf16.mxu0 0
        %2571 = vmatpush1.bf16.msra.mxu0 0
        %2572 = vmatprep.subr.bf16.mxu0 0
        %2573 = vmatpush1.bf16.msra.mxu0 0
        %2574 = vmatprep.subr.bf16.mxu0 0
        %2575 = vmatpush1.bf16.msra.mxu0 0
        %2576 = vmatprep.subr.bf16.mxu0 0
        %2577 = vmatpush1.bf16.msra.mxu0 0
        %2578 = vmatprep.subr.bf16.mxu0 0
        %2579 = vmatpush1.bf16.msra.mxu0 0
        %2580 = vmatprep.mubr.bf16.mxu0 0
        %2581 = vmatmul.mubr.bf16.gmra.mrb[0].mxu0 %v2543
        %v2582 = vpop.f32.mrb[0].mxu0
        %v2583 = vadd.f32 0.0, %v2582
        %v2584 = vpop.f32.mrb[0].mxu0
        %v2585 = vpop.f32.mrb[0].mxu0
        %v2586 = vpop.f32.mrb[0].mxu0
        %2587 = vdwg.mxu0
        %v2589 = vsel %vm921, %v2355, 0
        %v2592 = vsel %vm1047, %v1865, 0
        %2594 = vmatprep.subr.bf16.mxu0 0
        %2595 = vmatpush1.bf16.msra.mxu0 %v2592
        %2596 = vmatprep.subr.bf16.mxu0 0
        %2597 = vmatpush1.bf16.msra.mxu0 0
        %2598 = vmatprep.subr.bf16.mxu0 0
        %2599 = vmatpush1.bf16.msra.mxu0 0
        %2600 = vmatprep.subr.bf16.mxu0 0
        %2601 = vmatpush1.bf16.msra.mxu0 0
        %2602 = vmatprep.subr.bf16.mxu0 0
        %2603 = vmatpush1.bf16.msra.mxu0 0
        %2604 = vmatprep.subr.bf16.mxu0 0
        %2605 = vmatpush1.bf16.msra.mxu0 0
        %2606 = vmatprep.subr.bf16.mxu0 0
        %2607 = vmatpush1.bf16.msra.mxu0 0
        %2608 = vmatprep.subr.bf16.mxu0 0
        %2609 = vmatpush1.bf16.msra.mxu0 0
        %2610 = vmatprep.subr.bf16.mxu0 0
        %2611 = vmatpush1.bf16.msra.mxu0 0
        %2612 = vmatprep.subr.bf16.mxu0 0
        %2613 = vmatpush1.bf16.msra.mxu0 0
        %2614 = vmatprep.subr.bf16.mxu0 0
        %2615 = vmatpush1.bf16.msra.mxu0 0
        %2616 = vmatprep.subr.bf16.mxu0 0
        %2617 = vmatpush1.bf16.msra.mxu0 0
        %2618 = vmatprep.subr.bf16.mxu0 0
        %2619 = vmatpush1.bf16.msra.mxu0 0
        %2620 = vmatprep.subr.bf16.mxu0 0
        %2621 = vmatpush1.bf16.msra.mxu0 0
        %2622 = vmatprep.subr.bf16.mxu0 0
        %2623 = vmatpush1.bf16.msra.mxu0 0
        %2624 = vmatprep.subr.bf16.mxu0 0
        %2625 = vmatpush1.bf16.msra.mxu0 0
        %2626 = vmatprep.mubr.bf16.mxu0 0
        %2627 = vmatmul.mubr.bf16.gmra.mrb[0].mxu0 %v2589
        %v2628 = vpop.f32.mrb[0].mxu0
        %v2629 = vadd.f32 0.0, %v2628
        %v2630 = vpop.f32.mrb[0].mxu0
        %v2631 = vpop.f32.mrb[0].mxu0
        %v2632 = vpop.f32.mrb[0].mxu0
        %2633 = vdwg.mxu0
        %v2635 = vsel %vm921, %v2356, 0
        %v2638 = vsel %vm1047, %v1867, 0
        %2640 = vmatprep.subr.bf16.mxu0 0
        %2641 = vmatpush1.bf16.msra.mxu0 %v2638
        %2642 = vmatprep.subr.bf16.mxu0 0
        %2643 = vmatpush1.bf16.msra.mxu0 0
        %2644 = vmatprep.subr.bf16.mxu0 0
        %2645 = vmatpush1.bf16.msra.mxu0 0
        %2646 = vmatprep.subr.bf16.mxu0 0
        %2647 = vmatpush1.bf16.msra.mxu0 0
        %2648 = vmatprep.subr.bf16.mxu0 0
        %2649 = vmatpush1.bf16.msra.mxu0 0
        %2650 = vmatprep.subr.bf16.mxu0 0
        %2651 = vmatpush1.bf16.msra.mxu0 0
        %2652 = vmatprep.subr.bf16.mxu0 0
        %2653 = vmatpush1.bf16.msra.mxu0 0
        %2654 = vmatprep.subr.bf16.mxu0 0
        %2655 = vmatpush1.bf16.msra.mxu0 0
        %2656 = vmatprep.subr.bf16.mxu0 0
        %2657 = vmatpush1.bf16.msra.mxu0 0
        %2658 = vmatprep.subr.bf16.mxu0 0
        %2659 = vmatpush1.bf16.msra.mxu0 0
        %2660 = vmatprep.subr.bf16.mxu0 0
        %2661 = vmatpush1.bf16.msra.mxu0 0
        %2662 = vmatprep.subr.bf16.mxu0 0
        %2663 = vmatpush1.bf16.msra.mxu0 0
        %2664 = vmatprep.subr.bf16.mxu0 0
        %2665 = vmatpush1.bf16.msra.mxu0 0
        %2666 = vmatprep.subr.bf16.mxu0 0
        %2667 = vmatpush1.bf16.msra.mxu0 0
        %2668 = vmatprep.subr.bf16.mxu0 0
        %2669 = vmatpush1.bf16.msra.mxu0 0
        %2670 = vmatprep.subr.bf16.mxu0 0
        %2671 = vmatpush1.bf16.msra.mxu0 0
        %2672 = vmatprep.mubr.bf16.mxu0 0
        %2673 = vmatmul.mubr.bf16.gmra.mrb[0].mxu0 %v2635
        %v2674 = vpop.f32.mrb[0].mxu0
        %v2675 = vadd.f32 0.0, %v2674
        %v2676 = vpop.f32.mrb[0].mxu0
        %v2677 = vpop.f32.mrb[0].mxu0
        %v2678 = vpop.f32.mrb[0].mxu0
        %2679 = vdwg.mxu0
        %v2681 = vsel %vm921, %v2357, 0
        %v2684 = vsel %vm1047, %v1869, 0
        %2686 = vmatprep.subr.bf16.mxu0 0
        %2687 = vmatpush1.bf16.msra.mxu0 %v2684
        %2688 = vmatprep.subr.bf16.mxu0 0
        %2689 = vmatpush1.bf16.msra.mxu0 0
        %2690 = vmatprep.subr.bf16.mxu0 0
        %2691 = vmatpush1.bf16.msra.mxu0 0
        %2692 = vmatprep.subr.bf16.mxu0 0
        %2693 = vmatpush1.bf16.msra.mxu0 0
        %2694 = vmatprep.subr.bf16.mxu0 0
        %2695 = vmatpush1.bf16.msra.mxu0 0
        %2696 = vmatprep.subr.bf16.mxu0 0
        %2697 = vmatpush1.bf16.msra.mxu0 0
        %2698 = vmatprep.subr.bf16.mxu0 0
        %2699 = vmatpush1.bf16.msra.mxu0 0
        %2700 = vmatprep.subr.bf16.mxu0 0
        %2701 = vmatpush1.bf16.msra.mxu0 0
        %2702 = vmatprep.subr.bf16.mxu0 0
        %2703 = vmatpush1.bf16.msra.mxu0 0
        %2704 = vmatprep.subr.bf16.mxu0 0
        %2705 = vmatpush1.bf16.msra.mxu0 0
        %2706 = vmatprep.subr.bf16.mxu0 0
        %2707 = vmatpush1.bf16.msra.mxu0 0
        %2708 = vmatprep.subr.bf16.mxu0 0
        %2709 = vmatpush1.bf16.msra.mxu0 0
        %2710 = vmatprep.subr.bf16.mxu0 0
        %2711 = vmatpush1.bf16.msra.mxu0 0
        %2712 = vmatprep.subr.bf16.mxu0 0
        %2713 = vmatpush1.bf16.msra.mxu0 0
        %2714 = vmatprep.subr.bf16.mxu0 0
        %2715 = vmatpush1.bf16.msra.mxu0 0
        %2716 = vmatprep.subr.bf16.mxu0 0
        %2717 = vmatpush1.bf16.msra.mxu0 0
        %2718 = vmatprep.mubr.bf16.mxu0 0
        %2719 = vmatmul.mubr.bf16.gmra.mrb[0].mxu0 %v2681
        %v2720 = vpop.f32.mrb[0].mxu0
        %v2721 = vadd.f32 0.0, %v2720
        %v2722 = vpop.f32.mrb[0].mxu0
        %v2723 = vpop.f32.mrb[0].mxu0
        %v2724 = vpop.f32.mrb[0].mxu0
        %2725 = vdwg.mxu0
        %v2726 = vpack.c.bf16 %v2399, %v2399
        %2727 = vst.msk [vmem:[#allocation2] sm:$0xf] %vm1428, %v2726
        %v2728 = vpack.c.bf16 %v2445, %v2445
        %v2730 = vunpack.c.l.b16 %v2728
        %v2731 = vpack.c.b16 %v2730, %v2730
        %2732 = vrot.lane.b32.xlu0 %v2731, 4
        %v2733 = vpop.permute.xlu0 %2732
        %2735 = vst.msk [vmem:[#allocation2] sm:$0xf] %vm1437, %v2733
        %v2736 = vpack.c.bf16 %v2491, %v2491
        %v2738 = vunpack.c.l.b16 %v2736
        %v2739 = vpack.c.b16 %v2738, %v2738
        %2740 = vrot.lane.b32.xlu0 %v2739, 8
        %v2741 = vpop.permute.xlu0 %2740
        %2743 = vst.msk [vmem:[#allocation2] sm:$0xf] %vm1446, %v2741
        %v2744 = vpack.c.bf16 %v2537, %v2537
        %v2746 = vunpack.c.l.b16 %v2744
        %v2747 = vpack.c.b16 %v2746, %v2746
        %2748 = vrot.lane.b32.xlu0 %v2747, 12
        %v2749 = vpop.permute.xlu0 %2748
        %2751 = vst.msk [vmem:[#allocation2] sm:$0xf] %vm1455, %v2749
        %v2752 = vpack.c.bf16 %v2583, %v2583
        %v2754 = vunpack.c.l.b16 %v2752
        %v2755 = vpack.c.b16 %v2754, %v2754
        %2756 = vrot.lane.b32.xlu0 %v2755, 16
        %v2757 = vpop.permute.xlu0 %2756
        %2759 = vst.msk [vmem:[#allocation2] sm:$0xf] %vm1464, %v2757
        %v2760 = vpack.c.bf16 %v2629, %v2629
        %v2762 = vunpack.c.l.b16 %v2760
        %v2763 = vpack.c.b16 %v2762, %v2762
        %2764 = vrot.lane.b32.xlu0 %v2763, 20
        %v2765 = vpop.permute.xlu0 %2764
        %2767 = vst.msk [vmem:[#allocation2] sm:$0xf] %vm1473, %v2765
        %v2768 = vpack.c.bf16 %v2675, %v2675
        %v2770 = vunpack.c.l.b16 %v2768
        %v2771 = vpack.c.b16 %v2770, %v2770
        %2772 = vrot.lane.b32.xlu0 %v2771, 24
        %v2773 = vpop.permute.xlu0 %2772
        %2775 = vst.msk [vmem:[#allocation2] sm:$0xf] %vm1482, %v2773
        %v2776 = vpack.c.bf16 %v2721, %v2721
        %v2778 = vunpack.c.l.b16 %v2776
        %v2779 = vpack.c.b16 %v2778, %v2778
        %2780 = vrot.lane.b32.xlu0 %v2779, 28
        %v2781 = vpop.permute.xlu0 %2780
        %2783 = vst.msk [vmem:[#allocation2] sm:$0xf] %vm1491, %v2781
        %v2784 = vld [vmem:[#allocation2] sm:$0xf]
        %s2785 = scalar_lea.vmem [#allocation11], 64
        %v2786 = vld [vmem:[%s2785] sm:$0xf]
        %v2787 = vld [vmem:[%s2785 + $0x4] sm:$0xf]
        %v2788 = vld [vmem:[%s2785 + $0x8] sm:$0xf]
        %v2789 = vld [vmem:[%s2785 + $0xc] sm:$0xf]
        %v2790 = vlaneseq
        %v2791 = vshrl.u32 %v2790, 7
        %v2792 = vsub.s32 4, %v2791
        %v2793 = vrot.slane %v427, %v2792
        %v2798 = vunpack.c.l.b16 %v2786
        %v2799 = vunpack.c.l.b16 %v2787
        %v2800 = vunpack.c.l.b16 %v2788
        %v2801 = vunpack.c.l.b16 %v2789
        %v2802 = vpack.c.b16 %v2799, %v2798
        %v2803 = vpack.c.b16 %v2801, %v2800
        %v2807 = vsel %vm428, %v2784, 0
        %2809 = vmatprep.subr.bf16.mxu0 0
        %2810 = vmatpush1.bf16.msra.mxu0 %v2802
        %2811 = vmatprep.subr.bf16.mxu0 0
        %2812 = vmatpush1.bf16.msra.mxu0 %v2803
        %2813 = vmatprep.subr.bf16.mxu0 0
        %2814 = vmatpush1.bf16.msra.mxu0 0
        %2815 = vmatprep.subr.bf16.mxu0 0
        %2816 = vmatpush1.bf16.msra.mxu0 0
        %2817 = vmatprep.subr.bf16.mxu0 0
        %2818 = vmatpush1.bf16.msra.mxu0 0
        %2819 = vmatprep.subr.bf16.mxu0 0
        %2820 = vmatpush1.bf16.msra.mxu0 0
        %2821 = vmatprep.subr.bf16.mxu0 0
        %2822 = vmatpush1.bf16.msra.mxu0 0
        %2823 = vmatprep.subr.bf16.mxu0 0
        %2824 = vmatpush1.bf16.msra.mxu0 0
        %2825 = vmatprep.subr.bf16.mxu0 0
        %2826 = vmatpush1.bf16.msra.mxu0 0
        %2827 = vmatprep.subr.bf16.mxu0 0
        %2828 = vmatpush1.bf16.msra.mxu0 0
        %2829 = vmatprep.subr.bf16.mxu0 0
        %2830 = vmatpush1.bf16.msra.mxu0 0
        %2831 = vmatprep.subr.bf16.mxu0 0
        %2832 = vmatpush1.bf16.msra.mxu0 0
        %2833 = vmatprep.subr.bf16.mxu0 0
        %2834 = vmatpush1.bf16.msra.mxu0 0
        %2835 = vmatprep.subr.bf16.mxu0 0
        %2836 = vmatpush1.bf16.msra.mxu0 0
        %2837 = vmatprep.subr.bf16.mxu0 0
        %2838 = vmatpush1.bf16.msra.mxu0 0
        %2839 = vmatprep.subr.bf16.mxu0 0
        %2840 = vmatpush1.bf16.msra.mxu0 0
        %2841 = vmatprep.mubr.bf16.mxu0 0
        %2842 = vmatmul.mubr.bf16.gmra.mrb[0].mxu0 %v2807
        %v2843 = vpop.f32.mrb[0].mxu0
        %v2844 = vadd.f32 %v2793, %v2843
        %v2845 = vpop.f32.mrb[0].mxu0
        %v2846 = vpop.f32.mrb[0].mxu0
        %v2847 = vpop.f32.mrb[0].mxu0
        %2848 = vdwg.mxu0
        %v2849 = vadd.f32 %v1557, %v2844
        %v2850 = vsel %vm428, %v2849, 0.0
        %2851 = vadd.xlane.f32.xlu0 %v2850
        %v2852 = vpop.xlane.xlu0 %2851
        %v2853 = vmul.f32 %v2852, %v432
        %v2854 = vsub.f32 %v2849, %v2853
        %v2855 = vmul.f32 %v2854, %v2854
        %v2856 = vsel %vm428, %v2855, 0.0
        %2857 = vadd.xlane.f32.xlu0 %v2856
        %v2858 = vpop.xlane.xlu0 %2857
        %v2859 = vmul.f32 %v2858, %v432
        %v2860 = vadd.f32 %v2859, 1e-05
        %v2861 = vrsqrt.pop %v2860
        %v2862 = vmul.f32 %v2854, %v2861
        %v2863 = vlaneseq
        %v2864 = vshrl.u32 %v2863, 7
        %v2865 = vsub.s32 0, %v2864
        %v2866 = vrot.slane %v426, %v2865
        %v2867 = vmul.f32 %v2862, %v2866
        %v2868 = vlaneseq
        %v2869 = vshrl.u32 %v2868, 7
        %v2870 = vsub.s32 1, %v2869
        %v2871 = vrot.slane %v426, %v2870
        %v2872 = vadd.f32 %v2867, %v2871
        %s2873 = scalar_lea.vmem [#allocation11], 80
        %v2874 = vld [vmem:[%s2873] sm:$0xf]
        %v2875 = vld [vmem:[%s2873 + $0x4] sm:$0xf]
        %v2876 = vld [vmem:[%s2873 + $0x8] sm:$0xf]
        %v2877 = vld [vmem:[%s2873 + $0xc] sm:$0xf]
        %v2878 = vpack.c.bf16 %v2872, %v2872
        %v2879 = vlaneseq
        %v2880 = vshrl.u32 %v2879, 7
        %v2881 = vsub.s32 5, %v2880
        %v2882 = vrot.slane %v427, %v2881
        %v2887 = vunpack.c.l.b16 %v2874
        %v2888 = vunpack.c.l.b16 %v2875
        %v2889 = vunpack.c.l.b16 %v2876
        %v2890 = vunpack.c.l.b16 %v2877
        %v2891 = vpack.c.b16 %v2888, %v2887
        %v2892 = vpack.c.b16 %v2890, %v2889
        %v2896 = vsel %vm428, %v2878, 0
        %2898 = vmatprep.subr.bf16.mxu0 0
        %2899 = vmatpush1.bf16.msra.mxu0 %v2891
        %2900 = vmatprep.subr.bf16.mxu0 0
        %2901 = vmatpush1.bf16.msra.mxu0 %v2892
        %2902 = vmatprep.subr.bf16.mxu0 0
        %2903 = vmatpush1.bf16.msra.mxu0 0
        %2904 = vmatprep.subr.bf16.mxu0 0
        %2905 = vmatpush1.bf16.msra.mxu0 0
        %2906 = vmatprep.subr.bf16.mxu0 0
        %2907 = vmatpush1.bf16.msra.mxu0 0
        %2908 = vmatprep.subr.bf16.mxu0 0
        %2909 = vmatpush1.bf16.msra.mxu0 0
        %2910 = vmatprep.subr.bf16.mxu0 0
        %2911 = vmatpush1.bf16.msra.mxu0 0
        %2912 = vmatprep.subr.bf16.mxu0 0
        %2913 = vmatpush1.bf16.msra.mxu0 0
        %2914 = vmatprep.subr.bf16.mxu0 0
        %2915 = vmatpush1.bf16.msra.mxu0 0
        %2916 = vmatprep.subr.bf16.mxu0 0
        %2917 = vmatpush1.bf16.msra.mxu0 0
        %2918 = vmatprep.subr.bf16.mxu0 0
        %2919 = vmatpush1.bf16.msra.mxu0 0
        %2920 = vmatprep.subr.bf16.mxu0 0
        %2921 = vmatpush1.bf16.msra.mxu0 0
        %2922 = vmatprep.subr.bf16.mxu0 0
        %2923 = vmatpush1.bf16.msra.mxu0 0
        %2924 = vmatprep.subr.bf16.mxu0 0
        %2925 = vmatpush1.bf16.msra.mxu0 0
        %2926 = vmatprep.subr.bf16.mxu0 0
        %2927 = vmatpush1.bf16.msra.mxu0 0
        %2928 = vmatprep.subr.bf16.mxu0 0
        %2929 = vmatpush1.bf16.msra.mxu0 0
        %2930 = vmatprep.mubr.bf16.mxu0 0
        %2931 = vmatmul.mubr.bf16.gmra.mrb[0].mxu0 %v2896
        %v2932 = vpop.f32.mrb[0].mxu0
        %v2933 = vadd.f32 %v2882, %v2932
        %v2934 = vpop.f32.mrb[0].mxu0
        %v2935 = vpop.f32.mrb[0].mxu0
        %v2936 = vpop.f32.mrb[0].mxu0
        %2937 = vdwg.mxu0
        %v2938 = vmul.f32 %v2933, 0.5
        %v2939 = vmul.f32 %v2933, %v2933
        %v2940 = vmul.f32 %v2939, %v2933
        %v2941 = vmul.f32 %v2940, 0.044715
        %v2942 = vadd.f32 %v2933, %v2941
        %v2943 = vmul.f32 %v2942, 0.7978846
        %v2944 = vtanh.pop %v2943
        %v2945 = vadd.f32 %v2944, 1.0
        %v2946 = vmul.f32 %v2938, %v2945
        %s2947 = scalar_lea.vmem [#allocation11], 96
        %v2948 = vld [vmem:[%s2947] sm:$0xf]
        %v2949 = vld [vmem:[%s2947 + $0x4] sm:$0xf]
        %v2950 = vld [vmem:[%s2947 + $0x8] sm:$0xf]
        %v2951 = vld [vmem:[%s2947 + $0xc] sm:$0xf]
        %v2952 = vpack.c.bf16 %v2946, %v2946
        %v2953 = vlaneseq
        %v2954 = vshrl.u32 %v2953, 7
        %v2955 = vsub.s32 6, %v2954
        %v2956 = vrot.slane %v427, %v2955
        %v2961 = vunpack.c.l.b16 %v2948
        %v2962 = vunpack.c.l.b16 %v2949
        %v2963 = vunpack.c.l.b16 %v2950
        %v2964 = vunpack.c.l.b16 %v2951
        %v2965 = vpack.c.b16 %v2962, %v2961
        %v2966 = vpack.c.b16 %v2964, %v2963
        %v2970 = vsel %vm428, %v2952, 0
        %2972 = vmatprep.subr.bf16.mxu0 0
        %2973 = vmatpush1.bf16.msra.mxu0 %v2965
        %2974 = vmatprep.subr.bf16.mxu0 0
        %2975 = vmatpush1.bf16.msra.mxu0 %v2966
        %2976 = vmatprep.subr.bf16.mxu0 0
        %2977 = vmatpush1.bf16.msra.mxu0 0
        %2978 = vmatprep.subr.bf16.mxu0 0
        %2979 = vmatpush1.bf16.msra.mxu0 0
        %2980 = vmatprep.subr.bf16.mxu0 0
        %2981 = vmatpush1.bf16.msra.mxu0 0
        %2982 = vmatprep.subr.bf16.mxu0 0
        %2983 = vmatpush1.bf16.msra.mxu0 0
        %2984 = vmatprep.subr.bf16.mxu0 0
        %2985 = vmatpush1.bf16.msra.mxu0 0
        %2986 = vmatprep.subr.bf16.mxu0 0
        %2987 = vmatpush1.bf16.msra.mxu0 0
        %2988 = vmatprep.subr.bf16.mxu0 0
        %2989 = vmatpush1.bf16.msra.mxu0 0
        %2990 = vmatprep.subr.bf16.mxu0 0
        %2991 = vmatpush1.bf16.msra.mxu0 0
        %2992 = vmatprep.subr.bf16.mxu0 0
        %2993 = vmatpush1.bf16.msra.mxu0 0
        %2994 = vmatprep.subr.bf16.mxu0 0
        %2995 = vmatpush1.bf16.msra.mxu0 0
        %2996 = vmatprep.subr.bf16.mxu0 0
        %2997 = vmatpush1.bf16.msra.mxu0 0
        %2998 = vmatprep.subr.bf16.mxu0 0
        %2999 = vmatpush1.bf16.msra.mxu0 0
        %3000 = vmatprep.subr.bf16.mxu0 0
        %3001 = vmatpush1.bf16.msra.mxu0 0
        %3002 = vmatprep.subr.bf16.mxu0 0
        %3003 = vmatpush1.bf16.msra.mxu0 0
        %3004 = vmatprep.mubr.bf16.mxu0 0
        %3005 = vmatmul.mubr.bf16.gmra.mrb[0].mxu0 %v2970
        %v3006 = vpop.f32.mrb[0].mxu0
        %v3007 = vadd.f32 %v2956, %v3006
        %v3008 = vpop.f32.mrb[0].mxu0
        %v3009 = vpop.f32.mrb[0].mxu0
        %v3010 = vpop.f32.mrb[0].mxu0
        %3011 = vdwg.mxu0
        %v3012 = vadd.f32 %v2849, %v3007
        %3013 = vst.msk [vmem:[%s420] sm:$0xff] %vm428, %v3012
        %s3014 = sand.u32 %s220, 1
        %s3015 = scalar_lea.sflag [#allocation5], %s3014
        %s3016 = sand.u32 %s220, 1
        %s3017 = smul.addr %s3016, 8
        %s3018 = scalar_lea.vmem [#allocation12], %s3017
        // Predicated region
        $region73: #{tpu_custom_call.1} parent=51 // pred_check
          %p3019 = pneg %p230
        $region74: #{tpu_custom_call.1} parent=51 // pred_check_branch
          %3021 = sbr.rel (%p3019) target = $region76
        $region75: #{tpu_custom_call.1} parent=51 // pred_region
          %s3023 = ssub.s32 128, 128
          %3024 = vsyncadd %s3015, %s3023
          %s3025 = smul.addr %s29, 128
          %s3026 = scalar_lea.hbm %s8, %s3025
          %s3028 = sshll.u32 %s3018, 4
          %s3029 = int_to_ptr.vmem [resolvable:$true] %s3028
          %3031 = dma.vmem_to_hbm [thread:$0]  %s3029, 128, %s3026, %s3015
        $region76: #{tpu_custom_call.1} parent=51 // pred_fallthru
          _
      $region52: #{tpu_custom_call.1} parent=5 // pred_fallthru
        _
      %p3032 = scmp.le.s32.totalorder 2, %s24
      // Predicated region
      $region77: #{tpu_custom_call.1} parent=5 // pred_check
        %p3033 = pneg %p3032
      $region78: #{tpu_custom_call.1} parent=5 // pred_check_branch
        %3035 = sbr.rel (%p3033) target = $region80
      $region79: #{tpu_custom_call.1} parent=5 // pred_region
        %s3036 = ssub.s32 %s24, 2
        // Predicated region
        $region81: #{tpu_custom_call.1} parent=79 // pred_check
          %p3037 = pneg %p236
        $region82: #{tpu_custom_call.1} parent=79 // pred_check_branch
          %3039 = sbr.rel (%p3037) target = $region84
        $region83: #{tpu_custom_call.1} parent=79 // pred_region
          %s3040 = sand.u32 %s221, 1
          %s3041 = scalar_lea.sflag [#allocation5], %s3040
          %s3042 = sand.u32 %s221, 1
          %s3043 = smul.addr %s3042, 8
          %s3044 = scalar_lea.vmem [#allocation12], %s3043
          %3045 = dma.done %s3041, 128
        $region84: #{tpu_custom_call.1} parent=79 // pred_fallthru
          _
      $region80: #{tpu_custom_call.1} parent=5 // pred_fallthru
        _
    $region6: #{tpu_custom_call.1} parent=1 // loop_footer
      %s28 = sadd.s32 1, %s24
    $region7: #{tpu_custom_call.1} parent=1 // loop_footer_branch
      %23 = sbr.rel target = $region3
    $region8: #{tpu_custom_call.1} parent=1 // loop_exit
      _
    %3046 = vsyncpa [#allocation4], 1
    %s3047 = scalar_lea.sflag [#allocation4], 1
    %3048 = vsyncpa %s3047, 1
    %3049 = vsyncpa [#allocation7], 1
    %s3050 = scalar_lea.sflag [#allocation7], 1
    %3051 = vsyncpa %s3050, 1
    %3052 = vsyncpa [#allocation10], 1
    %3053 = vsyncpa [#allocation5], 1
    %s3054 = scalar_lea.sflag [#allocation5], 1
    %3055 = vsyncpa %s3054, 1

</llo_original>
